<compile_context>
chip_gen: v5e
topology: v5e:2x2
jax: 0.10.0
libtpu: 0.0.40
codegen_flags: <defaults>
</compile_context>

<pallas_src>
import functools
import math

import jax
import jax.numpy as jnp
from jax.experimental import pallas as pl
from jax.experimental.pallas import tpu as pltpu

_PAR = pltpu.CompilerParams(dimension_semantics=("parallel",))


def _row_tile(M):
    """Largest 8-aligned row tile that still gives >=2 grid steps (keeps both
    v7x TensorCores fed); falls back to the full extent."""
    for t in (512, 256, 128, 64, 32, 16, 8):
        if M % t == 0 and M // t >= 2:
            return t
    return M


# ----------------------------- in-kernel helpers ---------------------------

def _ln(x, g, b, eps):
    mu = jnp.mean(x, axis=-1, keepdims=True)
    xc = x - mu
    var = jnp.mean(xc * xc, axis=-1, keepdims=True)
    return xc * jax.lax.rsqrt(var + eps) * g + b


def _gelu(x):
    # TODO(synk): tanh approximation of GELU (torch default is erf-exact).
    return 0.5 * x * (1.0 + jnp.tanh(0.7978845608028654 * (x + 0.044715 * x * x * x)))


def _bf16_dot(a, b):
    # bf16 MXU operands, f32 accumulate (right for v5e/v6e/v7x MXUs).
    return jnp.dot(a.astype(jnp.bfloat16), b.astype(jnp.bfloat16),
                   preferred_element_type=jnp.float32)


# ----------------------------- Pallas kernels ------------------------------

def _fused_linear_kernel(*refs, act, has_pre_ln, has_post_ln, eps):
    o_ref = refs[-1]
    x_ref, w_ref, b_ref = refs[0], refs[1], refs[2]
    i = 3
    x = x_ref[...].astype(jnp.float32)
    if has_pre_ln:
        x = _ln(x, refs[i][...], refs[i + 1][...], eps)
        i += 2
    acc = _bf16_dot(x, w_ref[...]) + b_ref[...]
    if act == "gelu":
        acc = _gelu(acc)
    if has_post_ln:
        acc = _ln(acc, refs[i][...], refs[i + 1][...], eps)
        i += 2
    o_ref[...] = acc.astype(o_ref.dtype)


def fused_linear(x, w, b, *, act=None, pre_ln=None, post_ln=None, eps=1e-6):
    """(M,K)@(K,N)+b with optional fused pre-LN (over K), GELU, post-LN (over N).
    Gridded over row tiles only; K/N blocks stay resident (fine at these sizes)."""
    M, K = x.shape
    N = w.shape[1]
    tm = _row_tile(M)
    args = [x, w, b.reshape(1, N)]
    in_specs = [
        pl.BlockSpec((tm, K), lambda i: (i, 0)),
        pl.BlockSpec((K, N), lambda i: (0, 0)),
        pl.BlockSpec((1, N), lambda i: (0, 0)),
    ]
    if pre_ln is not None:
        g, gb = pre_ln
        args += [g.reshape(1, K), gb.reshape(1, K)]
        in_specs += [pl.BlockSpec((1, K), lambda i: (0, 0)),
                     pl.BlockSpec((1, K), lambda i: (0, 0))]
    if post_ln is not None:
        g, gb = post_ln
        args += [g.reshape(1, N), gb.reshape(1, N)]
        in_specs += [pl.BlockSpec((1, N), lambda i: (0, 0)),
                     pl.BlockSpec((1, N), lambda i: (0, 0))]
    # TODO(synk): full-scale dims (768x3072, vocab 7644) need 256x256 tiles plus a
    #             K grid axis ("arbitrary") with a VMEM f32 accumulator (pl.when init).
    return pl.pallas_call(
        functools.partial(_fused_linear_kernel, act=act,
                          has_pre_ln=pre_ln is not None,
                          has_post_ln=post_ln is not None, eps=eps),
        out_shape=jax.ShapeDtypeStruct((M, N), x.dtype),
        grid=(M // tm,),
        in_specs=in_specs,
        out_specs=pl.BlockSpec((tm, N), lambda i: (i, 0)),
        compiler_params=_PAR,
    )(*args)


def _fused_mlp_kernel(y_ref, res_ref, g_ref, gb_ref, w1_ref, b1_ref,
                      w2_ref, b2_ref, o_ref, *, eps):
    y = _ln(y_ref[...].astype(jnp.float32), g_ref[...], gb_ref[...], eps)
    h = _gelu(_bf16_dot(y, w1_ref[...]) + b1_ref[...])
    z = _bf16_dot(h, w2_ref[...]) + b2_ref[...]
    o_ref[...] = (res_ref[...].astype(jnp.float32) + z).astype(o_ref.dtype)


def fused_mlp(y, res, g, gb, w1, b1, w2, b2, eps=1e-6):
    """res + Linear2(GELU(Linear1(LN(y)))) in one kernel.
    Used for the ConvNeXt pw1/pw2 block body and the ViT MLP block."""
    M, C = y.shape
    H = w1.shape[1]
    tm = _row_tile(M)
    return pl.pallas_call(
        functools.partial(_fused_mlp_kernel, eps=eps),
        out_shape=jax.ShapeDtypeStruct((M, C), y.dtype),
        grid=(M // tm,),
        in_specs=[
            pl.BlockSpec((tm, C), lambda i: (i, 0)),
            pl.BlockSpec((tm, C), lambda i: (i, 0)),
            pl.BlockSpec((1, C), lambda i: (0, 0)),
            pl.BlockSpec((1, C), lambda i: (0, 0)),
            pl.BlockSpec((C, H), lambda i: (0, 0)),
            pl.BlockSpec((1, H), lambda i: (0, 0)),
            pl.BlockSpec((H, C), lambda i: (0, 0)),
            pl.BlockSpec((1, C), lambda i: (0, 0)),
        ],
        out_specs=pl.BlockSpec((tm, C), lambda i: (i, 0)),
        compiler_params=_PAR,
    )(y, res, g.reshape(1, C), gb.reshape(1, C), w1, b1.reshape(1, H),
      w2, b2.reshape(1, C))


def _layernorm_kernel(x_ref, w_ref, b_ref, o_ref, *, eps):
    o_ref[...] = _ln(x_ref[...].astype(jnp.float32), w_ref[...], b_ref[...],
                     eps).astype(o_ref.dtype)


def layernorm(x, w, b, eps=1e-6):
    M, C = x.shape
    tm = _row_tile(M)
    return pl.pallas_call(
        functools.partial(_layernorm_kernel, eps=eps),
        out_shape=jax.ShapeDtypeStruct((M, C), x.dtype),
        grid=(M // tm,),
        in_specs=[pl.BlockSpec((tm, C), lambda i: (i, 0)),
                  pl.BlockSpec((1, C), lambda i: (0, 0)),
                  pl.BlockSpec((1, C), lambda i: (0, 0))],
        out_specs=pl.BlockSpec((tm, C), lambda i: (i, 0)),
        compiler_params=_PAR,
    )(x, w.reshape(1, C), b.reshape(1, C))


def _dwconv_kernel(xp_ref, w_ref, b_ref, o_ref, *, H, W):
    # 49 taps read as static sub-window loads from the *ref* (no big value copies),
    # accumulated in an f32 value.
    C = o_ref.shape[-1]
    w = w_ref[...].astype(jnp.float32)               # (7, 7, C) -- tiny
    acc = jnp.zeros((H, W, C), jnp.float32)
    for dy in range(7):
        for dx in range(7):
            tap = xp_ref[0, pl.ds(dy, H), pl.ds(dx, W), :].astype(jnp.float32)
            acc = acc + tap * w[dy, dx, :]
    o_ref[0] = (acc + b_ref[...]).astype(o_ref.dtype)


def dwconv7x7(x, w, b):
    """Depthwise 7x7 conv, pad=3, stride=1, NHWC.  w:(7,7,C)  b:(C,)."""
    B, H, W, C = x.shape
    # TODO(synk): halo padding via a small HBM jnp.pad; at full scale fold the halo
    #             into the BlockSpec/index_map and pack W into lanes (C<128 wastes lanes).
    xp = jnp.pad(x, ((0, 0), (3, 3), (3, 3), (0, 0)))
    return pl.pallas_call(
        functools.partial(_dwconv_kernel, H=H, W=W),
        out_shape=jax.ShapeDtypeStruct((B, H, W, C), x.dtype),
        grid=(B,),
        in_specs=[pl.BlockSpec((1, H + 6, W + 6, C), lambda i: (i, 0, 0, 0)),
                  pl.BlockSpec((7, 7, C), lambda i: (0, 0, 0)),
                  pl.BlockSpec((1, C), lambda i: (0, 0))],
        out_specs=pl.BlockSpec((1, H, W, C), lambda i: (i, 0, 0, 0)),
        compiler_params=_PAR,
    )(xp, w, b.reshape(1, C))


def _vit_attn_kernel(tok_ref, g_ref, gb_ref, wq_ref, bq_ref, wk_ref, bk_ref,
                     wv_ref, bv_ref, wo_ref, bo_ref, o_ref, *, heads, eps):
    tok = tok_ref[0].astype(jnp.float32)             # (N, E)
    y = _ln(tok, g_ref[...], gb_ref[...], eps)
    q = _bf16_dot(y, wq_ref[...]) + bq_ref[...]
    k = _bf16_dot(y, wk_ref[...]) + bk_ref[...]
    v = _bf16_dot(y, wv_ref[...]) + bv_ref[...]
    E = q.shape[-1]
    hd = E // heads
    scale = 1.0 / math.sqrt(hd)
    outs = []
    for h in range(heads):
        sl = slice(h * hd, (h + 1) * hd)
        qh, kh, vh = q[:, sl], k[:, sl], v[:, sl]
        # contract last dim of q against last dim of k -> no explicit k.T relayout
        s = jax.lax.dot_general(
            qh.astype(jnp.bfloat16), kh.astype(jnp.bfloat16),
            (((1,), (1,)), ((), ())),
            preferred_element_type=jnp.float32) * scale
        m = jnp.max(s, axis=-1, keepdims=True)
        p = jnp.exp(s - m)
        p = p * pl.reciprocal(jnp.sum(p, axis=-1, keepdims=True), approx=True)
        outs.append(_bf16_dot(p, vh))
    attn = jnp.concatenate(outs, axis=-1)            # (N, E)
    o = _bf16_dot(attn, wo_ref[...]) + bo_ref[...]
    o_ref[0] = (tok + o).astype(o_ref.dtype)


def vit_attention(tok, g, gb, wq, bq, wk, bk, wv, bv, wo, bo, heads, eps=1e-6):
    """Fused pre-LN multi-head self-attention layer (QKV + attn + O + residual),
    one kernel gridded over batch."""
    B, N, E = tok.shape
    vec = lambda a: a.reshape(1, E)
    tok_spec = pl.BlockSpec((1, N, E), lambda i: (i, 0, 0))
    mat_spec = pl.BlockSpec((E, E), lambda i: (0, 0))
    vec_spec = pl.BlockSpec((1, E), lambda i: (0, 0))
    return pl.pallas_call(
        functools.partial(_vit_attn_kernel, heads=heads, eps=eps),
        out_shape=jax.ShapeDtypeStruct((B, N, E), tok.dtype),
        grid=(B,),
        in_specs=[tok_spec, vec_spec, vec_spec,
                  mat_spec, vec_spec, mat_spec, vec_spec,
                  mat_spec, vec_spec, mat_spec, vec_spec],
        out_specs=tok_spec,
        compiler_params=_PAR,
    )(tok, vec(g), vec(gb), wq, vec(bq), wk, vec(bk), wv, vec(bv), wo, vec(bo))


def _argmax_kernel(x_ref, o_ref):
    # argmax(softmax(x)) == argmax(x): softmax is skipped (only ids are returned).
    x = x_ref[...].astype(jnp.float32)
    m = jnp.max(x, axis=-1, keepdims=True)
    ids = jax.lax.broadcasted_iota(jnp.int32, x.shape, 1)
    first = jnp.min(jnp.where(x >= m, ids, x.shape[-1]),
                    axis=-1, keepdims=True)          # first-occurrence argmax
    o_ref[...] = first.astype(jnp.int32)


def argmax_last(logits):
    M, V = logits.shape
    tm = _row_tile(M)
    return pl.pallas_call(
        _argmax_kernel,
        out_shape=jax.ShapeDtypeStruct((M, 1), jnp.int32),
        grid=(M // tm,),
        in_specs=[pl.BlockSpec((tm, V), lambda i: (i, 0))],
        out_specs=pl.BlockSpec((tm, 1), lambda i: (i, 0)),
        compiler_params=_PAR,
    )(logits)


# ----------------------------- model glue ----------------------------------

DIMS = (32, 64)          # ConvNeXt stage dims (scaled)
EMBED = 64               # ViT embed dim (scaled)
HEADS = 2
DEPTH = 2                # ViT depth (scaled)
VOCAB = 256              # num_tokens (scaled from 7644)


def _init(key, shape, scale=0.02):
    return scale * jax.random.normal(key, shape, jnp.float32)


def patchify(x, p):
    """NHWC -> (B, H/p, W/p, p*p*C) non-overlapping patches (stride==kernel conv)."""
    B, H, W, C = x.shape
    x = x.reshape(B, H // p, p, W // p, p, C)
    x = x.transpose(0, 1, 3, 2, 4, 5)
    return x.reshape(B, H // p, W // p, p * p * C)


def make_params(key):
    ks = iter(jax.random.split(key, 64))
    p = {}
    # ConvNeXt stem: 4x4/4 conv + LN
    p["stem_w"] = _init(next(ks), (4 * 4 * 3, DIMS[0]))
    p["stem_b"] = jnp.zeros((DIMS[0],))
    p["stem_ln_w"] = jnp.ones((DIMS[0],)); p["stem_ln_b"] = jnp.zeros((DIMS[0],))
    # ConvNeXt blocks (one per stage)
    for s, d in enumerate(DIMS):
        p[f"blk{s}_dw_w"] = _init(next(ks), (7, 7, d))
        p[f"blk{s}_dw_b"] = jnp.zeros((d,))
        p[f"blk{s}_ln_w"] = jnp.ones((d,)); p[f"blk{s}_ln_b"] = jnp.zeros((d,))
        p[f"blk{s}_pw1_w"] = _init(next(ks), (d, 4 * d))
        p[f"blk{s}_pw1_b"] = jnp.zeros((4 * d,))
        gamma = 0.1  # layer-scale, folded into pwconv2 weights
        p[f"blk{s}_pw2_w"] = _init(next(ks), (4 * d, d)) * gamma
        p[f"blk{s}_pw2_b"] = jnp.zeros((d,))
    # downsample between stages: LN + 2x2/2 conv
    p["ds_ln_w"] = jnp.ones((DIMS[0],)); p["ds_ln_b"] = jnp.zeros((DIMS[0],))
    p["ds_w"] = _init(next(ks), (2 * 2 * DIMS[0], DIMS[1]))
    p["ds_b"] = jnp.zeros((DIMS[1],))
    # ViTSTR
    ntok = 16
    p["vit_proj_w"] = _init(next(ks), (DIMS[1], EMBED)); p["vit_proj_b"] = jnp.zeros((EMBED,))
    p["vit_pos"] = _init(next(ks), (1, ntok, EMBED))
    for l in range(DEPTH):
        p[f"vit{l}_ln1_w"] = jnp.ones((EMBED,)); p[f"vit{l}_ln1_b"] = jnp.zeros((EMBED,))
        for nm in ("q", "k", "v", "o"):
            p[f"vit{l}_{nm}_w"] = _init(next(ks), (EMBED, EMBED))
            p[f"vit{l}_{nm}_b"] = jnp.zeros((EMBED,))
        p[f"vit{l}_ln2_w"] = jnp.ones((EMBED,)); p[f"vit{l}_ln2_b"] = jnp.zeros((EMBED,))
        p[f"vit{l}_mlp1_w"] = _init(next(ks), (EMBED, 4 * EMBED))
        p[f"vit{l}_mlp1_b"] = jnp.zeros((4 * EMBED,))
        p[f"vit{l}_mlp2_w"] = _init(next(ks), (4 * EMBED, EMBED))
        p[f"vit{l}_mlp2_b"] = jnp.zeros((EMBED,))
    p["vit_ln_w"] = jnp.ones((EMBED,)); p["vit_ln_b"] = jnp.zeros((EMBED,))
    p["head_w"] = _init(next(ks), (EMBED, VOCAB)); p["head_b"] = jnp.zeros((VOCAB,))
    return p


def convnext_block(x, p, s):
    B, H, W, C = x.shape
    y = dwconv7x7(x, p[f"blk{s}_dw_w"], p[f"blk{s}_dw_b"])
    # LN + pw1(GELU) + pw2(*gamma) + residual fused into one kernel
    out = fused_mlp(y.reshape(B * H * W, C), x.reshape(B * H * W, C),
                    p[f"blk{s}_ln_w"], p[f"blk{s}_ln_b"],
                    p[f"blk{s}_pw1_w"], p[f"blk{s}_pw1_b"],
                    p[f"blk{s}_pw2_w"], p[f"blk{s}_pw2_b"])
    return out.reshape(B, H, W, C)


def forward(params, x_nchw):
    B = x_nchw.shape[0]
    x = jnp.transpose(x_nchw, (0, 2, 3, 1))          # NCHW -> NHWC
    # --- ConvNeXt stem: 4x4/4 conv (patchify + matmul) with fused post-LN ---
    xp = patchify(x, 4)                              # (B, 8, 8, 48)
    _, Hs, Ws, K = xp.shape
    t = fused_linear(xp.reshape(B * Hs * Ws, K), params["stem_w"], params["stem_b"],
                     post_ln=(params["stem_ln_w"], params["stem_ln_b"]))
    x = t.reshape(B, Hs, Ws, DIMS[0])
    # --- stage 0 ---
    x = convnext_block(x, params, 0)
    # --- downsample: LN + 2x2/2 conv ---
    _, H, W, C = x.shape
    t = layernorm(x.reshape(B * H * W, C), params["ds_ln_w"], params["ds_ln_b"])
    tp = patchify(t.reshape(B, H, W, C), 2)
    _, H2, W2, K2 = tp.shape
    t = fused_linear(tp.reshape(B * H2 * W2, K2), params["ds_w"], params["ds_b"])
    x = t.reshape(B, H2, W2, DIMS[1])
    # --- stage 1 ---
    x = convnext_block(x, params, 1)
    # --- ViTSTR over CNN features ---
    _, H, W, C = x.shape
    N = H * W
    t = fused_linear(x.reshape(B * N, C), params["vit_proj_w"], params["vit_proj_b"])
    tok = t.reshape(B, N, EMBED) + params["vit_pos"]
    for l in range(DEPTH):
        tok = vit_attention(tok,
                            params[f"vit{l}_ln1_w"], params[f"vit{l}_ln1_b"],
                            params[f"vit{l}_q_w"], params[f"vit{l}_q_b"],
                            params[f"vit{l}_k_w"], params[f"vit{l}_k_b"],
                            params[f"vit{l}_v_w"], params[f"vit{l}_v_b"],
                            params[f"vit{l}_o_w"], params[f"vit{l}_o_b"],
                            HEADS)
        t2 = tok.reshape(B * N, EMBED)
        t2 = fused_mlp(t2, t2,
                       params[f"vit{l}_ln2_w"], params[f"vit{l}_ln2_b"],
                       params[f"vit{l}_mlp1_w"], params[f"vit{l}_mlp1_b"],
                       params[f"vit{l}_mlp2_w"], params[f"vit{l}_mlp2_b"])
        tok = t2.reshape(B, N, EMBED)
    # final LN fused into the head projection
    logits = fused_linear(tok.reshape(B * N, EMBED), params["head_w"], params["head_b"],
                          pre_ln=(params["vit_ln_w"], params["vit_ln_b"]))
    idx = argmax_last(logits)                        # (B*N, 1) int32
    return idx.reshape(B, N)


if __name__ == "__main__":
    key = jax.random.PRNGKey(0)
    pkey, xkey = jax.random.split(key)
    params = make_params(pkey)
    x = jax.random.normal(xkey, (2, 3, 32, 32), jnp.float32)   # PyTorch NCHW input
    out = jax.jit(forward)(params, x)
    jax.block_until_ready(out)
    assert out.shape == (2, 16) and out.dtype == jnp.int32
    print("KERNEL_OK")
</pallas_src>

<mosaic_0001>
module attributes {stable_mosaic.version = 11 : i64} {
  func.func @_fused_linear_kernel(%arg0: i32, %arg1: memref<64x48xf32, #tpu.memory_space<vmem>>, %arg2: memref<48x32xf32, #tpu.memory_space<vmem>>, %arg3: memref<1x32xf32, #tpu.memory_space<vmem>>, %arg4: memref<1x32xf32, #tpu.memory_space<vmem>>, %arg5: memref<1x32xf32, #tpu.memory_space<vmem>>, %arg6: memref<64x32xf32, #tpu.memory_space<vmem>>) attributes {dimension_semantics = [#tpu.dimension_semantics<parallel>], iteration_bounds = array<i64: 2>, scalar_prefetch = 0 : i64, scratch_operands = 0 : i64, tpu.core_type = #tpu.core_type<tc>, window_params = [{transform_indices = @transform_0, window_bounds = array<i64: 64, 48>}, {pipeline_mode = #tpu.pipeline_mode<synchronous>, transform_indices = @transform_1, window_bounds = array<i64: 48, 32>}, {pipeline_mode = #tpu.pipeline_mode<synchronous>, transform_indices = @transform_2, window_bounds = array<i64: 1, 32>}, {pipeline_mode = #tpu.pipeline_mode<synchronous>, transform_indices = @transform_3, window_bounds = array<i64: 1, 32>}, {pipeline_mode = #tpu.pipeline_mode<synchronous>, transform_indices = @transform_4, window_bounds = array<i64: 1, 32>}, {transform_indices = @transform_5, window_bounds = array<i64: 64, 32>}]} {
    %c0 = arith.constant 0 : index
    %c0_0 = arith.constant 0 : index
    %0 = vector.load %arg1[%c0, %c0_0] : memref<64x48xf32, #tpu.memory_space<vmem>>, vector<64x48xf32>
    %c0_1 = arith.constant 0 : index
    %c0_2 = arith.constant 0 : index
    %1 = vector.load %arg2[%c0_1, %c0_2] : memref<48x32xf32, #tpu.memory_space<vmem>>, vector<48x32xf32>
    %2 = arith.truncf %0 : vector<64x48xf32> to vector<64x48xbf16>
    %3 = arith.truncf %1 : vector<48x32xf32> to vector<48x32xbf16>
    %cst = arith.constant dense<0.000000e+00> : vector<64x32xf32>
    %4 = tpu.matmul %2, %3, %cst {dimension_numbers = #tpu.dot_dimension_numbers<[1], [0], [0], [1], [0, 0, 1, 1], [], []>} : vector<64x48xbf16>, vector<48x32xbf16>, vector<64x32xf32> -> vector<64x32xf32>
    %c0_3 = arith.constant 0 : index
    %c0_4 = arith.constant 0 : index
    %5 = vector.load %arg3[%c0_3, %c0_4] : memref<1x32xf32, #tpu.memory_space<vmem>>, vector<1x32xf32>
    %6 = vector.broadcast %5 : vector<1x32xf32> to vector<64x32xf32>
    %7 = arith.addf %4, %6 : vector<64x32xf32>
    %c0_5 = arith.constant 0 : index
    %c0_6 = arith.constant 0 : index
    %8 = vector.load %arg4[%c0_5, %c0_6] : memref<1x32xf32, #tpu.memory_space<vmem>>, vector<1x32xf32>
    %c0_7 = arith.constant 0 : index
    %c0_8 = arith.constant 0 : index
    %9 = vector.load %arg5[%c0_7, %c0_8] : memref<1x32xf32, #tpu.memory_space<vmem>>, vector<1x32xf32>
    %cst_9 = arith.constant dense<0.000000e+00> : vector<64xf32>
    %10 = vector.multi_reduction <add>, %7, %cst_9 [1] : vector<64x32xf32> to vector<64xf32>
    %11 = vector.shape_cast %10 : vector<64xf32> to vector<64x1xf32>
    %cst_10 = arith.constant 3.200000e+01 : f32
    %12 = vector.broadcast %cst_10 : f32 to vector<64x1xf32>
    %13 = arith.divf %11, %12 : vector<64x1xf32>
    %14 = vector.broadcast %13 : vector<64x1xf32> to vector<64x32xf32>
    %15 = arith.subf %7, %14 : vector<64x32xf32>
    %16 = arith.mulf %15, %15 : vector<64x32xf32>
    %cst_11 = arith.constant dense<0.000000e+00> : vector<64xf32>
    %17 = vector.multi_reduction <add>, %16, %cst_11 [1] : vector<64x32xf32> to vector<64xf32>
    %18 = vector.shape_cast %17 : vector<64xf32> to vector<64x1xf32>
    %cst_12 = arith.constant 3.200000e+01 : f32
    %19 = vector.broadcast %cst_12 : f32 to vector<64x1xf32>
    %20 = arith.divf %18, %19 : vector<64x1xf32>
    %cst_13 = arith.constant 9.99999997E-7 : f32
    %21 = vector.broadcast %cst_13 : f32 to vector<64x1xf32>
    %22 = arith.addf %20, %21 : vector<64x1xf32>
    %23 = math.rsqrt %22 : vector<64x1xf32>
    %24 = vector.broadcast %23 : vector<64x1xf32> to vector<64x32xf32>
    %25 = arith.mulf %15, %24 : vector<64x32xf32>
    %26 = vector.broadcast %8 : vector<1x32xf32> to vector<64x32xf32>
    %27 = arith.mulf %25, %26 : vector<64x32xf32>
    %28 = vector.broadcast %9 : vector<1x32xf32> to vector<64x32xf32>
    %29 = arith.addf %27, %28 : vector<64x32xf32>
    %c0_14 = arith.constant 0 : index
    %c0_15 = arith.constant 0 : index
    %30 = vector.load %arg6[%c0_14, %c0_15] : memref<64x32xf32, #tpu.memory_space<vmem>>, vector<64x32xf32>
    tpu.vector_store %arg6[%c0_14, %c0_15], %29 {strides = array<i32>} : memref<64x32xf32, #tpu.memory_space<vmem>>, vector<64x32xf32>,
    return
  }
  func.func @transform_0(%arg0: i32) -> (i32, i32) {
    %c0_i32 = arith.constant 0 : i32
    %c0_i32_0 = arith.constant 0 : i32
    return %arg0, %c0_i32 : i32, i32
  }
  func.func @transform_1(%arg0: i32) -> (i32, i32) {
    %c0_i32 = arith.constant 0 : i32
    %c0_i32_0 = arith.constant 0 : i32
    %c0_i32_1 = arith.constant 0 : i32
    return %c0_i32, %c0_i32_0 : i32, i32
  }
  func.func @transform_2(%arg0: i32) -> (i32, i32) {
    %c0_i32 = arith.constant 0 : i32
    %c0_i32_0 = arith.constant 0 : i32
    %c0_i32_1 = arith.constant 0 : i32
    return %c0_i32, %c0_i32_0 : i32, i32
  }
  func.func @transform_3(%arg0: i32) -> (i32, i32) {
    %c0_i32 = arith.constant 0 : i32
    %c0_i32_0 = arith.constant 0 : i32
    %c0_i32_1 = arith.constant 0 : i32
    return %c0_i32, %c0_i32_0 : i32, i32
  }
  func.func @transform_4(%arg0: i32) -> (i32, i32) {
    %c0_i32 = arith.constant 0 : i32
    %c0_i32_0 = arith.constant 0 : i32
    %c0_i32_1 = arith.constant 0 : i32
    return %c0_i32, %c0_i32_0 : i32, i32
  }
  func.func @transform_5(%arg0: i32) -> (i32, i32) {
    %c0_i32 = arith.constant 0 : i32
    %c0_i32_0 = arith.constant 0 : i32
    return %arg0, %c0_i32 : i32, i32
  }
}

module attributes {stable_mosaic.version = 11 : i64} {
  func.func @_dwconv_kernel(%arg0: i32, %arg1: memref<1x14x14x32xf32, #tpu.memory_space<vmem>>, %arg2: memref<7x7x32xf32, #tpu.memory_space<vmem>>, %arg3: memref<1x32xf32, #tpu.memory_space<vmem>>, %arg4: memref<1x8x8x32xf32, #tpu.memory_space<vmem>>) attributes {dimension_semantics = [#tpu.dimension_semantics<parallel>], iteration_bounds = array<i64: 2>, scalar_prefetch = 0 : i64, scratch_operands = 0 : i64, tpu.core_type = #tpu.core_type<tc>, window_params = [{transform_indices = @transform_0, window_bounds = array<i64: 1, 14, 14, 32>}, {pipeline_mode = #tpu.pipeline_mode<synchronous>, transform_indices = @transform_1, window_bounds = array<i64: 7, 7, 32>}, {pipeline_mode = #tpu.pipeline_mode<synchronous>, transform_indices = @transform_2, window_bounds = array<i64: 1, 32>}, {transform_indices = @transform_3, window_bounds = array<i64: 1, 8, 8, 32>}]} {
    %c0 = arith.constant 0 : index
    %c0_0 = arith.constant 0 : index
    %c0_1 = arith.constant 0 : index
    %0 = vector.load %arg2[%c0, %c0_0, %c0_1] : memref<7x7x32xf32, #tpu.memory_space<vmem>>, vector<7x7x32xf32>
    %cst = arith.constant 0.000000e+00 : f32
    %1 = vector.broadcast %cst : f32 to vector<8x8x32xf32>
    %c0_2 = arith.constant 0 : index
    %c0_3 = arith.constant 0 : index
    %c0_4 = arith.constant 0 : index
    %c0_5 = arith.constant 0 : index
    %2 = vector.load %arg1[%c0_2, %c0_3, %c0_4, %c0_5] : memref<1x14x14x32xf32, #tpu.memory_space<vmem>>, vector<1x8x8x32xf32>
    %3 = vector.shape_cast %2 : vector<1x8x8x32xf32> to vector<8x8x32xf32>
    %4 = vector.extract_strided_slice %0 {offsets = [0, 0, 0], sizes = [1, 1, 32], strides = [1, 1, 1]} : vector<7x7x32xf32> to vector<1x1x32xf32>
    %5 = vector.shape_cast %4 : vector<1x1x32xf32> to vector<32xf32>
    %6 = vector.shape_cast %5 : vector<32xf32> to vector<1x1x32xf32>
    %7 = vector.broadcast %6 : vector<1x1x32xf32> to vector<8x8x32xf32>
    %8 = arith.mulf %3, %7 : vector<8x8x32xf32>
    %9 = arith.addf %1, %8 : vector<8x8x32xf32>
    %c0_6 = arith.constant 0 : index
    %c0_7 = arith.constant 0 : index
    %c1 = arith.constant 1 : index
    %c0_8 = arith.constant 0 : index
    %10 = vector.load %arg1[%c0_6, %c0_7, %c1, %c0_8] : memref<1x14x14x32xf32, #tpu.memory_space<vmem>>, vector<1x8x8x32xf32>
    %11 = vector.shape_cast %10 : vector<1x8x8x32xf32> to vector<8x8x32xf32>
    %12 = vector.extract_strided_slice %0 {offsets = [0, 1, 0], sizes = [1, 1, 32], strides = [1, 1, 1]} : vector<7x7x32xf32> to vector<1x1x32xf32>
    %13 = vector.shape_cast %12 : vector<1x1x32xf32> to vector<32xf32>
    %14 = vector.shape_cast %13 : vector<32xf32> to vector<1x1x32xf32>
    %15 = vector.broadcast %14 : vector<1x1x32xf32> to vector<8x8x32xf32>
    %16 = arith.mulf %11, %15 : vector<8x8x32xf32>
    %17 = arith.addf %9, %16 : vector<8x8x32xf32>
    %c0_9 = arith.constant 0 : index
    %c0_10 = arith.constant 0 : index
    %c2 = arith.constant 2 : index
    %c0_11 = arith.constant 0 : index
    %18 = vector.load %arg1[%c0_9, %c0_10, %c2, %c0_11] : memref<1x14x14x32xf32, #tpu.memory_space<vmem>>, vector<1x8x8x32xf32>
    %19 = vector.shape_cast %18 : vector<1x8x8x32xf32> to vector<8x8x32xf32>
    %20 = vector.extract_strided_slice %0 {offsets = [0, 2, 0], sizes = [1, 1, 32], strides = [1, 1, 1]} : vector<7x7x32xf32> to vector<1x1x32xf32>
    %21 = vector.shape_cast %20 : vector<1x1x32xf32> to vector<32xf32>
    %22 = vector.shape_cast %21 : vector<32xf32> to vector<1x1x32xf32>
    %23 = vector.broadcast %22 : vector<1x1x32xf32> to vector<8x8x32xf32>
    %24 = arith.mulf %19, %23 : vector<8x8x32xf32>
    %25 = arith.addf %17, %24 : vector<8x8x32xf32>
    %c0_12 = arith.constant 0 : index
    %c0_13 = arith.constant 0 : index
    %c3 = arith.constant 3 : index
    %c0_14 = arith.constant 0 : index
    %26 = vector.load %arg1[%c0_12, %c0_13, %c3, %c0_14] : memref<1x14x14x32xf32, #tpu.memory_space<vmem>>, vector<1x8x8x32xf32>
    %27 = vector.shape_cast %26 : vector<1x8x8x32xf32> to vector<8x8x32xf32>
    %28 = vector.extract_strided_slice %0 {offsets = [0, 3, 0], sizes = [1, 1, 32], strides = [1, 1, 1]} : vector<7x7x32xf32> to vector<1x1x32xf32>
    %29 = vector.shape_cast %28 : vector<1x1x32xf32> to vector<32xf32>
    %30 = vector.shape_cast %29 : vector<32xf32> to vector<1x1x32xf32>
    %31 = vector.broadcast %30 : vector<1x1x32xf32> to vector<8x8x32xf32>
    %32 = arith.mulf %27, %31 : vector<8x8x32xf32>
    %33 = arith.addf %25, %32 : vector<8x8x32xf32>
    %c0_15 = arith.constant 0 : index
    %c0_16 = arith.constant 0 : index
    %c4 = arith.constant 4 : index
    %c0_17 = arith.constant 0 : index
    %34 = vector.load %arg1[%c0_15, %c0_16, %c4, %c0_17] : memref<1x14x14x32xf32, #tpu.memory_space<vmem>>, vector<1x8x8x32xf32>
    %35 = vector.shape_cast %34 : vector<1x8x8x32xf32> to vector<8x8x32xf32>
    %36 = vector.extract_strided_slice %0 {offsets = [0, 4, 0], sizes = [1, 1, 32], strides = [1, 1, 1]} : vector<7x7x32xf32> to vector<1x1x32xf32>
    %37 = vector.shape_cast %36 : vector<1x1x32xf32> to vector<32xf32>
    %38 = vector.shape_cast %37 : vector<32xf32> to vector<1x1x32xf32>
    %39 = vector.broadcast %38 : vector<1x1x32xf32> to vector<8x8x32xf32>
    %40 = arith.mulf %35, %39 : vector<8x8x32xf32>
    %41 = arith.addf %33, %40 : vector<8x8x32xf32>
    %c0_18 = arith.constant 0 : index
    %c0_19 = arith.constant 0 : index
    %c5 = arith.constant 5 : index
    %c0_20 = arith.constant 0 : index
    %42 = vector.load %arg1[%c0_18, %c0_19, %c5, %c0_20] : memref<1x14x14x32xf32, #tpu.memory_space<vmem>>, vector<1x8x8x32xf32>
    %43 = vector.shape_cast %42 : vector<1x8x8x32xf32> to vector<8x8x32xf32>
    %44 = vector.extract_strided_slice %0 {offsets = [0, 5, 0], sizes = [1, 1, 32], strides = [1, 1, 1]} : vector<7x7x32xf32> to vector<1x1x32xf32>
    %45 = vector.shape_cast %44 : vector<1x1x32xf32> to vector<32xf32>
    %46 = vector.shape_cast %45 : vector<32xf32> to vector<1x1x32xf32>
    %47 = vector.broadcast %46 : vector<1x1x32xf32> to vector<8x8x32xf32>
    %48 = arith.mulf %43, %47 : vector<8x8x32xf32>
    %49 = arith.addf %41, %48 : vector<8x8x32xf32>
    %c0_21 = arith.constant 0 : index
    %c0_22 = arith.constant 0 : index
    %c6 = arith.constant 6 : index
    %c0_23 = arith.constant 0 : index
    %50 = vector.load %arg1[%c0_21, %c0_22, %c6, %c0_23] : memref<1x14x14x32xf32, #tpu.memory_space<vmem>>, vector<1x8x8x32xf32>
    %51 = vector.shape_cast %50 : vector<1x8x8x32xf32> to vector<8x8x32xf32>
    %52 = vector.extract_strided_slice %0 {offsets = [0, 6, 0], sizes = [1, 1, 32], strides = [1, 1, 1]} : vector<7x7x32xf32> to vector<1x1x32xf32>
    %53 = vector.shape_cast %52 : vector<1x1x32xf32> to vector<32xf32>
    %54 = vector.shape_cast %53 : vector<32xf32> to vector<1x1x32xf32>
    %55 = vector.broadcast %54 : vector<1x1x32xf32> to vector<8x8x32xf32>
    %56 = arith.mulf %51, %55 : vector<8x8x32xf32>
    %57 = arith.addf %49, %56 : vector<8x8x32xf32>
    %c0_24 = arith.constant 0 : index
    %c1_25 = arith.constant 1 : index
    %c0_26 = arith.constant 0 : index
    %c0_27 = arith.constant 0 : index
    %58 = vector.load %arg1[%c0_24, %c1_25, %c0_26, %c0_27] : memref<1x14x14x32xf32, #tpu.memory_space<vmem>>, vector<1x8x8x32xf32>
    %59 = vector.shape_cast %58 : vector<1x8x8x32xf32> to vector<8x8x32xf32>
    %60 = vector.extract_strided_slice %0 {offsets = [1, 0, 0], sizes = [1, 1, 32], strides = [1, 1, 1]} : vector<7x7x32xf32> to vector<1x1x32xf32>
    %61 = vector.shape_cast %60 : vector<1x1x32xf32> to vector<32xf32>
    %62 = vector.shape_cast %61 : vector<32xf32> to vector<1x1x32xf32>
    %63 = vector.broadcast %62 : vector<1x1x32xf32> to vector<8x8x32xf32>
    %64 = arith.mulf %59, %63 : vector<8x8x32xf32>
    %65 = arith.addf %57, %64 : vector<8x8x32xf32>
    %c0_28 = arith.constant 0 : index
    %c1_29 = arith.constant 1 : index
    %c1_30 = arith.constant 1 : index
    %c0_31 = arith.constant 0 : index
    %66 = vector.load %arg1[%c0_28, %c1_29, %c1_30, %c0_31] : memref<1x14x14x32xf32, #tpu.memory_space<vmem>>, vector<1x8x8x32xf32>
    %67 = vector.shape_cast %66 : vector<1x8x8x32xf32> to vector<8x8x32xf32>
    %68 = vector.extract_strided_slice %0 {offsets = [1, 1, 0], sizes = [1, 1, 32], strides = [1, 1, 1]} : vector<7x7x32xf32> to vector<1x1x32xf32>
    %69 = vector.shape_cast %68 : vector<1x1x32xf32> to vector<32xf32>
    %70 = vector.shape_cast %69 : vector<32xf32> to vector<1x1x32xf32>
    %71 = vector.broadcast %70 : vector<1x1x32xf32> to vector<8x8x32xf32>
    %72 = arith.mulf %67, %71 : vector<8x8x32xf32>
    %73 = arith.addf %65, %72 : vector<8x8x32xf32>
    %c0_32 = arith.constant 0 : index
    %c1_33 = arith.constant 1 : index
    %c2_34 = arith.constant 2 : index
    %c0_35 = arith.constant 0 : index
    %74 = vector.load %arg1[%c0_32, %c1_33, %c2_34, %c0_35] : memref<1x14x14x32xf32, #tpu.memory_space<vmem>>, vector<1x8x8x32xf32>
    %75 = vector.shape_cast %74 : vector<1x8x8x32xf32> to vector<8x8x32xf32>
    %76 = vector.extract_strided_slice %0 {offsets = [1, 2, 0], sizes = [1, 1, 32], strides = [1, 1, 1]} : vector<7x7x32xf32> to vector<1x1x32xf32>
    %77 = vector.shape_cast %76 : vector<1x1x32xf32> to vector<32xf32>
    %78 = vector.shape_cast %77 : vector<32xf32> to vector<1x1x32xf32>
    %79 = vector.broadcast %78 : vector<1x1x32xf32> to vector<8x8x32xf32>
    %80 = arith.mulf %75, %79 : vector<8x8x32xf32>
    %81 = arith.addf %73, %80 : vector<8x8x32xf32>
    %c0_36 = arith.constant 0 : index
    %c1_37 = arith.constant 1 : index
    %c3_38 = arith.constant 3 : index
    %c0_39 = arith.constant 0 : index
    %82 = vector.load %arg1[%c0_36, %c1_37, %c3_38, %c0_39] : memref<1x14x14x32xf32, #tpu.memory_space<vmem>>, vector<1x8x8x32xf32>
    %83 = vector.shape_cast %82 : vector<1x8x8x32xf32> to vector<8x8x32xf32>
    %84 = vector.extract_strided_slice %0 {offsets = [1, 3, 0], sizes = [1, 1, 32], strides = [1, 1, 1]} : vector<7x7x32xf32> to vector<1x1x32xf32>
    %85 = vector.shape_cast %84 : vector<1x1x32xf32> to vector<32xf32>
    %86 = vector.shape_cast %85 : vector<32xf32> to vector<1x1x32xf32>
    %87 = vector.broadcast %86 : vector<1x1x32xf32> to vector<8x8x32xf32>
    %88 = arith.mulf %83, %87 : vector<8x8x32xf32>
    %89 = arith.addf %81, %88 : vector<8x8x32xf32>
    %c0_40 = arith.constant 0 : index
    %c1_41 = arith.constant 1 : index
    %c4_42 = arith.constant 4 : index
    %c0_43 = arith.constant 0 : index
    %90 = vector.load %arg1[%c0_40, %c1_41, %c4_42, %c0_43] : memref<1x14x14x32xf32, #tpu.memory_space<vmem>>, vector<1x8x8x32xf32>
    %91 = vector.shape_cast %90 : vector<1x8x8x32xf32> to vector<8x8x32xf32>
    %92 = vector.extract_strided_slice %0 {offsets = [1, 4, 0], sizes = [1, 1, 32], strides = [1, 1, 1]} : vector<7x7x32xf32> to vector<1x1x32xf32>
    %93 = vector.shape_cast %92 : vector<1x1x32xf32> to vector<32xf32>
    %94 = vector.shape_cast %93 : vector<32xf32> to vector<1x1x32xf32>
    %95 = vector.broadcast %94 : vector<1x1x32xf32> to vector<8x8x32xf32>
    %96 = arith.mulf %91, %95 : vector<8x8x32xf32>
    %97 = arith.addf %89, %96 : vector<8x8x32xf32>
    %c0_44 = arith.constant 0 : index
    %c1_45 = arith.constant 1 : index
    %c5_46 = arith.constant 5 : index
    %c0_47 = arith.constant 0 : index
    %98 = vector.load %arg1[%c0_44, %c1_45, %c5_46, %c0_47] : memref<1x14x14x32xf32, #tpu.memory_space<vmem>>, vector<1x8x8x32xf32>
    %99 = vector.shape_cast %98 : vector<1x8x8x32xf32> to vector<8x8x32xf32>
    %100 = vector.extract_strided_slice %0 {offsets = [1, 5, 0], sizes = [1, 1, 32], strides = [1, 1, 1]} : vector<7x7x32xf32> to vector<1x1x32xf32>
    %101 = vector.shape_cast %100 : vector<1x1x32xf32> to vector<32xf32>
    %102 = vector.shape_cast %101 : vector<32xf32> to vector<1x1x32xf32>
    %103 = vector.broadcast %102 : vector<1x1x32xf32> to vector<8x8x32xf32>
    %104 = arith.mulf %99, %103 : vector<8x8x32xf32>
    %105 = arith.addf %97, %104 : vector<8x8x32xf32>
    %c0_48 = arith.constant 0 : index
    %c1_49 = arith.constant 1 : index
    %c6_50 = arith.constant 6 : index
    %c0_51 = arith.constant 0 : index
    %106 = vector.load %arg1[%c0_48, %c1_49, %c6_50, %c0_51] : memref<1x14x14x32xf32, #tpu.memory_space<vmem>>, vector<1x8x8x32xf32>
    %107 = vector.shape_cast %106 : vector<1x8x8x32xf32> to vector<8x8x32xf32>
    %108 = vector.extract_strided_slice %0 {offsets = [1, 6, 0], sizes = [1, 1, 32], strides = [1, 1, 1]} : vector<7x7x32xf32> to vector<1x1x32xf32>
    %109 = vector.shape_cast %108 : vector<1x1x32xf32> to vector<32xf32>
    %110 = vector.shape_cast %109 : vector<32xf32> to vector<1x1x32xf32>
    %111 = vector.broadcast %110 : vector<1x1x32xf32> to vector<8x8x32xf32>
    %112 = arith.mulf %107, %111 : vector<8x8x32xf32>
    %113 = arith.addf %105, %112 : vector<8x8x32xf32>
    %c0_52 = arith.constant 0 : index
    %c2_53 = arith.constant 2 : index
    %c0_54 = arith.constant 0 : index
    %c0_55 = arith.constant 0 : index
    %114 = vector.load %arg1[%c0_52, %c2_53, %c0_54, %c0_55] : memref<1x14x14x32xf32, #tpu.memory_space<vmem>>, vector<1x8x8x32xf32>
    %115 = vector.shape_cast %114 : vector<1x8x8x32xf32> to vector<8x8x32xf32>
    %116 = vector.extract_strided_slice %0 {offsets = [2, 0, 0], sizes = [1, 1, 32], strides = [1, 1, 1]} : vector<7x7x32xf32> to vector<1x1x32xf32>
    %117 = vector.shape_cast %116 : vector<1x1x32xf32> to vector<32xf32>
    %118 = vector.shape_cast %117 : vector<32xf32> to vector<1x1x32xf32>
    %119 = vector.broadcast %118 : vector<1x1x32xf32> to vector<8x8x32xf32>
    %120 = arith.mulf %115, %119 : vector<8x8x32xf32>
    %121 = arith.addf %113, %120 : vector<8x8x32xf32>
    %c0_56 = arith.constant 0 : index
    %c2_57 = arith.constant 2 : index
    %c1_58 = arith.constant 1 : index
    %c0_59 = arith.constant 0 : index
    %122 = vector.load %arg1[%c0_56, %c2_57, %c1_58, %c0_59] : memref<1x14x14x32xf32, #tpu.memory_space<vmem>>, vector<1x8x8x32xf32>
    %123 = vector.shape_cast %122 : vector<1x8x8x32xf32> to vector<8x8x32xf32>
    %124 = vector.extract_strided_slice %0 {offsets = [2, 1, 0], sizes = [1, 1, 32], strides = [1, 1, 1]} : vector<7x7x32xf32> to vector<1x1x32xf32>
    %125 = vector.shape_cast %124 : vector<1x1x32xf32> to vector<32xf32>
    %126 = vector.shape_cast %125 : vector<32xf32> to vector<1x1x32xf32>
    %127 = vector.broadcast %126 : vector<1x1x32xf32> to vector<8x8x32xf32>
    %128 = arith.mulf %123, %127 : vector<8x8x32xf32>
    %129 = arith.addf %121, %128 : vector<8x8x32xf32>
    %c0_60 = arith.constant 0 : index
    %c2_61 = arith.constant 2 : index
    %c2_62 = arith.constant 2 : index
    %c0_63 = arith.constant 0 : index
    %130 = vector.load %arg1[%c0_60, %c2_61, %c2_62, %c0_63] : memref<1x14x14x32xf32, #tpu.memory_space<vmem>>, vector<1x8x8x32xf32>
    %131 = vector.shape_cast %130 : vector<1x8x8x32xf32> to vector<8x8x32xf32>
    %132 = vector.extract_strided_slice %0 {offsets = [2, 2, 0], sizes = [1, 1, 32], strides = [1, 1, 1]} : vector<7x7x32xf32> to vector<1x1x32xf32>
    %133 = vector.shape_cast %132 : vector<1x1x32xf32> to vector<32xf32>
    %134 = vector.shape_cast %133 : vector<32xf32> to vector<1x1x32xf32>
    %135 = vector.broadcast %134 : vector<1x1x32xf32> to vector<8x8x32xf32>
    %136 = arith.mulf %131, %135 : vector<8x8x32xf32>
    %137 = arith.addf %129, %136 : vector<8x8x32xf32>
    %c0_64 = arith.constant 0 : index
    %c2_65 = arith.constant 2 : index
    %c3_66 = arith.constant 3 : index
    %c0_67 = arith.constant 0 : index
    %138 = vector.load %arg1[%c0_64, %c2_65, %c3_66, %c0_67] : memref<1x14x14x32xf32, #tpu.memory_space<vmem>>, vector<1x8x8x32xf32>
    %139 = vector.shape_cast %138 : vector<1x8x8x32xf32> to vector<8x8x32xf32>
    %140 = vector.extract_strided_slice %0 {offsets = [2, 3, 0], sizes = [1, 1, 32], strides = [1, 1, 1]} : vector<7x7x32xf32> to vector<1x1x32xf32>
    %141 = vector.shape_cast %140 : vector<1x1x32xf32> to vector<32xf32>
    %142 = vector.shape_cast %141 : vector<32xf32> to vector<1x1x32xf32>
    %143 = vector.broadcast %142 : vector<1x1x32xf32> to vector<8x8x32xf32>
    %144 = arith.mulf %139, %143 : vector<8x8x32xf32>
    %145 = arith.addf %137, %144 : vector<8x8x32xf32>
    %c0_68 = arith.constant 0 : index
    %c2_69 = arith.constant 2 : index
    %c4_70 = arith.constant 4 : index
    %c0_71 = arith.constant 0 : index
    %146 = vector.load %arg1[%c0_68, %c2_69, %c4_70, %c0_71] : memref<1x14x14x32xf32, #tpu.memory_space<vmem>>, vector<1x8x8x32xf32>
    %147 = vector.shape_cast %146 : vector<1x8x8x32xf32> to vector<8x8x32xf32>
    %148 = vector.extract_strided_slice %0 {offsets = [2, 4, 0], sizes = [1, 1, 32], strides = [1, 1, 1]} : vector<7x7x32xf32> to vector<1x1x32xf32>
    %149 = vector.shape_cast %148 : vector<1x1x32xf32> to vector<32xf32>
    %150 = vector.shape_cast %149 : vector<32xf32> to vector<1x1x32xf32>
    %151 = vector.broadcast %150 : vector<1x1x32xf32> to vector<8x8x32xf32>
    %152 = arith.mulf %147, %151 : vector<8x8x32xf32>
    %153 = arith.addf %145, %152 : vector<8x8x32xf32>
    %c0_72 = arith.constant 0 : index
    %c2_73 = arith.constant 2 : index
    %c5_74 = arith.constant 5 : index
    %c0_75 = arith.constant 0 : index
    %154 = vector.load %arg1[%c0_72, %c2_73, %c5_74, %c0_75] : memref<1x14x14x32xf32, #tpu.memory_space<vmem>>, vector<1x8x8x32xf32>
    %155 = vector.shape_cast %154 : vector<1x8x8x32xf32> to vector<8x8x32xf32>
    %156 = vector.extract_strided_slice %0 {offsets = [2, 5, 0], sizes = [1, 1, 32], strides = [1, 1, 1]} : vector<7x7x32xf32> to vector<1x1x32xf32>
    %157 = vector.shape_cast %156 : vector<1x1x32xf32> to vector<32xf32>
    %158 = vector.shape_cast %157 : vector<32xf32> to vector<1x1x32xf32>
    %159 = vector.broadcast %158 : vector<1x1x32xf32> to vector<8x8x32xf32>
    %160 = arith.mulf %155, %159 : vector<8x8x32xf32>
    %161 = arith.addf %153, %160 : vector<8x8x32xf32>
    %c0_76 = arith.constant 0 : index
    %c2_77 = arith.constant 2 : index
    %c6_78 = arith.constant 6 : index
    %c0_79 = arith.constant 0 : index
    %162 = vector.load %arg1[%c0_76, %c2_77, %c6_78, %c0_79] : memref<1x14x14x32xf32, #tpu.memory_space<vmem>>, vector<1x8x8x32xf32>
    %163 = vector.shape_cast %162 : vector<1x8x8x32xf32> to vector<8x8x32xf32>
    %164 = vector.extract_strided_slice %0 {offsets = [2, 6, 0], sizes = [1, 1, 32], strides = [1, 1, 1]} : vector<7x7x32xf32> to vector<1x1x32xf32>
    %165 = vector.shape_cast %164 : vector<1x1x32xf32> to vector<32xf32>
    %166 = vector.shape_cast %165 : vector<32xf32> to vector<1x1x32xf32>
    %167 = vector.broadcast %166 : vector<1x1x32xf32> to vector<8x8x32xf32>
    %168 = arith.mulf %163, %167 : vector<8x8x32xf32>
    %169 = arith.addf %161, %168 : vector<8x8x32xf32>
    %c0_80 = arith.constant 0 : index
    %c3_81 = arith.constant 3 : index
    %c0_82 = arith.constant 0 : index
    %c0_83 = arith.constant 0 : index
    %170 = vector.load %arg1[%c0_80, %c3_81, %c0_82, %c0_83] : memref<1x14x14x32xf32, #tpu.memory_space<vmem>>, vector<1x8x8x32xf32>
    %171 = vector.shape_cast %170 : vector<1x8x8x32xf32> to vector<8x8x32xf32>
    %172 = vector.extract_strided_slice %0 {offsets = [3, 0, 0], sizes = [1, 1, 32], strides = [1, 1, 1]} : vector<7x7x32xf32> to vector<1x1x32xf32>
    %173 = vector.shape_cast %172 : vector<1x1x32xf32> to vector<32xf32>
    %174 = vector.shape_cast %173 : vector<32xf32> to vector<1x1x32xf32>
    %175 = vector.broadcast %174 : vector<1x1x32xf32> to vector<8x8x32xf32>
    %176 = arith.mulf %171, %175 : vector<8x8x32xf32>
    %177 = arith.addf %169, %176 : vector<8x8x32xf32>
    %c0_84 = arith.constant 0 : index
    %c3_85 = arith.constant 3 : index
    %c1_86 = arith.constant 1 : index
    %c0_87 = arith.constant 0 : index
    %178 = vector.load %arg1[%c0_84, %c3_85, %c1_86, %c0_87] : memref<1x14x14x32xf32, #tpu.memory_space<vmem>>, vector<1x8x8x32xf32>
    %179 = vector.shape_cast %178 : vector<1x8x8x32xf32> to vector<8x8x32xf32>
    %180 = vector.extract_strided_slice %0 {offsets = [3, 1, 0], sizes = [1, 1, 32], strides = [1, 1, 1]} : vector<7x7x32xf32> to vector<1x1x32xf32>
    %181 = vector.shape_cast %180 : vector<1x1x32xf32> to vector<32xf32>
    %182 = vector.shape_cast %181 : vector<32xf32> to vector<1x1x32xf32>
    %183 = vector.broadcast %182 : vector<1x1x32xf32> to vector<8x8x32xf32>
    %184 = arith.mulf %179, %183 : vector<8x8x32xf32>
    %185 = arith.addf %177, %184 : vector<8x8x32xf32>
    %c0_88 = arith.constant 0 : index
    %c3_89 = arith.constant 3 : index
    %c2_90 = arith.constant 2 : index
    %c0_91 = arith.constant 0 : index
    %186 = vector.load %arg1[%c0_88, %c3_89, %c2_90, %c0_91] : memref<1x14x14x32xf32, #tpu.memory_space<vmem>>, vector<1x8x8x32xf32>
    %187 = vector.shape_cast %186 : vector<1x8x8x32xf32> to vector<8x8x32xf32>
    %188 = vector.extract_strided_slice %0 {offsets = [3, 2, 0], sizes = [1, 1, 32], strides = [1, 1, 1]} : vector<7x7x32xf32> to vector<1x1x32xf32>
    %189 = vector.shape_cast %188 : vector<1x1x32xf32> to vector<32xf32>
    %190 = vector.shape_cast %189 : vector<32xf32> to vector<1x1x32xf32>
    %191 = vector.broadcast %190 : vector<1x1x32xf32> to vector<8x8x32xf32>
    %192 = arith.mulf %187, %191 : vector<8x8x32xf32>
    %193 = arith.addf %185, %192 : vector<8x8x32xf32>
    %c0_92 = arith.constant 0 : index
    %c3_93 = arith.constant 3 : index
    %c3_94 = arith.constant 3 : index
    %c0_95 = arith.constant 0 : index
    %194 = vector.load %arg1[%c0_92, %c3_93, %c3_94, %c0_95] : memref<1x14x14x32xf32, #tpu.memory_space<vmem>>, vector<1x8x8x32xf32>
    %195 = vector.shape_cast %194 : vector<1x8x8x32xf32> to vector<8x8x32xf32>
    %196 = vector.extract_strided_slice %0 {offsets = [3, 3, 0], sizes = [1, 1, 32], strides = [1, 1, 1]} : vector<7x7x32xf32> to vector<1x1x32xf32>
    %197 = vector.shape_cast %196 : vector<1x1x32xf32> to vector<32xf32>
    %198 = vector.shape_cast %197 : vector<32xf32> to vector<1x1x32xf32>
    %199 = vector.broadcast %198 : vector<1x1x32xf32> to vector<8x8x32xf32>
    %200 = arith.mulf %195, %199 : vector<8x8x32xf32>
    %201 = arith.addf %193, %200 : vector<8x8x32xf32>
    %c0_96 = arith.constant 0 : index
    %c3_97 = arith.constant 3 : index
    %c4_98 = arith.constant 4 : index
    %c0_99 = arith.constant 0 : index
    %202 = vector.load %arg1[%c0_96, %c3_97, %c4_98, %c0_99] : memref<1x14x14x32xf32, #tpu.memory_space<vmem>>, vector<1x8x8x32xf32>
    %203 = vector.shape_cast %202 : vector<1x8x8x32xf32> to vector<8x8x32xf32>
    %204 = vector.extract_strided_slice %0 {offsets = [3, 4, 0], sizes = [1, 1, 32], strides = [1, 1, 1]} : vector<7x7x32xf32> to vector<1x1x32xf32>
    %205 = vector.shape_cast %204 : vector<1x1x32xf32> to vector<32xf32>
    %206 = vector.shape_cast %205 : vector<32xf32> to vector<1x1x32xf32>
    %207 = vector.broadcast %206 : vector<1x1x32xf32> to vector<8x8x32xf32>
    %208 = arith.mulf %203, %207 : vector<8x8x32xf32>
    %209 = arith.addf %201, %208 : vector<8x8x32xf32>
    %c0_100 = arith.constant 0 : index
    %c3_101 = arith.constant 3 : index
    %c5_102 = arith.constant 5 : index
    %c0_103 = arith.constant 0 : index
    %210 = vector.load %arg1[%c0_100, %c3_101, %c5_102, %c0_103] : memref<1x14x14x32xf32, #tpu.memory_space<vmem>>, vector<1x8x8x32xf32>
    %211 = vector.shape_cast %210 : vector<1x8x8x32xf32> to vector<8x8x32xf32>
    %212 = vector.extract_strided_slice %0 {offsets = [3, 5, 0], sizes = [1, 1, 32], strides = [1, 1, 1]} : vector<7x7x32xf32> to vector<1x1x32xf32>
    %213 = vector.shape_cast %212 : vector<1x1x32xf32> to vector<32xf32>
    %214 = vector.shape_cast %213 : vector<32xf32> to vector<1x1x32xf32>
    %215 = vector.broadcast %214 : vector<1x1x32xf32> to vector<8x8x32xf32>
    %216 = arith.mulf %211, %215 : vector<8x8x32xf32>
    %217 = arith.addf %209, %216 : vector<8x8x32xf32>
    %c0_104 = arith.constant 0 : index
    %c3_105 = arith.constant 3 : index
    %c6_106 = arith.constant 6 : index
    %c0_107 = arith.constant 0 : index
    %218 = vector.load %arg1[%c0_104, %c3_105, %c6_106, %c0_107] : memref<1x14x14x32xf32, #tpu.memory_space<vmem>>, vector<1x8x8x32xf32>
    %219 = vector.shape_cast %218 : vector<1x8x8x32xf32> to vector<8x8x32xf32>
    %220 = vector.extract_strided_slice %0 {offsets = [3, 6, 0], sizes = [1, 1, 32], strides = [1, 1, 1]} : vector<7x7x32xf32> to vector<1x1x32xf32>
    %221 = vector.shape_cast %220 : vector<1x1x32xf32> to vector<32xf32>
    %222 = vector.shape_cast %221 : vector<32xf32> to vector<1x1x32xf32>
    %223 = vector.broadcast %222 : vector<1x1x32xf32> to vector<8x8x32xf32>
    %224 = arith.mulf %219, %223 : vector<8x8x32xf32>
    %225 = arith.addf %217, %224 : vector<8x8x32xf32>
    %c0_108 = arith.constant 0 : index
    %c4_109 = arith.constant 4 : index
    %c0_110 = arith.constant 0 : index
    %c0_111 = arith.constant 0 : index
    %226 = vector.load %arg1[%c0_108, %c4_109, %c0_110, %c0_111] : memref<1x14x14x32xf32, #tpu.memory_space<vmem>>, vector<1x8x8x32xf32>
    %227 = vector.shape_cast %226 : vector<1x8x8x32xf32> to vector<8x8x32xf32>
    %228 = vector.extract_strided_slice %0 {offsets = [4, 0, 0], sizes = [1, 1, 32], strides = [1, 1, 1]} : vector<7x7x32xf32> to vector<1x1x32xf32>
    %229 = vector.shape_cast %228 : vector<1x1x32xf32> to vector<32xf32>
    %230 = vector.shape_cast %229 : vector<32xf32> to vector<1x1x32xf32>
    %231 = vector.broadcast %230 : vector<1x1x32xf32> to vector<8x8x32xf32>
    %232 = arith.mulf %227, %231 : vector<8x8x32xf32>
    %233 = arith.addf %225, %232 : vector<8x8x32xf32>
    %c0_112 = arith.constant 0 : index
    %c4_113 = arith.constant 4 : index
    %c1_114 = arith.constant 1 : index
    %c0_115 = arith.constant 0 : index
    %234 = vector.load %arg1[%c0_112, %c4_113, %c1_114, %c0_115] : memref<1x14x14x32xf32, #tpu.memory_space<vmem>>, vector<1x8x8x32xf32>
    %235 = vector.shape_cast %234 : vector<1x8x8x32xf32> to vector<8x8x32xf32>
    %236 = vector.extract_strided_slice %0 {offsets = [4, 1, 0], sizes = [1, 1, 32], strides = [1, 1, 1]} : vector<7x7x32xf32> to vector<1x1x32xf32>
    %237 = vector.shape_cast %236 : vector<1x1x32xf32> to vector<32xf32>
    %238 = vector.shape_cast %237 : vector<32xf32> to vector<1x1x32xf32>
    %239 = vector.broadcast %238 : vector<1x1x32xf32> to vector<8x8x32xf32>
    %240 = arith.mulf %235, %239 : vector<8x8x32xf32>
    %241 = arith.addf %233, %240 : vector<8x8x32xf32>
    %c0_116 = arith.constant 0 : index
    %c4_117 = arith.constant 4 : index
    %c2_118 = arith.constant 2 : index
    %c0_119 = arith.constant 0 : index
    %242 = vector.load %arg1[%c0_116, %c4_117, %c2_118, %c0_119] : memref<1x14x14x32xf32, #tpu.memory_space<vmem>>, vector<1x8x8x32xf32>
    %243 = vector.shape_cast %242 : vector<1x8x8x32xf32> to vector<8x8x32xf32>
    %244 = vector.extract_strided_slice %0 {offsets = [4, 2, 0], sizes = [1, 1, 32], strides = [1, 1, 1]} : vector<7x7x32xf32> to vector<1x1x32xf32>
    %245 = vector.shape_cast %244 : vector<1x1x32xf32> to vector<32xf32>
    %246 = vector.shape_cast %245 : vector<32xf32> to vector<1x1x32xf32>
    %247 = vector.broadcast %246 : vector<1x1x32xf32> to vector<8x8x32xf32>
    %248 = arith.mulf %243, %247 : vector<8x8x32xf32>
    %249 = arith.addf %241, %248 : vector<8x8x32xf32>
    %c0_120 = arith.constant 0 : index
    %c4_121 = arith.constant 4 : index
    %c3_122 = arith.constant 3 : index
    %c0_123 = arith.constant 0 : index
    %250 = vector.load %arg1[%c0_120, %c4_121, %c3_122, %c0_123] : memref<1x14x14x32xf32, #tpu.memory_space<vmem>>, vector<1x8x8x32xf32>
    %251 = vector.shape_cast %250 : vector<1x8x8x32xf32> to vector<8x8x32xf32>
    %252 = vector.extract_strided_slice %0 {offsets = [4, 3, 0], sizes = [1, 1, 32], strides = [1, 1, 1]} : vector<7x7x32xf32> to vector<1x1x32xf32>
    %253 = vector.shape_cast %252 : vector<1x1x32xf32> to vector<32xf32>
    %254 = vector.shape_cast %253 : vector<32xf32> to vector<1x1x32xf32>
    %255 = vector.broadcast %254 : vector<1x1x32xf32> to vector<8x8x32xf32>
    %256 = arith.mulf %251, %255 : vector<8x8x32xf32>
    %257 = arith.addf %249, %256 : vector<8x8x32xf32>
    %c0_124 = arith.constant 0 : index
    %c4_125 = arith.constant 4 : index
    %c4_126 = arith.constant 4 : index
    %c0_127 = arith.constant 0 : index
    %258 = vector.load %arg1[%c0_124, %c4_125, %c4_126, %c0_127] : memref<1x14x14x32xf32, #tpu.memory_space<vmem>>, vector<1x8x8x32xf32>
    %259 = vector.shape_cast %258 : vector<1x8x8x32xf32> to vector<8x8x32xf32>
    %260 = vector.extract_strided_slice %0 {offsets = [4, 4, 0], sizes = [1, 1, 32], strides = [1, 1, 1]} : vector<7x7x32xf32> to vector<1x1x32xf32>
    %261 = vector.shape_cast %260 : vector<1x1x32xf32> to vector<32xf32>
    %262 = vector.shape_cast %261 : vector<32xf32> to vector<1x1x32xf32>
    %263 = vector.broadcast %262 : vector<1x1x32xf32> to vector<8x8x32xf32>
    %264 = arith.mulf %259, %263 : vector<8x8x32xf32>
    %265 = arith.addf %257, %264 : vector<8x8x32xf32>
    %c0_128 = arith.constant 0 : index
    %c4_129 = arith.constant 4 : index
    %c5_130 = arith.constant 5 : index
    %c0_131 = arith.constant 0 : index
    %266 = vector.load %arg1[%c0_128, %c4_129, %c5_130, %c0_131] : memref<1x14x14x32xf32, #tpu.memory_space<vmem>>, vector<1x8x8x32xf32>
    %267 = vector.shape_cast %266 : vector<1x8x8x32xf32> to vector<8x8x32xf32>
    %268 = vector.extract_strided_slice %0 {offsets = [4, 5, 0], sizes = [1, 1, 32], strides = [1, 1, 1]} : vector<7x7x32xf32> to vector<1x1x32xf32>
    %269 = vector.shape_cast %268 : vector<1x1x32xf32> to vector<32xf32>
    %270 = vector.shape_cast %269 : vector<32xf32> to vector<1x1x32xf32>
    %271 = vector.broadcast %270 : vector<1x1x32xf32> to vector<8x8x32xf32>
    %272 = arith.mulf %267, %271 : vector<8x8x32xf32>
    %273 = arith.addf %265, %272 : vector<8x8x32xf32>
    %c0_132 = arith.constant 0 : index
    %c4_133 = arith.constant 4 : index
    %c6_134 = arith.constant 6 : index
    %c0_135 = arith.constant 0 : index
    %274 = vector.load %arg1[%c0_132, %c4_133, %c6_134, %c0_135] : memref<1x14x14x32xf32, #tpu.memory_space<vmem>>, vector<1x8x8x32xf32>
    %275 = vector.shape_cast %274 : vector<1x8x8x32xf32> to vector<8x8x32xf32>
    %276 = vector.extract_strided_slice %0 {offsets = [4, 6, 0], sizes = [1, 1, 32], strides = [1, 1, 1]} : vector<7x7x32xf32> to vector<1x1x32xf32>
    %277 = vector.shape_cast %276 : vector<1x1x32xf32> to vector<32xf32>
    %278 = vector.shape_cast %277 : vector<32xf32> to vector<1x1x32xf32>
    %279 = vector.broadcast %278 : vector<1x1x32xf32> to vector<8x8x32xf32>
    %280 = arith.mulf %275, %279 : vector<8x8x32xf32>
    %281 = arith.addf %273, %280 : vector<8x8x32xf32>
    %c0_136 = arith.constant 0 : index
    %c5_137 = arith.constant 5 : index
    %c0_138 = arith.constant 0 : index
    %c0_139 = arith.constant 0 : index
    %282 = vector.load %arg1[%c0_136, %c5_137, %c0_138, %c0_139] : memref<1x14x14x32xf32, #tpu.memory_space<vmem>>, vector<1x8x8x32xf32>
    %283 = vector.shape_cast %282 : vector<1x8x8x32xf32> to vector<8x8x32xf32>
    %284 = vector.extract_strided_slice %0 {offsets = [5, 0, 0], sizes = [1, 1, 32], strides = [1, 1, 1]} : vector<7x7x32xf32> to vector<1x1x32xf32>
    %285 = vector.shape_cast %284 : vector<1x1x32xf32> to vector<32xf32>
    %286 = vector.shape_cast %285 : vector<32xf32> to vector<1x1x32xf32>
    %287 = vector.broadcast %286 : vector<1x1x32xf32> to vector<8x8x32xf32>
    %288 = arith.mulf %283, %287 : vector<8x8x32xf32>
    %289 = arith.addf %281, %288 : vector<8x8x32xf32>
    %c0_140 = arith.constant 0 : index
    %c5_141 = arith.constant 5 : index
    %c1_142 = arith.constant 1 : index
    %c0_143 = arith.constant 0 : index
    %290 = vector.load %arg1[%c0_140, %c5_141, %c1_142, %c0_143] : memref<1x14x14x32xf32, #tpu.memory_space<vmem>>, vector<1x8x8x32xf32>
    %291 = vector.shape_cast %290 : vector<1x8x8x32xf32> to vector<8x8x32xf32>
    %292 = vector.extract_strided_slice %0 {offsets = [5, 1, 0], sizes = [1, 1, 32], strides = [1, 1, 1]} : vector<7x7x32xf32> to vector<1x1x32xf32>
    %293 = vector.shape_cast %292 : vector<1x1x32xf32> to vector<32xf32>
    %294 = vector.shape_cast %293 : vector<32xf32> to vector<1x1x32xf32>
    %295 = vector.broadcast %294 : vector<1x1x32xf32> to vector<8x8x32xf32>
    %296 = arith.mulf %291, %295 : vector<8x8x32xf32>
    %297 = arith.addf %289, %296 : vector<8x8x32xf32>
    %c0_144 = arith.constant 0 : index
    %c5_145 = arith.constant 5 : index
    %c2_146 = arith.constant 2 : index
    %c0_147 = arith.constant 0 : index
    %298 = vector.load %arg1[%c0_144, %c5_145, %c2_146, %c0_147] : memref<1x14x14x32xf32, #tpu.memory_space<vmem>>, vector<1x8x8x32xf32>
    %299 = vector.shape_cast %298 : vector<1x8x8x32xf32> to vector<8x8x32xf32>
    %300 = vector.extract_strided_slice %0 {offsets = [5, 2, 0], sizes = [1, 1, 32], strides = [1, 1, 1]} : vector<7x7x32xf32> to vector<1x1x32xf32>
    %301 = vector.shape_cast %300 : vector<1x1x32xf32> to vector<32xf32>
    %302 = vector.shape_cast %301 : vector<32xf32> to vector<1x1x32xf32>
    %303 = vector.broadcast %302 : vector<1x1x32xf32> to vector<8x8x32xf32>
    %304 = arith.mulf %299, %303 : vector<8x8x32xf32>
    %305 = arith.addf %297, %304 : vector<8x8x32xf32>
    %c0_148 = arith.constant 0 : index
    %c5_149 = arith.constant 5 : index
    %c3_150 = arith.constant 3 : index
    %c0_151 = arith.constant 0 : index
    %306 = vector.load %arg1[%c0_148, %c5_149, %c3_150, %c0_151] : memref<1x14x14x32xf32, #tpu.memory_space<vmem>>, vector<1x8x8x32xf32>
    %307 = vector.shape_cast %306 : vector<1x8x8x32xf32> to vector<8x8x32xf32>
    %308 = vector.extract_strided_slice %0 {offsets = [5, 3, 0], sizes = [1, 1, 32], strides = [1, 1, 1]} : vector<7x7x32xf32> to vector<1x1x32xf32>
    %309 = vector.shape_cast %308 : vector<1x1x32xf32> to vector<32xf32>
    %310 = vector.shape_cast %309 : vector<32xf32> to vector<1x1x32xf32>
    %311 = vector.broadcast %310 : vector<1x1x32xf32> to vector<8x8x32xf32>
    %312 = arith.mulf %307, %311 : vector<8x8x32xf32>
    %313 = arith.addf %305, %312 : vector<8x8x32xf32>
    %c0_152 = arith.constant 0 : index
    %c5_153 = arith.constant 5 : index
    %c4_154 = arith.constant 4 : index
    %c0_155 = arith.constant 0 : index
    %314 = vector.load %arg1[%c0_152, %c5_153, %c4_154, %c0_155] : memref<1x14x14x32xf32, #tpu.memory_space<vmem>>, vector<1x8x8x32xf32>
    %315 = vector.shape_cast %314 : vector<1x8x8x32xf32> to vector<8x8x32xf32>
    %316 = vector.extract_strided_slice %0 {offsets = [5, 4, 0], sizes = [1, 1, 32], strides = [1, 1, 1]} : vector<7x7x32xf32> to vector<1x1x32xf32>
    %317 = vector.shape_cast %316 : vector<1x1x32xf32> to vector<32xf32>
    %318 = vector.shape_cast %317 : vector<32xf32> to vector<1x1x32xf32>
    %319 = vector.broadcast %318 : vector<1x1x32xf32> to vector<8x8x32xf32>
    %320 = arith.mulf %315, %319 : vector<8x8x32xf32>
    %321 = arith.addf %313, %320 : vector<8x8x32xf32>
    %c0_156 = arith.constant 0 : index
    %c5_157 = arith.constant 5 : index
    %c5_158 = arith.constant 5 : index
    %c0_159 = arith.constant 0 : index
    %322 = vector.load %arg1[%c0_156, %c5_157, %c5_158, %c0_159] : memref<1x14x14x32xf32, #tpu.memory_space<vmem>>, vector<1x8x8x32xf32>
    %323 = vector.shape_cast %322 : vector<1x8x8x32xf32> to vector<8x8x32xf32>
    %324 = vector.extract_strided_slice %0 {offsets = [5, 5, 0], sizes = [1, 1, 32], strides = [1, 1, 1]} : vector<7x7x32xf32> to vector<1x1x32xf32>
    %325 = vector.shape_cast %324 : vector<1x1x32xf32> to vector<32xf32>
    %326 = vector.shape_cast %325 : vector<32xf32> to vector<1x1x32xf32>
    %327 = vector.broadcast %326 : vector<1x1x32xf32> to vector<8x8x32xf32>
    %328 = arith.mulf %323, %327 : vector<8x8x32xf32>
    %329 = arith.addf %321, %328 : vector<8x8x32xf32>
    %c0_160 = arith.constant 0 : index
    %c5_161 = arith.constant 5 : index
    %c6_162 = arith.constant 6 : index
    %c0_163 = arith.constant 0 : index
    %330 = vector.load %arg1[%c0_160, %c5_161, %c6_162, %c0_163] : memref<1x14x14x32xf32, #tpu.memory_space<vmem>>, vector<1x8x8x32xf32>
    %331 = vector.shape_cast %330 : vector<1x8x8x32xf32> to vector<8x8x32xf32>
    %332 = vector.extract_strided_slice %0 {offsets = [5, 6, 0], sizes = [1, 1, 32], strides = [1, 1, 1]} : vector<7x7x32xf32> to vector<1x1x32xf32>
    %333 = vector.shape_cast %332 : vector<1x1x32xf32> to vector<32xf32>
    %334 = vector.shape_cast %333 : vector<32xf32> to vector<1x1x32xf32>
    %335 = vector.broadcast %334 : vector<1x1x32xf32> to vector<8x8x32xf32>
    %336 = arith.mulf %331, %335 : vector<8x8x32xf32>
    %337 = arith.addf %329, %336 : vector<8x8x32xf32>
    %c0_164 = arith.constant 0 : index
    %c6_165 = arith.constant 6 : index
    %c0_166 = arith.constant 0 : index
    %c0_167 = arith.constant 0 : index
    %338 = vector.load %arg1[%c0_164, %c6_165, %c0_166, %c0_167] : memref<1x14x14x32xf32, #tpu.memory_space<vmem>>, vector<1x8x8x32xf32>
    %339 = vector.shape_cast %338 : vector<1x8x8x32xf32> to vector<8x8x32xf32>
    %340 = vector.extract_strided_slice %0 {offsets = [6, 0, 0], sizes = [1, 1, 32], strides = [1, 1, 1]} : vector<7x7x32xf32> to vector<1x1x32xf32>
    %341 = vector.shape_cast %340 : vector<1x1x32xf32> to vector<32xf32>
    %342 = vector.shape_cast %341 : vector<32xf32> to vector<1x1x32xf32>
    %343 = vector.broadcast %342 : vector<1x1x32xf32> to vector<8x8x32xf32>
    %344 = arith.mulf %339, %343 : vector<8x8x32xf32>
    %345 = arith.addf %337, %344 : vector<8x8x32xf32>
    %c0_168 = arith.constant 0 : index
    %c6_169 = arith.constant 6 : index
    %c1_170 = arith.constant 1 : index
    %c0_171 = arith.constant 0 : index
    %346 = vector.load %arg1[%c0_168, %c6_169, %c1_170, %c0_171] : memref<1x14x14x32xf32, #tpu.memory_space<vmem>>, vector<1x8x8x32xf32>
    %347 = vector.shape_cast %346 : vector<1x8x8x32xf32> to vector<8x8x32xf32>
    %348 = vector.extract_strided_slice %0 {offsets = [6, 1, 0], sizes = [1, 1, 32], strides = [1, 1, 1]} : vector<7x7x32xf32> to vector<1x1x32xf32>
    %349 = vector.shape_cast %348 : vector<1x1x32xf32> to vector<32xf32>
    %350 = vector.shape_cast %349 : vector<32xf32> to vector<1x1x32xf32>
    %351 = vector.broadcast %350 : vector<1x1x32xf32> to vector<8x8x32xf32>
    %352 = arith.mulf %347, %351 : vector<8x8x32xf32>
    %353 = arith.addf %345, %352 : vector<8x8x32xf32>
    %c0_172 = arith.constant 0 : index
    %c6_173 = arith.constant 6 : index
    %c2_174 = arith.constant 2 : index
    %c0_175 = arith.constant 0 : index
    %354 = vector.load %arg1[%c0_172, %c6_173, %c2_174, %c0_175] : memref<1x14x14x32xf32, #tpu.memory_space<vmem>>, vector<1x8x8x32xf32>
    %355 = vector.shape_cast %354 : vector<1x8x8x32xf32> to vector<8x8x32xf32>
    %356 = vector.extract_strided_slice %0 {offsets = [6, 2, 0], sizes = [1, 1, 32], strides = [1, 1, 1]} : vector<7x7x32xf32> to vector<1x1x32xf32>
    %357 = vector.shape_cast %356 : vector<1x1x32xf32> to vector<32xf32>
    %358 = vector.shape_cast %357 : vector<32xf32> to vector<1x1x32xf32>
    %359 = vector.broadcast %358 : vector<1x1x32xf32> to vector<8x8x32xf32>
    %360 = arith.mulf %355, %359 : vector<8x8x32xf32>
    %361 = arith.addf %353, %360 : vector<8x8x32xf32>
    %c0_176 = arith.constant 0 : index
    %c6_177 = arith.constant 6 : index
    %c3_178 = arith.constant 3 : index
    %c0_179 = arith.constant 0 : index
    %362 = vector.load %arg1[%c0_176, %c6_177, %c3_178, %c0_179] : memref<1x14x14x32xf32, #tpu.memory_space<vmem>>, vector<1x8x8x32xf32>
    %363 = vector.shape_cast %362 : vector<1x8x8x32xf32> to vector<8x8x32xf32>
    %364 = vector.extract_strided_slice %0 {offsets = [6, 3, 0], sizes = [1, 1, 32], strides = [1, 1, 1]} : vector<7x7x32xf32> to vector<1x1x32xf32>
    %365 = vector.shape_cast %364 : vector<1x1x32xf32> to vector<32xf32>
    %366 = vector.shape_cast %365 : vector<32xf32> to vector<1x1x32xf32>
    %367 = vector.broadcast %366 : vector<1x1x32xf32> to vector<8x8x32xf32>
    %368 = arith.mulf %363, %367 : vector<8x8x32xf32>
    %369 = arith.addf %361, %368 : vector<8x8x32xf32>
    %c0_180 = arith.constant 0 : index
    %c6_181 = arith.constant 6 : index
    %c4_182 = arith.constant 4 : index
    %c0_183 = arith.constant 0 : index
    %370 = vector.load %arg1[%c0_180, %c6_181, %c4_182, %c0_183] : memref<1x14x14x32xf32, #tpu.memory_space<vmem>>, vector<1x8x8x32xf32>
    %371 = vector.shape_cast %370 : vector<1x8x8x32xf32> to vector<8x8x32xf32>
    %372 = vector.extract_strided_slice %0 {offsets = [6, 4, 0], sizes = [1, 1, 32], strides = [1, 1, 1]} : vector<7x7x32xf32> to vector<1x1x32xf32>
    %373 = vector.shape_cast %372 : vector<1x1x32xf32> to vector<32xf32>
    %374 = vector.shape_cast %373 : vector<32xf32> to vector<1x1x32xf32>
    %375 = vector.broadcast %374 : vector<1x1x32xf32> to vector<8x8x32xf32>
    %376 = arith.mulf %371, %375 : vector<8x8x32xf32>
    %377 = arith.addf %369, %376 : vector<8x8x32xf32>
    %c0_184 = arith.constant 0 : index
    %c6_185 = arith.constant 6 : index
    %c5_186 = arith.constant 5 : index
    %c0_187 = arith.constant 0 : index
    %378 = vector.load %arg1[%c0_184, %c6_185, %c5_186, %c0_187] : memref<1x14x14x32xf32, #tpu.memory_space<vmem>>, vector<1x8x8x32xf32>
    %379 = vector.shape_cast %378 : vector<1x8x8x32xf32> to vector<8x8x32xf32>
    %380 = vector.extract_strided_slice %0 {offsets = [6, 5, 0], sizes = [1, 1, 32], strides = [1, 1, 1]} : vector<7x7x32xf32> to vector<1x1x32xf32>
    %381 = vector.shape_cast %380 : vector<1x1x32xf32> to vector<32xf32>
    %382 = vector.shape_cast %381 : vector<32xf32> to vector<1x1x32xf32>
    %383 = vector.broadcast %382 : vector<1x1x32xf32> to vector<8x8x32xf32>
    %384 = arith.mulf %379, %383 : vector<8x8x32xf32>
    %385 = arith.addf %377, %384 : vector<8x8x32xf32>
    %c0_188 = arith.constant 0 : index
    %c6_189 = arith.constant 6 : index
    %c6_190 = arith.constant 6 : index
    %c0_191 = arith.constant 0 : index
    %386 = vector.load %arg1[%c0_188, %c6_189, %c6_190, %c0_191] : memref<1x14x14x32xf32, #tpu.memory_space<vmem>>, vector<1x8x8x32xf32>
    %387 = vector.shape_cast %386 : vector<1x8x8x32xf32> to vector<8x8x32xf32>
    %388 = vector.extract_strided_slice %0 {offsets = [6, 6, 0], sizes = [1, 1, 32], strides = [1, 1, 1]} : vector<7x7x32xf32> to vector<1x1x32xf32>
    %389 = vector.shape_cast %388 : vector<1x1x32xf32> to vector<32xf32>
    %390 = vector.shape_cast %389 : vector<32xf32> to vector<1x1x32xf32>
    %391 = vector.broadcast %390 : vector<1x1x32xf32> to vector<8x8x32xf32>
    %392 = arith.mulf %387, %391 : vector<8x8x32xf32>
    %393 = arith.addf %385, %392 : vector<8x8x32xf32>
    %c0_192 = arith.constant 0 : index
    %c0_193 = arith.constant 0 : index
    %394 = vector.load %arg3[%c0_192, %c0_193] : memref<1x32xf32, #tpu.memory_space<vmem>>, vector<1x32xf32>
    %395 = vector.shape_cast %394 : vector<1x32xf32> to vector<1x1x32xf32>
    %396 = vector.broadcast %395 : vector<1x1x32xf32> to vector<8x8x32xf32>
    %397 = arith.addf %393, %396 : vector<8x8x32xf32>
    %c0_194 = arith.constant 0 : index
    %c0_195 = arith.constant 0 : index
    %c0_196 = arith.constant 0 : index
    %c0_197 = arith.constant 0 : index
    %398 = vector.load %arg4[%c0_194, %c0_195, %c0_196, %c0_197] : memref<1x8x8x32xf32, #tpu.memory_space<vmem>>, vector<1x8x8x32xf32>
    %399 = vector.shape_cast %398 : vector<1x8x8x32xf32> to vector<8x8x32xf32>
    %400 = vector.shape_cast %397 : vector<8x8x32xf32> to vector<1x8x8x32xf32>
    tpu.vector_store %arg4[%c0_194, %c0_195, %c0_196, %c0_197], %400 {strides = array<i32>} : memref<1x8x8x32xf32, #tpu.memory_space<vmem>>, vector<1x8x8x32xf32>,
    return
  }
  func.func @transform_0(%arg0: i32) -> (i32, i32, i32, i32) {
    %c0_i32 = arith.constant 0 : i32
    %c0_i32_0 = arith.constant 0 : i32
    %c0_i32_1 = arith.constant 0 : i32
    %c0_i32_2 = arith.constant 0 : i32
    return %arg0, %c0_i32, %c0_i32_0, %c0_i32_1 : i32, i32, i32, i32
  }
  func.func @transform_1(%arg0: i32) -> (i32, i32, i32) {
    %c0_i32 = arith.constant 0 : i32
    %c0_i32_0 = arith.constant 0 : i32
    %c0_i32_1 = arith.constant 0 : i32
    %c0_i32_2 = arith.constant 0 : i32
    return %c0_i32, %c0_i32_0, %c0_i32_1 : i32, i32, i32
  }
  func.func @transform_2(%arg0: i32) -> (i32, i32) {
    %c0_i32 = arith.constant 0 : i32
    %c0_i32_0 = arith.constant 0 : i32
    %c0_i32_1 = arith.constant 0 : i32
    return %c0_i32, %c0_i32_0 : i32, i32
  }
  func.func @transform_3(%arg0: i32) -> (i32, i32, i32, i32) {
    %c0_i32 = arith.constant 0 : i32
    %c0_i32_0 = arith.constant 0 : i32
    %c0_i32_1 = arith.constant 0 : i32
    %c0_i32_2 = arith.constant 0 : i32
    return %arg0, %c0_i32, %c0_i32_0, %c0_i32_1 : i32, i32, i32, i32
  }
}

module attributes {stable_mosaic.version = 11 : i64} {
  func.func @_layernorm_kernel(%arg0: i32, %arg1: memref<64x32xf32, #tpu.memory_space<vmem>>, %arg2: memref<1x32xf32, #tpu.memory_space<vmem>>, %arg3: memref<1x32xf32, #tpu.memory_space<vmem>>, %arg4: memref<64x32xf32, #tpu.memory_space<vmem>>) attributes {dimension_semantics = [#tpu.dimension_semantics<parallel>], iteration_bounds = array<i64: 2>, scalar_prefetch = 0 : i64, scratch_operands = 0 : i64, tpu.core_type = #tpu.core_type<tc>, window_params = [{transform_indices = @transform_0, window_bounds = array<i64: 64, 32>}, {pipeline_mode = #tpu.pipeline_mode<synchronous>, transform_indices = @transform_1, window_bounds = array<i64: 1, 32>}, {pipeline_mode = #tpu.pipeline_mode<synchronous>, transform_indices = @transform_2, window_bounds = array<i64: 1, 32>}, {transform_indices = @transform_3, window_bounds = array<i64: 64, 32>}]} {
    %c0 = arith.constant 0 : index
    %c0_0 = arith.constant 0 : index
    %0 = vector.load %arg1[%c0, %c0_0] : memref<64x32xf32, #tpu.memory_space<vmem>>, vector<64x32xf32>
    %c0_1 = arith.constant 0 : index
    %c0_2 = arith.constant 0 : index
    %1 = vector.load %arg2[%c0_1, %c0_2] : memref<1x32xf32, #tpu.memory_space<vmem>>, vector<1x32xf32>
    %c0_3 = arith.constant 0 : index
    %c0_4 = arith.constant 0 : index
    %2 = vector.load %arg3[%c0_3, %c0_4] : memref<1x32xf32, #tpu.memory_space<vmem>>, vector<1x32xf32>
    %cst = arith.constant dense<0.000000e+00> : vector<64xf32>
    %3 = vector.multi_reduction <add>, %0, %cst [1] : vector<64x32xf32> to vector<64xf32>
    %4 = vector.shape_cast %3 : vector<64xf32> to vector<64x1xf32>
    %cst_5 = arith.constant 3.200000e+01 : f32
    %5 = vector.broadcast %cst_5 : f32 to vector<64x1xf32>
    %6 = arith.divf %4, %5 : vector<64x1xf32>
    %7 = vector.broadcast %6 : vector<64x1xf32> to vector<64x32xf32>
    %8 = arith.subf %0, %7 : vector<64x32xf32>
    %9 = arith.mulf %8, %8 : vector<64x32xf32>
    %cst_6 = arith.constant dense<0.000000e+00> : vector<64xf32>
    %10 = vector.multi_reduction <add>, %9, %cst_6 [1] : vector<64x32xf32> to vector<64xf32>
    %11 = vector.shape_cast %10 : vector<64xf32> to vector<64x1xf32>
    %cst_7 = arith.constant 3.200000e+01 : f32
    %12 = vector.broadcast %cst_7 : f32 to vector<64x1xf32>
    %13 = arith.divf %11, %12 : vector<64x1xf32>
    %cst_8 = arith.constant 9.99999997E-7 : f32
    %14 = vector.broadcast %cst_8 : f32 to vector<64x1xf32>
    %15 = arith.addf %13, %14 : vector<64x1xf32>
    %16 = math.rsqrt %15 : vector<64x1xf32>
    %17 = vector.broadcast %16 : vector<64x1xf32> to vector<64x32xf32>
    %18 = arith.mulf %8, %17 : vector<64x32xf32>
    %19 = vector.broadcast %1 : vector<1x32xf32> to vector<64x32xf32>
    %20 = arith.mulf %18, %19 : vector<64x32xf32>
    %21 = vector.broadcast %2 : vector<1x32xf32> to vector<64x32xf32>
    %22 = arith.addf %20, %21 : vector<64x32xf32>
    %c0_9 = arith.constant 0 : index
    %c0_10 = arith.constant 0 : index
    %23 = vector.load %arg4[%c0_9, %c0_10] : memref<64x32xf32, #tpu.memory_space<vmem>>, vector<64x32xf32>
    tpu.vector_store %arg4[%c0_9, %c0_10], %22 {strides = array<i32>} : memref<64x32xf32, #tpu.memory_space<vmem>>, vector<64x32xf32>,
    return
  }
  func.func @transform_0(%arg0: i32) -> (i32, i32) {
    %c0_i32 = arith.constant 0 : i32
    %c0_i32_0 = arith.constant 0 : i32
    return %arg0, %c0_i32 : i32, i32
  }
  func.func @transform_1(%arg0: i32) -> (i32, i32) {
    %c0_i32 = arith.constant 0 : i32
    %c0_i32_0 = arith.constant 0 : i32
    %c0_i32_1 = arith.constant 0 : i32
    return %c0_i32, %c0_i32_0 : i32, i32
  }
  func.func @transform_2(%arg0: i32) -> (i32, i32) {
    %c0_i32 = arith.constant 0 : i32
    %c0_i32_0 = arith.constant 0 : i32
    %c0_i32_1 = arith.constant 0 : i32
    return %c0_i32, %c0_i32_0 : i32, i32
  }
  func.func @transform_3(%arg0: i32) -> (i32, i32) {
    %c0_i32 = arith.constant 0 : i32
    %c0_i32_0 = arith.constant 0 : i32
    return %arg0, %c0_i32 : i32, i32
  }
}

module attributes {stable_mosaic.version = 11 : i64} {
  func.func @_fused_mlp_kernel(%arg0: i32, %arg1: memref<64x32xf32, #tpu.memory_space<vmem>>, %arg2: memref<64x32xf32, #tpu.memory_space<vmem>>, %arg3: memref<1x32xf32, #tpu.memory_space<vmem>>, %arg4: memref<1x32xf32, #tpu.memory_space<vmem>>, %arg5: memref<32x128xf32, #tpu.memory_space<vmem>>, %arg6: memref<1x128xf32, #tpu.memory_space<vmem>>, %arg7: memref<128x32xf32, #tpu.memory_space<vmem>>, %arg8: memref<1x32xf32, #tpu.memory_space<vmem>>, %arg9: memref<64x32xf32, #tpu.memory_space<vmem>>) attributes {dimension_semantics = [#tpu.dimension_semantics<parallel>], iteration_bounds = array<i64: 2>, scalar_prefetch = 0 : i64, scratch_operands = 0 : i64, tpu.core_type = #tpu.core_type<tc>, window_params = [{transform_indices = @transform_0, window_bounds = array<i64: 64, 32>}, {transform_indices = @transform_1, window_bounds = array<i64: 64, 32>}, {pipeline_mode = #tpu.pipeline_mode<synchronous>, transform_indices = @transform_2, window_bounds = array<i64: 1, 32>}, {pipeline_mode = #tpu.pipeline_mode<synchronous>, transform_indices = @transform_3, window_bounds = array<i64: 1, 32>}, {pipeline_mode = #tpu.pipeline_mode<synchronous>, transform_indices = @transform_4, window_bounds = array<i64: 32, 128>}, {pipeline_mode = #tpu.pipeline_mode<synchronous>, transform_indices = @transform_5, window_bounds = array<i64: 1, 128>}, {pipeline_mode = #tpu.pipeline_mode<synchronous>, transform_indices = @transform_6, window_bounds = array<i64: 128, 32>}, {pipeline_mode = #tpu.pipeline_mode<synchronous>, transform_indices = @transform_7, window_bounds = array<i64: 1, 32>}, {transform_indices = @transform_8, window_bounds = array<i64: 64, 32>}]} {
    %c0 = arith.constant 0 : index
    %c0_0 = arith.constant 0 : index
    %0 = vector.load %arg1[%c0, %c0_0] : memref<64x32xf32, #tpu.memory_space<vmem>>, vector<64x32xf32>
    %c0_1 = arith.constant 0 : index
    %c0_2 = arith.constant 0 : index
    %1 = vector.load %arg3[%c0_1, %c0_2] : memref<1x32xf32, #tpu.memory_space<vmem>>, vector<1x32xf32>
    %c0_3 = arith.constant 0 : index
    %c0_4 = arith.constant 0 : index
    %2 = vector.load %arg4[%c0_3, %c0_4] : memref<1x32xf32, #tpu.memory_space<vmem>>, vector<1x32xf32>
    %cst = arith.constant dense<0.000000e+00> : vector<64xf32>
    %3 = vector.multi_reduction <add>, %0, %cst [1] : vector<64x32xf32> to vector<64xf32>
    %4 = vector.shape_cast %3 : vector<64xf32> to vector<64x1xf32>
    %cst_5 = arith.constant 3.200000e+01 : f32
    %5 = vector.broadcast %cst_5 : f32 to vector<64x1xf32>
    %6 = arith.divf %4, %5 : vector<64x1xf32>
    %7 = vector.broadcast %6 : vector<64x1xf32> to vector<64x32xf32>
    %8 = arith.subf %0, %7 : vector<64x32xf32>
    %9 = arith.mulf %8, %8 : vector<64x32xf32>
    %cst_6 = arith.constant dense<0.000000e+00> : vector<64xf32>
    %10 = vector.multi_reduction <add>, %9, %cst_6 [1] : vector<64x32xf32> to vector<64xf32>
    %11 = vector.shape_cast %10 : vector<64xf32> to vector<64x1xf32>
    %cst_7 = arith.constant 3.200000e+01 : f32
    %12 = vector.broadcast %cst_7 : f32 to vector<64x1xf32>
    %13 = arith.divf %11, %12 : vector<64x1xf32>
    %cst_8 = arith.constant 9.99999997E-7 : f32
    %14 = vector.broadcast %cst_8 : f32 to vector<64x1xf32>
    %15 = arith.addf %13, %14 : vector<64x1xf32>
    %16 = math.rsqrt %15 : vector<64x1xf32>
    %17 = vector.broadcast %16 : vector<64x1xf32> to vector<64x32xf32>
    %18 = arith.mulf %8, %17 : vector<64x32xf32>
    %19 = vector.broadcast %1 : vector<1x32xf32> to vector<64x32xf32>
    %20 = arith.mulf %18, %19 : vector<64x32xf32>
    %21 = vector.broadcast %2 : vector<1x32xf32> to vector<64x32xf32>
    %22 = arith.addf %20, %21 : vector<64x32xf32>
    %c0_9 = arith.constant 0 : index
    %c0_10 = arith.constant 0 : index
    %23 = vector.load %arg5[%c0_9, %c0_10] : memref<32x128xf32, #tpu.memory_space<vmem>>, vector<32x128xf32>
    %24 = arith.truncf %22 : vector<64x32xf32> to vector<64x32xbf16>
    %25 = arith.truncf %23 : vector<32x128xf32> to vector<32x128xbf16>
    %cst_11 = arith.constant dense<0.000000e+00> : vector<64x128xf32>
    %26 = tpu.matmul %24, %25, %cst_11 {dimension_numbers = #tpu.dot_dimension_numbers<[1], [0], [0], [1], [0, 0, 1, 1], [], []>} : vector<64x32xbf16>, vector<32x128xbf16>, vector<64x128xf32> -> vector<64x128xf32>
    %c0_12 = arith.constant 0 : index
    %c0_13 = arith.constant 0 : index
    %27 = vector.load %arg6[%c0_12, %c0_13] : memref<1x128xf32, #tpu.memory_space<vmem>>, vector<1x128xf32>
    %28 = vector.broadcast %27 : vector<1x128xf32> to vector<64x128xf32>
    %29 = arith.addf %26, %28 : vector<64x128xf32>
    %cst_14 = arith.constant 5.000000e-01 : f32
    %30 = vector.broadcast %cst_14 : f32 to vector<64x128xf32>
    %31 = arith.mulf %30, %29 : vector<64x128xf32>
    %cst_15 = arith.constant 4.471500e-02 : f32
    %32 = vector.broadcast %cst_15 : f32 to vector<64x128xf32>
    %33 = arith.mulf %32, %29 : vector<64x128xf32>
    %34 = arith.mulf %33, %29 : vector<64x128xf32>
    %35 = arith.mulf %34, %29 : vector<64x128xf32>
    %36 = arith.addf %29, %35 : vector<64x128xf32>
    %cst_16 = arith.constant 0.797884583 : f32
    %37 = vector.broadcast %cst_16 : f32 to vector<64x128xf32>
    %38 = arith.mulf %37, %36 : vector<64x128xf32>
    %39 = math.tanh %38 : vector<64x128xf32>
    %cst_17 = arith.constant 1.000000e+00 : f32
    %40 = vector.broadcast %cst_17 : f32 to vector<64x128xf32>
    %41 = arith.addf %40, %39 : vector<64x128xf32>
    %42 = arith.mulf %31, %41 : vector<64x128xf32>
    %c0_18 = arith.constant 0 : index
    %c0_19 = arith.constant 0 : index
    %43 = vector.load %arg7[%c0_18, %c0_19] : memref<128x32xf32, #tpu.memory_space<vmem>>, vector<128x32xf32>
    %44 = arith.truncf %42 : vector<64x128xf32> to vector<64x128xbf16>
    %45 = arith.truncf %43 : vector<128x32xf32> to vector<128x32xbf16>
    %cst_20 = arith.constant dense<0.000000e+00> : vector<64x32xf32>
    %46 = tpu.matmul %44, %45, %cst_20 {dimension_numbers = #tpu.dot_dimension_numbers<[1], [0], [0], [1], [0, 0, 1, 1], [], []>} : vector<64x128xbf16>, vector<128x32xbf16>, vector<64x32xf32> -> vector<64x32xf32>
    %c0_21 = arith.constant 0 : index
    %c0_22 = arith.constant 0 : index
    %47 = vector.load %arg8[%c0_21, %c0_22] : memref<1x32xf32, #tpu.memory_space<vmem>>, vector<1x32xf32>
    %48 = vector.broadcast %47 : vector<1x32xf32> to vector<64x32xf32>
    %49 = arith.addf %46, %48 : vector<64x32xf32>
    %c0_23 = arith.constant 0 : index
    %c0_24 = arith.constant 0 : index
    %50 = vector.load %arg2[%c0_23, %c0_24] : memref<64x32xf32, #tpu.memory_space<vmem>>, vector<64x32xf32>
    %51 = arith.addf %50, %49 : vector<64x32xf32>
    %c0_25 = arith.constant 0 : index
    %c0_26 = arith.constant 0 : index
    %52 = vector.load %arg9[%c0_25, %c0_26] : memref<64x32xf32, #tpu.memory_space<vmem>>, vector<64x32xf32>
    tpu.vector_store %arg9[%c0_25, %c0_26], %51 {strides = array<i32>} : memref<64x32xf32, #tpu.memory_space<vmem>>, vector<64x32xf32>,
    return
  }
  func.func @transform_0(%arg0: i32) -> (i32, i32) {
    %c0_i32 = arith.constant 0 : i32
    %c0_i32_0 = arith.constant 0 : i32
    return %arg0, %c0_i32 : i32, i32
  }
  func.func @transform_1(%arg0: i32) -> (i32, i32) {
    %c0_i32 = arith.constant 0 : i32
    %c0_i32_0 = arith.constant 0 : i32
    return %arg0, %c0_i32 : i32, i32
  }
  func.func @transform_2(%arg0: i32) -> (i32, i32) {
    %c0_i32 = arith.constant 0 : i32
    %c0_i32_0 = arith.constant 0 : i32
    %c0_i32_1 = arith.constant 0 : i32
    return %c0_i32, %c0_i32_0 : i32, i32
  }
  func.func @transform_3(%arg0: i32) -> (i32, i32) {
    %c0_i32 = arith.constant 0 : i32
    %c0_i32_0 = arith.constant 0 : i32
    %c0_i32_1 = arith.constant 0 : i32
    return %c0_i32, %c0_i32_0 : i32, i32
  }
  func.func @transform_4(%arg0: i32) -> (i32, i32) {
    %c0_i32 = arith.constant 0 : i32
    %c0_i32_0 = arith.constant 0 : i32
    %c0_i32_1 = arith.constant 0 : i32
    return %c0_i32, %c0_i32_0 : i32, i32
  }
  func.func @transform_5(%arg0: i32) -> (i32, i32) {
    %c0_i32 = arith.constant 0 : i32
    %c0_i32_0 = arith.constant 0 : i32
    %c0_i32_1 = arith.constant 0 : i32
    return %c0_i32, %c0_i32_0 : i32, i32
  }
  func.func @transform_6(%arg0: i32) -> (i32, i32) {
    %c0_i32 = arith.constant 0 : i32
    %c0_i32_0 = arith.constant 0 : i32
    %c0_i32_1 = arith.constant 0 : i32
    return %c0_i32, %c0_i32_0 : i32, i32
  }
  func.func @transform_7(%arg0: i32) -> (i32, i32) {
    %c0_i32 = arith.constant 0 : i32
    %c0_i32_0 = arith.constant 0 : i32
    %c0_i32_1 = arith.constant 0 : i32
    return %c0_i32, %c0_i32_0 : i32, i32
  }
  func.func @transform_8(%arg0: i32) -> (i32, i32) {
    %c0_i32 = arith.constant 0 : i32
    %c0_i32_0 = arith.constant 0 : i32
    return %arg0, %c0_i32 : i32, i32
  }
}

module attributes {stable_mosaic.version = 11 : i64} {
  func.func @_fused_linear_kernel(%arg0: i32, %arg1: memref<16x128xf32, #tpu.memory_space<vmem>>, %arg2: memref<128x64xf32, #tpu.memory_space<vmem>>, %arg3: memref<1x64xf32, #tpu.memory_space<vmem>>, %arg4: memref<16x64xf32, #tpu.memory_space<vmem>>) attributes {dimension_semantics = [#tpu.dimension_semantics<parallel>], iteration_bounds = array<i64: 2>, scalar_prefetch = 0 : i64, scratch_operands = 0 : i64, tpu.core_type = #tpu.core_type<tc>, window_params = [{transform_indices = @transform_0, window_bounds = array<i64: 16, 128>}, {pipeline_mode = #tpu.pipeline_mode<synchronous>, transform_indices = @transform_1, window_bounds = array<i64: 128, 64>}, {pipeline_mode = #tpu.pipeline_mode<synchronous>, transform_indices = @transform_2, window_bounds = array<i64: 1, 64>}, {transform_indices = @transform_3, window_bounds = array<i64: 16, 64>}]} {
    %c0 = arith.constant 0 : index
    %c0_0 = arith.constant 0 : index
    %0 = vector.load %arg1[%c0, %c0_0] : memref<16x128xf32, #tpu.memory_space<vmem>>, vector<16x128xf32>
    %c0_1 = arith.constant 0 : index
    %c0_2 = arith.constant 0 : index
    %1 = vector.load %arg2[%c0_1, %c0_2] : memref<128x64xf32, #tpu.memory_space<vmem>>, vector<128x64xf32>
    %2 = arith.truncf %0 : vector<16x128xf32> to vector<16x128xbf16>
    %3 = arith.truncf %1 : vector<128x64xf32> to vector<128x64xbf16>
    %cst = arith.constant dense<0.000000e+00> : vector<16x64xf32>
    %4 = tpu.matmul %2, %3, %cst {dimension_numbers = #tpu.dot_dimension_numbers<[1], [0], [0], [1], [0, 0, 1, 1], [], []>} : vector<16x128xbf16>, vector<128x64xbf16>, vector<16x64xf32> -> vector<16x64xf32>
    %c0_3 = arith.constant 0 : index
    %c0_4 = arith.constant 0 : index
    %5 = vector.load %arg3[%c0_3, %c0_4] : memref<1x64xf32, #tpu.memory_space<vmem>>, vector<1x64xf32>
    %6 = vector.broadcast %5 : vector<1x64xf32> to vector<16x64xf32>
    %7 = arith.addf %4, %6 : vector<16x64xf32>
    %c0_5 = arith.constant 0 : index
    %c0_6 = arith.constant 0 : index
    %8 = vector.load %arg4[%c0_5, %c0_6] : memref<16x64xf32, #tpu.memory_space<vmem>>, vector<16x64xf32>
    tpu.vector_store %arg4[%c0_5, %c0_6], %7 {strides = array<i32>} : memref<16x64xf32, #tpu.memory_space<vmem>>, vector<16x64xf32>,
    return
  }
  func.func @transform_0(%arg0: i32) -> (i32, i32) {
    %c0_i32 = arith.constant 0 : i32
    %c0_i32_0 = arith.constant 0 : i32
    return %arg0, %c0_i32 : i32, i32
  }
  func.func @transform_1(%arg0: i32) -> (i32, i32) {
    %c0_i32 = arith.constant 0 : i32
    %c0_i32_0 = arith.constant 0 : i32
    %c0_i32_1 = arith.constant 0 : i32
    return %c0_i32, %c0_i32_0 : i32, i32
  }
  func.func @transform_2(%arg0: i32) -> (i32, i32) {
    %c0_i32 = arith.constant 0 : i32
    %c0_i32_0 = arith.constant 0 : i32
    %c0_i32_1 = arith.constant 0 : i32
    return %c0_i32, %c0_i32_0 : i32, i32
  }
  func.func @transform_3(%arg0: i32) -> (i32, i32) {
    %c0_i32 = arith.constant 0 : i32
    %c0_i32_0 = arith.constant 0 : i32
    return %arg0, %c0_i32 : i32, i32
  }
}

module attributes {stable_mosaic.version = 11 : i64} {
  func.func @_dwconv_kernel(%arg0: i32, %arg1: memref<1x10x10x64xf32, #tpu.memory_space<vmem>>, %arg2: memref<7x7x64xf32, #tpu.memory_space<vmem>>, %arg3: memref<1x64xf32, #tpu.memory_space<vmem>>, %arg4: memref<1x4x4x64xf32, #tpu.memory_space<vmem>>) attributes {dimension_semantics = [#tpu.dimension_semantics<parallel>], iteration_bounds = array<i64: 2>, scalar_prefetch = 0 : i64, scratch_operands = 0 : i64, tpu.core_type = #tpu.core_type<tc>, window_params = [{transform_indices = @transform_0, window_bounds = array<i64: 1, 10, 10, 64>}, {pipeline_mode = #tpu.pipeline_mode<synchronous>, transform_indices = @transform_1, window_bounds = array<i64: 7, 7, 64>}, {pipeline_mode = #tpu.pipeline_mode<synchronous>, transform_indices = @transform_2, window_bounds = array<i64: 1, 64>}, {transform_indices = @transform_3, window_bounds = array<i64: 1, 4, 4, 64>}]} {
    %c0 = arith.constant 0 : index
    %c0_0 = arith.constant 0 : index
    %c0_1 = arith.constant 0 : index
    %0 = vector.load %arg2[%c0, %c0_0, %c0_1] : memref<7x7x64xf32, #tpu.memory_space<vmem>>, vector<7x7x64xf32>
    %cst = arith.constant 0.000000e+00 : f32
    %1 = vector.broadcast %cst : f32 to vector<4x4x64xf32>
    %c0_2 = arith.constant 0 : index
    %c0_3 = arith.constant 0 : index
    %c0_4 = arith.constant 0 : index
    %c0_5 = arith.constant 0 : index
    %2 = vector.load %arg1[%c0_2, %c0_3, %c0_4, %c0_5] : memref<1x10x10x64xf32, #tpu.memory_space<vmem>>, vector<1x4x4x64xf32>
    %3 = vector.shape_cast %2 : vector<1x4x4x64xf32> to vector<4x4x64xf32>
    %4 = vector.extract_strided_slice %0 {offsets = [0, 0, 0], sizes = [1, 1, 64], strides = [1, 1, 1]} : vector<7x7x64xf32> to vector<1x1x64xf32>
    %5 = vector.shape_cast %4 : vector<1x1x64xf32> to vector<64xf32>
    %6 = vector.shape_cast %5 : vector<64xf32> to vector<1x1x64xf32>
    %7 = vector.broadcast %6 : vector<1x1x64xf32> to vector<4x4x64xf32>
    %8 = arith.mulf %3, %7 : vector<4x4x64xf32>
    %9 = arith.addf %1, %8 : vector<4x4x64xf32>
    %c0_6 = arith.constant 0 : index
    %c0_7 = arith.constant 0 : index
    %c1 = arith.constant 1 : index
    %c0_8 = arith.constant 0 : index
    %10 = vector.load %arg1[%c0_6, %c0_7, %c1, %c0_8] : memref<1x10x10x64xf32, #tpu.memory_space<vmem>>, vector<1x4x4x64xf32>
    %11 = vector.shape_cast %10 : vector<1x4x4x64xf32> to vector<4x4x64xf32>
    %12 = vector.extract_strided_slice %0 {offsets = [0, 1, 0], sizes = [1, 1, 64], strides = [1, 1, 1]} : vector<7x7x64xf32> to vector<1x1x64xf32>
    %13 = vector.shape_cast %12 : vector<1x1x64xf32> to vector<64xf32>
    %14 = vector.shape_cast %13 : vector<64xf32> to vector<1x1x64xf32>
    %15 = vector.broadcast %14 : vector<1x1x64xf32> to vector<4x4x64xf32>
    %16 = arith.mulf %11, %15 : vector<4x4x64xf32>
    %17 = arith.addf %9, %16 : vector<4x4x64xf32>
    %c0_9 = arith.constant 0 : index
    %c0_10 = arith.constant 0 : index
    %c2 = arith.constant 2 : index
    %c0_11 = arith.constant 0 : index
    %18 = vector.load %arg1[%c0_9, %c0_10, %c2, %c0_11] : memref<1x10x10x64xf32, #tpu.memory_space<vmem>>, vector<1x4x4x64xf32>
    %19 = vector.shape_cast %18 : vector<1x4x4x64xf32> to vector<4x4x64xf32>
    %20 = vector.extract_strided_slice %0 {offsets = [0, 2, 0], sizes = [1, 1, 64], strides = [1, 1, 1]} : vector<7x7x64xf32> to vector<1x1x64xf32>
    %21 = vector.shape_cast %20 : vector<1x1x64xf32> to vector<64xf32>
    %22 = vector.shape_cast %21 : vector<64xf32> to vector<1x1x64xf32>
    %23 = vector.broadcast %22 : vector<1x1x64xf32> to vector<4x4x64xf32>
    %24 = arith.mulf %19, %23 : vector<4x4x64xf32>
    %25 = arith.addf %17, %24 : vector<4x4x64xf32>
    %c0_12 = arith.constant 0 : index
    %c0_13 = arith.constant 0 : index
    %c3 = arith.constant 3 : index
    %c0_14 = arith.constant 0 : index
    %26 = vector.load %arg1[%c0_12, %c0_13, %c3, %c0_14] : memref<1x10x10x64xf32, #tpu.memory_space<vmem>>, vector<1x4x4x64xf32>
    %27 = vector.shape_cast %26 : vector<1x4x4x64xf32> to vector<4x4x64xf32>
    %28 = vector.extract_strided_slice %0 {offsets = [0, 3, 0], sizes = [1, 1, 64], strides = [1, 1, 1]} : vector<7x7x64xf32> to vector<1x1x64xf32>
    %29 = vector.shape_cast %28 : vector<1x1x64xf32> to vector<64xf32>
    %30 = vector.shape_cast %29 : vector<64xf32> to vector<1x1x64xf32>
    %31 = vector.broadcast %30 : vector<1x1x64xf32> to vector<4x4x64xf32>
    %32 = arith.mulf %27, %31 : vector<4x4x64xf32>
    %33 = arith.addf %25, %32 : vector<4x4x64xf32>
    %c0_15 = arith.constant 0 : index
    %c0_16 = arith.constant 0 : index
    %c4 = arith.constant 4 : index
    %c0_17 = arith.constant 0 : index
    %34 = vector.load %arg1[%c0_15, %c0_16, %c4, %c0_17] : memref<1x10x10x64xf32, #tpu.memory_space<vmem>>, vector<1x4x4x64xf32>
    %35 = vector.shape_cast %34 : vector<1x4x4x64xf32> to vector<4x4x64xf32>
    %36 = vector.extract_strided_slice %0 {offsets = [0, 4, 0], sizes = [1, 1, 64], strides = [1, 1, 1]} : vector<7x7x64xf32> to vector<1x1x64xf32>
    %37 = vector.shape_cast %36 : vector<1x1x64xf32> to vector<64xf32>
    %38 = vector.shape_cast %37 : vector<64xf32> to vector<1x1x64xf32>
    %39 = vector.broadcast %38 : vector<1x1x64xf32> to vector<4x4x64xf32>
    %40 = arith.mulf %35, %39 : vector<4x4x64xf32>
    %41 = arith.addf %33, %40 : vector<4x4x64xf32>
    %c0_18 = arith.constant 0 : index
    %c0_19 = arith.constant 0 : index
    %c5 = arith.constant 5 : index
    %c0_20 = arith.constant 0 : index
    %42 = vector.load %arg1[%c0_18, %c0_19, %c5, %c0_20] : memref<1x10x10x64xf32, #tpu.memory_space<vmem>>, vector<1x4x4x64xf32>
    %43 = vector.shape_cast %42 : vector<1x4x4x64xf32> to vector<4x4x64xf32>
    %44 = vector.extract_strided_slice %0 {offsets = [0, 5, 0], sizes = [1, 1, 64], strides = [1, 1, 1]} : vector<7x7x64xf32> to vector<1x1x64xf32>
    %45 = vector.shape_cast %44 : vector<1x1x64xf32> to vector<64xf32>
    %46 = vector.shape_cast %45 : vector<64xf32> to vector<1x1x64xf32>
    %47 = vector.broadcast %46 : vector<1x1x64xf32> to vector<4x4x64xf32>
    %48 = arith.mulf %43, %47 : vector<4x4x64xf32>
    %49 = arith.addf %41, %48 : vector<4x4x64xf32>
    %c0_21 = arith.constant 0 : index
    %c0_22 = arith.constant 0 : index
    %c6 = arith.constant 6 : index
    %c0_23 = arith.constant 0 : index
    %50 = vector.load %arg1[%c0_21, %c0_22, %c6, %c0_23] : memref<1x10x10x64xf32, #tpu.memory_space<vmem>>, vector<1x4x4x64xf32>
    %51 = vector.shape_cast %50 : vector<1x4x4x64xf32> to vector<4x4x64xf32>
    %52 = vector.extract_strided_slice %0 {offsets = [0, 6, 0], sizes = [1, 1, 64], strides = [1, 1, 1]} : vector<7x7x64xf32> to vector<1x1x64xf32>
    %53 = vector.shape_cast %52 : vector<1x1x64xf32> to vector<64xf32>
    %54 = vector.shape_cast %53 : vector<64xf32> to vector<1x1x64xf32>
    %55 = vector.broadcast %54 : vector<1x1x64xf32> to vector<4x4x64xf32>
    %56 = arith.mulf %51, %55 : vector<4x4x64xf32>
    %57 = arith.addf %49, %56 : vector<4x4x64xf32>
    %c0_24 = arith.constant 0 : index
    %c1_25 = arith.constant 1 : index
    %c0_26 = arith.constant 0 : index
    %c0_27 = arith.constant 0 : index
    %58 = vector.load %arg1[%c0_24, %c1_25, %c0_26, %c0_27] : memref<1x10x10x64xf32, #tpu.memory_space<vmem>>, vector<1x4x4x64xf32>
    %59 = vector.shape_cast %58 : vector<1x4x4x64xf32> to vector<4x4x64xf32>
    %60 = vector.extract_strided_slice %0 {offsets = [1, 0, 0], sizes = [1, 1, 64], strides = [1, 1, 1]} : vector<7x7x64xf32> to vector<1x1x64xf32>
    %61 = vector.shape_cast %60 : vector<1x1x64xf32> to vector<64xf32>
    %62 = vector.shape_cast %61 : vector<64xf32> to vector<1x1x64xf32>
    %63 = vector.broadcast %62 : vector<1x1x64xf32> to vector<4x4x64xf32>
    %64 = arith.mulf %59, %63 : vector<4x4x64xf32>
    %65 = arith.addf %57, %64 : vector<4x4x64xf32>
    %c0_28 = arith.constant 0 : index
    %c1_29 = arith.constant 1 : index
    %c1_30 = arith.constant 1 : index
    %c0_31 = arith.constant 0 : index
    %66 = vector.load %arg1[%c0_28, %c1_29, %c1_30, %c0_31] : memref<1x10x10x64xf32, #tpu.memory_space<vmem>>, vector<1x4x4x64xf32>
    %67 = vector.shape_cast %66 : vector<1x4x4x64xf32> to vector<4x4x64xf32>
    %68 = vector.extract_strided_slice %0 {offsets = [1, 1, 0], sizes = [1, 1, 64], strides = [1, 1, 1]} : vector<7x7x64xf32> to vector<1x1x64xf32>
    %69 = vector.shape_cast %68 : vector<1x1x64xf32> to vector<64xf32>
    %70 = vector.shape_cast %69 : vector<64xf32> to vector<1x1x64xf32>
    %71 = vector.broadcast %70 : vector<1x1x64xf32> to vector<4x4x64xf32>
    %72 = arith.mulf %67, %71 : vector<4x4x64xf32>
    %73 = arith.addf %65, %72 : vector<4x4x64xf32>
    %c0_32 = arith.constant 0 : index
    %c1_33 = arith.constant 1 : index
    %c2_34 = arith.constant 2 : index
    %c0_35 = arith.constant 0 : index
    %74 = vector.load %arg1[%c0_32, %c1_33, %c2_34, %c0_35] : memref<1x10x10x64xf32, #tpu.memory_space<vmem>>, vector<1x4x4x64xf32>
    %75 = vector.shape_cast %74 : vector<1x4x4x64xf32> to vector<4x4x64xf32>
    %76 = vector.extract_strided_slice %0 {offsets = [1, 2, 0], sizes = [1, 1, 64], strides = [1, 1, 1]} : vector<7x7x64xf32> to vector<1x1x64xf32>
    %77 = vector.shape_cast %76 : vector<1x1x64xf32> to vector<64xf32>
    %78 = vector.shape_cast %77 : vector<64xf32> to vector<1x1x64xf32>
    %79 = vector.broadcast %78 : vector<1x1x64xf32> to vector<4x4x64xf32>
    %80 = arith.mulf %75, %79 : vector<4x4x64xf32>
    %81 = arith.addf %73, %80 : vector<4x4x64xf32>
    %c0_36 = arith.constant 0 : index
    %c1_37 = arith.constant 1 : index
    %c3_38 = arith.constant 3 : index
    %c0_39 = arith.constant 0 : index
    %82 = vector.load %arg1[%c0_36, %c1_37, %c3_38, %c0_39] : memref<1x10x10x64xf32, #tpu.memory_space<vmem>>, vector<1x4x4x64xf32>
    %83 = vector.shape_cast %82 : vector<1x4x4x64xf32> to vector<4x4x64xf32>
    %84 = vector.extract_strided_slice %0 {offsets = [1, 3, 0], sizes = [1, 1, 64], strides = [1, 1, 1]} : vector<7x7x64xf32> to vector<1x1x64xf32>
    %85 = vector.shape_cast %84 : vector<1x1x64xf32> to vector<64xf32>
    %86 = vector.shape_cast %85 : vector<64xf32> to vector<1x1x64xf32>
    %87 = vector.broadcast %86 : vector<1x1x64xf32> to vector<4x4x64xf32>
    %88 = arith.mulf %83, %87 : vector<4x4x64xf32>
    %89 = arith.addf %81, %88 : vector<4x4x64xf32>
    %c0_40 = arith.constant 0 : index
    %c1_41 = arith.constant 1 : index
    %c4_42 = arith.constant 4 : index
    %c0_43 = arith.constant 0 : index
    %90 = vector.load %arg1[%c0_40, %c1_41, %c4_42, %c0_43] : memref<1x10x10x64xf32, #tpu.memory_space<vmem>>, vector<1x4x4x64xf32>
    %91 = vector.shape_cast %90 : vector<1x4x4x64xf32> to vector<4x4x64xf32>
    %92 = vector.extract_strided_slice %0 {offsets = [1, 4, 0], sizes = [1, 1, 64], strides = [1, 1, 1]} : vector<7x7x64xf32> to vector<1x1x64xf32>
    %93 = vector.shape_cast %92 : vector<1x1x64xf32> to vector<64xf32>
    %94 = vector.shape_cast %93 : vector<64xf32> to vector<1x1x64xf32>
    %95 = vector.broadcast %94 : vector<1x1x64xf32> to vector<4x4x64xf32>
    %96 = arith.mulf %91, %95 : vector<4x4x64xf32>
    %97 = arith.addf %89, %96 : vector<4x4x64xf32>
    %c0_44 = arith.constant 0 : index
    %c1_45 = arith.constant 1 : index
    %c5_46 = arith.constant 5 : index
    %c0_47 = arith.constant 0 : index
    %98 = vector.load %arg1[%c0_44, %c1_45, %c5_46, %c0_47] : memref<1x10x10x64xf32, #tpu.memory_space<vmem>>, vector<1x4x4x64xf32>
    %99 = vector.shape_cast %98 : vector<1x4x4x64xf32> to vector<4x4x64xf32>
    %100 = vector.extract_strided_slice %0 {offsets = [1, 5, 0], sizes = [1, 1, 64], strides = [1, 1, 1]} : vector<7x7x64xf32> to vector<1x1x64xf32>
    %101 = vector.shape_cast %100 : vector<1x1x64xf32> to vector<64xf32>
    %102 = vector.shape_cast %101 : vector<64xf32> to vector<1x1x64xf32>
    %103 = vector.broadcast %102 : vector<1x1x64xf32> to vector<4x4x64xf32>
    %104 = arith.mulf %99, %103 : vector<4x4x64xf32>
    %105 = arith.addf %97, %104 : vector<4x4x64xf32>
    %c0_48 = arith.constant 0 : index
    %c1_49 = arith.constant 1 : index
    %c6_50 = arith.constant 6 : index
    %c0_51 = arith.constant 0 : index
    %106 = vector.load %arg1[%c0_48, %c1_49, %c6_50, %c0_51] : memref<1x10x10x64xf32, #tpu.memory_space<vmem>>, vector<1x4x4x64xf32>
    %107 = vector.shape_cast %106 : vector<1x4x4x64xf32> to vector<4x4x64xf32>
    %108 = vector.extract_strided_slice %0 {offsets = [1, 6, 0], sizes = [1, 1, 64], strides = [1, 1, 1]} : vector<7x7x64xf32> to vector<1x1x64xf32>
    %109 = vector.shape_cast %108 : vector<1x1x64xf32> to vector<64xf32>
    %110 = vector.shape_cast %109 : vector<64xf32> to vector<1x1x64xf32>
    %111 = vector.broadcast %110 : vector<1x1x64xf32> to vector<4x4x64xf32>
    %112 = arith.mulf %107, %111 : vector<4x4x64xf32>
    %113 = arith.addf %105, %112 : vector<4x4x64xf32>
    %c0_52 = arith.constant 0 : index
    %c2_53 = arith.constant 2 : index
    %c0_54 = arith.constant 0 : index
    %c0_55 = arith.constant 0 : index
    %114 = vector.load %arg1[%c0_52, %c2_53, %c0_54, %c0_55] : memref<1x10x10x64xf32, #tpu.memory_space<vmem>>, vector<1x4x4x64xf32>
    %115 = vector.shape_cast %114 : vector<1x4x4x64xf32> to vector<4x4x64xf32>
    %116 = vector.extract_strided_slice %0 {offsets = [2, 0, 0], sizes = [1, 1, 64], strides = [1, 1, 1]} : vector<7x7x64xf32> to vector<1x1x64xf32>
    %117 = vector.shape_cast %116 : vector<1x1x64xf32> to vector<64xf32>
    %118 = vector.shape_cast %117 : vector<64xf32> to vector<1x1x64xf32>
    %119 = vector.broadcast %118 : vector<1x1x64xf32> to vector<4x4x64xf32>
    %120 = arith.mulf %115, %119 : vector<4x4x64xf32>
    %121 = arith.addf %113, %120 : vector<4x4x64xf32>
    %c0_56 = arith.constant 0 : index
    %c2_57 = arith.constant 2 : index
    %c1_58 = arith.constant 1 : index
    %c0_59 = arith.constant 0 : index
    %122 = vector.load %arg1[%c0_56, %c2_57, %c1_58, %c0_59] : memref<1x10x10x64xf32, #tpu.memory_space<vmem>>, vector<1x4x4x64xf32>
    %123 = vector.shape_cast %122 : vector<1x4x4x64xf32> to vector<4x4x64xf32>
    %124 = vector.extract_strided_slice %0 {offsets = [2, 1, 0], sizes = [1, 1, 64], strides = [1, 1, 1]} : vector<7x7x64xf32> to vector<1x1x64xf32>
    %125 = vector.shape_cast %124 : vector<1x1x64xf32> to vector<64xf32>
    %126 = vector.shape_cast %125 : vector<64xf32> to vector<1x1x64xf32>
    %127 = vector.broadcast %126 : vector<1x1x64xf32> to vector<4x4x64xf32>
    %128 = arith.mulf %123, %127 : vector<4x4x64xf32>
    %129 = arith.addf %121, %128 : vector<4x4x64xf32>
    %c0_60 = arith.constant 0 : index
    %c2_61 = arith.constant 2 : index
    %c2_62 = arith.constant 2 : index
    %c0_63 = arith.constant 0 : index
    %130 = vector.load %arg1[%c0_60, %c2_61, %c2_62, %c0_63] : memref<1x10x10x64xf32, #tpu.memory_space<vmem>>, vector<1x4x4x64xf32>
    %131 = vector.shape_cast %130 : vector<1x4x4x64xf32> to vector<4x4x64xf32>
    %132 = vector.extract_strided_slice %0 {offsets = [2, 2, 0], sizes = [1, 1, 64], strides = [1, 1, 1]} : vector<7x7x64xf32> to vector<1x1x64xf32>
    %133 = vector.shape_cast %132 : vector<1x1x64xf32> to vector<64xf32>
    %134 = vector.shape_cast %133 : vector<64xf32> to vector<1x1x64xf32>
    %135 = vector.broadcast %134 : vector<1x1x64xf32> to vector<4x4x64xf32>
    %136 = arith.mulf %131, %135 : vector<4x4x64xf32>
    %137 = arith.addf %129, %136 : vector<4x4x64xf32>
    %c0_64 = arith.constant 0 : index
    %c2_65 = arith.constant 2 : index
    %c3_66 = arith.constant 3 : index
    %c0_67 = arith.constant 0 : index
    %138 = vector.load %arg1[%c0_64, %c2_65, %c3_66, %c0_67] : memref<1x10x10x64xf32, #tpu.memory_space<vmem>>, vector<1x4x4x64xf32>
    %139 = vector.shape_cast %138 : vector<1x4x4x64xf32> to vector<4x4x64xf32>
    %140 = vector.extract_strided_slice %0 {offsets = [2, 3, 0], sizes = [1, 1, 64], strides = [1, 1, 1]} : vector<7x7x64xf32> to vector<1x1x64xf32>
    %141 = vector.shape_cast %140 : vector<1x1x64xf32> to vector<64xf32>
    %142 = vector.shape_cast %141 : vector<64xf32> to vector<1x1x64xf32>
    %143 = vector.broadcast %142 : vector<1x1x64xf32> to vector<4x4x64xf32>
    %144 = arith.mulf %139, %143 : vector<4x4x64xf32>
    %145 = arith.addf %137, %144 : vector<4x4x64xf32>
    %c0_68 = arith.constant 0 : index
    %c2_69 = arith.constant 2 : index
    %c4_70 = arith.constant 4 : index
    %c0_71 = arith.constant 0 : index
    %146 = vector.load %arg1[%c0_68, %c2_69, %c4_70, %c0_71] : memref<1x10x10x64xf32, #tpu.memory_space<vmem>>, vector<1x4x4x64xf32>
    %147 = vector.shape_cast %146 : vector<1x4x4x64xf32> to vector<4x4x64xf32>
    %148 = vector.extract_strided_slice %0 {offsets = [2, 4, 0], sizes = [1, 1, 64], strides = [1, 1, 1]} : vector<7x7x64xf32> to vector<1x1x64xf32>
    %149 = vector.shape_cast %148 : vector<1x1x64xf32> to vector<64xf32>
    %150 = vector.shape_cast %149 : vector<64xf32> to vector<1x1x64xf32>
    %151 = vector.broadcast %150 : vector<1x1x64xf32> to vector<4x4x64xf32>
    %152 = arith.mulf %147, %151 : vector<4x4x64xf32>
    %153 = arith.addf %145, %152 : vector<4x4x64xf32>
    %c0_72 = arith.constant 0 : index
    %c2_73 = arith.constant 2 : index
    %c5_74 = arith.constant 5 : index
    %c0_75 = arith.constant 0 : index
    %154 = vector.load %arg1[%c0_72, %c2_73, %c5_74, %c0_75] : memref<1x10x10x64xf32, #tpu.memory_space<vmem>>, vector<1x4x4x64xf32>
    %155 = vector.shape_cast %154 : vector<1x4x4x64xf32> to vector<4x4x64xf32>
    %156 = vector.extract_strided_slice %0 {offsets = [2, 5, 0], sizes = [1, 1, 64], strides = [1, 1, 1]} : vector<7x7x64xf32> to vector<1x1x64xf32>
    %157 = vector.shape_cast %156 : vector<1x1x64xf32> to vector<64xf32>
    %158 = vector.shape_cast %157 : vector<64xf32> to vector<1x1x64xf32>
    %159 = vector.broadcast %158 : vector<1x1x64xf32> to vector<4x4x64xf32>
    %160 = arith.mulf %155, %159 : vector<4x4x64xf32>
    %161 = arith.addf %153, %160 : vector<4x4x64xf32>
    %c0_76 = arith.constant 0 : index
    %c2_77 = arith.constant 2 : index
    %c6_78 = arith.constant 6 : index
    %c0_79 = arith.constant 0 : index
    %162 = vector.load %arg1[%c0_76, %c2_77, %c6_78, %c0_79] : memref<1x10x10x64xf32, #tpu.memory_space<vmem>>, vector<1x4x4x64xf32>
    %163 = vector.shape_cast %162 : vector<1x4x4x64xf32> to vector<4x4x64xf32>
    %164 = vector.extract_strided_slice %0 {offsets = [2, 6, 0], sizes = [1, 1, 64], strides = [1, 1, 1]} : vector<7x7x64xf32> to vector<1x1x64xf32>
    %165 = vector.shape_cast %164 : vector<1x1x64xf32> to vector<64xf32>
    %166 = vector.shape_cast %165 : vector<64xf32> to vector<1x1x64xf32>
    %167 = vector.broadcast %166 : vector<1x1x64xf32> to vector<4x4x64xf32>
    %168 = arith.mulf %163, %167 : vector<4x4x64xf32>
    %169 = arith.addf %161, %168 : vector<4x4x64xf32>
    %c0_80 = arith.constant 0 : index
    %c3_81 = arith.constant 3 : index
    %c0_82 = arith.constant 0 : index
    %c0_83 = arith.constant 0 : index
    %170 = vector.load %arg1[%c0_80, %c3_81, %c0_82, %c0_83] : memref<1x10x10x64xf32, #tpu.memory_space<vmem>>, vector<1x4x4x64xf32>
    %171 = vector.shape_cast %170 : vector<1x4x4x64xf32> to vector<4x4x64xf32>
    %172 = vector.extract_strided_slice %0 {offsets = [3, 0, 0], sizes = [1, 1, 64], strides = [1, 1, 1]} : vector<7x7x64xf32> to vector<1x1x64xf32>
    %173 = vector.shape_cast %172 : vector<1x1x64xf32> to vector<64xf32>
    %174 = vector.shape_cast %173 : vector<64xf32> to vector<1x1x64xf32>
    %175 = vector.broadcast %174 : vector<1x1x64xf32> to vector<4x4x64xf32>
    %176 = arith.mulf %171, %175 : vector<4x4x64xf32>
    %177 = arith.addf %169, %176 : vector<4x4x64xf32>
    %c0_84 = arith.constant 0 : index
    %c3_85 = arith.constant 3 : index
    %c1_86 = arith.constant 1 : index
    %c0_87 = arith.constant 0 : index
    %178 = vector.load %arg1[%c0_84, %c3_85, %c1_86, %c0_87] : memref<1x10x10x64xf32, #tpu.memory_space<vmem>>, vector<1x4x4x64xf32>
    %179 = vector.shape_cast %178 : vector<1x4x4x64xf32> to vector<4x4x64xf32>
    %180 = vector.extract_strided_slice %0 {offsets = [3, 1, 0], sizes = [1, 1, 64], strides = [1, 1, 1]} : vector<7x7x64xf32> to vector<1x1x64xf32>
    %181 = vector.shape_cast %180 : vector<1x1x64xf32> to vector<64xf32>
    %182 = vector.shape_cast %181 : vector<64xf32> to vector<1x1x64xf32>
    %183 = vector.broadcast %182 : vector<1x1x64xf32> to vector<4x4x64xf32>
    %184 = arith.mulf %179, %183 : vector<4x4x64xf32>
    %185 = arith.addf %177, %184 : vector<4x4x64xf32>
    %c0_88 = arith.constant 0 : index
    %c3_89 = arith.constant 3 : index
    %c2_90 = arith.constant 2 : index
    %c0_91 = arith.constant 0 : index
    %186 = vector.load %arg1[%c0_88, %c3_89, %c2_90, %c0_91] : memref<1x10x10x64xf32, #tpu.memory_space<vmem>>, vector<1x4x4x64xf32>
    %187 = vector.shape_cast %186 : vector<1x4x4x64xf32> to vector<4x4x64xf32>
    %188 = vector.extract_strided_slice %0 {offsets = [3, 2, 0], sizes = [1, 1, 64], strides = [1, 1, 1]} : vector<7x7x64xf32> to vector<1x1x64xf32>
    %189 = vector.shape_cast %188 : vector<1x1x64xf32> to vector<64xf32>
    %190 = vector.shape_cast %189 : vector<64xf32> to vector<1x1x64xf32>
    %191 = vector.broadcast %190 : vector<1x1x64xf32> to vector<4x4x64xf32>
    %192 = arith.mulf %187, %191 : vector<4x4x64xf32>
    %193 = arith.addf %185, %192 : vector<4x4x64xf32>
    %c0_92 = arith.constant 0 : index
    %c3_93 = arith.constant 3 : index
    %c3_94 = arith.constant 3 : index
    %c0_95 = arith.constant 0 : index
    %194 = vector.load %arg1[%c0_92, %c3_93, %c3_94, %c0_95] : memref<1x10x10x64xf32, #tpu.memory_space<vmem>>, vector<1x4x4x64xf32>
    %195 = vector.shape_cast %194 : vector<1x4x4x64xf32> to vector<4x4x64xf32>
    %196 = vector.extract_strided_slice %0 {offsets = [3, 3, 0], sizes = [1, 1, 64], strides = [1, 1, 1]} : vector<7x7x64xf32> to vector<1x1x64xf32>
    %197 = vector.shape_cast %196 : vector<1x1x64xf32> to vector<64xf32>
    %198 = vector.shape_cast %197 : vector<64xf32> to vector<1x1x64xf32>
    %199 = vector.broadcast %198 : vector<1x1x64xf32> to vector<4x4x64xf32>
    %200 = arith.mulf %195, %199 : vector<4x4x64xf32>
    %201 = arith.addf %193, %200 : vector<4x4x64xf32>
    %c0_96 = arith.constant 0 : index
    %c3_97 = arith.constant 3 : index
    %c4_98 = arith.constant 4 : index
    %c0_99 = arith.constant 0 : index
    %202 = vector.load %arg1[%c0_96, %c3_97, %c4_98, %c0_99] : memref<1x10x10x64xf32, #tpu.memory_space<vmem>>, vector<1x4x4x64xf32>
    %203 = vector.shape_cast %202 : vector<1x4x4x64xf32> to vector<4x4x64xf32>
    %204 = vector.extract_strided_slice %0 {offsets = [3, 4, 0], sizes = [1, 1, 64], strides = [1, 1, 1]} : vector<7x7x64xf32> to vector<1x1x64xf32>
    %205 = vector.shape_cast %204 : vector<1x1x64xf32> to vector<64xf32>
    %206 = vector.shape_cast %205 : vector<64xf32> to vector<1x1x64xf32>
    %207 = vector.broadcast %206 : vector<1x1x64xf32> to vector<4x4x64xf32>
    %208 = arith.mulf %203, %207 : vector<4x4x64xf32>
    %209 = arith.addf %201, %208 : vector<4x4x64xf32>
    %c0_100 = arith.constant 0 : index
    %c3_101 = arith.constant 3 : index
    %c5_102 = arith.constant 5 : index
    %c0_103 = arith.constant 0 : index
    %210 = vector.load %arg1[%c0_100, %c3_101, %c5_102, %c0_103] : memref<1x10x10x64xf32, #tpu.memory_space<vmem>>, vector<1x4x4x64xf32>
    %211 = vector.shape_cast %210 : vector<1x4x4x64xf32> to vector<4x4x64xf32>
    %212 = vector.extract_strided_slice %0 {offsets = [3, 5, 0], sizes = [1, 1, 64], strides = [1, 1, 1]} : vector<7x7x64xf32> to vector<1x1x64xf32>
    %213 = vector.shape_cast %212 : vector<1x1x64xf32> to vector<64xf32>
    %214 = vector.shape_cast %213 : vector<64xf32> to vector<1x1x64xf32>
    %215 = vector.broadcast %214 : vector<1x1x64xf32> to vector<4x4x64xf32>
    %216 = arith.mulf %211, %215 : vector<4x4x64xf32>
    %217 = arith.addf %209, %216 : vector<4x4x64xf32>
    %c0_104 = arith.constant 0 : index
    %c3_105 = arith.constant 3 : index
    %c6_106 = arith.constant 6 : index
    %c0_107 = arith.constant 0 : index
    %218 = vector.load %arg1[%c0_104, %c3_105, %c6_106, %c0_107] : memref<1x10x10x64xf32, #tpu.memory_space<vmem>>, vector<1x4x4x64xf32>
    %219 = vector.shape_cast %218 : vector<1x4x4x64xf32> to vector<4x4x64xf32>
    %220 = vector.extract_strided_slice %0 {offsets = [3, 6, 0], sizes = [1, 1, 64], strides = [1, 1, 1]} : vector<7x7x64xf32> to vector<1x1x64xf32>
    %221 = vector.shape_cast %220 : vector<1x1x64xf32> to vector<64xf32>
    %222 = vector.shape_cast %221 : vector<64xf32> to vector<1x1x64xf32>
    %223 = vector.broadcast %222 : vector<1x1x64xf32> to vector<4x4x64xf32>
    %224 = arith.mulf %219, %223 : vector<4x4x64xf32>
    %225 = arith.addf %217, %224 : vector<4x4x64xf32>
    %c0_108 = arith.constant 0 : index
    %c4_109 = arith.constant 4 : index
    %c0_110 = arith.constant 0 : index
    %c0_111 = arith.constant 0 : index
    %226 = vector.load %arg1[%c0_108, %c4_109, %c0_110, %c0_111] : memref<1x10x10x64xf32, #tpu.memory_space<vmem>>, vector<1x4x4x64xf32>
    %227 = vector.shape_cast %226 : vector<1x4x4x64xf32> to vector<4x4x64xf32>
    %228 = vector.extract_strided_slice %0 {offsets = [4, 0, 0], sizes = [1, 1, 64], strides = [1, 1, 1]} : vector<7x7x64xf32> to vector<1x1x64xf32>
    %229 = vector.shape_cast %228 : vector<1x1x64xf32> to vector<64xf32>
    %230 = vector.shape_cast %229 : vector<64xf32> to vector<1x1x64xf32>
    %231 = vector.broadcast %230 : vector<1x1x64xf32> to vector<4x4x64xf32>
    %232 = arith.mulf %227, %231 : vector<4x4x64xf32>
    %233 = arith.addf %225, %232 : vector<4x4x64xf32>
    %c0_112 = arith.constant 0 : index
    %c4_113 = arith.constant 4 : index
    %c1_114 = arith.constant 1 : index
    %c0_115 = arith.constant 0 : index
    %234 = vector.load %arg1[%c0_112, %c4_113, %c1_114, %c0_115] : memref<1x10x10x64xf32, #tpu.memory_space<vmem>>, vector<1x4x4x64xf32>
    %235 = vector.shape_cast %234 : vector<1x4x4x64xf32> to vector<4x4x64xf32>
    %236 = vector.extract_strided_slice %0 {offsets = [4, 1, 0], sizes = [1, 1, 64], strides = [1, 1, 1]} : vector<7x7x64xf32> to vector<1x1x64xf32>
    %237 = vector.shape_cast %236 : vector<1x1x64xf32> to vector<64xf32>
    %238 = vector.shape_cast %237 : vector<64xf32> to vector<1x1x64xf32>
    %239 = vector.broadcast %238 : vector<1x1x64xf32> to vector<4x4x64xf32>
    %240 = arith.mulf %235, %239 : vector<4x4x64xf32>
    %241 = arith.addf %233, %240 : vector<4x4x64xf32>
    %c0_116 = arith.constant 0 : index
    %c4_117 = arith.constant 4 : index
    %c2_118 = arith.constant 2 : index
    %c0_119 = arith.constant 0 : index
    %242 = vector.load %arg1[%c0_116, %c4_117, %c2_118, %c0_119] : memref<1x10x10x64xf32, #tpu.memory_space<vmem>>, vector<1x4x4x64xf32>
    %243 = vector.shape_cast %242 : vector<1x4x4x64xf32> to vector<4x4x64xf32>
    %244 = vector.extract_strided_slice %0 {offsets = [4, 2, 0], sizes = [1, 1, 64], strides = [1, 1, 1]} : vector<7x7x64xf32> to vector<1x1x64xf32>
    %245 = vector.shape_cast %244 : vector<1x1x64xf32> to vector<64xf32>
    %246 = vector.shape_cast %245 : vector<64xf32> to vector<1x1x64xf32>
    %247 = vector.broadcast %246 : vector<1x1x64xf32> to vector<4x4x64xf32>
    %248 = arith.mulf %243, %247 : vector<4x4x64xf32>
    %249 = arith.addf %241, %248 : vector<4x4x64xf32>
    %c0_120 = arith.constant 0 : index
    %c4_121 = arith.constant 4 : index
    %c3_122 = arith.constant 3 : index
    %c0_123 = arith.constant 0 : index
    %250 = vector.load %arg1[%c0_120, %c4_121, %c3_122, %c0_123] : memref<1x10x10x64xf32, #tpu.memory_space<vmem>>, vector<1x4x4x64xf32>
    %251 = vector.shape_cast %250 : vector<1x4x4x64xf32> to vector<4x4x64xf32>
    %252 = vector.extract_strided_slice %0 {offsets = [4, 3, 0], sizes = [1, 1, 64], strides = [1, 1, 1]} : vector<7x7x64xf32> to vector<1x1x64xf32>
    %253 = vector.shape_cast %252 : vector<1x1x64xf32> to vector<64xf32>
    %254 = vector.shape_cast %253 : vector<64xf32> to vector<1x1x64xf32>
    %255 = vector.broadcast %254 : vector<1x1x64xf32> to vector<4x4x64xf32>
    %256 = arith.mulf %251, %255 : vector<4x4x64xf32>
    %257 = arith.addf %249, %256 : vector<4x4x64xf32>
    %c0_124 = arith.constant 0 : index
    %c4_125 = arith.constant 4 : index
    %c4_126 = arith.constant 4 : index
    %c0_127 = arith.constant 0 : index
    %258 = vector.load %arg1[%c0_124, %c4_125, %c4_126, %c0_127] : memref<1x10x10x64xf32, #tpu.memory_space<vmem>>, vector<1x4x4x64xf32>
    %259 = vector.shape_cast %258 : vector<1x4x4x64xf32> to vector<4x4x64xf32>
    %260 = vector.extract_strided_slice %0 {offsets = [4, 4, 0], sizes = [1, 1, 64], strides = [1, 1, 1]} : vector<7x7x64xf32> to vector<1x1x64xf32>
    %261 = vector.shape_cast %260 : vector<1x1x64xf32> to vector<64xf32>
    %262 = vector.shape_cast %261 : vector<64xf32> to vector<1x1x64xf32>
    %263 = vector.broadcast %262 : vector<1x1x64xf32> to vector<4x4x64xf32>
    %264 = arith.mulf %259, %263 : vector<4x4x64xf32>
    %265 = arith.addf %257, %264 : vector<4x4x64xf32>
    %c0_128 = arith.constant 0 : index
    %c4_129 = arith.constant 4 : index
    %c5_130 = arith.constant 5 : index
    %c0_131 = arith.constant 0 : index
    %266 = vector.load %arg1[%c0_128, %c4_129, %c5_130, %c0_131] : memref<1x10x10x64xf32, #tpu.memory_space<vmem>>, vector<1x4x4x64xf32>
    %267 = vector.shape_cast %266 : vector<1x4x4x64xf32> to vector<4x4x64xf32>
    %268 = vector.extract_strided_slice %0 {offsets = [4, 5, 0], sizes = [1, 1, 64], strides = [1, 1, 1]} : vector<7x7x64xf32> to vector<1x1x64xf32>
    %269 = vector.shape_cast %268 : vector<1x1x64xf32> to vector<64xf32>
    %270 = vector.shape_cast %269 : vector<64xf32> to vector<1x1x64xf32>
    %271 = vector.broadcast %270 : vector<1x1x64xf32> to vector<4x4x64xf32>
    %272 = arith.mulf %267, %271 : vector<4x4x64xf32>
    %273 = arith.addf %265, %272 : vector<4x4x64xf32>
    %c0_132 = arith.constant 0 : index
    %c4_133 = arith.constant 4 : index
    %c6_134 = arith.constant 6 : index
    %c0_135 = arith.constant 0 : index
    %274 = vector.load %arg1[%c0_132, %c4_133, %c6_134, %c0_135] : memref<1x10x10x64xf32, #tpu.memory_space<vmem>>, vector<1x4x4x64xf32>
    %275 = vector.shape_cast %274 : vector<1x4x4x64xf32> to vector<4x4x64xf32>
    %276 = vector.extract_strided_slice %0 {offsets = [4, 6, 0], sizes = [1, 1, 64], strides = [1, 1, 1]} : vector<7x7x64xf32> to vector<1x1x64xf32>
    %277 = vector.shape_cast %276 : vector<1x1x64xf32> to vector<64xf32>
    %278 = vector.shape_cast %277 : vector<64xf32> to vector<1x1x64xf32>
    %279 = vector.broadcast %278 : vector<1x1x64xf32> to vector<4x4x64xf32>
    %280 = arith.mulf %275, %279 : vector<4x4x64xf32>
    %281 = arith.addf %273, %280 : vector<4x4x64xf32>
    %c0_136 = arith.constant 0 : index
    %c5_137 = arith.constant 5 : index
    %c0_138 = arith.constant 0 : index
    %c0_139 = arith.constant 0 : index
    %282 = vector.load %arg1[%c0_136, %c5_137, %c0_138, %c0_139] : memref<1x10x10x64xf32, #tpu.memory_space<vmem>>, vector<1x4x4x64xf32>
    %283 = vector.shape_cast %282 : vector<1x4x4x64xf32> to vector<4x4x64xf32>
    %284 = vector.extract_strided_slice %0 {offsets = [5, 0, 0], sizes = [1, 1, 64], strides = [1, 1, 1]} : vector<7x7x64xf32> to vector<1x1x64xf32>
    %285 = vector.shape_cast %284 : vector<1x1x64xf32> to vector<64xf32>
    %286 = vector.shape_cast %285 : vector<64xf32> to vector<1x1x64xf32>
    %287 = vector.broadcast %286 : vector<1x1x64xf32> to vector<4x4x64xf32>
    %288 = arith.mulf %283, %287 : vector<4x4x64xf32>
    %289 = arith.addf %281, %288 : vector<4x4x64xf32>
    %c0_140 = arith.constant 0 : index
    %c5_141 = arith.constant 5 : index
    %c1_142 = arith.constant 1 : index
    %c0_143 = arith.constant 0 : index
    %290 = vector.load %arg1[%c0_140, %c5_141, %c1_142, %c0_143] : memref<1x10x10x64xf32, #tpu.memory_space<vmem>>, vector<1x4x4x64xf32>
    %291 = vector.shape_cast %290 : vector<1x4x4x64xf32> to vector<4x4x64xf32>
    %292 = vector.extract_strided_slice %0 {offsets = [5, 1, 0], sizes = [1, 1, 64], strides = [1, 1, 1]} : vector<7x7x64xf32> to vector<1x1x64xf32>
    %293 = vector.shape_cast %292 : vector<1x1x64xf32> to vector<64xf32>
    %294 = vector.shape_cast %293 : vector<64xf32> to vector<1x1x64xf32>
    %295 = vector.broadcast %294 : vector<1x1x64xf32> to vector<4x4x64xf32>
    %296 = arith.mulf %291, %295 : vector<4x4x64xf32>
    %297 = arith.addf %289, %296 : vector<4x4x64xf32>
    %c0_144 = arith.constant 0 : index
    %c5_145 = arith.constant 5 : index
    %c2_146 = arith.constant 2 : index
    %c0_147 = arith.constant 0 : index
    %298 = vector.load %arg1[%c0_144, %c5_145, %c2_146, %c0_147] : memref<1x10x10x64xf32, #tpu.memory_space<vmem>>, vector<1x4x4x64xf32>
    %299 = vector.shape_cast %298 : vector<1x4x4x64xf32> to vector<4x4x64xf32>
    %300 = vector.extract_strided_slice %0 {offsets = [5, 2, 0], sizes = [1, 1, 64], strides = [1, 1, 1]} : vector<7x7x64xf32> to vector<1x1x64xf32>
    %301 = vector.shape_cast %300 : vector<1x1x64xf32> to vector<64xf32>
    %302 = vector.shape_cast %301 : vector<64xf32> to vector<1x1x64xf32>
    %303 = vector.broadcast %302 : vector<1x1x64xf32> to vector<4x4x64xf32>
    %304 = arith.mulf %299, %303 : vector<4x4x64xf32>
    %305 = arith.addf %297, %304 : vector<4x4x64xf32>
    %c0_148 = arith.constant 0 : index
    %c5_149 = arith.constant 5 : index
    %c3_150 = arith.constant 3 : index
    %c0_151 = arith.constant 0 : index
    %306 = vector.load %arg1[%c0_148, %c5_149, %c3_150, %c0_151] : memref<1x10x10x64xf32, #tpu.memory_space<vmem>>, vector<1x4x4x64xf32>
    %307 = vector.shape_cast %306 : vector<1x4x4x64xf32> to vector<4x4x64xf32>
    %308 = vector.extract_strided_slice %0 {offsets = [5, 3, 0], sizes = [1, 1, 64], strides = [1, 1, 1]} : vector<7x7x64xf32> to vector<1x1x64xf32>
    %309 = vector.shape_cast %308 : vector<1x1x64xf32> to vector<64xf32>
    %310 = vector.shape_cast %309 : vector<64xf32> to vector<1x1x64xf32>
    %311 = vector.broadcast %310 : vector<1x1x64xf32> to vector<4x4x64xf32>
    %312 = arith.mulf %307, %311 : vector<4x4x64xf32>
    %313 = arith.addf %305, %312 : vector<4x4x64xf32>
    %c0_152 = arith.constant 0 : index
    %c5_153 = arith.constant 5 : index
    %c4_154 = arith.constant 4 : index
    %c0_155 = arith.constant 0 : index
    %314 = vector.load %arg1[%c0_152, %c5_153, %c4_154, %c0_155] : memref<1x10x10x64xf32, #tpu.memory_space<vmem>>, vector<1x4x4x64xf32>
    %315 = vector.shape_cast %314 : vector<1x4x4x64xf32> to vector<4x4x64xf32>
    %316 = vector.extract_strided_slice %0 {offsets = [5, 4, 0], sizes = [1, 1, 64], strides = [1, 1, 1]} : vector<7x7x64xf32> to vector<1x1x64xf32>
    %317 = vector.shape_cast %316 : vector<1x1x64xf32> to vector<64xf32>
    %318 = vector.shape_cast %317 : vector<64xf32> to vector<1x1x64xf32>
    %319 = vector.broadcast %318 : vector<1x1x64xf32> to vector<4x4x64xf32>
    %320 = arith.mulf %315, %319 : vector<4x4x64xf32>
    %321 = arith.addf %313, %320 : vector<4x4x64xf32>
    %c0_156 = arith.constant 0 : index
    %c5_157 = arith.constant 5 : index
    %c5_158 = arith.constant 5 : index
    %c0_159 = arith.constant 0 : index
    %322 = vector.load %arg1[%c0_156, %c5_157, %c5_158, %c0_159] : memref<1x10x10x64xf32, #tpu.memory_space<vmem>>, vector<1x4x4x64xf32>
    %323 = vector.shape_cast %322 : vector<1x4x4x64xf32> to vector<4x4x64xf32>
    %324 = vector.extract_strided_slice %0 {offsets = [5, 5, 0], sizes = [1, 1, 64], strides = [1, 1, 1]} : vector<7x7x64xf32> to vector<1x1x64xf32>
    %325 = vector.shape_cast %324 : vector<1x1x64xf32> to vector<64xf32>
    %326 = vector.shape_cast %325 : vector<64xf32> to vector<1x1x64xf32>
    %327 = vector.broadcast %326 : vector<1x1x64xf32> to vector<4x4x64xf32>
    %328 = arith.mulf %323, %327 : vector<4x4x64xf32>
    %329 = arith.addf %321, %328 : vector<4x4x64xf32>
    %c0_160 = arith.constant 0 : index
    %c5_161 = arith.constant 5 : index
    %c6_162 = arith.constant 6 : index
    %c0_163 = arith.constant 0 : index
    %330 = vector.load %arg1[%c0_160, %c5_161, %c6_162, %c0_163] : memref<1x10x10x64xf32, #tpu.memory_space<vmem>>, vector<1x4x4x64xf32>
    %331 = vector.shape_cast %330 : vector<1x4x4x64xf32> to vector<4x4x64xf32>
    %332 = vector.extract_strided_slice %0 {offsets = [5, 6, 0], sizes = [1, 1, 64], strides = [1, 1, 1]} : vector<7x7x64xf32> to vector<1x1x64xf32>
    %333 = vector.shape_cast %332 : vector<1x1x64xf32> to vector<64xf32>
    %334 = vector.shape_cast %333 : vector<64xf32> to vector<1x1x64xf32>
    %335 = vector.broadcast %334 : vector<1x1x64xf32> to vector<4x4x64xf32>
    %336 = arith.mulf %331, %335 : vector<4x4x64xf32>
    %337 = arith.addf %329, %336 : vector<4x4x64xf32>
    %c0_164 = arith.constant 0 : index
    %c6_165 = arith.constant 6 : index
    %c0_166 = arith.constant 0 : index
    %c0_167 = arith.constant 0 : index
    %338 = vector.load %arg1[%c0_164, %c6_165, %c0_166, %c0_167] : memref<1x10x10x64xf32, #tpu.memory_space<vmem>>, vector<1x4x4x64xf32>
    %339 = vector.shape_cast %338 : vector<1x4x4x64xf32> to vector<4x4x64xf32>
    %340 = vector.extract_strided_slice %0 {offsets = [6, 0, 0], sizes = [1, 1, 64], strides = [1, 1, 1]} : vector<7x7x64xf32> to vector<1x1x64xf32>
    %341 = vector.shape_cast %340 : vector<1x1x64xf32> to vector<64xf32>
    %342 = vector.shape_cast %341 : vector<64xf32> to vector<1x1x64xf32>
    %343 = vector.broadcast %342 : vector<1x1x64xf32> to vector<4x4x64xf32>
    %344 = arith.mulf %339, %343 : vector<4x4x64xf32>
    %345 = arith.addf %337, %344 : vector<4x4x64xf32>
    %c0_168 = arith.constant 0 : index
    %c6_169 = arith.constant 6 : index
    %c1_170 = arith.constant 1 : index
    %c0_171 = arith.constant 0 : index
    %346 = vector.load %arg1[%c0_168, %c6_169, %c1_170, %c0_171] : memref<1x10x10x64xf32, #tpu.memory_space<vmem>>, vector<1x4x4x64xf32>
    %347 = vector.shape_cast %346 : vector<1x4x4x64xf32> to vector<4x4x64xf32>
    %348 = vector.extract_strided_slice %0 {offsets = [6, 1, 0], sizes = [1, 1, 64], strides = [1, 1, 1]} : vector<7x7x64xf32> to vector<1x1x64xf32>
    %349 = vector.shape_cast %348 : vector<1x1x64xf32> to vector<64xf32>
    %350 = vector.shape_cast %349 : vector<64xf32> to vector<1x1x64xf32>
    %351 = vector.broadcast %350 : vector<1x1x64xf32> to vector<4x4x64xf32>
    %352 = arith.mulf %347, %351 : vector<4x4x64xf32>
    %353 = arith.addf %345, %352 : vector<4x4x64xf32>
    %c0_172 = arith.constant 0 : index
    %c6_173 = arith.constant 6 : index
    %c2_174 = arith.constant 2 : index
    %c0_175 = arith.constant 0 : index
    %354 = vector.load %arg1[%c0_172, %c6_173, %c2_174, %c0_175] : memref<1x10x10x64xf32, #tpu.memory_space<vmem>>, vector<1x4x4x64xf32>
    %355 = vector.shape_cast %354 : vector<1x4x4x64xf32> to vector<4x4x64xf32>
    %356 = vector.extract_strided_slice %0 {offsets = [6, 2, 0], sizes = [1, 1, 64], strides = [1, 1, 1]} : vector<7x7x64xf32> to vector<1x1x64xf32>
    %357 = vector.shape_cast %356 : vector<1x1x64xf32> to vector<64xf32>
    %358 = vector.shape_cast %357 : vector<64xf32> to vector<1x1x64xf32>
    %359 = vector.broadcast %358 : vector<1x1x64xf32> to vector<4x4x64xf32>
    %360 = arith.mulf %355, %359 : vector<4x4x64xf32>
    %361 = arith.addf %353, %360 : vector<4x4x64xf32>
    %c0_176 = arith.constant 0 : index
    %c6_177 = arith.constant 6 : index
    %c3_178 = arith.constant 3 : index
    %c0_179 = arith.constant 0 : index
    %362 = vector.load %arg1[%c0_176, %c6_177, %c3_178, %c0_179] : memref<1x10x10x64xf32, #tpu.memory_space<vmem>>, vector<1x4x4x64xf32>
    %363 = vector.shape_cast %362 : vector<1x4x4x64xf32> to vector<4x4x64xf32>
    %364 = vector.extract_strided_slice %0 {offsets = [6, 3, 0], sizes = [1, 1, 64], strides = [1, 1, 1]} : vector<7x7x64xf32> to vector<1x1x64xf32>
    %365 = vector.shape_cast %364 : vector<1x1x64xf32> to vector<64xf32>
    %366 = vector.shape_cast %365 : vector<64xf32> to vector<1x1x64xf32>
    %367 = vector.broadcast %366 : vector<1x1x64xf32> to vector<4x4x64xf32>
    %368 = arith.mulf %363, %367 : vector<4x4x64xf32>
    %369 = arith.addf %361, %368 : vector<4x4x64xf32>
    %c0_180 = arith.constant 0 : index
    %c6_181 = arith.constant 6 : index
    %c4_182 = arith.constant 4 : index
    %c0_183 = arith.constant 0 : index
    %370 = vector.load %arg1[%c0_180, %c6_181, %c4_182, %c0_183] : memref<1x10x10x64xf32, #tpu.memory_space<vmem>>, vector<1x4x4x64xf32>
    %371 = vector.shape_cast %370 : vector<1x4x4x64xf32> to vector<4x4x64xf32>
    %372 = vector.extract_strided_slice %0 {offsets = [6, 4, 0], sizes = [1, 1, 64], strides = [1, 1, 1]} : vector<7x7x64xf32> to vector<1x1x64xf32>
    %373 = vector.shape_cast %372 : vector<1x1x64xf32> to vector<64xf32>
    %374 = vector.shape_cast %373 : vector<64xf32> to vector<1x1x64xf32>
    %375 = vector.broadcast %374 : vector<1x1x64xf32> to vector<4x4x64xf32>
    %376 = arith.mulf %371, %375 : vector<4x4x64xf32>
    %377 = arith.addf %369, %376 : vector<4x4x64xf32>
    %c0_184 = arith.constant 0 : index
    %c6_185 = arith.constant 6 : index
    %c5_186 = arith.constant 5 : index
    %c0_187 = arith.constant 0 : index
    %378 = vector.load %arg1[%c0_184, %c6_185, %c5_186, %c0_187] : memref<1x10x10x64xf32, #tpu.memory_space<vmem>>, vector<1x4x4x64xf32>
    %379 = vector.shape_cast %378 : vector<1x4x4x64xf32> to vector<4x4x64xf32>
    %380 = vector.extract_strided_slice %0 {offsets = [6, 5, 0], sizes = [1, 1, 64], strides = [1, 1, 1]} : vector<7x7x64xf32> to vector<1x1x64xf32>
    %381 = vector.shape_cast %380 : vector<1x1x64xf32> to vector<64xf32>
    %382 = vector.shape_cast %381 : vector<64xf32> to vector<1x1x64xf32>
    %383 = vector.broadcast %382 : vector<1x1x64xf32> to vector<4x4x64xf32>
    %384 = arith.mulf %379, %383 : vector<4x4x64xf32>
    %385 = arith.addf %377, %384 : vector<4x4x64xf32>
    %c0_188 = arith.constant 0 : index
    %c6_189 = arith.constant 6 : index
    %c6_190 = arith.constant 6 : index
    %c0_191 = arith.constant 0 : index
    %386 = vector.load %arg1[%c0_188, %c6_189, %c6_190, %c0_191] : memref<1x10x10x64xf32, #tpu.memory_space<vmem>>, vector<1x4x4x64xf32>
    %387 = vector.shape_cast %386 : vector<1x4x4x64xf32> to vector<4x4x64xf32>
    %388 = vector.extract_strided_slice %0 {offsets = [6, 6, 0], sizes = [1, 1, 64], strides = [1, 1, 1]} : vector<7x7x64xf32> to vector<1x1x64xf32>
    %389 = vector.shape_cast %388 : vector<1x1x64xf32> to vector<64xf32>
    %390 = vector.shape_cast %389 : vector<64xf32> to vector<1x1x64xf32>
    %391 = vector.broadcast %390 : vector<1x1x64xf32> to vector<4x4x64xf32>
    %392 = arith.mulf %387, %391 : vector<4x4x64xf32>
    %393 = arith.addf %385, %392 : vector<4x4x64xf32>
    %c0_192 = arith.constant 0 : index
    %c0_193 = arith.constant 0 : index
    %394 = vector.load %arg3[%c0_192, %c0_193] : memref<1x64xf32, #tpu.memory_space<vmem>>, vector<1x64xf32>
    %395 = vector.shape_cast %394 : vector<1x64xf32> to vector<1x1x64xf32>
    %396 = vector.broadcast %395 : vector<1x1x64xf32> to vector<4x4x64xf32>
    %397 = arith.addf %393, %396 : vector<4x4x64xf32>
    %c0_194 = arith.constant 0 : index
    %c0_195 = arith.constant 0 : index
    %c0_196 = arith.constant 0 : index
    %c0_197 = arith.constant 0 : index
    %398 = vector.load %arg4[%c0_194, %c0_195, %c0_196, %c0_197] : memref<1x4x4x64xf32, #tpu.memory_space<vmem>>, vector<1x4x4x64xf32>
    %399 = vector.shape_cast %398 : vector<1x4x4x64xf32> to vector<4x4x64xf32>
    %400 = vector.shape_cast %397 : vector<4x4x64xf32> to vector<1x4x4x64xf32>
    tpu.vector_store %arg4[%c0_194, %c0_195, %c0_196, %c0_197], %400 {strides = array<i32>} : memref<1x4x4x64xf32, #tpu.memory_space<vmem>>, vector<1x4x4x64xf32>,
    return
  }
  func.func @transform_0(%arg0: i32) -> (i32, i32, i32, i32) {
    %c0_i32 = arith.constant 0 : i32
    %c0_i32_0 = arith.constant 0 : i32
    %c0_i32_1 = arith.constant 0 : i32
    %c0_i32_2 = arith.constant 0 : i32
    return %arg0, %c0_i32, %c0_i32_0, %c0_i32_1 : i32, i32, i32, i32
  }
  func.func @transform_1(%arg0: i32) -> (i32, i32, i32) {
    %c0_i32 = arith.constant 0 : i32
    %c0_i32_0 = arith.constant 0 : i32
    %c0_i32_1 = arith.constant 0 : i32
    %c0_i32_2 = arith.constant 0 : i32
    return %c0_i32, %c0_i32_0, %c0_i32_1 : i32, i32, i32
  }
  func.func @transform_2(%arg0: i32) -> (i32, i32) {
    %c0_i32 = arith.constant 0 : i32
    %c0_i32_0 = arith.constant 0 : i32
    %c0_i32_1 = arith.constant 0 : i32
    return %c0_i32, %c0_i32_0 : i32, i32
  }
  func.func @transform_3(%arg0: i32) -> (i32, i32, i32, i32) {
    %c0_i32 = arith.constant 0 : i32
    %c0_i32_0 = arith.constant 0 : i32
    %c0_i32_1 = arith.constant 0 : i32
    %c0_i32_2 = arith.constant 0 : i32
    return %arg0, %c0_i32, %c0_i32_0, %c0_i32_1 : i32, i32, i32, i32
  }
}

module attributes {stable_mosaic.version = 11 : i64} {
  func.func @_fused_mlp_kernel(%arg0: i32, %arg1: memref<16x64xf32, #tpu.memory_space<vmem>>, %arg2: memref<16x64xf32, #tpu.memory_space<vmem>>, %arg3: memref<1x64xf32, #tpu.memory_space<vmem>>, %arg4: memref<1x64xf32, #tpu.memory_space<vmem>>, %arg5: memref<64x256xf32, #tpu.memory_space<vmem>>, %arg6: memref<1x256xf32, #tpu.memory_space<vmem>>, %arg7: memref<256x64xf32, #tpu.memory_space<vmem>>, %arg8: memref<1x64xf32, #tpu.memory_space<vmem>>, %arg9: memref<16x64xf32, #tpu.memory_space<vmem>>) attributes {dimension_semantics = [#tpu.dimension_semantics<parallel>], iteration_bounds = array<i64: 2>, scalar_prefetch = 0 : i64, scratch_operands = 0 : i64, tpu.core_type = #tpu.core_type<tc>, window_params = [{transform_indices = @transform_0, window_bounds = array<i64: 16, 64>}, {transform_indices = @transform_1, window_bounds = array<i64: 16, 64>}, {pipeline_mode = #tpu.pipeline_mode<synchronous>, transform_indices = @transform_2, window_bounds = array<i64: 1, 64>}, {pipeline_mode = #tpu.pipeline_mode<synchronous>, transform_indices = @transform_3, window_bounds = array<i64: 1, 64>}, {pipeline_mode = #tpu.pipeline_mode<synchronous>, transform_indices = @transform_4, window_bounds = array<i64: 64, 256>}, {pipeline_mode = #tpu.pipeline_mode<synchronous>, transform_indices = @transform_5, window_bounds = array<i64: 1, 256>}, {pipeline_mode = #tpu.pipeline_mode<synchronous>, transform_indices = @transform_6, window_bounds = array<i64: 256, 64>}, {pipeline_mode = #tpu.pipeline_mode<synchronous>, transform_indices = @transform_7, window_bounds = array<i64: 1, 64>}, {transform_indices = @transform_8, window_bounds = array<i64: 16, 64>}]} {
    %c0 = arith.constant 0 : index
    %c0_0 = arith.constant 0 : index
    %0 = vector.load %arg1[%c0, %c0_0] : memref<16x64xf32, #tpu.memory_space<vmem>>, vector<16x64xf32>
    %c0_1 = arith.constant 0 : index
    %c0_2 = arith.constant 0 : index
    %1 = vector.load %arg3[%c0_1, %c0_2] : memref<1x64xf32, #tpu.memory_space<vmem>>, vector<1x64xf32>
    %c0_3 = arith.constant 0 : index
    %c0_4 = arith.constant 0 : index
    %2 = vector.load %arg4[%c0_3, %c0_4] : memref<1x64xf32, #tpu.memory_space<vmem>>, vector<1x64xf32>
    %cst = arith.constant dense<0.000000e+00> : vector<16xf32>
    %3 = vector.multi_reduction <add>, %0, %cst [1] : vector<16x64xf32> to vector<16xf32>
    %4 = vector.shape_cast %3 : vector<16xf32> to vector<16x1xf32>
    %cst_5 = arith.constant 6.400000e+01 : f32
    %5 = vector.broadcast %cst_5 : f32 to vector<16x1xf32>
    %6 = arith.divf %4, %5 : vector<16x1xf32>
    %7 = vector.broadcast %6 : vector<16x1xf32> to vector<16x64xf32>
    %8 = arith.subf %0, %7 : vector<16x64xf32>
    %9 = arith.mulf %8, %8 : vector<16x64xf32>
    %cst_6 = arith.constant dense<0.000000e+00> : vector<16xf32>
    %10 = vector.multi_reduction <add>, %9, %cst_6 [1] : vector<16x64xf32> to vector<16xf32>
    %11 = vector.shape_cast %10 : vector<16xf32> to vector<16x1xf32>
    %cst_7 = arith.constant 6.400000e+01 : f32
    %12 = vector.broadcast %cst_7 : f32 to vector<16x1xf32>
    %13 = arith.divf %11, %12 : vector<16x1xf32>
    %cst_8 = arith.constant 9.99999997E-7 : f32
    %14 = vector.broadcast %cst_8 : f32 to vector<16x1xf32>
    %15 = arith.addf %13, %14 : vector<16x1xf32>
    %16 = math.rsqrt %15 : vector<16x1xf32>
    %17 = vector.broadcast %16 : vector<16x1xf32> to vector<16x64xf32>
    %18 = arith.mulf %8, %17 : vector<16x64xf32>
    %19 = vector.broadcast %1 : vector<1x64xf32> to vector<16x64xf32>
    %20 = arith.mulf %18, %19 : vector<16x64xf32>
    %21 = vector.broadcast %2 : vector<1x64xf32> to vector<16x64xf32>
    %22 = arith.addf %20, %21 : vector<16x64xf32>
    %c0_9 = arith.constant 0 : index
    %c0_10 = arith.constant 0 : index
    %23 = vector.load %arg5[%c0_9, %c0_10] : memref<64x256xf32, #tpu.memory_space<vmem>>, vector<64x256xf32>
    %24 = arith.truncf %22 : vector<16x64xf32> to vector<16x64xbf16>
    %25 = arith.truncf %23 : vector<64x256xf32> to vector<64x256xbf16>
    %cst_11 = arith.constant dense<0.000000e+00> : vector<16x256xf32>
    %26 = tpu.matmul %24, %25, %cst_11 {dimension_numbers = #tpu.dot_dimension_numbers<[1], [0], [0], [1], [0, 0, 1, 1], [], []>} : vector<16x64xbf16>, vector<64x256xbf16>, vector<16x256xf32> -> vector<16x256xf32>
    %c0_12 = arith.constant 0 : index
    %c0_13 = arith.constant 0 : index
    %27 = vector.load %arg6[%c0_12, %c0_13] : memref<1x256xf32, #tpu.memory_space<vmem>>, vector<1x256xf32>
    %28 = vector.broadcast %27 : vector<1x256xf32> to vector<16x256xf32>
    %29 = arith.addf %26, %28 : vector<16x256xf32>
    %cst_14 = arith.constant 5.000000e-01 : f32
    %30 = vector.broadcast %cst_14 : f32 to vector<16x256xf32>
    %31 = arith.mulf %30, %29 : vector<16x256xf32>
    %cst_15 = arith.constant 4.471500e-02 : f32
    %32 = vector.broadcast %cst_15 : f32 to vector<16x256xf32>
    %33 = arith.mulf %32, %29 : vector<16x256xf32>
    %34 = arith.mulf %33, %29 : vector<16x256xf32>
    %35 = arith.mulf %34, %29 : vector<16x256xf32>
    %36 = arith.addf %29, %35 : vector<16x256xf32>
    %cst_16 = arith.constant 0.797884583 : f32
    %37 = vector.broadcast %cst_16 : f32 to vector<16x256xf32>
    %38 = arith.mulf %37, %36 : vector<16x256xf32>
    %39 = math.tanh %38 : vector<16x256xf32>
    %cst_17 = arith.constant 1.000000e+00 : f32
    %40 = vector.broadcast %cst_17 : f32 to vector<16x256xf32>
    %41 = arith.addf %40, %39 : vector<16x256xf32>
    %42 = arith.mulf %31, %41 : vector<16x256xf32>
    %c0_18 = arith.constant 0 : index
    %c0_19 = arith.constant 0 : index
    %43 = vector.load %arg7[%c0_18, %c0_19] : memref<256x64xf32, #tpu.memory_space<vmem>>, vector<256x64xf32>
    %44 = arith.truncf %42 : vector<16x256xf32> to vector<16x256xbf16>
    %45 = arith.truncf %43 : vector<256x64xf32> to vector<256x64xbf16>
    %cst_20 = arith.constant dense<0.000000e+00> : vector<16x64xf32>
    %46 = tpu.matmul %44, %45, %cst_20 {dimension_numbers = #tpu.dot_dimension_numbers<[1], [0], [0], [1], [0, 0, 1, 1], [], []>} : vector<16x256xbf16>, vector<256x64xbf16>, vector<16x64xf32> -> vector<16x64xf32>
    %c0_21 = arith.constant 0 : index
    %c0_22 = arith.constant 0 : index
    %47 = vector.load %arg8[%c0_21, %c0_22] : memref<1x64xf32, #tpu.memory_space<vmem>>, vector<1x64xf32>
    %48 = vector.broadcast %47 : vector<1x64xf32> to vector<16x64xf32>
    %49 = arith.addf %46, %48 : vector<16x64xf32>
    %c0_23 = arith.constant 0 : index
    %c0_24 = arith.constant 0 : index
    %50 = vector.load %arg2[%c0_23, %c0_24] : memref<16x64xf32, #tpu.memory_space<vmem>>, vector<16x64xf32>
    %51 = arith.addf %50, %49 : vector<16x64xf32>
    %c0_25 = arith.constant 0 : index
    %c0_26 = arith.constant 0 : index
    %52 = vector.load %arg9[%c0_25, %c0_26] : memref<16x64xf32, #tpu.memory_space<vmem>>, vector<16x64xf32>
    tpu.vector_store %arg9[%c0_25, %c0_26], %51 {strides = array<i32>} : memref<16x64xf32, #tpu.memory_space<vmem>>, vector<16x64xf32>,
    return
  }
  func.func @transform_0(%arg0: i32) -> (i32, i32) {
    %c0_i32 = arith.constant 0 : i32
    %c0_i32_0 = arith.constant 0 : i32
    return %arg0, %c0_i32 : i32, i32
  }
  func.func @transform_1(%arg0: i32) -> (i32, i32) {
    %c0_i32 = arith.constant 0 : i32
    %c0_i32_0 = arith.constant 0 : i32
    return %arg0, %c0_i32 : i32, i32
  }
  func.func @transform_2(%arg0: i32) -> (i32, i32) {
    %c0_i32 = arith.constant 0 : i32
    %c0_i32_0 = arith.constant 0 : i32
    %c0_i32_1 = arith.constant 0 : i32
    return %c0_i32, %c0_i32_0 : i32, i32
  }
  func.func @transform_3(%arg0: i32) -> (i32, i32) {
    %c0_i32 = arith.constant 0 : i32
    %c0_i32_0 = arith.constant 0 : i32
    %c0_i32_1 = arith.constant 0 : i32
    return %c0_i32, %c0_i32_0 : i32, i32
  }
  func.func @transform_4(%arg0: i32) -> (i32, i32) {
    %c0_i32 = arith.constant 0 : i32
    %c0_i32_0 = arith.constant 0 : i32
    %c0_i32_1 = arith.constant 0 : i32
    return %c0_i32, %c0_i32_0 : i32, i32
  }
  func.func @transform_5(%arg0: i32) -> (i32, i32) {
    %c0_i32 = arith.constant 0 : i32
    %c0_i32_0 = arith.constant 0 : i32
    %c0_i32_1 = arith.constant 0 : i32
    return %c0_i32, %c0_i32_0 : i32, i32
  }
  func.func @transform_6(%arg0: i32) -> (i32, i32) {
    %c0_i32 = arith.constant 0 : i32
    %c0_i32_0 = arith.constant 0 : i32
    %c0_i32_1 = arith.constant 0 : i32
    return %c0_i32, %c0_i32_0 : i32, i32
  }
  func.func @transform_7(%arg0: i32) -> (i32, i32) {
    %c0_i32 = arith.constant 0 : i32
    %c0_i32_0 = arith.constant 0 : i32
    %c0_i32_1 = arith.constant 0 : i32
    return %c0_i32, %c0_i32_0 : i32, i32
  }
  func.func @transform_8(%arg0: i32) -> (i32, i32) {
    %c0_i32 = arith.constant 0 : i32
    %c0_i32_0 = arith.constant 0 : i32
    return %arg0, %c0_i32 : i32, i32
  }
}

module attributes {stable_mosaic.version = 11 : i64} {
  func.func @_fused_linear_kernel(%arg0: i32, %arg1: memref<16x64xf32, #tpu.memory_space<vmem>>, %arg2: memref<64x64xf32, #tpu.memory_space<vmem>>, %arg3: memref<1x64xf32, #tpu.memory_space<vmem>>, %arg4: memref<16x64xf32, #tpu.memory_space<vmem>>) attributes {dimension_semantics = [#tpu.dimension_semantics<parallel>], iteration_bounds = array<i64: 2>, scalar_prefetch = 0 : i64, scratch_operands = 0 : i64, tpu.core_type = #tpu.core_type<tc>, window_params = [{transform_indices = @transform_0, window_bounds = array<i64: 16, 64>}, {pipeline_mode = #tpu.pipeline_mode<synchronous>, transform_indices = @transform_1, window_bounds = array<i64: 64, 64>}, {pipeline_mode = #tpu.pipeline_mode<synchronous>, transform_indices = @transform_2, window_bounds = array<i64: 1, 64>}, {transform_indices = @transform_3, window_bounds = array<i64: 16, 64>}]} {
    %c0 = arith.constant 0 : index
    %c0_0 = arith.constant 0 : index
    %0 = vector.load %arg1[%c0, %c0_0] : memref<16x64xf32, #tpu.memory_space<vmem>>, vector<16x64xf32>
    %c0_1 = arith.constant 0 : index
    %c0_2 = arith.constant 0 : index
    %1 = vector.load %arg2[%c0_1, %c0_2] : memref<64x64xf32, #tpu.memory_space<vmem>>, vector<64x64xf32>
    %2 = arith.truncf %0 : vector<16x64xf32> to vector<16x64xbf16>
    %3 = arith.truncf %1 : vector<64x64xf32> to vector<64x64xbf16>
    %cst = arith.constant dense<0.000000e+00> : vector<16x64xf32>
    %4 = tpu.matmul %2, %3, %cst {dimension_numbers = #tpu.dot_dimension_numbers<[1], [0], [0], [1], [0, 0, 1, 1], [], []>} : vector<16x64xbf16>, vector<64x64xbf16>, vector<16x64xf32> -> vector<16x64xf32>
    %c0_3 = arith.constant 0 : index
    %c0_4 = arith.constant 0 : index
    %5 = vector.load %arg3[%c0_3, %c0_4] : memref<1x64xf32, #tpu.memory_space<vmem>>, vector<1x64xf32>
    %6 = vector.broadcast %5 : vector<1x64xf32> to vector<16x64xf32>
    %7 = arith.addf %4, %6 : vector<16x64xf32>
    %c0_5 = arith.constant 0 : index
    %c0_6 = arith.constant 0 : index
    %8 = vector.load %arg4[%c0_5, %c0_6] : memref<16x64xf32, #tpu.memory_space<vmem>>, vector<16x64xf32>
    tpu.vector_store %arg4[%c0_5, %c0_6], %7 {strides = array<i32>} : memref<16x64xf32, #tpu.memory_space<vmem>>, vector<16x64xf32>,
    return
  }
  func.func @transform_0(%arg0: i32) -> (i32, i32) {
    %c0_i32 = arith.constant 0 : i32
    %c0_i32_0 = arith.constant 0 : i32
    return %arg0, %c0_i32 : i32, i32
  }
  func.func @transform_1(%arg0: i32) -> (i32, i32) {
    %c0_i32 = arith.constant 0 : i32
    %c0_i32_0 = arith.constant 0 : i32
    %c0_i32_1 = arith.constant 0 : i32
    return %c0_i32, %c0_i32_0 : i32, i32
  }
  func.func @transform_2(%arg0: i32) -> (i32, i32) {
    %c0_i32 = arith.constant 0 : i32
    %c0_i32_0 = arith.constant 0 : i32
    %c0_i32_1 = arith.constant 0 : i32
    return %c0_i32, %c0_i32_0 : i32, i32
  }
  func.func @transform_3(%arg0: i32) -> (i32, i32) {
    %c0_i32 = arith.constant 0 : i32
    %c0_i32_0 = arith.constant 0 : i32
    return %arg0, %c0_i32 : i32, i32
  }
}

module attributes {stable_mosaic.version = 11 : i64} {
  func.func @_fused_linear_kernel(%arg0: i32, %arg1: memref<16x64xf32, #tpu.memory_space<vmem>>, %arg2: memref<64x256xf32, #tpu.memory_space<vmem>>, %arg3: memref<1x256xf32, #tpu.memory_space<vmem>>, %arg4: memref<1x64xf32, #tpu.memory_space<vmem>>, %arg5: memref<1x64xf32, #tpu.memory_space<vmem>>, %arg6: memref<16x256xf32, #tpu.memory_space<vmem>>) attributes {dimension_semantics = [#tpu.dimension_semantics<parallel>], iteration_bounds = array<i64: 2>, scalar_prefetch = 0 : i64, scratch_operands = 0 : i64, tpu.core_type = #tpu.core_type<tc>, window_params = [{transform_indices = @transform_0, window_bounds = array<i64: 16, 64>}, {pipeline_mode = #tpu.pipeline_mode<synchronous>, transform_indices = @transform_1, window_bounds = array<i64: 64, 256>}, {pipeline_mode = #tpu.pipeline_mode<synchronous>, transform_indices = @transform_2, window_bounds = array<i64: 1, 256>}, {pipeline_mode = #tpu.pipeline_mode<synchronous>, transform_indices = @transform_3, window_bounds = array<i64: 1, 64>}, {pipeline_mode = #tpu.pipeline_mode<synchronous>, transform_indices = @transform_4, window_bounds = array<i64: 1, 64>}, {transform_indices = @transform_5, window_bounds = array<i64: 16, 256>}]} {
    %c0 = arith.constant 0 : index
    %c0_0 = arith.constant 0 : index
    %0 = vector.load %arg1[%c0, %c0_0] : memref<16x64xf32, #tpu.memory_space<vmem>>, vector<16x64xf32>
    %c0_1 = arith.constant 0 : index
    %c0_2 = arith.constant 0 : index
    %1 = vector.load %arg4[%c0_1, %c0_2] : memref<1x64xf32, #tpu.memory_space<vmem>>, vector<1x64xf32>
    %c0_3 = arith.constant 0 : index
    %c0_4 = arith.constant 0 : index
    %2 = vector.load %arg5[%c0_3, %c0_4] : memref<1x64xf32, #tpu.memory_space<vmem>>, vector<1x64xf32>
    %cst = arith.constant dense<0.000000e+00> : vector<16xf32>
    %3 = vector.multi_reduction <add>, %0, %cst [1] : vector<16x64xf32> to vector<16xf32>
    %4 = vector.shape_cast %3 : vector<16xf32> to vector<16x1xf32>
    %cst_5 = arith.constant 6.400000e+01 : f32
    %5 = vector.broadcast %cst_5 : f32 to vector<16x1xf32>
    %6 = arith.divf %4, %5 : vector<16x1xf32>
    %7 = vector.broadcast %6 : vector<16x1xf32> to vector<16x64xf32>
    %8 = arith.subf %0, %7 : vector<16x64xf32>
    %9 = arith.mulf %8, %8 : vector<16x64xf32>
    %cst_6 = arith.constant dense<0.000000e+00> : vector<16xf32>
    %10 = vector.multi_reduction <add>, %9, %cst_6 [1] : vector<16x64xf32> to vector<16xf32>
    %11 = vector.shape_cast %10 : vector<16xf32> to vector<16x1xf32>
    %cst_7 = arith.constant 6.400000e+01 : f32
    %12 = vector.broadcast %cst_7 : f32 to vector<16x1xf32>
    %13 = arith.divf %11, %12 : vector<16x1xf32>
    %cst_8 = arith.constant 9.99999997E-7 : f32
    %14 = vector.broadcast %cst_8 : f32 to vector<16x1xf32>
    %15 = arith.addf %13, %14 : vector<16x1xf32>
    %16 = math.rsqrt %15 : vector<16x1xf32>
    %17 = vector.broadcast %16 : vector<16x1xf32> to vector<16x64xf32>
    %18 = arith.mulf %8, %17 : vector<16x64xf32>
    %19 = vector.broadcast %1 : vector<1x64xf32> to vector<16x64xf32>
    %20 = arith.mulf %18, %19 : vector<16x64xf32>
    %21 = vector.broadcast %2 : vector<1x64xf32> to vector<16x64xf32>
    %22 = arith.addf %20, %21 : vector<16x64xf32>
    %c0_9 = arith.constant 0 : index
    %c0_10 = arith.constant 0 : index
    %23 = vector.load %arg2[%c0_9, %c0_10] : memref<64x256xf32, #tpu.memory_space<vmem>>, vector<64x256xf32>
    %24 = arith.truncf %22 : vector<16x64xf32> to vector<16x64xbf16>
    %25 = arith.truncf %23 : vector<64x256xf32> to vector<64x256xbf16>
    %cst_11 = arith.constant dense<0.000000e+00> : vector<16x256xf32>
    %26 = tpu.matmul %24, %25, %cst_11 {dimension_numbers = #tpu.dot_dimension_numbers<[1], [0], [0], [1], [0, 0, 1, 1], [], []>} : vector<16x64xbf16>, vector<64x256xbf16>, vector<16x256xf32> -> vector<16x256xf32>
    %c0_12 = arith.constant 0 : index
    %c0_13 = arith.constant 0 : index
    %27 = vector.load %arg3[%c0_12, %c0_13] : memref<1x256xf32, #tpu.memory_space<vmem>>, vector<1x256xf32>
    %28 = vector.broadcast %27 : vector<1x256xf32> to vector<16x256xf32>
    %29 = arith.addf %26, %28 : vector<16x256xf32>
    %c0_14 = arith.constant 0 : index
    %c0_15 = arith.constant 0 : index
    %30 = vector.load %arg6[%c0_14, %c0_15] : memref<16x256xf32, #tpu.memory_space<vmem>>, vector<16x256xf32>
    tpu.vector_store %arg6[%c0_14, %c0_15], %29 {strides = array<i32>} : memref<16x256xf32, #tpu.memory_space<vmem>>, vector<16x256xf32>,
    return
  }
  func.func @transform_0(%arg0: i32) -> (i32, i32) {
    %c0_i32 = arith.constant 0 : i32
    %c0_i32_0 = arith.constant 0 : i32
    return %arg0, %c0_i32 : i32, i32
  }
  func.func @transform_1(%arg0: i32) -> (i32, i32) {
    %c0_i32 = arith.constant 0 : i32
    %c0_i32_0 = arith.constant 0 : i32
    %c0_i32_1 = arith.constant 0 : i32
    return %c0_i32, %c0_i32_0 : i32, i32
  }
  func.func @transform_2(%arg0: i32) -> (i32, i32) {
    %c0_i32 = arith.constant 0 : i32
    %c0_i32_0 = arith.constant 0 : i32
    %c0_i32_1 = arith.constant 0 : i32
    return %c0_i32, %c0_i32_0 : i32, i32
  }
  func.func @transform_3(%arg0: i32) -> (i32, i32) {
    %c0_i32 = arith.constant 0 : i32
    %c0_i32_0 = arith.constant 0 : i32
    %c0_i32_1 = arith.constant 0 : i32
    return %c0_i32, %c0_i32_0 : i32, i32
  }
  func.func @transform_4(%arg0: i32) -> (i32, i32) {
    %c0_i32 = arith.constant 0 : i32
    %c0_i32_0 = arith.constant 0 : i32
    %c0_i32_1 = arith.constant 0 : i32
    return %c0_i32, %c0_i32_0 : i32, i32
  }
  func.func @transform_5(%arg0: i32) -> (i32, i32) {
    %c0_i32 = arith.constant 0 : i32
    %c0_i32_0 = arith.constant 0 : i32
    return %arg0, %c0_i32 : i32, i32
  }
}

module attributes {stable_mosaic.version = 11 : i64} {
  func.func @_vit_attn_kernel(%arg0: i32, %arg1: memref<1x16x64xf32, #tpu.memory_space<vmem>>, %arg2: memref<1x64xf32, #tpu.memory_space<vmem>>, %arg3: memref<1x64xf32, #tpu.memory_space<vmem>>, %arg4: memref<64x64xf32, #tpu.memory_space<vmem>>, %arg5: memref<1x64xf32, #tpu.memory_space<vmem>>, %arg6: memref<64x64xf32, #tpu.memory_space<vmem>>, %arg7: memref<1x64xf32, #tpu.memory_space<vmem>>, %arg8: memref<64x64xf32, #tpu.memory_space<vmem>>, %arg9: memref<1x64xf32, #tpu.memory_space<vmem>>, %arg10: memref<64x64xf32, #tpu.memory_space<vmem>>, %arg11: memref<1x64xf32, #tpu.memory_space<vmem>>, %arg12: memref<1x16x64xf32, #tpu.memory_space<vmem>>) attributes {dimension_semantics = [#tpu.dimension_semantics<parallel>], iteration_bounds = array<i64: 2>, scalar_prefetch = 0 : i64, scratch_operands = 0 : i64, tpu.core_type = #tpu.core_type<tc>, window_params = [{transform_indices = @transform_0, window_bounds = array<i64: 1, 16, 64>}, {pipeline_mode = #tpu.pipeline_mode<synchronous>, transform_indices = @transform_1, window_bounds = array<i64: 1, 64>}, {pipeline_mode = #tpu.pipeline_mode<synchronous>, transform_indices = @transform_2, window_bounds = array<i64: 1, 64>}, {pipeline_mode = #tpu.pipeline_mode<synchronous>, transform_indices = @transform_3, window_bounds = array<i64: 64, 64>}, {pipeline_mode = #tpu.pipeline_mode<synchronous>, transform_indices = @transform_4, window_bounds = array<i64: 1, 64>}, {pipeline_mode = #tpu.pipeline_mode<synchronous>, transform_indices = @transform_5, window_bounds = array<i64: 64, 64>}, {pipeline_mode = #tpu.pipeline_mode<synchronous>, transform_indices = @transform_6, window_bounds = array<i64: 1, 64>}, {pipeline_mode = #tpu.pipeline_mode<synchronous>, transform_indices = @transform_7, window_bounds = array<i64: 64, 64>}, {pipeline_mode = #tpu.pipeline_mode<synchronous>, transform_indices = @transform_8, window_bounds = array<i64: 1, 64>}, {pipeline_mode = #tpu.pipeline_mode<synchronous>, transform_indices = @transform_9, window_bounds = array<i64: 64, 64>}, {pipeline_mode = #tpu.pipeline_mode<synchronous>, transform_indices = @transform_10, window_bounds = array<i64: 1, 64>}, {transform_indices = @transform_11, window_bounds = array<i64: 1, 16, 64>}]} {
    %c0 = arith.constant 0 : index
    %c0_0 = arith.constant 0 : index
    %c0_1 = arith.constant 0 : index
    %0 = vector.load %arg1[%c0, %c0_0, %c0_1] : memref<1x16x64xf32, #tpu.memory_space<vmem>>, vector<1x16x64xf32>
    %1 = vector.shape_cast %0 : vector<1x16x64xf32> to vector<16x64xf32>
    %c0_2 = arith.constant 0 : index
    %c0_3 = arith.constant 0 : index
    %2 = vector.load %arg2[%c0_2, %c0_3] : memref<1x64xf32, #tpu.memory_space<vmem>>, vector<1x64xf32>
    %c0_4 = arith.constant 0 : index
    %c0_5 = arith.constant 0 : index
    %3 = vector.load %arg3[%c0_4, %c0_5] : memref<1x64xf32, #tpu.memory_space<vmem>>, vector<1x64xf32>
    %cst = arith.constant dense<0.000000e+00> : vector<16xf32>
    %4 = vector.multi_reduction <add>, %1, %cst [1] : vector<16x64xf32> to vector<16xf32>
    %5 = vector.shape_cast %4 : vector<16xf32> to vector<16x1xf32>
    %cst_6 = arith.constant 6.400000e+01 : f32
    %6 = vector.broadcast %cst_6 : f32 to vector<16x1xf32>
    %7 = arith.divf %5, %6 : vector<16x1xf32>
    %8 = vector.broadcast %7 : vector<16x1xf32> to vector<16x64xf32>
    %9 = arith.subf %1, %8 : vector<16x64xf32>
    %10 = arith.mulf %9, %9 : vector<16x64xf32>
    %cst_7 = arith.constant dense<0.000000e+00> : vector<16xf32>
    %11 = vector.multi_reduction <add>, %10, %cst_7 [1] : vector<16x64xf32> to vector<16xf32>
    %12 = vector.shape_cast %11 : vector<16xf32> to vector<16x1xf32>
    %cst_8 = arith.constant 6.400000e+01 : f32
    %13 = vector.broadcast %cst_8 : f32 to vector<16x1xf32>
    %14 = arith.divf %12, %13 : vector<16x1xf32>
    %cst_9 = arith.constant 9.99999997E-7 : f32
    %15 = vector.broadcast %cst_9 : f32 to vector<16x1xf32>
    %16 = arith.addf %14, %15 : vector<16x1xf32>
    %17 = math.rsqrt %16 : vector<16x1xf32>
    %18 = vector.broadcast %17 : vector<16x1xf32> to vector<16x64xf32>
    %19 = arith.mulf %9, %18 : vector<16x64xf32>
    %20 = vector.broadcast %2 : vector<1x64xf32> to vector<16x64xf32>
    %21 = arith.mulf %19, %20 : vector<16x64xf32>
    %22 = vector.broadcast %3 : vector<1x64xf32> to vector<16x64xf32>
    %23 = arith.addf %21, %22 : vector<16x64xf32>
    %c0_10 = arith.constant 0 : index
    %c0_11 = arith.constant 0 : index
    %24 = vector.load %arg4[%c0_10, %c0_11] : memref<64x64xf32, #tpu.memory_space<vmem>>, vector<64x64xf32>
    %25 = arith.truncf %23 : vector<16x64xf32> to vector<16x64xbf16>
    %26 = arith.truncf %24 : vector<64x64xf32> to vector<64x64xbf16>
    %cst_12 = arith.constant dense<0.000000e+00> : vector<16x64xf32>
    %27 = tpu.matmul %25, %26, %cst_12 {dimension_numbers = #tpu.dot_dimension_numbers<[1], [0], [0], [1], [0, 0, 1, 1], [], []>} : vector<16x64xbf16>, vector<64x64xbf16>, vector<16x64xf32> -> vector<16x64xf32>
    %c0_13 = arith.constant 0 : index
    %c0_14 = arith.constant 0 : index
    %28 = vector.load %arg5[%c0_13, %c0_14] : memref<1x64xf32, #tpu.memory_space<vmem>>, vector<1x64xf32>
    %29 = vector.broadcast %28 : vector<1x64xf32> to vector<16x64xf32>
    %30 = arith.addf %27, %29 : vector<16x64xf32>
    %c0_15 = arith.constant 0 : index
    %c0_16 = arith.constant 0 : index
    %31 = vector.load %arg6[%c0_15, %c0_16] : memref<64x64xf32, #tpu.memory_space<vmem>>, vector<64x64xf32>
    %32 = arith.truncf %23 : vector<16x64xf32> to vector<16x64xbf16>
    %33 = arith.truncf %31 : vector<64x64xf32> to vector<64x64xbf16>
    %cst_17 = arith.constant dense<0.000000e+00> : vector<16x64xf32>
    %34 = tpu.matmul %32, %33, %cst_17 {dimension_numbers = #tpu.dot_dimension_numbers<[1], [0], [0], [1], [0, 0, 1, 1], [], []>} : vector<16x64xbf16>, vector<64x64xbf16>, vector<16x64xf32> -> vector<16x64xf32>
    %c0_18 = arith.constant 0 : index
    %c0_19 = arith.constant 0 : index
    %35 = vector.load %arg7[%c0_18, %c0_19] : memref<1x64xf32, #tpu.memory_space<vmem>>, vector<1x64xf32>
    %36 = vector.broadcast %35 : vector<1x64xf32> to vector<16x64xf32>
    %37 = arith.addf %34, %36 : vector<16x64xf32>
    %c0_20 = arith.constant 0 : index
    %c0_21 = arith.constant 0 : index
    %38 = vector.load %arg8[%c0_20, %c0_21] : memref<64x64xf32, #tpu.memory_space<vmem>>, vector<64x64xf32>
    %39 = arith.truncf %23 : vector<16x64xf32> to vector<16x64xbf16>
    %40 = arith.truncf %38 : vector<64x64xf32> to vector<64x64xbf16>
    %cst_22 = arith.constant dense<0.000000e+00> : vector<16x64xf32>
    %41 = tpu.matmul %39, %40, %cst_22 {dimension_numbers = #tpu.dot_dimension_numbers<[1], [0], [0], [1], [0, 0, 1, 1], [], []>} : vector<16x64xbf16>, vector<64x64xbf16>, vector<16x64xf32> -> vector<16x64xf32>
    %c0_23 = arith.constant 0 : index
    %c0_24 = arith.constant 0 : index
    %42 = vector.load %arg9[%c0_23, %c0_24] : memref<1x64xf32, #tpu.memory_space<vmem>>, vector<1x64xf32>
    %43 = vector.broadcast %42 : vector<1x64xf32> to vector<16x64xf32>
    %44 = arith.addf %41, %43 : vector<16x64xf32>
    %45 = vector.extract_strided_slice %30 {offsets = [0, 0], sizes = [16, 32], strides = [1, 1]} : vector<16x64xf32> to vector<16x32xf32>
    %46 = vector.extract_strided_slice %37 {offsets = [0, 0], sizes = [16, 32], strides = [1, 1]} : vector<16x64xf32> to vector<16x32xf32>
    %47 = vector.extract_strided_slice %44 {offsets = [0, 0], sizes = [16, 32], strides = [1, 1]} : vector<16x64xf32> to vector<16x32xf32>
    %48 = arith.truncf %45 : vector<16x32xf32> to vector<16x32xbf16>
    %49 = arith.truncf %46 : vector<16x32xf32> to vector<16x32xbf16>
    %cst_25 = arith.constant dense<0.000000e+00> : vector<16x16xf32>
    %50 = tpu.matmul %48, %49, %cst_25 {dimension_numbers = #tpu.dot_dimension_numbers<[1], [1], [0], [0], [0, 0, 1, 0], [], []>} : vector<16x32xbf16>, vector<16x32xbf16>, vector<16x16xf32> -> vector<16x16xf32>
    %cst_26 = arith.constant 0.176776692 : f32
    %51 = vector.broadcast %cst_26 : f32 to vector<16x16xf32>
    %52 = arith.mulf %50, %51 : vector<16x16xf32>
    %cst_27 = arith.constant dense<0xFF800000> : vector<16xf32>
    %53 = vector.multi_reduction <maximumf>, %52, %cst_27 [1] : vector<16x16xf32> to vector<16xf32>
    %54 = vector.shape_cast %53 : vector<16xf32> to vector<16x1xf32>
    %55 = vector.broadcast %54 : vector<16x1xf32> to vector<16x16xf32>
    %56 = arith.subf %52, %55 : vector<16x16xf32>
    %57 = math.exp %56 : vector<16x16xf32>
    %cst_28 = arith.constant dense<0.000000e+00> : vector<16xf32>
    %58 = vector.multi_reduction <add>, %57, %cst_28 [1] : vector<16x16xf32> to vector<16xf32>
    %59 = vector.shape_cast %58 : vector<16xf32> to vector<16x1xf32>
    %60 = tpu.reciprocal %59 {approx = true} : vector<16x1xf32> -> vector<16x1xf32>
    %61 = vector.broadcast %60 : vector<16x1xf32> to vector<16x16xf32>
    %62 = arith.mulf %57, %61 : vector<16x16xf32>
    %63 = arith.truncf %62 : vector<16x16xf32> to vector<16x16xbf16>
    %64 = arith.truncf %47 : vector<16x32xf32> to vector<16x32xbf16>
    %cst_29 = arith.constant dense<0.000000e+00> : vector<16x32xf32>
    %65 = tpu.matmul %63, %64, %cst_29 {dimension_numbers = #tpu.dot_dimension_numbers<[1], [0], [0], [1], [0, 0, 1, 1], [], []>} : vector<16x16xbf16>, vector<16x32xbf16>, vector<16x32xf32> -> vector<16x32xf32>
    %66 = vector.extract_strided_slice %30 {offsets = [0, 32], sizes = [16, 32], strides = [1, 1]} : vector<16x64xf32> to vector<16x32xf32>
    %67 = vector.extract_strided_slice %37 {offsets = [0, 32], sizes = [16, 32], strides = [1, 1]} : vector<16x64xf32> to vector<16x32xf32>
    %68 = vector.extract_strided_slice %44 {offsets = [0, 32], sizes = [16, 32], strides = [1, 1]} : vector<16x64xf32> to vector<16x32xf32>
    %69 = arith.truncf %66 : vector<16x32xf32> to vector<16x32xbf16>
    %70 = arith.truncf %67 : vector<16x32xf32> to vector<16x32xbf16>
    %cst_30 = arith.constant dense<0.000000e+00> : vector<16x16xf32>
    %71 = tpu.matmul %69, %70, %cst_30 {dimension_numbers = #tpu.dot_dimension_numbers<[1], [1], [0], [0], [0, 0, 1, 0], [], []>} : vector<16x32xbf16>, vector<16x32xbf16>, vector<16x16xf32> -> vector<16x16xf32>
    %cst_31 = arith.constant 0.176776692 : f32
    %72 = vector.broadcast %cst_31 : f32 to vector<16x16xf32>
    %73 = arith.mulf %71, %72 : vector<16x16xf32>
    %cst_32 = arith.constant dense<0xFF800000> : vector<16xf32>
    %74 = vector.multi_reduction <maximumf>, %73, %cst_32 [1] : vector<16x16xf32> to vector<16xf32>
    %75 = vector.shape_cast %74 : vector<16xf32> to vector<16x1xf32>
    %76 = vector.broadcast %75 : vector<16x1xf32> to vector<16x16xf32>
    %77 = arith.subf %73, %76 : vector<16x16xf32>
    %78 = math.exp %77 : vector<16x16xf32>
    %cst_33 = arith.constant dense<0.000000e+00> : vector<16xf32>
    %79 = vector.multi_reduction <add>, %78, %cst_33 [1] : vector<16x16xf32> to vector<16xf32>
    %80 = vector.shape_cast %79 : vector<16xf32> to vector<16x1xf32>
    %81 = tpu.reciprocal %80 {approx = true} : vector<16x1xf32> -> vector<16x1xf32>
    %82 = vector.broadcast %81 : vector<16x1xf32> to vector<16x16xf32>
    %83 = arith.mulf %78, %82 : vector<16x16xf32>
    %84 = arith.truncf %83 : vector<16x16xf32> to vector<16x16xbf16>
    %85 = arith.truncf %68 : vector<16x32xf32> to vector<16x32xbf16>
    %cst_34 = arith.constant dense<0.000000e+00> : vector<16x32xf32>
    %86 = tpu.matmul %84, %85, %cst_34 {dimension_numbers = #tpu.dot_dimension_numbers<[1], [0], [0], [1], [0, 0, 1, 1], [], []>} : vector<16x16xbf16>, vector<16x32xbf16>, vector<16x32xf32> -> vector<16x32xf32>
    %87 = tpu.concatenate %65, %86 in 1 : vector<16x32xf32>, vector<16x32xf32> -> vector<16x64xf32>
    %c0_35 = arith.constant 0 : index
    %c0_36 = arith.constant 0 : index
    %88 = vector.load %arg10[%c0_35, %c0_36] : memref<64x64xf32, #tpu.memory_space<vmem>>, vector<64x64xf32>
    %89 = arith.truncf %87 : vector<16x64xf32> to vector<16x64xbf16>
    %90 = arith.truncf %88 : vector<64x64xf32> to vector<64x64xbf16>
    %cst_37 = arith.constant dense<0.000000e+00> : vector<16x64xf32>
    %91 = tpu.matmul %89, %90, %cst_37 {dimension_numbers = #tpu.dot_dimension_numbers<[1], [0], [0], [1], [0, 0, 1, 1], [], []>} : vector<16x64xbf16>, vector<64x64xbf16>, vector<16x64xf32> -> vector<16x64xf32>
    %c0_38 = arith.constant 0 : index
    %c0_39 = arith.constant 0 : index
    %92 = vector.load %arg11[%c0_38, %c0_39] : memref<1x64xf32, #tpu.memory_space<vmem>>, vector<1x64xf32>
    %93 = vector.broadcast %92 : vector<1x64xf32> to vector<16x64xf32>
    %94 = arith.addf %91, %93 : vector<16x64xf32>
    %95 = arith.addf %1, %94 : vector<16x64xf32>
    %c0_40 = arith.constant 0 : index
    %c0_41 = arith.constant 0 : index
    %c0_42 = arith.constant 0 : index
    %96 = vector.load %arg12[%c0_40, %c0_41, %c0_42] : memref<1x16x64xf32, #tpu.memory_space<vmem>>, vector<1x16x64xf32>
    %97 = vector.shape_cast %96 : vector<1x16x64xf32> to vector<16x64xf32>
    %98 = vector.shape_cast %95 : vector<16x64xf32> to vector<1x16x64xf32>
    tpu.vector_store %arg12[%c0_40, %c0_41, %c0_42], %98 {strides = array<i32>} : memref<1x16x64xf32, #tpu.memory_space<vmem>>, vector<1x16x64xf32>,
    return
  }
  func.func @transform_0(%arg0: i32) -> (i32, i32, i32) {
    %c0_i32 = arith.constant 0 : i32
    %c0_i32_0 = arith.constant 0 : i32
    %c0_i32_1 = arith.constant 0 : i32
    return %arg0, %c0_i32, %c0_i32_0 : i32, i32, i32
  }
  func.func @transform_1(%arg0: i32) -> (i32, i32) {
    %c0_i32 = arith.constant 0 : i32
    %c0_i32_0 = arith.constant 0 : i32
    %c0_i32_1 = arith.constant 0 : i32
    return %c0_i32, %c0_i32_0 : i32, i32
  }
  func.func @transform_2(%arg0: i32) -> (i32, i32) {
    %c0_i32 = arith.constant 0 : i32
    %c0_i32_0 = arith.constant 0 : i32
    %c0_i32_1 = arith.constant 0 : i32
    return %c0_i32, %c0_i32_0 : i32, i32
  }
  func.func @transform_3(%arg0: i32) -> (i32, i32) {
    %c0_i32 = arith.constant 0 : i32
    %c0_i32_0 = arith.constant 0 : i32
    %c0_i32_1 = arith.constant 0 : i32
    return %c0_i32, %c0_i32_0 : i32, i32
  }
  func.func @transform_4(%arg0: i32) -> (i32, i32) {
    %c0_i32 = arith.constant 0 : i32
    %c0_i32_0 = arith.constant 0 : i32
    %c0_i32_1 = arith.constant 0 : i32
    return %c0_i32, %c0_i32_0 : i32, i32
  }
  func.func @transform_5(%arg0: i32) -> (i32, i32) {
    %c0_i32 = arith.constant 0 : i32
    %c0_i32_0 = arith.constant 0 : i32
    %c0_i32_1 = arith.constant 0 : i32
    return %c0_i32, %c0_i32_0 : i32, i32
  }
  func.func @transform_6(%arg0: i32) -> (i32, i32) {
    %c0_i32 = arith.constant 0 : i32
    %c0_i32_0 = arith.constant 0 : i32
    %c0_i32_1 = arith.constant 0 : i32
    return %c0_i32, %c0_i32_0 : i32, i32
  }
  func.func @transform_7(%arg0: i32) -> (i32, i32) {
    %c0_i32 = arith.constant 0 : i32
    %c0_i32_0 = arith.constant 0 : i32
    %c0_i32_1 = arith.constant 0 : i32
    return %c0_i32, %c0_i32_0 : i32, i32
  }
  func.func @transform_8(%arg0: i32) -> (i32, i32) {
    %c0_i32 = arith.constant 0 : i32
    %c0_i32_0 = arith.constant 0 : i32
    %c0_i32_1 = arith.constant 0 : i32
    return %c0_i32, %c0_i32_0 : i32, i32
  }
  func.func @transform_9(%arg0: i32) -> (i32, i32) {
    %c0_i32 = arith.constant 0 : i32
    %c0_i32_0 = arith.constant 0 : i32
    %c0_i32_1 = arith.constant 0 : i32
    return %c0_i32, %c0_i32_0 : i32, i32
  }
  func.func @transform_10(%arg0: i32) -> (i32, i32) {
    %c0_i32 = arith.constant 0 : i32
    %c0_i32_0 = arith.constant 0 : i32
    %c0_i32_1 = arith.constant 0 : i32
    return %c0_i32, %c0_i32_0 : i32, i32
  }
  func.func @transform_11(%arg0: i32) -> (i32, i32, i32) {
    %c0_i32 = arith.constant 0 : i32
    %c0_i32_0 = arith.constant 0 : i32
    %c0_i32_1 = arith.constant 0 : i32
    return %arg0, %c0_i32, %c0_i32_0 : i32, i32, i32
  }
}

module attributes {stable_mosaic.version = 11 : i64} {
  func.func @_argmax_kernel(%arg0: i32, %arg1: memref<16x256xf32, #tpu.memory_space<vmem>>, %arg2: memref<16x1xi32, #tpu.memory_space<vmem>>) attributes {dimension_semantics = [#tpu.dimension_semantics<parallel>], iteration_bounds = array<i64: 2>, scalar_prefetch = 0 : i64, scratch_operands = 0 : i64, tpu.core_type = #tpu.core_type<tc>, window_params = [{transform_indices = @transform_0, window_bounds = array<i64: 16, 256>}, {transform_indices = @transform_1, window_bounds = array<i64: 16, 1>}]} {
    %c0 = arith.constant 0 : index
    %c0_0 = arith.constant 0 : index
    %0 = vector.load %arg1[%c0, %c0_0] : memref<16x256xf32, #tpu.memory_space<vmem>>, vector<16x256xf32>
    %cst = arith.constant dense<0xFF800000> : vector<16xf32>
    %1 = vector.multi_reduction <maximumf>, %0, %cst [1] : vector<16x256xf32> to vector<16xf32>
    %2 = vector.shape_cast %1 : vector<16xf32> to vector<16x1xf32>
    %3 = tpu.iota {dimensions = array<i32: 1>} : vector<16x256xi32>
    %4 = vector.broadcast %2 : vector<16x1xf32> to vector<16x256xf32>
    %5 = arith.cmpf oge, %0, %4 : vector<16x256xf32>
    %c256_i32 = arith.constant 256 : i32
    %6 = vector.broadcast %c256_i32 : i32 to vector<16x256xi32>
    %7 = arith.select %5, %3, %6 : vector<16x256xi1>, vector<16x256xi32>
    %cst_1 = arith.constant dense<2147483647> : vector<16xi32>
    %8 = vector.multi_reduction <minsi>, %7, %cst_1 [1] : vector<16x256xi32> to vector<16xi32>
    %9 = vector.shape_cast %8 : vector<16xi32> to vector<16x1xi32>
    %c0_2 = arith.constant 0 : index
    %c0_3 = arith.constant 0 : index
    %10 = vector.load %arg2[%c0_2, %c0_3] : memref<16x1xi32, #tpu.memory_space<vmem>>, vector<16x1xi32>
    tpu.vector_store %arg2[%c0_2, %c0_3], %9 {strides = array<i32>} : memref<16x1xi32, #tpu.memory_space<vmem>>, vector<16x1xi32>,
    return
  }
  func.func @transform_0(%arg0: i32) -> (i32, i32) {
    %c0_i32 = arith.constant 0 : i32
    %c0_i32_0 = arith.constant 0 : i32
    return %arg0, %c0_i32 : i32, i32
  }
  func.func @transform_1(%arg0: i32) -> (i32, i32) {
    %c0_i32 = arith.constant 0 : i32
    %c0_i32_0 = arith.constant 0 : i32
    return %arg0, %c0_i32 : i32, i32
  }
}

</mosaic_0001>

<llo_original>
// kernel: forward.14
$region0: #{forward.14}
  #allocation0 [shape = 'u32[]', space=smem, size = 0x4, offset = 0x4, fixed_abs, tag = 'smem constant byte address 0x4 - core index']
  #allocation1 [shape = 'u32[72,128]{1,0:T(1,128)}', space=vmem, size = 0x9000, scoped, tag = 'internal scratch']
  %s0 = inlined_call_operand.vmem [shape: f32[128,48], index: 0, kind: input, shape index: {}]
  %s1 = inlined_call_operand.vmem [shape: f32[48,32], index: 1, kind: input, shape index: {}]
  %s2 = inlined_call_operand.vmem [shape: f32[1,32], index: 2, kind: input, shape index: {}]
  %s3 = inlined_call_operand.vmem [shape: f32[1,32], index: 3, kind: input, shape index: {}]
  %s4 = inlined_call_operand.vmem [shape: f32[1,32], index: 4, kind: input, shape index: {}]
  %s5 = inlined_call_operand.vmem [shape: f32[128,32], index: 5, kind: output, shape index: {}]
  %s6 = sld [smem:[#allocation0]]
  $region53: #{forward.14} parent=0
    _
  %s8 = ssub.s32 1, %s6
  %s9 = scalar_select 0, %s8, %s6
  loop: start=0, step=1, limit=4
  $region2: #{forward.14} parent=0 // loop_pre_header
    _
  $region3: #{forward.14} parent=0 // loop_header
    %s11 = sphi 0, %s15
    %p12 = scmp.ge.s32.totalorder %s11, 4
    %s21 = sphi 0, %s23
    %s24 = sphi 0, %s21
    %s25 = sphi 0, %s24
    %s41 = sphi 0, %s25
    %s45 = sphi 0, %s45
    %s47 = sphi 0, %s45
    %s48 = sphi 0, %s47
    %s62 = sphi 0, %s48
    %s66 = sphi 0, %s66
    %s68 = sphi 0, %s66
    %s69 = sphi 0, %s68
    %s83 = sphi 0, %s69
    %s87 = sphi 0, %s87
    %s89 = sphi 0, %s87
    %s90 = sphi 0, %s89
    %s104 = sphi 0, %s90
    %s108 = sphi 0, %s108
    %s110 = sphi 0, %s108
    %s111 = sphi 0, %s110
    %s125 = sphi 0, %s111
    %s131 = sphi 0, %s133
    %s134 = sphi 0, %s131
    %s135 = sphi 0, %s134
    %s151 = sphi 0, %s135
  $region4: #{forward.14} parent=0 // loop_header_branch
    %14 = sbr.rel (%p12) target = $region8
  $region5: #{forward.14} parent=0 // loop_body
    %s16 = ssub.s32 %s11, 1
    %s17 = ssub.s32 %s11, 2
    %s18 = sadd.s32 %s11, 1
    %s19 = ssub.s32 %s11, %s18
    %p20 = scmp.eq.s32.totalorder %s19, 0
    %s22 = sadd.s32 %s21, 1
    %s23 = scalar_select %p20, %s21, %s22
    %p26 = pneg %p20
    %p27 = scmp.eq.s32.totalorder %s11, 1
    %p28 = por %p26, %p27
    %p29 = scmp.ne.s32.totalorder %s21, %s24
    %p30 = scmp.eq.s32.totalorder %s11, 0
    %p31 = por %p29, %p30
    %p32 = scmp.ne.s32.totalorder %s21, %s24
    %p33 = scmp.eq.s32.totalorder %s16, 1
    %p34 = por %p32, %p33
    %p35 = scmp.ne.s32.totalorder %s24, %s25
    %p36 = scmp.eq.s32.totalorder %s16, 0
    %p37 = por %p35, %p36
    %p38 = scmp.ne.s32.totalorder %s24, %s25
    %p39 = scmp.eq.s32.totalorder %s17, 1
    %p40 = por %p38, %p39
    %p42 = scmp.ne.s32.totalorder %s25, %s41
    %p43 = scmp.eq.s32.totalorder %s17, 0
    %p44 = por %p42, %p43
    %s46 = sadd.s32 %s45, 1
    %p49 = scmp.eq.s32.totalorder %s11, 1
    %p50 = scmp.ne.s32.totalorder %s45, %s47
    %p51 = scmp.eq.s32.totalorder %s11, 0
    %p52 = por %p50, %p51
    %p53 = scmp.ne.s32.totalorder %s45, %s47
    %p54 = scmp.eq.s32.totalorder %s16, 1
    %p55 = por %p53, %p54
    %p56 = scmp.ne.s32.totalorder %s47, %s48
    %p57 = scmp.eq.s32.totalorder %s16, 0
    %p58 = por %p56, %p57
    %p59 = scmp.ne.s32.totalorder %s47, %s48
    %p60 = scmp.eq.s32.totalorder %s17, 1
    %p61 = por %p59, %p60
    %p63 = scmp.ne.s32.totalorder %s48, %s62
    %p64 = scmp.eq.s32.totalorder %s17, 0
    %p65 = por %p63, %p64
    %s67 = sadd.s32 %s66, 1
    %p70 = scmp.eq.s32.totalorder %s11, 1
    %p71 = scmp.ne.s32.totalorder %s66, %s68
    %p72 = scmp.eq.s32.totalorder %s11, 0
    %p73 = por %p71, %p72
    %p74 = scmp.ne.s32.totalorder %s66, %s68
    %p75 = scmp.eq.s32.totalorder %s16, 1
    %p76 = por %p74, %p75
    %p77 = scmp.ne.s32.totalorder %s68, %s69
    %p78 = scmp.eq.s32.totalorder %s16, 0
    %p79 = por %p77, %p78
    %p80 = scmp.ne.s32.totalorder %s68, %s69
    %p81 = scmp.eq.s32.totalorder %s17, 1
    %p82 = por %p80, %p81
    %p84 = scmp.ne.s32.totalorder %s69, %s83
    %p85 = scmp.eq.s32.totalorder %s17, 0
    %p86 = por %p84, %p85
    %s88 = sadd.s32 %s87, 1
    %p91 = scmp.eq.s32.totalorder %s11, 1
    %p92 = scmp.ne.s32.totalorder %s87, %s89
    %p93 = scmp.eq.s32.totalorder %s11, 0
    %p94 = por %p92, %p93
    %p95 = scmp.ne.s32.totalorder %s87, %s89
    %p96 = scmp.eq.s32.totalorder %s16, 1
    %p97 = por %p95, %p96
    %p98 = scmp.ne.s32.totalorder %s89, %s90
    %p99 = scmp.eq.s32.totalorder %s16, 0
    %p100 = por %p98, %p99
    %p101 = scmp.ne.s32.totalorder %s89, %s90
    %p102 = scmp.eq.s32.totalorder %s17, 1
    %p103 = por %p101, %p102
    %p105 = scmp.ne.s32.totalorder %s90, %s104
    %p106 = scmp.eq.s32.totalorder %s17, 0
    %p107 = por %p105, %p106
    %s109 = sadd.s32 %s108, 1
    %p112 = scmp.eq.s32.totalorder %s11, 1
    %p113 = scmp.ne.s32.totalorder %s108, %s110
    %p114 = scmp.eq.s32.totalorder %s11, 0
    %p115 = por %p113, %p114
    %p116 = scmp.ne.s32.totalorder %s108, %s110
    %p117 = scmp.eq.s32.totalorder %s16, 1
    %p118 = por %p116, %p117
    %p119 = scmp.ne.s32.totalorder %s110, %s111
    %p120 = scmp.eq.s32.totalorder %s16, 0
    %p121 = por %p119, %p120
    %p122 = scmp.ne.s32.totalorder %s110, %s111
    %p123 = scmp.eq.s32.totalorder %s17, 1
    %p124 = por %p122, %p123
    %p126 = scmp.ne.s32.totalorder %s111, %s125
    %p127 = scmp.eq.s32.totalorder %s17, 0
    %p128 = por %p126, %p127
    %s129 = ssub.s32 %s11, %s18
    %p130 = scmp.eq.s32.totalorder %s129, 0
    %s132 = sadd.s32 %s131, 1
    %s133 = scalar_select %p130, %s131, %s132
    %p136 = pneg %p130
    %p137 = scmp.eq.s32.totalorder %s11, 1
    %p138 = por %p136, %p137
    %p139 = scmp.ne.s32.totalorder %s131, %s134
    %p140 = scmp.eq.s32.totalorder %s11, 0
    %p141 = por %p139, %p140
    %p142 = scmp.ne.s32.totalorder %s131, %s134
    %p143 = scmp.eq.s32.totalorder %s16, 1
    %p144 = por %p142, %p143
    %p145 = scmp.ne.s32.totalorder %s134, %s135
    %p146 = scmp.eq.s32.totalorder %s16, 0
    %p147 = por %p145, %p146
    %p148 = scmp.ne.s32.totalorder %s134, %s135
    %p149 = scmp.eq.s32.totalorder %s17, 1
    %p150 = por %p148, %p149
    %p152 = scmp.ne.s32.totalorder %s135, %s151
    %p153 = scmp.eq.s32.totalorder %s17, 0
    %p154 = por %p152, %p153
    %p155 = scmp.le.s32.totalorder 1, %s11
    %p156 = scmp.lt.s32.totalorder %s11, 3
    %p157 = pnand %p155, %p156
    %p158 = pneg %p157
    // Predicated region
    $region9: #{forward.14} parent=5 // pred_check
      _
    $region10: #{forward.14} parent=5 // pred_check_branch
      %160 = sbr.rel (%p157) target = $region12
    $region11: #{forward.14} parent=5 // pred_region
      %s161 = ssub.s32 %s11, 1
      // Predicated region
      $region13: #{forward.14} parent=11 // pred_check
        %p162 = pneg %p58
      $region14: #{forward.14} parent=11 // pred_check_branch
        %164 = sbr.rel (%p162) target = $region16
      $region15: #{forward.14} parent=11 // pred_region
        _
      $region16: #{forward.14} parent=11 // pred_fallthru
        _
      // Predicated region
      $region17: #{forward.14} parent=11 // pred_check
        %p165 = pneg %p79
      $region18: #{forward.14} parent=11 // pred_check_branch
        %167 = sbr.rel (%p165) target = $region20
      $region19: #{forward.14} parent=11 // pred_region
        _
      $region20: #{forward.14} parent=11 // pred_fallthru
        _
      // Predicated region
      $region21: #{forward.14} parent=11 // pred_check
        %p168 = pneg %p100
      $region22: #{forward.14} parent=11 // pred_check_branch
        %170 = sbr.rel (%p168) target = $region24
      $region23: #{forward.14} parent=11 // pred_region
        _
      $region24: #{forward.14} parent=11 // pred_fallthru
        _
      // Predicated region
      $region25: #{forward.14} parent=11 // pred_check
        %p171 = pneg %p121
      $region26: #{forward.14} parent=11 // pred_check_branch
        %173 = sbr.rel (%p171) target = $region28
      $region27: #{forward.14} parent=11 // pred_region
        _
      $region28: #{forward.14} parent=11 // pred_fallthru
        _
    $region12: #{forward.14} parent=5 // pred_fallthru
      _
    %p174 = scmp.lt.s32.totalorder %s11, 2
    // Predicated region
    $region29: #{forward.14} parent=5 // pred_check
      %p175 = pneg %p174
    $region30: #{forward.14} parent=5 // pred_check_branch
      %177 = sbr.rel (%p175) target = $region32
    $region31: #{forward.14} parent=5 // pred_region
      // Predicated region
      $region33: #{forward.14} parent=31 // pred_check
        %p178 = pneg %p31
      $region34: #{forward.14} parent=31 // pred_check_branch
        %180 = sbr.rel (%p178) target = $region36
      $region35: #{forward.14} parent=31 // pred_region
        %s181 = smul.u32 8, %s11
        %p182 = scmp.lt.s32.totalorder %s181, 15
        %s183 = scalar_select %p182, %s181, 15
        %s184 = smul.addr %s183, 8
        %s185 = scalar_lea.vmem %s0, %s184
        %s186 = smul.u32 8, %s11
      $region36: #{forward.14} parent=31 // pred_fallthru
        _
    $region32: #{forward.14} parent=5 // pred_fallthru
      _
    %p187 = scmp.le.s32.totalorder 1, %s11
    %p188 = scmp.lt.s32.totalorder %s11, 3
    %p189 = pnand %p187, %p188
    %p190 = pneg %p189
    // Predicated region
    $region37: #{forward.14} parent=5 // pred_check
      _
    $region38: #{forward.14} parent=5 // pred_check_branch
      %192 = sbr.rel (%p189) target = $region40
    $region39: #{forward.14} parent=5 // pred_region
      %s193 = ssub.s32 %s11, 1
      %s194 = smul.u32 8, %s16
      %p195 = scmp.lt.s32.totalorder %s194, 15
      %s196 = scalar_select %p195, %s194, 15
      %s197 = smul.addr %s196, 8
      %s198 = scalar_lea.vmem %s0, %s197
      %p199 = pneg %p37
      %p200 = pneg %p34
      %p201 = pneg %p58
      %p202 = pneg %p55
      %p203 = pneg %p79
      %p204 = pneg %p76
      %p205 = pneg %p100
      %p206 = pneg %p97
      %p207 = pneg %p121
      %p208 = pneg %p118
      %p209 = pneg %p147
      %p210 = pneg %p144
      %s211 = smul.u32 8, %s16
      %p212 = scmp.lt.s32.totalorder %s211, 15
      %s213 = scalar_select %p212, %s211, 15
      %s214 = smul.addr %s213, 8
      %s215 = scalar_lea.vmem %s5, %s214
      %s216 = smul.u32 8, %s16
      %p217 = scmp.lt.s32.totalorder %s216, 15
      %s218 = scalar_select %p217, %s216, 15
      %s219 = smul.addr %s218, 8
      %s220 = scalar_lea.vmem %s0, %s219
      %s221 = smul.u32 8, %s16
      %s222 = smul.u32 8, %s16
      %p223 = scmp.lt.s32.totalorder %s222, 15
      %s224 = scalar_select %p223, %s222, 15
      %s225 = smul.addr %s224, 8
      %s226 = scalar_lea.vmem %s5, %s225
      %s227 = smul.u32 8, %s16
      %v229 = vld [vmem:[%s220] sm:$0xff]
      %v230 = vld [vmem:[%s220 + $0x8] sm:$0xff]
      %v231 = vld [vmem:[%s220 + $0x10] sm:$0xff]
      %v232 = vld [vmem:[%s220 + $0x18] sm:$0xff]
      %v233 = vld [vmem:[%s220 + $0x20] sm:$0xff]
      %v234 = vld [vmem:[%s220 + $0x28] sm:$0xff]
      %v235 = vld [vmem:[%s220 + $0x30] sm:$0xff]
      %v236 = vld [vmem:[%s220 + $0x38] sm:$0xff]
      %v237 = vld [vmem:[%s1] sm:$0xff]
      %v238 = vld [vmem:[%s1 + $0x8] sm:$0xff]
      %v239 = vld [vmem:[%s1 + $0x10] sm:$0xff]
      %v240 = vld [vmem:[%s1 + $0x18] sm:$0xff]
      %v241 = vld [vmem:[%s1 + $0x20] sm:$0xff]
      %v242 = vld [vmem:[%s1 + $0x28] sm:$0xff]
      %v243 = vpack.c.bf16 %v230, %v229
      %v244 = vpack.c.bf16 %v232, %v231
      %v245 = vpack.c.bf16 %v234, %v233
      %v246 = vpack.c.bf16 %v236, %v235
      %v247 = vpack.c.bf16 %v238, %v237
      %v248 = vpack.c.bf16 %v240, %v239
      %v249 = vpack.c.bf16 %v242, %v241
      %v250 = vld [vmem:[%s2] sm:$0x1]
      %v252 = vperm.slane %v250, 0
      %vm254 = vcmask 392192
      %v256 = vsel %vm254, %v243, 0
      %v259 = vsel %vm254, %v244, 0
      %v262 = vsel %vm254, %v245, 0
      %v265 = vsel %vm254, %v246, 0
      %267 = vmatpush.bf16.msra.mxu0 0
      %268 = vmatpush.bf16.msra.mxu0 0
      %269 = vmatpush.bf16.msra.mxu0 0
      %270 = vmatpush.bf16.msra.mxu0 0
      %271 = vmatpush.bf16.msra.mxu0 0
      %272 = vmatpush.bf16.msra.mxu0 %v249
      %273 = vmatpush.bf16.msra.mxu0 %v248
      %274 = vmatpush.bf16.msra.mxu0 %v247
      %275 = vmatmul.bf16.gmra.mxu0 %v256
      %v276 = vpop.f32.mrf.mxu0
      %v277 = vadd.f32 %v252, %v276
      %v278 = vpop.f32.mrf.mxu0
      %v279 = vadd.f32 %v252, %v278
      %280 = vmatmul.bf16.gmra.mxu0 %v259
      %v281 = vpop.f32.mrf.mxu0
      %v282 = vadd.f32 %v252, %v281
      %v283 = vpop.f32.mrf.mxu0
      %v284 = vadd.f32 %v252, %v283
      %285 = vmatmul.bf16.gmra.mxu0 %v262
      %v286 = vpop.f32.mrf.mxu0
      %v287 = vadd.f32 %v252, %v286
      %v288 = vpop.f32.mrf.mxu0
      %v289 = vadd.f32 %v252, %v288
      %290 = vmatmul.bf16.gmra.mxu0 %v265
      %v291 = vpop.f32.mrf.mxu0
      %v292 = vadd.f32 %v252, %v291
      %v293 = vpop.f32.mrf.mxu0
      %v294 = vadd.f32 %v252, %v293
      %295 = vdwg.mxu0
      %v296 = vld [vmem:[%s3] sm:$0x1]
      %v297 = vld [vmem:[%s4] sm:$0x1]
      %vm298 = vcmask 261120
      %v299 = vsel %vm298, %v277, 0.0
      %300 = vadd.xlane.f32.xlu0 %v299
      %v301 = vpop.xlane.xlu0 %300
      %v302 = vsel %vm298, %v279, 0.0
      %303 = vadd.xlane.f32.xlu0 %v302
      %v304 = vpop.xlane.xlu0 %303
      %v305 = vsel %vm298, %v282, 0.0
      %306 = vadd.xlane.f32.xlu0 %v305
      %v307 = vpop.xlane.xlu0 %306
      %v308 = vsel %vm298, %v284, 0.0
      %309 = vadd.xlane.f32.xlu0 %v308
      %v310 = vpop.xlane.xlu0 %309
      %v311 = vsel %vm298, %v287, 0.0
      %312 = vadd.xlane.f32.xlu0 %v311
      %v313 = vpop.xlane.xlu0 %312
      %v314 = vsel %vm298, %v289, 0.0
      %315 = vadd.xlane.f32.xlu0 %v314
      %v316 = vpop.xlane.xlu0 %315
      %v317 = vsel %vm298, %v292, 0.0
      %318 = vadd.xlane.f32.xlu0 %v317
      %v319 = vpop.xlane.xlu0 %318
      %v320 = vsel %vm298, %v294, 0.0
      %321 = vadd.xlane.f32.xlu0 %v320
      %v322 = vpop.xlane.xlu0 %321
      %v323 = vrcp.pop 32.0
      %v324 = vmul.f32 32.0, %v323
      %v325 = vsub.f32 1.0, %v324
      %v326 = vmul.f32 %v323, %v325
      %v327 = vadd.f32 %v323, %v326
      %vm328 = vweird.f32 %v323
      %v329 = vsel %vm328, %v323, %v327
      %v330 = vmul.f32 %v301, %v329
      %v331 = vmul.f32 %v304, %v329
      %v332 = vmul.f32 %v307, %v329
      %v333 = vmul.f32 %v310, %v329
      %v334 = vmul.f32 %v313, %v329
      %v335 = vmul.f32 %v316, %v329
      %v336 = vmul.f32 %v319, %v329
      %v337 = vmul.f32 %v322, %v329
      %v338 = vsub.f32 %v277, %v330
      %v339 = vsub.f32 %v279, %v331
      %v340 = vsub.f32 %v282, %v332
      %v341 = vsub.f32 %v284, %v333
      %v342 = vsub.f32 %v287, %v334
      %v343 = vsub.f32 %v289, %v335
      %v344 = vsub.f32 %v292, %v336
      %v345 = vsub.f32 %v294, %v337
      %v346 = vmul.f32 %v338, %v338
      %v347 = vmul.f32 %v339, %v339
      %v348 = vmul.f32 %v340, %v340
      %v349 = vmul.f32 %v341, %v341
      %v350 = vmul.f32 %v342, %v342
      %v351 = vmul.f32 %v343, %v343
      %v352 = vmul.f32 %v344, %v344
      %v353 = vmul.f32 %v345, %v345
      %v354 = vsel %vm298, %v346, 0.0
      %355 = vadd.xlane.f32.xlu0 %v354
      %v356 = vpop.xlane.xlu0 %355
      %v357 = vsel %vm298, %v347, 0.0
      %358 = vadd.xlane.f32.xlu0 %v357
      %v359 = vpop.xlane.xlu0 %358
      %v360 = vsel %vm298, %v348, 0.0
      %361 = vadd.xlane.f32.xlu0 %v360
      %v362 = vpop.xlane.xlu0 %361
      %v363 = vsel %vm298, %v349, 0.0
      %364 = vadd.xlane.f32.xlu0 %v363
      %v365 = vpop.xlane.xlu0 %364
      %v366 = vsel %vm298, %v350, 0.0
      %367 = vadd.xlane.f32.xlu0 %v366
      %v368 = vpop.xlane.xlu0 %367
      %v369 = vsel %vm298, %v351, 0.0
      %370 = vadd.xlane.f32.xlu0 %v369
      %v371 = vpop.xlane.xlu0 %370
      %v372 = vsel %vm298, %v352, 0.0
      %373 = vadd.xlane.f32.xlu0 %v372
      %v374 = vpop.xlane.xlu0 %373
      %v375 = vsel %vm298, %v353, 0.0
      %376 = vadd.xlane.f32.xlu0 %v375
      %v377 = vpop.xlane.xlu0 %376
      %v378 = vmul.f32 %v356, %v329
      %v379 = vmul.f32 %v359, %v329
      %v380 = vmul.f32 %v362, %v329
      %v381 = vmul.f32 %v365, %v329
      %v382 = vmul.f32 %v368, %v329
      %v383 = vmul.f32 %v371, %v329
      %v384 = vmul.f32 %v374, %v329
      %v385 = vmul.f32 %v377, %v329
      %v386 = vadd.f32 %v378, 1e-06
      %v387 = vadd.f32 %v379, 1e-06
      %v388 = vadd.f32 %v380, 1e-06
      %v389 = vadd.f32 %v381, 1e-06
      %v390 = vadd.f32 %v382, 1e-06
      %v391 = vadd.f32 %v383, 1e-06
      %v392 = vadd.f32 %v384, 1e-06
      %v393 = vadd.f32 %v385, 1e-06
      %v394 = vrsqrt.pop %v386
      %v395 = vmul.f32 %v394, %v386
      %v396 = vmul.f32 %v395, %v394
      %v397 = vmul.f32 0.5, %v396
      %v398 = vsub.f32 1.5, %v397
      %v399 = vmul.f32 %v394, %v398
      %vm400 = vweird.f32 %v386
      %vm401 = vweird.f32 %v394
      %vm402 = vmor %vm400, %vm401
      %v403 = vsel %vm402, %v394, %v399
      %v404 = vrsqrt.pop %v387
      %v405 = vmul.f32 %v404, %v387
      %v406 = vmul.f32 %v405, %v404
      %v407 = vmul.f32 0.5, %v406
      %v408 = vsub.f32 1.5, %v407
      %v409 = vmul.f32 %v404, %v408
      %vm410 = vweird.f32 %v387
      %vm411 = vweird.f32 %v404
      %vm412 = vmor %vm410, %vm411
      %v413 = vsel %vm412, %v404, %v409
      %v414 = vrsqrt.pop %v388
      %v415 = vmul.f32 %v414, %v388
      %v416 = vmul.f32 %v415, %v414
      %v417 = vmul.f32 0.5, %v416
      %v418 = vsub.f32 1.5, %v417
      %v419 = vmul.f32 %v414, %v418
      %vm420 = vweird.f32 %v388
      %vm421 = vweird.f32 %v414
      %vm422 = vmor %vm420, %vm421
      %v423 = vsel %vm422, %v414, %v419
      %v424 = vrsqrt.pop %v389
      %v425 = vmul.f32 %v424, %v389
      %v426 = vmul.f32 %v425, %v424
      %v427 = vmul.f32 0.5, %v426
      %v428 = vsub.f32 1.5, %v427
      %v429 = vmul.f32 %v424, %v428
      %vm430 = vweird.f32 %v389
      %vm431 = vweird.f32 %v424
      %vm432 = vmor %vm430, %vm431
      %v433 = vsel %vm432, %v424, %v429
      %v434 = vrsqrt.pop %v390
      %v435 = vmul.f32 %v434, %v390
      %v436 = vmul.f32 %v435, %v434
      %v437 = vmul.f32 0.5, %v436
      %v438 = vsub.f32 1.5, %v437
      %v439 = vmul.f32 %v434, %v438
      %vm440 = vweird.f32 %v390
      %vm441 = vweird.f32 %v434
      %vm442 = vmor %vm440, %vm441
      %v443 = vsel %vm442, %v434, %v439
      %v444 = vrsqrt.pop %v391
      %v445 = vmul.f32 %v444, %v391
      %v446 = vmul.f32 %v445, %v444
      %v447 = vmul.f32 0.5, %v446
      %v448 = vsub.f32 1.5, %v447
      %v449 = vmul.f32 %v444, %v448
      %vm450 = vweird.f32 %v391
      %vm451 = vweird.f32 %v444
      %vm452 = vmor %vm450, %vm451
      %v453 = vsel %vm452, %v444, %v449
      %v454 = vrsqrt.pop %v392
      %v455 = vmul.f32 %v454, %v392
      %v456 = vmul.f32 %v455, %v454
      %v457 = vmul.f32 0.5, %v456
      %v458 = vsub.f32 1.5, %v457
      %v459 = vmul.f32 %v454, %v458
      %vm460 = vweird.f32 %v392
      %vm461 = vweird.f32 %v454
      %vm462 = vmor %vm460, %vm461
      %v463 = vsel %vm462, %v454, %v459
      %v464 = vrsqrt.pop %v393
      %v465 = vmul.f32 %v464, %v393
      %v466 = vmul.f32 %v465, %v464
      %v467 = vmul.f32 0.5, %v466
      %v468 = vsub.f32 1.5, %v467
      %v469 = vmul.f32 %v464, %v468
      %vm470 = vweird.f32 %v393
      %vm471 = vweird.f32 %v464
      %vm472 = vmor %vm470, %vm471
      %v473 = vsel %vm472, %v464, %v469
      %v474 = vmul.f32 %v338, %v403
      %v475 = vmul.f32 %v339, %v413
      %v476 = vmul.f32 %v340, %v423
      %v477 = vmul.f32 %v341, %v433
      %v478 = vmul.f32 %v342, %v443
      %v479 = vmul.f32 %v343, %v453
      %v480 = vmul.f32 %v344, %v463
      %v481 = vmul.f32 %v345, %v473
      %v483 = vperm.slane %v296, 0
      %v485 = vmul.f32 %v474, %v483
      %v486 = vmul.f32 %v475, %v483
      %v487 = vmul.f32 %v476, %v483
      %v488 = vmul.f32 %v477, %v483
      %v489 = vmul.f32 %v478, %v483
      %v490 = vmul.f32 %v479, %v483
      %v491 = vmul.f32 %v480, %v483
      %v492 = vmul.f32 %v481, %v483
      %v494 = vperm.slane %v297, 0
      %v496 = vadd.f32 %v485, %v494
      %v497 = vadd.f32 %v486, %v494
      %v498 = vadd.f32 %v487, %v494
      %v499 = vadd.f32 %v488, %v494
      %v500 = vadd.f32 %v489, %v494
      %v501 = vadd.f32 %v490, %v494
      %v502 = vadd.f32 %v491, %v494
      %v503 = vadd.f32 %v492, %v494
      %504 = vst.msk [vmem:[%s226] sm:$0xff] %vm298, %v496
      %505 = vst.msk [vmem:[%s226 + $0x8] sm:$0xff] %vm298, %v497
      %506 = vst.msk [vmem:[%s226 + $0x10] sm:$0xff] %vm298, %v498
      %507 = vst.msk [vmem:[%s226 + $0x18] sm:$0xff] %vm298, %v499
      %508 = vst.msk [vmem:[%s226 + $0x20] sm:$0xff] %vm298, %v500
      %509 = vst.msk [vmem:[%s226 + $0x28] sm:$0xff] %vm298, %v501
      %510 = vst.msk [vmem:[%s226 + $0x30] sm:$0xff] %vm298, %v502
      %511 = vst.msk [vmem:[%s226 + $0x38] sm:$0xff] %vm298, %v503
      %s512 = smul.u32 8, %s16
      %p513 = scmp.lt.s32.totalorder %s512, 15
      %s514 = scalar_select %p513, %s512, 15
      %s515 = smul.addr %s514, 8
      %s516 = scalar_lea.vmem %s5, %s515
      // Predicated region
      $region41: #{forward.14} parent=39 // pred_check
        %p517 = pneg %p144
      $region42: #{forward.14} parent=39 // pred_check_branch
        %519 = sbr.rel (%p517) target = $region44
      $region43: #{forward.14} parent=39 // pred_region
        %s520 = smul.u32 8, %s16
      $region44: #{forward.14} parent=39 // pred_fallthru
        _
    $region40: #{forward.14} parent=5 // pred_fallthru
      _
    %p521 = scmp.le.s32.totalorder 2, %s11
    // Predicated region
    $region45: #{forward.14} parent=5 // pred_check
      %p522 = pneg %p521
    $region46: #{forward.14} parent=5 // pred_check_branch
      %524 = sbr.rel (%p522) target = $region48
    $region47: #{forward.14} parent=5 // pred_region
      %s525 = ssub.s32 %s11, 2
      // Predicated region
      $region49: #{forward.14} parent=47 // pred_check
        %p526 = pneg %p150
      $region50: #{forward.14} parent=47 // pred_check_branch
        %528 = sbr.rel (%p526) target = $region52
      $region51: #{forward.14} parent=47 // pred_region
        %s529 = smul.u32 8, %s17
        %p530 = scmp.lt.s32.totalorder %s529, 15
        %s531 = scalar_select %p530, %s529, 15
        %s532 = smul.addr %s531, 8
        %s533 = scalar_lea.vmem %s5, %s532
      $region52: #{forward.14} parent=47 // pred_fallthru
        _
    $region48: #{forward.14} parent=5 // pred_fallthru
      _
  $region6: #{forward.14} parent=0 // loop_footer
    %s15 = sadd.s32 1, %s11
  $region7: #{forward.14} parent=0 // loop_footer_branch
    %10 = sbr.rel target = $region3
  $region8: #{forward.14} parent=0 // loop_exit
    _

// kernel: forward.17
$region0: #{forward.17}
  #allocation0 [shape = 'u32[]', space=smem, size = 0x4, offset = 0x4, fixed_abs, tag = 'smem constant byte address 0x4 - core index']
  #allocation1 [shape = 'u32[72,128]{1,0:T(1,128)}', space=vmem, size = 0x9000, scoped, tag = 'internal scratch']
  %s0 = inlined_call_operand.vmem [shape: f32[128,32], index: 0, kind: input, shape index: {}]
  %s1 = inlined_call_operand.vmem [shape: f32[1,32], index: 1, kind: input, shape index: {}]
  %s2 = inlined_call_operand.vmem [shape: f32[1,32], index: 2, kind: input, shape index: {}]
  %s3 = inlined_call_operand.vmem [shape: f32[128,32], index: 3, kind: output, shape index: {}]
  %s4 = sld [smem:[#allocation0]]
  $region45: #{forward.17} parent=0
    _
  %s6 = ssub.s32 1, %s4
  %s7 = scalar_select 0, %s6, %s4
  loop: start=0, step=1, limit=4
  $region2: #{forward.17} parent=0 // loop_pre_header
    _
  $region3: #{forward.17} parent=0 // loop_header
    %s9 = sphi 0, %s13
    %p10 = scmp.ge.s32.totalorder %s9, 4
    %s19 = sphi 0, %s21
    %s22 = sphi 0, %s19
    %s23 = sphi 0, %s22
    %s39 = sphi 0, %s23
    %s43 = sphi 0, %s43
    %s45 = sphi 0, %s43
    %s46 = sphi 0, %s45
    %s60 = sphi 0, %s46
    %s64 = sphi 0, %s64
    %s66 = sphi 0, %s64
    %s67 = sphi 0, %s66
    %s81 = sphi 0, %s67
    %s87 = sphi 0, %s89
    %s90 = sphi 0, %s87
    %s91 = sphi 0, %s90
    %s107 = sphi 0, %s91
  $region4: #{forward.17} parent=0 // loop_header_branch
    %12 = sbr.rel (%p10) target = $region8
  $region5: #{forward.17} parent=0 // loop_body
    %s14 = ssub.s32 %s9, 1
    %s15 = ssub.s32 %s9, 2
    %s16 = sadd.s32 %s9, 1
    %s17 = ssub.s32 %s9, %s16
    %p18 = scmp.eq.s32.totalorder %s17, 0
    %s20 = sadd.s32 %s19, 1
    %s21 = scalar_select %p18, %s19, %s20
    %p24 = pneg %p18
    %p25 = scmp.eq.s32.totalorder %s9, 1
    %p26 = por %p24, %p25
    %p27 = scmp.ne.s32.totalorder %s19, %s22
    %p28 = scmp.eq.s32.totalorder %s9, 0
    %p29 = por %p27, %p28
    %p30 = scmp.ne.s32.totalorder %s19, %s22
    %p31 = scmp.eq.s32.totalorder %s14, 1
    %p32 = por %p30, %p31
    %p33 = scmp.ne.s32.totalorder %s22, %s23
    %p34 = scmp.eq.s32.totalorder %s14, 0
    %p35 = por %p33, %p34
    %p36 = scmp.ne.s32.totalorder %s22, %s23
    %p37 = scmp.eq.s32.totalorder %s15, 1
    %p38 = por %p36, %p37
    %p40 = scmp.ne.s32.totalorder %s23, %s39
    %p41 = scmp.eq.s32.totalorder %s15, 0
    %p42 = por %p40, %p41
    %s44 = sadd.s32 %s43, 1
    %p47 = scmp.eq.s32.totalorder %s9, 1
    %p48 = scmp.ne.s32.totalorder %s43, %s45
    %p49 = scmp.eq.s32.totalorder %s9, 0
    %p50 = por %p48, %p49
    %p51 = scmp.ne.s32.totalorder %s43, %s45
    %p52 = scmp.eq.s32.totalorder %s14, 1
    %p53 = por %p51, %p52
    %p54 = scmp.ne.s32.totalorder %s45, %s46
    %p55 = scmp.eq.s32.totalorder %s14, 0
    %p56 = por %p54, %p55
    %p57 = scmp.ne.s32.totalorder %s45, %s46
    %p58 = scmp.eq.s32.totalorder %s15, 1
    %p59 = por %p57, %p58
    %p61 = scmp.ne.s32.totalorder %s46, %s60
    %p62 = scmp.eq.s32.totalorder %s15, 0
    %p63 = por %p61, %p62
    %s65 = sadd.s32 %s64, 1
    %p68 = scmp.eq.s32.totalorder %s9, 1
    %p69 = scmp.ne.s32.totalorder %s64, %s66
    %p70 = scmp.eq.s32.totalorder %s9, 0
    %p71 = por %p69, %p70
    %p72 = scmp.ne.s32.totalorder %s64, %s66
    %p73 = scmp.eq.s32.totalorder %s14, 1
    %p74 = por %p72, %p73
    %p75 = scmp.ne.s32.totalorder %s66, %s67
    %p76 = scmp.eq.s32.totalorder %s14, 0
    %p77 = por %p75, %p76
    %p78 = scmp.ne.s32.totalorder %s66, %s67
    %p79 = scmp.eq.s32.totalorder %s15, 1
    %p80 = por %p78, %p79
    %p82 = scmp.ne.s32.totalorder %s67, %s81
    %p83 = scmp.eq.s32.totalorder %s15, 0
    %p84 = por %p82, %p83
    %s85 = ssub.s32 %s9, %s16
    %p86 = scmp.eq.s32.totalorder %s85, 0
    %s88 = sadd.s32 %s87, 1
    %s89 = scalar_select %p86, %s87, %s88
    %p92 = pneg %p86
    %p93 = scmp.eq.s32.totalorder %s9, 1
    %p94 = por %p92, %p93
    %p95 = scmp.ne.s32.totalorder %s87, %s90
    %p96 = scmp.eq.s32.totalorder %s9, 0
    %p97 = por %p95, %p96
    %p98 = scmp.ne.s32.totalorder %s87, %s90
    %p99 = scmp.eq.s32.totalorder %s14, 1
    %p100 = por %p98, %p99
    %p101 = scmp.ne.s32.totalorder %s90, %s91
    %p102 = scmp.eq.s32.totalorder %s14, 0
    %p103 = por %p101, %p102
    %p104 = scmp.ne.s32.totalorder %s90, %s91
    %p105 = scmp.eq.s32.totalorder %s15, 1
    %p106 = por %p104, %p105
    %p108 = scmp.ne.s32.totalorder %s91, %s107
    %p109 = scmp.eq.s32.totalorder %s15, 0
    %p110 = por %p108, %p109
    %p111 = scmp.le.s32.totalorder 1, %s9
    %p112 = scmp.lt.s32.totalorder %s9, 3
    %p113 = pnand %p111, %p112
    %p114 = pneg %p113
    // Predicated region
    $region9: #{forward.17} parent=5 // pred_check
      _
    $region10: #{forward.17} parent=5 // pred_check_branch
      %116 = sbr.rel (%p113) target = $region12
    $region11: #{forward.17} parent=5 // pred_region
      %s117 = ssub.s32 %s9, 1
      // Predicated region
      $region13: #{forward.17} parent=11 // pred_check
        %p118 = pneg %p56
      $region14: #{forward.17} parent=11 // pred_check_branch
        %120 = sbr.rel (%p118) target = $region16
      $region15: #{forward.17} parent=11 // pred_region
        _
      $region16: #{forward.17} parent=11 // pred_fallthru
        _
      // Predicated region
      $region17: #{forward.17} parent=11 // pred_check
        %p121 = pneg %p77
      $region18: #{forward.17} parent=11 // pred_check_branch
        %123 = sbr.rel (%p121) target = $region20
      $region19: #{forward.17} parent=11 // pred_region
        _
      $region20: #{forward.17} parent=11 // pred_fallthru
        _
    $region12: #{forward.17} parent=5 // pred_fallthru
      _
    %p124 = scmp.lt.s32.totalorder %s9, 2
    // Predicated region
    $region21: #{forward.17} parent=5 // pred_check
      %p125 = pneg %p124
    $region22: #{forward.17} parent=5 // pred_check_branch
      %127 = sbr.rel (%p125) target = $region24
    $region23: #{forward.17} parent=5 // pred_region
      // Predicated region
      $region25: #{forward.17} parent=23 // pred_check
        %p128 = pneg %p29
      $region26: #{forward.17} parent=23 // pred_check_branch
        %130 = sbr.rel (%p128) target = $region28
      $region27: #{forward.17} parent=23 // pred_region
        %s131 = smul.u32 8, %s9
        %p132 = scmp.lt.s32.totalorder %s131, 15
        %s133 = scalar_select %p132, %s131, 15
        %s134 = smul.addr %s133, 8
        %s135 = scalar_lea.vmem %s0, %s134
        %s136 = smul.u32 8, %s9
      $region28: #{forward.17} parent=23 // pred_fallthru
        _
    $region24: #{forward.17} parent=5 // pred_fallthru
      _
    %p137 = scmp.le.s32.totalorder 1, %s9
    %p138 = scmp.lt.s32.totalorder %s9, 3
    %p139 = pnand %p137, %p138
    %p140 = pneg %p139
    // Predicated region
    $region29: #{forward.17} parent=5 // pred_check
      _
    $region30: #{forward.17} parent=5 // pred_check_branch
      %142 = sbr.rel (%p139) target = $region32
    $region31: #{forward.17} parent=5 // pred_region
      %s143 = ssub.s32 %s9, 1
      %s144 = smul.u32 8, %s14
      %p145 = scmp.lt.s32.totalorder %s144, 15
      %s146 = scalar_select %p145, %s144, 15
      %s147 = smul.addr %s146, 8
      %s148 = scalar_lea.vmem %s0, %s147
      %p149 = pneg %p35
      %p150 = pneg %p32
      %p151 = pneg %p56
      %p152 = pneg %p53
      %p153 = pneg %p77
      %p154 = pneg %p74
      %p155 = pneg %p103
      %p156 = pneg %p100
      %s157 = smul.u32 8, %s14
      %p158 = scmp.lt.s32.totalorder %s157, 15
      %s159 = scalar_select %p158, %s157, 15
      %s160 = smul.addr %s159, 8
      %s161 = scalar_lea.vmem %s3, %s160
      %s162 = smul.u32 8, %s14
      %p163 = scmp.lt.s32.totalorder %s162, 15
      %s164 = scalar_select %p163, %s162, 15
      %s165 = smul.addr %s164, 8
      %s166 = scalar_lea.vmem %s0, %s165
      %s167 = smul.u32 8, %s14
      %s168 = smul.u32 8, %s14
      %p169 = scmp.lt.s32.totalorder %s168, 15
      %s170 = scalar_select %p169, %s168, 15
      %s171 = smul.addr %s170, 8
      %s172 = scalar_lea.vmem %s3, %s171
      %s173 = smul.u32 8, %s14
      %v174 = vld [vmem:[%s166] sm:$0xff]
      %v175 = vld [vmem:[%s166 + $0x8] sm:$0xff]
      %v176 = vld [vmem:[%s166 + $0x10] sm:$0xff]
      %v177 = vld [vmem:[%s166 + $0x18] sm:$0xff]
      %v178 = vld [vmem:[%s166 + $0x20] sm:$0xff]
      %v179 = vld [vmem:[%s166 + $0x28] sm:$0xff]
      %v180 = vld [vmem:[%s166 + $0x30] sm:$0xff]
      %v181 = vld [vmem:[%s166 + $0x38] sm:$0xff]
      %v182 = vld [vmem:[%s1] sm:$0x1]
      %v183 = vld [vmem:[%s2] sm:$0x1]
      %vm184 = vcmask 261120
      %v185 = vsel %vm184, %v174, 0.0
      %186 = vadd.xlane.f32.xlu0 %v185
      %v187 = vpop.xlane.xlu0 %186
      %v188 = vsel %vm184, %v175, 0.0
      %189 = vadd.xlane.f32.xlu0 %v188
      %v190 = vpop.xlane.xlu0 %189
      %v191 = vsel %vm184, %v176, 0.0
      %192 = vadd.xlane.f32.xlu0 %v191
      %v193 = vpop.xlane.xlu0 %192
      %v194 = vsel %vm184, %v177, 0.0
      %195 = vadd.xlane.f32.xlu0 %v194
      %v196 = vpop.xlane.xlu0 %195
      %v197 = vsel %vm184, %v178, 0.0
      %198 = vadd.xlane.f32.xlu0 %v197
      %v199 = vpop.xlane.xlu0 %198
      %v200 = vsel %vm184, %v179, 0.0
      %201 = vadd.xlane.f32.xlu0 %v200
      %v202 = vpop.xlane.xlu0 %201
      %v203 = vsel %vm184, %v180, 0.0
      %204 = vadd.xlane.f32.xlu0 %v203
      %v205 = vpop.xlane.xlu0 %204
      %v206 = vsel %vm184, %v181, 0.0
      %207 = vadd.xlane.f32.xlu0 %v206
      %v208 = vpop.xlane.xlu0 %207
      %v209 = vrcp.pop 32.0
      %v210 = vmul.f32 32.0, %v209
      %v211 = vsub.f32 1.0, %v210
      %v212 = vmul.f32 %v209, %v211
      %v213 = vadd.f32 %v209, %v212
      %vm214 = vweird.f32 %v209
      %v215 = vsel %vm214, %v209, %v213
      %v216 = vmul.f32 %v187, %v215
      %v217 = vmul.f32 %v190, %v215
      %v218 = vmul.f32 %v193, %v215
      %v219 = vmul.f32 %v196, %v215
      %v220 = vmul.f32 %v199, %v215
      %v221 = vmul.f32 %v202, %v215
      %v222 = vmul.f32 %v205, %v215
      %v223 = vmul.f32 %v208, %v215
      %v224 = vsub.f32 %v174, %v216
      %v225 = vsub.f32 %v175, %v217
      %v226 = vsub.f32 %v176, %v218
      %v227 = vsub.f32 %v177, %v219
      %v228 = vsub.f32 %v178, %v220
      %v229 = vsub.f32 %v179, %v221
      %v230 = vsub.f32 %v180, %v222
      %v231 = vsub.f32 %v181, %v223
      %v232 = vmul.f32 %v224, %v224
      %v233 = vmul.f32 %v225, %v225
      %v234 = vmul.f32 %v226, %v226
      %v235 = vmul.f32 %v227, %v227
      %v236 = vmul.f32 %v228, %v228
      %v237 = vmul.f32 %v229, %v229
      %v238 = vmul.f32 %v230, %v230
      %v239 = vmul.f32 %v231, %v231
      %v240 = vsel %vm184, %v232, 0.0
      %241 = vadd.xlane.f32.xlu0 %v240
      %v242 = vpop.xlane.xlu0 %241
      %v243 = vsel %vm184, %v233, 0.0
      %244 = vadd.xlane.f32.xlu0 %v243
      %v245 = vpop.xlane.xlu0 %244
      %v246 = vsel %vm184, %v234, 0.0
      %247 = vadd.xlane.f32.xlu0 %v246
      %v248 = vpop.xlane.xlu0 %247
      %v249 = vsel %vm184, %v235, 0.0
      %250 = vadd.xlane.f32.xlu0 %v249
      %v251 = vpop.xlane.xlu0 %250
      %v252 = vsel %vm184, %v236, 0.0
      %253 = vadd.xlane.f32.xlu0 %v252
      %v254 = vpop.xlane.xlu0 %253
      %v255 = vsel %vm184, %v237, 0.0
      %256 = vadd.xlane.f32.xlu0 %v255
      %v257 = vpop.xlane.xlu0 %256
      %v258 = vsel %vm184, %v238, 0.0
      %259 = vadd.xlane.f32.xlu0 %v258
      %v260 = vpop.xlane.xlu0 %259
      %v261 = vsel %vm184, %v239, 0.0
      %262 = vadd.xlane.f32.xlu0 %v261
      %v263 = vpop.xlane.xlu0 %262
      %v264 = vmul.f32 %v242, %v215
      %v265 = vmul.f32 %v245, %v215
      %v266 = vmul.f32 %v248, %v215
      %v267 = vmul.f32 %v251, %v215
      %v268 = vmul.f32 %v254, %v215
      %v269 = vmul.f32 %v257, %v215
      %v270 = vmul.f32 %v260, %v215
      %v271 = vmul.f32 %v263, %v215
      %v272 = vadd.f32 %v264, 1e-06
      %v273 = vadd.f32 %v265, 1e-06
      %v274 = vadd.f32 %v266, 1e-06
      %v275 = vadd.f32 %v267, 1e-06
      %v276 = vadd.f32 %v268, 1e-06
      %v277 = vadd.f32 %v269, 1e-06
      %v278 = vadd.f32 %v270, 1e-06
      %v279 = vadd.f32 %v271, 1e-06
      %v280 = vrsqrt.pop %v272
      %v281 = vmul.f32 %v280, %v272
      %v282 = vmul.f32 %v281, %v280
      %v283 = vmul.f32 0.5, %v282
      %v284 = vsub.f32 1.5, %v283
      %v285 = vmul.f32 %v280, %v284
      %vm286 = vweird.f32 %v272
      %vm287 = vweird.f32 %v280
      %vm288 = vmor %vm286, %vm287
      %v289 = vsel %vm288, %v280, %v285
      %v290 = vrsqrt.pop %v273
      %v291 = vmul.f32 %v290, %v273
      %v292 = vmul.f32 %v291, %v290
      %v293 = vmul.f32 0.5, %v292
      %v294 = vsub.f32 1.5, %v293
      %v295 = vmul.f32 %v290, %v294
      %vm296 = vweird.f32 %v273
      %vm297 = vweird.f32 %v290
      %vm298 = vmor %vm296, %vm297
      %v299 = vsel %vm298, %v290, %v295
      %v300 = vrsqrt.pop %v274
      %v301 = vmul.f32 %v300, %v274
      %v302 = vmul.f32 %v301, %v300
      %v303 = vmul.f32 0.5, %v302
      %v304 = vsub.f32 1.5, %v303
      %v305 = vmul.f32 %v300, %v304
      %vm306 = vweird.f32 %v274
      %vm307 = vweird.f32 %v300
      %vm308 = vmor %vm306, %vm307
      %v309 = vsel %vm308, %v300, %v305
      %v310 = vrsqrt.pop %v275
      %v311 = vmul.f32 %v310, %v275
      %v312 = vmul.f32 %v311, %v310
      %v313 = vmul.f32 0.5, %v312
      %v314 = vsub.f32 1.5, %v313
      %v315 = vmul.f32 %v310, %v314
      %vm316 = vweird.f32 %v275
      %vm317 = vweird.f32 %v310
      %vm318 = vmor %vm316, %vm317
      %v319 = vsel %vm318, %v310, %v315
      %v320 = vrsqrt.pop %v276
      %v321 = vmul.f32 %v320, %v276
      %v322 = vmul.f32 %v321, %v320
      %v323 = vmul.f32 0.5, %v322
      %v324 = vsub.f32 1.5, %v323
      %v325 = vmul.f32 %v320, %v324
      %vm326 = vweird.f32 %v276
      %vm327 = vweird.f32 %v320
      %vm328 = vmor %vm326, %vm327
      %v329 = vsel %vm328, %v320, %v325
      %v330 = vrsqrt.pop %v277
      %v331 = vmul.f32 %v330, %v277
      %v332 = vmul.f32 %v331, %v330
      %v333 = vmul.f32 0.5, %v332
      %v334 = vsub.f32 1.5, %v333
      %v335 = vmul.f32 %v330, %v334
      %vm336 = vweird.f32 %v277
      %vm337 = vweird.f32 %v330
      %vm338 = vmor %vm336, %vm337
      %v339 = vsel %vm338, %v330, %v335
      %v340 = vrsqrt.pop %v278
      %v341 = vmul.f32 %v340, %v278
      %v342 = vmul.f32 %v341, %v340
      %v343 = vmul.f32 0.5, %v342
      %v344 = vsub.f32 1.5, %v343
      %v345 = vmul.f32 %v340, %v344
      %vm346 = vweird.f32 %v278
      %vm347 = vweird.f32 %v340
      %vm348 = vmor %vm346, %vm347
      %v349 = vsel %vm348, %v340, %v345
      %v350 = vrsqrt.pop %v279
      %v351 = vmul.f32 %v350, %v279
      %v352 = vmul.f32 %v351, %v350
      %v353 = vmul.f32 0.5, %v352
      %v354 = vsub.f32 1.5, %v353
      %v355 = vmul.f32 %v350, %v354
      %vm356 = vweird.f32 %v279
      %vm357 = vweird.f32 %v350
      %vm358 = vmor %vm356, %vm357
      %v359 = vsel %vm358, %v350, %v355
      %v360 = vmul.f32 %v224, %v289
      %v361 = vmul.f32 %v225, %v299
      %v362 = vmul.f32 %v226, %v309
      %v363 = vmul.f32 %v227, %v319
      %v364 = vmul.f32 %v228, %v329
      %v365 = vmul.f32 %v229, %v339
      %v366 = vmul.f32 %v230, %v349
      %v367 = vmul.f32 %v231, %v359
      %v369 = vperm.slane %v182, 0
      %v371 = vmul.f32 %v360, %v369
      %v372 = vmul.f32 %v361, %v369
      %v373 = vmul.f32 %v362, %v369
      %v374 = vmul.f32 %v363, %v369
      %v375 = vmul.f32 %v364, %v369
      %v376 = vmul.f32 %v365, %v369
      %v377 = vmul.f32 %v366, %v369
      %v378 = vmul.f32 %v367, %v369
      %v380 = vperm.slane %v183, 0
      %v382 = vadd.f32 %v371, %v380
      %v383 = vadd.f32 %v372, %v380
      %v384 = vadd.f32 %v373, %v380
      %v385 = vadd.f32 %v374, %v380
      %v386 = vadd.f32 %v375, %v380
      %v387 = vadd.f32 %v376, %v380
      %v388 = vadd.f32 %v377, %v380
      %v389 = vadd.f32 %v378, %v380
      %390 = vst.msk [vmem:[%s172] sm:$0xff] %vm184, %v382
      %391 = vst.msk [vmem:[%s172 + $0x8] sm:$0xff] %vm184, %v383
      %392 = vst.msk [vmem:[%s172 + $0x10] sm:$0xff] %vm184, %v384
      %393 = vst.msk [vmem:[%s172 + $0x18] sm:$0xff] %vm184, %v385
      %394 = vst.msk [vmem:[%s172 + $0x20] sm:$0xff] %vm184, %v386
      %395 = vst.msk [vmem:[%s172 + $0x28] sm:$0xff] %vm184, %v387
      %396 = vst.msk [vmem:[%s172 + $0x30] sm:$0xff] %vm184, %v388
      %397 = vst.msk [vmem:[%s172 + $0x38] sm:$0xff] %vm184, %v389
      %s398 = smul.u32 8, %s14
      %p399 = scmp.lt.s32.totalorder %s398, 15
      %s400 = scalar_select %p399, %s398, 15
      %s401 = smul.addr %s400, 8
      %s402 = scalar_lea.vmem %s3, %s401
      // Predicated region
      $region33: #{forward.17} parent=31 // pred_check
        %p403 = pneg %p100
      $region34: #{forward.17} parent=31 // pred_check_branch
        %405 = sbr.rel (%p403) target = $region36
      $region35: #{forward.17} parent=31 // pred_region
        %s406 = smul.u32 8, %s14
      $region36: #{forward.17} parent=31 // pred_fallthru
        _
    $region32: #{forward.17} parent=5 // pred_fallthru
      _
    %p407 = scmp.le.s32.totalorder 2, %s9
    // Predicated region
    $region37: #{forward.17} parent=5 // pred_check
      %p408 = pneg %p407
    $region38: #{forward.17} parent=5 // pred_check_branch
      %410 = sbr.rel (%p408) target = $region40
    $region39: #{forward.17} parent=5 // pred_region
      %s411 = ssub.s32 %s9, 2
      // Predicated region
      $region41: #{forward.17} parent=39 // pred_check
        %p412 = pneg %p106
      $region42: #{forward.17} parent=39 // pred_check_branch
        %414 = sbr.rel (%p412) target = $region44
      $region43: #{forward.17} parent=39 // pred_region
        %s415 = smul.u32 8, %s15
        %p416 = scmp.lt.s32.totalorder %s415, 15
        %s417 = scalar_select %p416, %s415, 15
        %s418 = smul.addr %s417, 8
        %s419 = scalar_lea.vmem %s3, %s418
      $region44: #{forward.17} parent=39 // pred_fallthru
        _
    $region40: #{forward.17} parent=5 // pred_fallthru
      _
  $region6: #{forward.17} parent=0 // loop_footer
    %s13 = sadd.s32 1, %s9
  $region7: #{forward.17} parent=0 // loop_footer_branch
    %8 = sbr.rel target = $region3
  $region8: #{forward.17} parent=0 // loop_exit
    _

// kernel: forward.16
$region0: #{forward.16}
  #allocation0 [shape = 'u32[]', space=smem, size = 0x4, offset = 0x4, fixed_abs, tag = 'smem constant byte address 0x4 - core index']
  #allocation1 [shape = 'u32[72,128]{1,0:T(1,128)}', space=vmem, size = 0x9000, scoped, tag = 'internal scratch']
  %s0 = inlined_call_operand.vmem [shape: f32[128,32], index: 0, kind: input, shape index: {}]
  %s1 = inlined_call_operand.vmem [shape: f32[128,32], index: 1, kind: input, shape index: {}]
  %s2 = inlined_call_operand.vmem [shape: f32[1,32], index: 2, kind: input, shape index: {}]
  %s3 = inlined_call_operand.vmem [shape: f32[1,32], index: 3, kind: input, shape index: {}]
  %s4 = inlined_call_operand.vmem [shape: f32[32,128], index: 4, kind: input, shape index: {}]
  %s5 = inlined_call_operand.vmem [shape: f32[1,128], index: 5, kind: input, shape index: {}]
  %s6 = inlined_call_operand.vmem [shape: f32[128,32], index: 6, kind: input, shape index: {}]
  %s7 = inlined_call_operand.vmem [shape: f32[1,32], index: 7, kind: input, shape index: {}]
  %s8 = inlined_call_operand.vmem [shape: f32[128,32], index: 8, kind: output, shape index: {}]
  %s9 = sld [smem:[#allocation0]]
  $region65: #{forward.16} parent=0
    _
  %s11 = ssub.s32 1, %s9
  %s12 = scalar_select 0, %s11, %s9
  loop: start=0, step=1, limit=4
  $region2: #{forward.16} parent=0 // loop_pre_header
    _
  $region3: #{forward.16} parent=0 // loop_header
    %s14 = sphi 0, %s18
    %p15 = scmp.ge.s32.totalorder %s14, 4
    %s24 = sphi 0, %s26
    %s27 = sphi 0, %s24
    %s28 = sphi 0, %s27
    %s44 = sphi 0, %s28
    %s50 = sphi 0, %s52
    %s53 = sphi 0, %s50
    %s54 = sphi 0, %s53
    %s70 = sphi 0, %s54
    %s74 = sphi 0, %s74
    %s76 = sphi 0, %s74
    %s77 = sphi 0, %s76
    %s91 = sphi 0, %s77
    %s95 = sphi 0, %s95
    %s97 = sphi 0, %s95
    %s98 = sphi 0, %s97
    %s112 = sphi 0, %s98
    %s116 = sphi 0, %s116
    %s118 = sphi 0, %s116
    %s119 = sphi 0, %s118
    %s133 = sphi 0, %s119
    %s137 = sphi 0, %s137
    %s139 = sphi 0, %s137
    %s140 = sphi 0, %s139
    %s154 = sphi 0, %s140
    %s158 = sphi 0, %s158
    %s160 = sphi 0, %s158
    %s161 = sphi 0, %s160
    %s175 = sphi 0, %s161
    %s179 = sphi 0, %s179
    %s181 = sphi 0, %s179
    %s182 = sphi 0, %s181
    %s196 = sphi 0, %s182
    %s202 = sphi 0, %s204
    %s205 = sphi 0, %s202
    %s206 = sphi 0, %s205
    %s222 = sphi 0, %s206
  $region4: #{forward.16} parent=0 // loop_header_branch
    %17 = sbr.rel (%p15) target = $region8
  $region5: #{forward.16} parent=0 // loop_body
    %s19 = ssub.s32 %s14, 1
    %s20 = ssub.s32 %s14, 2
    %s21 = sadd.s32 %s14, 1
    %s22 = ssub.s32 %s14, %s21
    %p23 = scmp.eq.s32.totalorder %s22, 0
    %s25 = sadd.s32 %s24, 1
    %s26 = scalar_select %p23, %s24, %s25
    %p29 = pneg %p23
    %p30 = scmp.eq.s32.totalorder %s14, 1
    %p31 = por %p29, %p30
    %p32 = scmp.ne.s32.totalorder %s24, %s27
    %p33 = scmp.eq.s32.totalorder %s14, 0
    %p34 = por %p32, %p33
    %p35 = scmp.ne.s32.totalorder %s24, %s27
    %p36 = scmp.eq.s32.totalorder %s19, 1
    %p37 = por %p35, %p36
    %p38 = scmp.ne.s32.totalorder %s27, %s28
    %p39 = scmp.eq.s32.totalorder %s19, 0
    %p40 = por %p38, %p39
    %p41 = scmp.ne.s32.totalorder %s27, %s28
    %p42 = scmp.eq.s32.totalorder %s20, 1
    %p43 = por %p41, %p42
    %p45 = scmp.ne.s32.totalorder %s28, %s44
    %p46 = scmp.eq.s32.totalorder %s20, 0
    %p47 = por %p45, %p46
    %s48 = ssub.s32 %s14, %s21
    %p49 = scmp.eq.s32.totalorder %s48, 0
    %s51 = sadd.s32 %s50, 1
    %s52 = scalar_select %p49, %s50, %s51
    %p55 = pneg %p49
    %p56 = scmp.eq.s32.totalorder %s14, 1
    %p57 = por %p55, %p56
    %p58 = scmp.ne.s32.totalorder %s50, %s53
    %p59 = scmp.eq.s32.totalorder %s14, 0
    %p60 = por %p58, %p59
    %p61 = scmp.ne.s32.totalorder %s50, %s53
    %p62 = scmp.eq.s32.totalorder %s19, 1
    %p63 = por %p61, %p62
    %p64 = scmp.ne.s32.totalorder %s53, %s54
    %p65 = scmp.eq.s32.totalorder %s19, 0
    %p66 = por %p64, %p65
    %p67 = scmp.ne.s32.totalorder %s53, %s54
    %p68 = scmp.eq.s32.totalorder %s20, 1
    %p69 = por %p67, %p68
    %p71 = scmp.ne.s32.totalorder %s54, %s70
    %p72 = scmp.eq.s32.totalorder %s20, 0
    %p73 = por %p71, %p72
    %s75 = sadd.s32 %s74, 1
    %p78 = scmp.eq.s32.totalorder %s14, 1
    %p79 = scmp.ne.s32.totalorder %s74, %s76
    %p80 = scmp.eq.s32.totalorder %s14, 0
    %p81 = por %p79, %p80
    %p82 = scmp.ne.s32.totalorder %s74, %s76
    %p83 = scmp.eq.s32.totalorder %s19, 1
    %p84 = por %p82, %p83
    %p85 = scmp.ne.s32.totalorder %s76, %s77
    %p86 = scmp.eq.s32.totalorder %s19, 0
    %p87 = por %p85, %p86
    %p88 = scmp.ne.s32.totalorder %s76, %s77
    %p89 = scmp.eq.s32.totalorder %s20, 1
    %p90 = por %p88, %p89
    %p92 = scmp.ne.s32.totalorder %s77, %s91
    %p93 = scmp.eq.s32.totalorder %s20, 0
    %p94 = por %p92, %p93
    %s96 = sadd.s32 %s95, 1
    %p99 = scmp.eq.s32.totalorder %s14, 1
    %p100 = scmp.ne.s32.totalorder %s95, %s97
    %p101 = scmp.eq.s32.totalorder %s14, 0
    %p102 = por %p100, %p101
    %p103 = scmp.ne.s32.totalorder %s95, %s97
    %p104 = scmp.eq.s32.totalorder %s19, 1
    %p105 = por %p103, %p104
    %p106 = scmp.ne.s32.totalorder %s97, %s98
    %p107 = scmp.eq.s32.totalorder %s19, 0
    %p108 = por %p106, %p107
    %p109 = scmp.ne.s32.totalorder %s97, %s98
    %p110 = scmp.eq.s32.totalorder %s20, 1
    %p111 = por %p109, %p110
    %p113 = scmp.ne.s32.totalorder %s98, %s112
    %p114 = scmp.eq.s32.totalorder %s20, 0
    %p115 = por %p113, %p114
    %s117 = sadd.s32 %s116, 1
    %p120 = scmp.eq.s32.totalorder %s14, 1
    %p121 = scmp.ne.s32.totalorder %s116, %s118
    %p122 = scmp.eq.s32.totalorder %s14, 0
    %p123 = por %p121, %p122
    %p124 = scmp.ne.s32.totalorder %s116, %s118
    %p125 = scmp.eq.s32.totalorder %s19, 1
    %p126 = por %p124, %p125
    %p127 = scmp.ne.s32.totalorder %s118, %s119
    %p128 = scmp.eq.s32.totalorder %s19, 0
    %p129 = por %p127, %p128
    %p130 = scmp.ne.s32.totalorder %s118, %s119
    %p131 = scmp.eq.s32.totalorder %s20, 1
    %p132 = por %p130, %p131
    %p134 = scmp.ne.s32.totalorder %s119, %s133
    %p135 = scmp.eq.s32.totalorder %s20, 0
    %p136 = por %p134, %p135
    %s138 = sadd.s32 %s137, 1
    %p141 = scmp.eq.s32.totalorder %s14, 1
    %p142 = scmp.ne.s32.totalorder %s137, %s139
    %p143 = scmp.eq.s32.totalorder %s14, 0
    %p144 = por %p142, %p143
    %p145 = scmp.ne.s32.totalorder %s137, %s139
    %p146 = scmp.eq.s32.totalorder %s19, 1
    %p147 = por %p145, %p146
    %p148 = scmp.ne.s32.totalorder %s139, %s140
    %p149 = scmp.eq.s32.totalorder %s19, 0
    %p150 = por %p148, %p149
    %p151 = scmp.ne.s32.totalorder %s139, %s140
    %p152 = scmp.eq.s32.totalorder %s20, 1
    %p153 = por %p151, %p152
    %p155 = scmp.ne.s32.totalorder %s140, %s154
    %p156 = scmp.eq.s32.totalorder %s20, 0
    %p157 = por %p155, %p156
    %s159 = sadd.s32 %s158, 1
    %p162 = scmp.eq.s32.totalorder %s14, 1
    %p163 = scmp.ne.s32.totalorder %s158, %s160
    %p164 = scmp.eq.s32.totalorder %s14, 0
    %p165 = por %p163, %p164
    %p166 = scmp.ne.s32.totalorder %s158, %s160
    %p167 = scmp.eq.s32.totalorder %s19, 1
    %p168 = por %p166, %p167
    %p169 = scmp.ne.s32.totalorder %s160, %s161
    %p170 = scmp.eq.s32.totalorder %s19, 0
    %p171 = por %p169, %p170
    %p172 = scmp.ne.s32.totalorder %s160, %s161
    %p173 = scmp.eq.s32.totalorder %s20, 1
    %p174 = por %p172, %p173
    %p176 = scmp.ne.s32.totalorder %s161, %s175
    %p177 = scmp.eq.s32.totalorder %s20, 0
    %p178 = por %p176, %p177
    %s180 = sadd.s32 %s179, 1
    %p183 = scmp.eq.s32.totalorder %s14, 1
    %p184 = scmp.ne.s32.totalorder %s179, %s181
    %p185 = scmp.eq.s32.totalorder %s14, 0
    %p186 = por %p184, %p185
    %p187 = scmp.ne.s32.totalorder %s179, %s181
    %p188 = scmp.eq.s32.totalorder %s19, 1
    %p189 = por %p187, %p188
    %p190 = scmp.ne.s32.totalorder %s181, %s182
    %p191 = scmp.eq.s32.totalorder %s19, 0
    %p192 = por %p190, %p191
    %p193 = scmp.ne.s32.totalorder %s181, %s182
    %p194 = scmp.eq.s32.totalorder %s20, 1
    %p195 = por %p193, %p194
    %p197 = scmp.ne.s32.totalorder %s182, %s196
    %p198 = scmp.eq.s32.totalorder %s20, 0
    %p199 = por %p197, %p198
    %s200 = ssub.s32 %s14, %s21
    %p201 = scmp.eq.s32.totalorder %s200, 0
    %s203 = sadd.s32 %s202, 1
    %s204 = scalar_select %p201, %s202, %s203
    %p207 = pneg %p201
    %p208 = scmp.eq.s32.totalorder %s14, 1
    %p209 = por %p207, %p208
    %p210 = scmp.ne.s32.totalorder %s202, %s205
    %p211 = scmp.eq.s32.totalorder %s14, 0
    %p212 = por %p210, %p211
    %p213 = scmp.ne.s32.totalorder %s202, %s205
    %p214 = scmp.eq.s32.totalorder %s19, 1
    %p215 = por %p213, %p214
    %p216 = scmp.ne.s32.totalorder %s205, %s206
    %p217 = scmp.eq.s32.totalorder %s19, 0
    %p218 = por %p216, %p217
    %p219 = scmp.ne.s32.totalorder %s205, %s206
    %p220 = scmp.eq.s32.totalorder %s20, 1
    %p221 = por %p219, %p220
    %p223 = scmp.ne.s32.totalorder %s206, %s222
    %p224 = scmp.eq.s32.totalorder %s20, 0
    %p225 = por %p223, %p224
    %p226 = scmp.le.s32.totalorder 1, %s14
    %p227 = scmp.lt.s32.totalorder %s14, 3
    %p228 = pnand %p226, %p227
    %p229 = pneg %p228
    // Predicated region
    $region9: #{forward.16} parent=5 // pred_check
      _
    $region10: #{forward.16} parent=5 // pred_check_branch
      %231 = sbr.rel (%p228) target = $region12
    $region11: #{forward.16} parent=5 // pred_region
      %s232 = ssub.s32 %s14, 1
      // Predicated region
      $region13: #{forward.16} parent=11 // pred_check
        %p233 = pneg %p87
      $region14: #{forward.16} parent=11 // pred_check_branch
        %235 = sbr.rel (%p233) target = $region16
      $region15: #{forward.16} parent=11 // pred_region
        _
      $region16: #{forward.16} parent=11 // pred_fallthru
        _
      // Predicated region
      $region17: #{forward.16} parent=11 // pred_check
        %p236 = pneg %p108
      $region18: #{forward.16} parent=11 // pred_check_branch
        %238 = sbr.rel (%p236) target = $region20
      $region19: #{forward.16} parent=11 // pred_region
        _
      $region20: #{forward.16} parent=11 // pred_fallthru
        _
      // Predicated region
      $region21: #{forward.16} parent=11 // pred_check
        %p239 = pneg %p129
      $region22: #{forward.16} parent=11 // pred_check_branch
        %241 = sbr.rel (%p239) target = $region24
      $region23: #{forward.16} parent=11 // pred_region
        _
      $region24: #{forward.16} parent=11 // pred_fallthru
        _
      // Predicated region
      $region25: #{forward.16} parent=11 // pred_check
        %p242 = pneg %p150
      $region26: #{forward.16} parent=11 // pred_check_branch
        %244 = sbr.rel (%p242) target = $region28
      $region27: #{forward.16} parent=11 // pred_region
        _
      $region28: #{forward.16} parent=11 // pred_fallthru
        _
      // Predicated region
      $region29: #{forward.16} parent=11 // pred_check
        %p245 = pneg %p171
      $region30: #{forward.16} parent=11 // pred_check_branch
        %247 = sbr.rel (%p245) target = $region32
      $region31: #{forward.16} parent=11 // pred_region
        _
      $region32: #{forward.16} parent=11 // pred_fallthru
        _
      // Predicated region
      $region33: #{forward.16} parent=11 // pred_check
        %p248 = pneg %p192
      $region34: #{forward.16} parent=11 // pred_check_branch
        %250 = sbr.rel (%p248) target = $region36
      $region35: #{forward.16} parent=11 // pred_region
        _
      $region36: #{forward.16} parent=11 // pred_fallthru
        _
    $region12: #{forward.16} parent=5 // pred_fallthru
      _
    %p251 = scmp.lt.s32.totalorder %s14, 2
    // Predicated region
    $region37: #{forward.16} parent=5 // pred_check
      %p252 = pneg %p251
    $region38: #{forward.16} parent=5 // pred_check_branch
      %254 = sbr.rel (%p252) target = $region40
    $region39: #{forward.16} parent=5 // pred_region
      // Predicated region
      $region41: #{forward.16} parent=39 // pred_check
        %p255 = pneg %p34
      $region42: #{forward.16} parent=39 // pred_check_branch
        %257 = sbr.rel (%p255) target = $region44
      $region43: #{forward.16} parent=39 // pred_region
        %s258 = smul.u32 8, %s14
        %p259 = scmp.lt.s32.totalorder %s258, 15
        %s260 = scalar_select %p259, %s258, 15
        %s261 = smul.addr %s260, 8
        %s262 = scalar_lea.vmem %s0, %s261
        %s263 = smul.u32 8, %s14
      $region44: #{forward.16} parent=39 // pred_fallthru
        _
      // Predicated region
      $region45: #{forward.16} parent=39 // pred_check
        %p264 = pneg %p60
      $region46: #{forward.16} parent=39 // pred_check_branch
        %266 = sbr.rel (%p264) target = $region48
      $region47: #{forward.16} parent=39 // pred_region
        %s267 = smul.u32 8, %s14
        %p268 = scmp.lt.s32.totalorder %s267, 15
        %s269 = scalar_select %p268, %s267, 15
        %s270 = smul.addr %s269, 8
        %s271 = scalar_lea.vmem %s1, %s270
        %s272 = smul.u32 8, %s14
      $region48: #{forward.16} parent=39 // pred_fallthru
        _
    $region40: #{forward.16} parent=5 // pred_fallthru
      _
    %p273 = scmp.le.s32.totalorder 1, %s14
    %p274 = scmp.lt.s32.totalorder %s14, 3
    %p275 = pnand %p273, %p274
    %p276 = pneg %p275
    // Predicated region
    $region49: #{forward.16} parent=5 // pred_check
      _
    $region50: #{forward.16} parent=5 // pred_check_branch
      %278 = sbr.rel (%p275) target = $region52
    $region51: #{forward.16} parent=5 // pred_region
      %s279 = ssub.s32 %s14, 1
      %s280 = smul.u32 8, %s19
      %p281 = scmp.lt.s32.totalorder %s280, 15
      %s282 = scalar_select %p281, %s280, 15
      %s283 = smul.addr %s282, 8
      %s284 = scalar_lea.vmem %s0, %s283
      %p285 = pneg %p40
      %p286 = pneg %p37
      %s287 = smul.u32 8, %s19
      %p288 = scmp.lt.s32.totalorder %s287, 15
      %s289 = scalar_select %p288, %s287, 15
      %s290 = smul.addr %s289, 8
      %s291 = scalar_lea.vmem %s1, %s290
      %p292 = pneg %p66
      %p293 = pneg %p63
      %p294 = pneg %p87
      %p295 = pneg %p84
      %p296 = pneg %p108
      %p297 = pneg %p105
      %p298 = pneg %p129
      %p299 = pneg %p126
      %p300 = pneg %p150
      %p301 = pneg %p147
      %p302 = pneg %p171
      %p303 = pneg %p168
      %p304 = pneg %p192
      %p305 = pneg %p189
      %p306 = pneg %p218
      %p307 = pneg %p215
      %s308 = smul.u32 8, %s19
      %p309 = scmp.lt.s32.totalorder %s308, 15
      %s310 = scalar_select %p309, %s308, 15
      %s311 = smul.addr %s310, 8
      %s312 = scalar_lea.vmem %s8, %s311
      %s313 = smul.u32 8, %s19
      %p314 = scmp.lt.s32.totalorder %s313, 15
      %s315 = scalar_select %p314, %s313, 15
      %s316 = smul.addr %s315, 8
      %s317 = scalar_lea.vmem %s0, %s316
      %s318 = smul.u32 8, %s19
      %s319 = smul.u32 8, %s19
      %p320 = scmp.lt.s32.totalorder %s319, 15
      %s321 = scalar_select %p320, %s319, 15
      %s322 = smul.addr %s321, 8
      %s323 = scalar_lea.vmem %s1, %s322
      %s324 = smul.u32 8, %s19
      %s325 = smul.u32 8, %s19
      %p326 = scmp.lt.s32.totalorder %s325, 15
      %s327 = scalar_select %p326, %s325, 15
      %s328 = smul.addr %s327, 8
      %s329 = scalar_lea.vmem %s8, %s328
      %s330 = smul.u32 8, %s19
      %v332 = vld [vmem:[%s317] sm:$0xff]
      %v333 = vld [vmem:[%s317 + $0x8] sm:$0xff]
      %v334 = vld [vmem:[%s317 + $0x10] sm:$0xff]
      %v335 = vld [vmem:[%s317 + $0x18] sm:$0xff]
      %v336 = vld [vmem:[%s317 + $0x20] sm:$0xff]
      %v337 = vld [vmem:[%s317 + $0x28] sm:$0xff]
      %v338 = vld [vmem:[%s317 + $0x30] sm:$0xff]
      %v339 = vld [vmem:[%s317 + $0x38] sm:$0xff]
      %v340 = vld [vmem:[%s2] sm:$0x1]
      %v341 = vld [vmem:[%s3] sm:$0x1]
      %vm342 = vcmask 261120
      %v343 = vsel %vm342, %v332, 0.0
      %344 = vadd.xlane.f32.xlu0 %v343
      %v345 = vpop.xlane.xlu0 %344
      %v346 = vsel %vm342, %v333, 0.0
      %347 = vadd.xlane.f32.xlu0 %v346
      %v348 = vpop.xlane.xlu0 %347
      %v349 = vsel %vm342, %v334, 0.0
      %350 = vadd.xlane.f32.xlu0 %v349
      %v351 = vpop.xlane.xlu0 %350
      %v352 = vsel %vm342, %v335, 0.0
      %353 = vadd.xlane.f32.xlu0 %v352
      %v354 = vpop.xlane.xlu0 %353
      %v355 = vsel %vm342, %v336, 0.0
      %356 = vadd.xlane.f32.xlu0 %v355
      %v357 = vpop.xlane.xlu0 %356
      %v358 = vsel %vm342, %v337, 0.0
      %359 = vadd.xlane.f32.xlu0 %v358
      %v360 = vpop.xlane.xlu0 %359
      %v361 = vsel %vm342, %v338, 0.0
      %362 = vadd.xlane.f32.xlu0 %v361
      %v363 = vpop.xlane.xlu0 %362
      %v364 = vsel %vm342, %v339, 0.0
      %365 = vadd.xlane.f32.xlu0 %v364
      %v366 = vpop.xlane.xlu0 %365
      %v367 = vrcp.pop 32.0
      %v368 = vmul.f32 32.0, %v367
      %v369 = vsub.f32 1.0, %v368
      %v370 = vmul.f32 %v367, %v369
      %v371 = vadd.f32 %v367, %v370
      %vm372 = vweird.f32 %v367
      %v373 = vsel %vm372, %v367, %v371
      %v374 = vmul.f32 %v345, %v373
      %v375 = vmul.f32 %v348, %v373
      %v376 = vmul.f32 %v351, %v373
      %v377 = vmul.f32 %v354, %v373
      %v378 = vmul.f32 %v357, %v373
      %v379 = vmul.f32 %v360, %v373
      %v380 = vmul.f32 %v363, %v373
      %v381 = vmul.f32 %v366, %v373
      %v382 = vsub.f32 %v332, %v374
      %v383 = vsub.f32 %v333, %v375
      %v384 = vsub.f32 %v334, %v376
      %v385 = vsub.f32 %v335, %v377
      %v386 = vsub.f32 %v336, %v378
      %v387 = vsub.f32 %v337, %v379
      %v388 = vsub.f32 %v338, %v380
      %v389 = vsub.f32 %v339, %v381
      %v390 = vmul.f32 %v382, %v382
      %v391 = vmul.f32 %v383, %v383
      %v392 = vmul.f32 %v384, %v384
      %v393 = vmul.f32 %v385, %v385
      %v394 = vmul.f32 %v386, %v386
      %v395 = vmul.f32 %v387, %v387
      %v396 = vmul.f32 %v388, %v388
      %v397 = vmul.f32 %v389, %v389
      %v398 = vsel %vm342, %v390, 0.0
      %399 = vadd.xlane.f32.xlu0 %v398
      %v400 = vpop.xlane.xlu0 %399
      %v401 = vsel %vm342, %v391, 0.0
      %402 = vadd.xlane.f32.xlu0 %v401
      %v403 = vpop.xlane.xlu0 %402
      %v404 = vsel %vm342, %v392, 0.0
      %405 = vadd.xlane.f32.xlu0 %v404
      %v406 = vpop.xlane.xlu0 %405
      %v407 = vsel %vm342, %v393, 0.0
      %408 = vadd.xlane.f32.xlu0 %v407
      %v409 = vpop.xlane.xlu0 %408
      %v410 = vsel %vm342, %v394, 0.0
      %411 = vadd.xlane.f32.xlu0 %v410
      %v412 = vpop.xlane.xlu0 %411
      %v413 = vsel %vm342, %v395, 0.0
      %414 = vadd.xlane.f32.xlu0 %v413
      %v415 = vpop.xlane.xlu0 %414
      %v416 = vsel %vm342, %v396, 0.0
      %417 = vadd.xlane.f32.xlu0 %v416
      %v418 = vpop.xlane.xlu0 %417
      %v419 = vsel %vm342, %v397, 0.0
      %420 = vadd.xlane.f32.xlu0 %v419
      %v421 = vpop.xlane.xlu0 %420
      %v422 = vmul.f32 %v400, %v373
      %v423 = vmul.f32 %v403, %v373
      %v424 = vmul.f32 %v406, %v373
      %v425 = vmul.f32 %v409, %v373
      %v426 = vmul.f32 %v412, %v373
      %v427 = vmul.f32 %v415, %v373
      %v428 = vmul.f32 %v418, %v373
      %v429 = vmul.f32 %v421, %v373
      %v430 = vadd.f32 %v422, 1e-06
      %v431 = vadd.f32 %v423, 1e-06
      %v432 = vadd.f32 %v424, 1e-06
      %v433 = vadd.f32 %v425, 1e-06
      %v434 = vadd.f32 %v426, 1e-06
      %v435 = vadd.f32 %v427, 1e-06
      %v436 = vadd.f32 %v428, 1e-06
      %v437 = vadd.f32 %v429, 1e-06
      %v438 = vrsqrt.pop %v430
      %v439 = vmul.f32 %v438, %v430
      %v440 = vmul.f32 %v439, %v438
      %v441 = vmul.f32 0.5, %v440
      %v442 = vsub.f32 1.5, %v441
      %v443 = vmul.f32 %v438, %v442
      %vm444 = vweird.f32 %v430
      %vm445 = vweird.f32 %v438
      %vm446 = vmor %vm444, %vm445
      %v447 = vsel %vm446, %v438, %v443
      %v448 = vrsqrt.pop %v431
      %v449 = vmul.f32 %v448, %v431
      %v450 = vmul.f32 %v449, %v448
      %v451 = vmul.f32 0.5, %v450
      %v452 = vsub.f32 1.5, %v451
      %v453 = vmul.f32 %v448, %v452
      %vm454 = vweird.f32 %v431
      %vm455 = vweird.f32 %v448
      %vm456 = vmor %vm454, %vm455
      %v457 = vsel %vm456, %v448, %v453
      %v458 = vrsqrt.pop %v432
      %v459 = vmul.f32 %v458, %v432
      %v460 = vmul.f32 %v459, %v458
      %v461 = vmul.f32 0.5, %v460
      %v462 = vsub.f32 1.5, %v461
      %v463 = vmul.f32 %v458, %v462
      %vm464 = vweird.f32 %v432
      %vm465 = vweird.f32 %v458
      %vm466 = vmor %vm464, %vm465
      %v467 = vsel %vm466, %v458, %v463
      %v468 = vrsqrt.pop %v433
      %v469 = vmul.f32 %v468, %v433
      %v470 = vmul.f32 %v469, %v468
      %v471 = vmul.f32 0.5, %v470
      %v472 = vsub.f32 1.5, %v471
      %v473 = vmul.f32 %v468, %v472
      %vm474 = vweird.f32 %v433
      %vm475 = vweird.f32 %v468
      %vm476 = vmor %vm474, %vm475
      %v477 = vsel %vm476, %v468, %v473
      %v478 = vrsqrt.pop %v434
      %v479 = vmul.f32 %v478, %v434
      %v480 = vmul.f32 %v479, %v478
      %v481 = vmul.f32 0.5, %v480
      %v482 = vsub.f32 1.5, %v481
      %v483 = vmul.f32 %v478, %v482
      %vm484 = vweird.f32 %v434
      %vm485 = vweird.f32 %v478
      %vm486 = vmor %vm484, %vm485
      %v487 = vsel %vm486, %v478, %v483
      %v488 = vrsqrt.pop %v435
      %v489 = vmul.f32 %v488, %v435
      %v490 = vmul.f32 %v489, %v488
      %v491 = vmul.f32 0.5, %v490
      %v492 = vsub.f32 1.5, %v491
      %v493 = vmul.f32 %v488, %v492
      %vm494 = vweird.f32 %v435
      %vm495 = vweird.f32 %v488
      %vm496 = vmor %vm494, %vm495
      %v497 = vsel %vm496, %v488, %v493
      %v498 = vrsqrt.pop %v436
      %v499 = vmul.f32 %v498, %v436
      %v500 = vmul.f32 %v499, %v498
      %v501 = vmul.f32 0.5, %v500
      %v502 = vsub.f32 1.5, %v501
      %v503 = vmul.f32 %v498, %v502
      %vm504 = vweird.f32 %v436
      %vm505 = vweird.f32 %v498
      %vm506 = vmor %vm504, %vm505
      %v507 = vsel %vm506, %v498, %v503
      %v508 = vrsqrt.pop %v437
      %v509 = vmul.f32 %v508, %v437
      %v510 = vmul.f32 %v509, %v508
      %v511 = vmul.f32 0.5, %v510
      %v512 = vsub.f32 1.5, %v511
      %v513 = vmul.f32 %v508, %v512
      %vm514 = vweird.f32 %v437
      %vm515 = vweird.f32 %v508
      %vm516 = vmor %vm514, %vm515
      %v517 = vsel %vm516, %v508, %v513
      %v518 = vmul.f32 %v382, %v447
      %v519 = vmul.f32 %v383, %v457
      %v520 = vmul.f32 %v384, %v467
      %v521 = vmul.f32 %v385, %v477
      %v522 = vmul.f32 %v386, %v487
      %v523 = vmul.f32 %v387, %v497
      %v524 = vmul.f32 %v388, %v507
      %v525 = vmul.f32 %v389, %v517
      %v527 = vperm.slane %v340, 0
      %v529 = vmul.f32 %v518, %v527
      %v530 = vmul.f32 %v519, %v527
      %v531 = vmul.f32 %v520, %v527
      %v532 = vmul.f32 %v521, %v527
      %v533 = vmul.f32 %v522, %v527
      %v534 = vmul.f32 %v523, %v527
      %v535 = vmul.f32 %v524, %v527
      %v536 = vmul.f32 %v525, %v527
      %v538 = vperm.slane %v341, 0
      %v540 = vadd.f32 %v529, %v538
      %v541 = vadd.f32 %v530, %v538
      %v542 = vadd.f32 %v531, %v538
      %v543 = vadd.f32 %v532, %v538
      %v544 = vadd.f32 %v533, %v538
      %v545 = vadd.f32 %v534, %v538
      %v546 = vadd.f32 %v535, %v538
      %v547 = vadd.f32 %v536, %v538
      %v548 = vld [vmem:[%s4] sm:$0xff]
      %v549 = vld [vmem:[%s4 + $0x8] sm:$0xff]
      %v550 = vld [vmem:[%s4 + $0x10] sm:$0xff]
      %v551 = vld [vmem:[%s4 + $0x18] sm:$0xff]
      %v552 = vpack.c.bf16 %v541, %v540
      %v553 = vpack.c.bf16 %v543, %v542
      %v554 = vpack.c.bf16 %v545, %v544
      %v555 = vpack.c.bf16 %v547, %v546
      %v556 = vpack.c.bf16 %v549, %v548
      %v557 = vpack.c.bf16 %v551, %v550
      %v558 = vld [vmem:[%s5] sm:$0x1]
      %v560 = vperm.slane %v558, 0
      %v563 = vsel %vm342, %v552, 0
      %v566 = vsel %vm342, %v553, 0
      %v569 = vsel %vm342, %v554, 0
      %v572 = vsel %vm342, %v555, 0
      %574 = vmatpush.bf16.msra.mxu0 0
      %575 = vmatpush.bf16.msra.mxu0 0
      %576 = vmatpush.bf16.msra.mxu0 0
      %577 = vmatpush.bf16.msra.mxu0 0
      %578 = vmatpush.bf16.msra.mxu0 0
      %579 = vmatpush.bf16.msra.mxu0 0
      %580 = vmatpush.bf16.msra.mxu0 %v557
      %581 = vmatpush.bf16.msra.mxu0 %v556
      %582 = vmatmul.bf16.gmra.mxu0 %v563
      %v583 = vpop.f32.mrf.mxu0
      %v584 = vadd.f32 %v560, %v583
      %v585 = vpop.f32.mrf.mxu0
      %v586 = vadd.f32 %v560, %v585
      %587 = vmatmul.bf16.gmra.mxu0 %v566
      %v588 = vpop.f32.mrf.mxu0
      %v589 = vadd.f32 %v560, %v588
      %v590 = vpop.f32.mrf.mxu0
      %v591 = vadd.f32 %v560, %v590
      %592 = vmatmul.bf16.gmra.mxu0 %v569
      %v593 = vpop.f32.mrf.mxu0
      %v594 = vadd.f32 %v560, %v593
      %v595 = vpop.f32.mrf.mxu0
      %v596 = vadd.f32 %v560, %v595
      %597 = vmatmul.bf16.gmra.mxu0 %v572
      %v598 = vpop.f32.mrf.mxu0
      %v599 = vadd.f32 %v560, %v598
      %v600 = vpop.f32.mrf.mxu0
      %v601 = vadd.f32 %v560, %v600
      %602 = vdwg.mxu0
      %v603 = vmul.f32 %v584, 0.5
      %v604 = vmul.f32 %v586, 0.5
      %v605 = vmul.f32 %v589, 0.5
      %v606 = vmul.f32 %v591, 0.5
      %v607 = vmul.f32 %v594, 0.5
      %v608 = vmul.f32 %v596, 0.5
      %v609 = vmul.f32 %v599, 0.5
      %v610 = vmul.f32 %v601, 0.5
      %v611 = vmul.f32 %v584, 0.044715
      %v612 = vmul.f32 %v586, 0.044715
      %v613 = vmul.f32 %v589, 0.044715
      %v614 = vmul.f32 %v591, 0.044715
      %v615 = vmul.f32 %v594, 0.044715
      %v616 = vmul.f32 %v596, 0.044715
      %v617 = vmul.f32 %v599, 0.044715
      %v618 = vmul.f32 %v601, 0.044715
      %v619 = vmul.f32 %v611, %v584
      %v620 = vmul.f32 %v612, %v586
      %v621 = vmul.f32 %v613, %v589
      %v622 = vmul.f32 %v614, %v591
      %v623 = vmul.f32 %v615, %v594
      %v624 = vmul.f32 %v616, %v596
      %v625 = vmul.f32 %v617, %v599
      %v626 = vmul.f32 %v618, %v601
      %v627 = vmul.f32 %v619, %v584
      %v628 = vmul.f32 %v620, %v586
      %v629 = vmul.f32 %v621, %v589
      %v630 = vmul.f32 %v622, %v591
      %v631 = vmul.f32 %v623, %v594
      %v632 = vmul.f32 %v624, %v596
      %v633 = vmul.f32 %v625, %v599
      %v634 = vmul.f32 %v626, %v601
      %v635 = vadd.f32 %v584, %v627
      %v636 = vadd.f32 %v586, %v628
      %v637 = vadd.f32 %v589, %v629
      %v638 = vadd.f32 %v591, %v630
      %v639 = vadd.f32 %v594, %v631
      %v640 = vadd.f32 %v596, %v632
      %v641 = vadd.f32 %v599, %v633
      %v642 = vadd.f32 %v601, %v634
      %v643 = vmul.f32 %v635, 0.7978846
      %v644 = vmul.f32 %v636, 0.7978846
      %v645 = vmul.f32 %v637, 0.7978846
      %v646 = vmul.f32 %v638, 0.7978846
      %v647 = vmul.f32 %v639, 0.7978846
      %v648 = vmul.f32 %v640, 0.7978846
      %v649 = vmul.f32 %v641, 0.7978846
      %v650 = vmul.f32 %v642, 0.7978846
      %v651 = vtanh.pop %v643
      %v652 = vtanh.pop %v644
      %v653 = vtanh.pop %v645
      %v654 = vtanh.pop %v646
      %v655 = vtanh.pop %v647
      %v656 = vtanh.pop %v648
      %v657 = vtanh.pop %v649
      %v658 = vtanh.pop %v650
      %v659 = vadd.f32 %v651, 1.0
      %v660 = vadd.f32 %v652, 1.0
      %v661 = vadd.f32 %v653, 1.0
      %v662 = vadd.f32 %v654, 1.0
      %v663 = vadd.f32 %v655, 1.0
      %v664 = vadd.f32 %v656, 1.0
      %v665 = vadd.f32 %v657, 1.0
      %v666 = vadd.f32 %v658, 1.0
      %v667 = vmul.f32 %v603, %v659
      %v668 = vmul.f32 %v604, %v660
      %v669 = vmul.f32 %v605, %v661
      %v670 = vmul.f32 %v606, %v662
      %v671 = vmul.f32 %v607, %v663
      %v672 = vmul.f32 %v608, %v664
      %v673 = vmul.f32 %v609, %v665
      %v674 = vmul.f32 %v610, %v666
      %v675 = vld [vmem:[%s6] sm:$0xff]
      %v676 = vld [vmem:[%s6 + $0x8] sm:$0xff]
      %v677 = vld [vmem:[%s6 + $0x10] sm:$0xff]
      %v678 = vld [vmem:[%s6 + $0x18] sm:$0xff]
      %v679 = vld [vmem:[%s6 + $0x20] sm:$0xff]
      %v680 = vld [vmem:[%s6 + $0x28] sm:$0xff]
      %v681 = vld [vmem:[%s6 + $0x30] sm:$0xff]
      %v682 = vld [vmem:[%s6 + $0x38] sm:$0xff]
      %v683 = vld [vmem:[%s6 + $0x40] sm:$0xff]
      %v684 = vld [vmem:[%s6 + $0x48] sm:$0xff]
      %v685 = vld [vmem:[%s6 + $0x50] sm:$0xff]
      %v686 = vld [vmem:[%s6 + $0x58] sm:$0xff]
      %v687 = vld [vmem:[%s6 + $0x60] sm:$0xff]
      %v688 = vld [vmem:[%s6 + $0x68] sm:$0xff]
      %v689 = vld [vmem:[%s6 + $0x70] sm:$0xff]
      %v690 = vld [vmem:[%s6 + $0x78] sm:$0xff]
      %v691 = vpack.c.bf16 %v668, %v667
      %v692 = vpack.c.bf16 %v670, %v669
      %v693 = vpack.c.bf16 %v672, %v671
      %v694 = vpack.c.bf16 %v674, %v673
      %v695 = vpack.c.bf16 %v676, %v675
      %v696 = vpack.c.bf16 %v678, %v677
      %v697 = vpack.c.bf16 %v680, %v679
      %v698 = vpack.c.bf16 %v682, %v681
      %v699 = vpack.c.bf16 %v684, %v683
      %v700 = vpack.c.bf16 %v686, %v685
      %v701 = vpack.c.bf16 %v688, %v687
      %v702 = vpack.c.bf16 %v690, %v689
      %v703 = vld [vmem:[%s7] sm:$0x1]
      %v705 = vperm.slane %v703, 0
      %707 = vmatpush.bf16.msra.mxu0 %v702
      %708 = vmatpush.bf16.msra.mxu0 %v701
      %709 = vmatpush.bf16.msra.mxu0 %v700
      %710 = vmatpush.bf16.msra.mxu0 %v699
      %711 = vmatpush.bf16.msra.mxu0 %v698
      %712 = vmatpush.bf16.msra.mxu0 %v697
      %713 = vmatpush.bf16.msra.mxu0 %v696
      %714 = vmatpush.bf16.msra.mxu0 %v695
      %715 = vmatmul.bf16.gmra.mxu0 %v691
      %v716 = vpop.f32.mrf.mxu0
      %v717 = vadd.f32 %v705, %v716
      %v718 = vpop.f32.mrf.mxu0
      %v719 = vadd.f32 %v705, %v718
      %720 = vmatmul.bf16.gmra.mxu0 %v692
      %v721 = vpop.f32.mrf.mxu0
      %v722 = vadd.f32 %v705, %v721
      %v723 = vpop.f32.mrf.mxu0
      %v724 = vadd.f32 %v705, %v723
      %725 = vmatmul.bf16.gmra.mxu0 %v693
      %v726 = vpop.f32.mrf.mxu0
      %v727 = vadd.f32 %v705, %v726
      %v728 = vpop.f32.mrf.mxu0
      %v729 = vadd.f32 %v705, %v728
      %730 = vmatmul.bf16.gmra.mxu0 %v694
      %v731 = vpop.f32.mrf.mxu0
      %v732 = vadd.f32 %v705, %v731
      %v733 = vpop.f32.mrf.mxu0
      %v734 = vadd.f32 %v705, %v733
      %735 = vdwg.mxu0
      %v736 = vld [vmem:[%s323] sm:$0xff]
      %v737 = vld [vmem:[%s323 + $0x8] sm:$0xff]
      %v738 = vld [vmem:[%s323 + $0x10] sm:$0xff]
      %v739 = vld [vmem:[%s323 + $0x18] sm:$0xff]
      %v740 = vld [vmem:[%s323 + $0x20] sm:$0xff]
      %v741 = vld [vmem:[%s323 + $0x28] sm:$0xff]
      %v742 = vld [vmem:[%s323 + $0x30] sm:$0xff]
      %v743 = vld [vmem:[%s323 + $0x38] sm:$0xff]
      %v744 = vadd.f32 %v736, %v717
      %v745 = vadd.f32 %v737, %v719
      %v746 = vadd.f32 %v738, %v722
      %v747 = vadd.f32 %v739, %v724
      %v748 = vadd.f32 %v740, %v727
      %v749 = vadd.f32 %v741, %v729
      %v750 = vadd.f32 %v742, %v732
      %v751 = vadd.f32 %v743, %v734
      %752 = vst.msk [vmem:[%s329] sm:$0xff] %vm342, %v744
      %753 = vst.msk [vmem:[%s329 + $0x8] sm:$0xff] %vm342, %v745
      %754 = vst.msk [vmem:[%s329 + $0x10] sm:$0xff] %vm342, %v746
      %755 = vst.msk [vmem:[%s329 + $0x18] sm:$0xff] %vm342, %v747
      %756 = vst.msk [vmem:[%s329 + $0x20] sm:$0xff] %vm342, %v748
      %757 = vst.msk [vmem:[%s329 + $0x28] sm:$0xff] %vm342, %v749
      %758 = vst.msk [vmem:[%s329 + $0x30] sm:$0xff] %vm342, %v750
      %759 = vst.msk [vmem:[%s329 + $0x38] sm:$0xff] %vm342, %v751
      %s760 = smul.u32 8, %s19
      %p761 = scmp.lt.s32.totalorder %s760, 15
      %s762 = scalar_select %p761, %s760, 15
      %s763 = smul.addr %s762, 8
      %s764 = scalar_lea.vmem %s8, %s763
      // Predicated region
      $region53: #{forward.16} parent=51 // pred_check
        %p765 = pneg %p215
      $region54: #{forward.16} parent=51 // pred_check_branch
        %767 = sbr.rel (%p765) target = $region56
      $region55: #{forward.16} parent=51 // pred_region
        %s768 = smul.u32 8, %s19
      $region56: #{forward.16} parent=51 // pred_fallthru
        _
    $region52: #{forward.16} parent=5 // pred_fallthru
      _
    %p769 = scmp.le.s32.totalorder 2, %s14
    // Predicated region
    $region57: #{forward.16} parent=5 // pred_check
      %p770 = pneg %p769
    $region58: #{forward.16} parent=5 // pred_check_branch
      %772 = sbr.rel (%p770) target = $region60
    $region59: #{forward.16} parent=5 // pred_region
      %s773 = ssub.s32 %s14, 2
      // Predicated region
      $region61: #{forward.16} parent=59 // pred_check
        %p774 = pneg %p221
      $region62: #{forward.16} parent=59 // pred_check_branch
        %776 = sbr.rel (%p774) target = $region64
      $region63: #{forward.16} parent=59 // pred_region
        %s777 = smul.u32 8, %s20
        %p778 = scmp.lt.s32.totalorder %s777, 15
        %s779 = scalar_select %p778, %s777, 15
        %s780 = smul.addr %s779, 8
        %s781 = scalar_lea.vmem %s8, %s780
      $region64: #{forward.16} parent=59 // pred_fallthru
        _
    $region60: #{forward.16} parent=5 // pred_fallthru
      _
  $region6: #{forward.16} parent=0 // loop_footer
    %s18 = sadd.s32 1, %s14
  $region7: #{forward.16} parent=0 // loop_footer_branch
    %13 = sbr.rel target = $region3
  $region8: #{forward.16} parent=0 // loop_exit
    _

// kernel: forward.15
$region0: #{forward.15}
  #allocation0 [shape = 'u32[]', space=smem, size = 0x4, offset = 0x4, fixed_abs, tag = 'smem constant byte address 0x4 - core index']
  #allocation1 [shape = 'u32[72,128]{1,0:T(1,128)}', space=vmem, size = 0x9000, scoped, tag = 'internal scratch']
  %s0 = inlined_call_operand.vmem [shape: f32[2,14,14,32], index: 0, kind: input, shape index: {}]
  %s1 = inlined_call_operand.vmem [shape: f32[7,7,32], index: 1, kind: input, shape index: {}]
  %s2 = inlined_call_operand.vmem [shape: f32[1,32], index: 2, kind: input, shape index: {}]
  %s3 = inlined_call_operand.vmem [shape: f32[2,8,8,32], index: 3, kind: output, shape index: {}]
  %s4 = sld [smem:[#allocation0]]
  $region45: #{forward.15} parent=0
    _
  %s6 = ssub.s32 1, %s4
  %s7 = scalar_select 0, %s6, %s4
  loop: start=0, step=1, limit=4
  $region2: #{forward.15} parent=0 // loop_pre_header
    _
  $region3: #{forward.15} parent=0 // loop_header
    %s9 = sphi 0, %s13
    %p10 = scmp.ge.s32.totalorder %s9, 4
    %s19 = sphi 0, %s21
    %s22 = sphi 0, %s19
    %s23 = sphi 0, %s22
    %s39 = sphi 0, %s23
    %s43 = sphi 0, %s43
    %s45 = sphi 0, %s43
    %s46 = sphi 0, %s45
    %s60 = sphi 0, %s46
    %s64 = sphi 0, %s64
    %s66 = sphi 0, %s64
    %s67 = sphi 0, %s66
    %s81 = sphi 0, %s67
    %s87 = sphi 0, %s89
    %s90 = sphi 0, %s87
    %s91 = sphi 0, %s90
    %s107 = sphi 0, %s91
  $region4: #{forward.15} parent=0 // loop_header_branch
    %12 = sbr.rel (%p10) target = $region8
  $region5: #{forward.15} parent=0 // loop_body
    %s14 = ssub.s32 %s9, 1
    %s15 = ssub.s32 %s9, 2
    %s16 = sadd.s32 %s9, 1
    %s17 = ssub.s32 %s9, %s16
    %p18 = scmp.eq.s32.totalorder %s17, 0
    %s20 = sadd.s32 %s19, 1
    %s21 = scalar_select %p18, %s19, %s20
    %p24 = pneg %p18
    %p25 = scmp.eq.s32.totalorder %s9, 1
    %p26 = por %p24, %p25
    %p27 = scmp.ne.s32.totalorder %s19, %s22
    %p28 = scmp.eq.s32.totalorder %s9, 0
    %p29 = por %p27, %p28
    %p30 = scmp.ne.s32.totalorder %s19, %s22
    %p31 = scmp.eq.s32.totalorder %s14, 1
    %p32 = por %p30, %p31
    %p33 = scmp.ne.s32.totalorder %s22, %s23
    %p34 = scmp.eq.s32.totalorder %s14, 0
    %p35 = por %p33, %p34
    %p36 = scmp.ne.s32.totalorder %s22, %s23
    %p37 = scmp.eq.s32.totalorder %s15, 1
    %p38 = por %p36, %p37
    %p40 = scmp.ne.s32.totalorder %s23, %s39
    %p41 = scmp.eq.s32.totalorder %s15, 0
    %p42 = por %p40, %p41
    %s44 = sadd.s32 %s43, 1
    %p47 = scmp.eq.s32.totalorder %s9, 1
    %p48 = scmp.ne.s32.totalorder %s43, %s45
    %p49 = scmp.eq.s32.totalorder %s9, 0
    %p50 = por %p48, %p49
    %p51 = scmp.ne.s32.totalorder %s43, %s45
    %p52 = scmp.eq.s32.totalorder %s14, 1
    %p53 = por %p51, %p52
    %p54 = scmp.ne.s32.totalorder %s45, %s46
    %p55 = scmp.eq.s32.totalorder %s14, 0
    %p56 = por %p54, %p55
    %p57 = scmp.ne.s32.totalorder %s45, %s46
    %p58 = scmp.eq.s32.totalorder %s15, 1
    %p59 = por %p57, %p58
    %p61 = scmp.ne.s32.totalorder %s46, %s60
    %p62 = scmp.eq.s32.totalorder %s15, 0
    %p63 = por %p61, %p62
    %s65 = sadd.s32 %s64, 1
    %p68 = scmp.eq.s32.totalorder %s9, 1
    %p69 = scmp.ne.s32.totalorder %s64, %s66
    %p70 = scmp.eq.s32.totalorder %s9, 0
    %p71 = por %p69, %p70
    %p72 = scmp.ne.s32.totalorder %s64, %s66
    %p73 = scmp.eq.s32.totalorder %s14, 1
    %p74 = por %p72, %p73
    %p75 = scmp.ne.s32.totalorder %s66, %s67
    %p76 = scmp.eq.s32.totalorder %s14, 0
    %p77 = por %p75, %p76
    %p78 = scmp.ne.s32.totalorder %s66, %s67
    %p79 = scmp.eq.s32.totalorder %s15, 1
    %p80 = por %p78, %p79
    %p82 = scmp.ne.s32.totalorder %s67, %s81
    %p83 = scmp.eq.s32.totalorder %s15, 0
    %p84 = por %p82, %p83
    %s85 = ssub.s32 %s9, %s16
    %p86 = scmp.eq.s32.totalorder %s85, 0
    %s88 = sadd.s32 %s87, 1
    %s89 = scalar_select %p86, %s87, %s88
    %p92 = pneg %p86
    %p93 = scmp.eq.s32.totalorder %s9, 1
    %p94 = por %p92, %p93
    %p95 = scmp.ne.s32.totalorder %s87, %s90
    %p96 = scmp.eq.s32.totalorder %s9, 0
    %p97 = por %p95, %p96
    %p98 = scmp.ne.s32.totalorder %s87, %s90
    %p99 = scmp.eq.s32.totalorder %s14, 1
    %p100 = por %p98, %p99
    %p101 = scmp.ne.s32.totalorder %s90, %s91
    %p102 = scmp.eq.s32.totalorder %s14, 0
    %p103 = por %p101, %p102
    %p104 = scmp.ne.s32.totalorder %s90, %s91
    %p105 = scmp.eq.s32.totalorder %s15, 1
    %p106 = por %p104, %p105
    %p108 = scmp.ne.s32.totalorder %s91, %s107
    %p109 = scmp.eq.s32.totalorder %s15, 0
    %p110 = por %p108, %p109
    %p111 = scmp.le.s32.totalorder 1, %s9
    %p112 = scmp.lt.s32.totalorder %s9, 3
    %p113 = pnand %p111, %p112
    %p114 = pneg %p113
    // Predicated region
    $region9: #{forward.15} parent=5 // pred_check
      _
    $region10: #{forward.15} parent=5 // pred_check_branch
      %116 = sbr.rel (%p113) target = $region12
    $region11: #{forward.15} parent=5 // pred_region
      %s117 = ssub.s32 %s9, 1
      // Predicated region
      $region13: #{forward.15} parent=11 // pred_check
        %p118 = pneg %p56
      $region14: #{forward.15} parent=11 // pred_check_branch
        %120 = sbr.rel (%p118) target = $region16
      $region15: #{forward.15} parent=11 // pred_region
        _
      $region16: #{forward.15} parent=11 // pred_fallthru
        _
      // Predicated region
      $region17: #{forward.15} parent=11 // pred_check
        %p121 = pneg %p77
      $region18: #{forward.15} parent=11 // pred_check_branch
        %123 = sbr.rel (%p121) target = $region20
      $region19: #{forward.15} parent=11 // pred_region
        _
      $region20: #{forward.15} parent=11 // pred_fallthru
        _
    $region12: #{forward.15} parent=5 // pred_fallthru
      _
    %p124 = scmp.lt.s32.totalorder %s9, 2
    // Predicated region
    $region21: #{forward.15} parent=5 // pred_check
      %p125 = pneg %p124
    $region22: #{forward.15} parent=5 // pred_check_branch
      %127 = sbr.rel (%p125) target = $region24
    $region23: #{forward.15} parent=5 // pred_region
      // Predicated region
      $region25: #{forward.15} parent=23 // pred_check
        %p128 = pneg %p29
      $region26: #{forward.15} parent=23 // pred_check_branch
        %130 = sbr.rel (%p128) target = $region28
      $region27: #{forward.15} parent=23 // pred_region
        %p131 = scmp.lt.s32.totalorder %s9, 1
        %s132 = scalar_select %p131, %s9, 1
        %s133 = smul.addr %s132, 28
        %s134 = smul.addr %s133, 8
        %s135 = scalar_lea.vmem %s0, %s134
      $region28: #{forward.15} parent=23 // pred_fallthru
        _
    $region24: #{forward.15} parent=5 // pred_fallthru
      _
    %p136 = scmp.le.s32.totalorder 1, %s9
    %p137 = scmp.lt.s32.totalorder %s9, 3
    %p138 = pnand %p136, %p137
    %p139 = pneg %p138
    // Predicated region
    $region29: #{forward.15} parent=5 // pred_check
      _
    $region30: #{forward.15} parent=5 // pred_check_branch
      %141 = sbr.rel (%p138) target = $region32
    $region31: #{forward.15} parent=5 // pred_region
      %s142 = ssub.s32 %s9, 1
      %p143 = scmp.lt.s32.totalorder %s14, 1
      %s144 = scalar_select %p143, %s14, 1
      %s145 = smul.addr %s144, 28
      %s146 = smul.addr %s145, 8
      %s147 = scalar_lea.vmem %s0, %s146
      %p148 = pneg %p35
      %p149 = pneg %p32
      %p150 = pneg %p56
      %p151 = pneg %p53
      %p152 = pneg %p77
      %p153 = pneg %p74
      %p154 = pneg %p103
      %p155 = pneg %p100
      %p156 = scmp.lt.s32.totalorder %s14, 1
      %s157 = scalar_select %p156, %s14, 1
      %s158 = smul.addr %s157, 8
      %s159 = smul.addr %s158, 8
      %s160 = scalar_lea.vmem %s3, %s159
      %p161 = scmp.lt.s32.totalorder %s14, 1
      %s162 = scalar_select %p161, %s14, 1
      %s163 = smul.addr %s162, 28
      %s164 = smul.addr %s163, 8
      %s165 = scalar_lea.vmem %s0, %s164
      %p166 = scmp.lt.s32.totalorder %s14, 1
      %s167 = scalar_select %p166, %s14, 1
      %s168 = smul.addr %s167, 8
      %s169 = smul.addr %s168, 8
      %s170 = scalar_lea.vmem %s3, %s169
      %v171 = vld [vmem:[%s1] sm:$0x7f]
      %v172 = vld [vmem:[%s1 + $0x8] sm:$0x7f]
      %v173 = vld [vmem:[%s1 + $0x10] sm:$0x7f]
      %v174 = vld [vmem:[%s1 + $0x18] sm:$0x7f]
      %v175 = vld [vmem:[%s1 + $0x20] sm:$0x7f]
      %v176 = vld [vmem:[%s1 + $0x28] sm:$0x7f]
      %v177 = vld [vmem:[%s1 + $0x30] sm:$0x7f]
      %v178 = vld [vmem:[%s165] sm:$0xff]
      %v179 = vld [vmem:[%s165 + $0x10] sm:$0xff]
      %v180 = vld [vmem:[%s165 + $0x20] sm:$0xff]
      %v181 = vld [vmem:[%s165 + $0x30] sm:$0xff]
      %v182 = vld [vmem:[%s165 + $0x40] sm:$0xff]
      %v183 = vld [vmem:[%s165 + $0x50] sm:$0xff]
      %v184 = vld [vmem:[%s165 + $0x60] sm:$0xff]
      %v185 = vld [vmem:[%s165 + $0x70] sm:$0xff]
      %v186 = vperm.slane %v171, 0
      %v187 = vmul.f32 %v178, %v186
      %v188 = vmul.f32 %v179, %v186
      %v189 = vmul.f32 %v180, %v186
      %v190 = vmul.f32 %v181, %v186
      %v191 = vmul.f32 %v182, %v186
      %v192 = vmul.f32 %v183, %v186
      %v193 = vmul.f32 %v184, %v186
      %v194 = vmul.f32 %v185, %v186
      %v195 = vadd.f32 %v187, 0.0
      %v196 = vadd.f32 %v188, 0.0
      %v197 = vadd.f32 %v189, 0.0
      %v198 = vadd.f32 %v190, 0.0
      %v199 = vadd.f32 %v191, 0.0
      %v200 = vadd.f32 %v192, 0.0
      %v201 = vadd.f32 %v193, 0.0
      %v202 = vadd.f32 %v194, 0.0
      %v203 = vld [vmem:[%s165 + $0x1] sm:$0xff]
      %v204 = vld [vmem:[%s165 + $0x11] sm:$0xff]
      %v205 = vld [vmem:[%s165 + $0x21] sm:$0xff]
      %v206 = vld [vmem:[%s165 + $0x31] sm:$0xff]
      %v207 = vld [vmem:[%s165 + $0x41] sm:$0xff]
      %v208 = vld [vmem:[%s165 + $0x51] sm:$0xff]
      %v209 = vld [vmem:[%s165 + $0x61] sm:$0xff]
      %v210 = vld [vmem:[%s165 + $0x71] sm:$0xff]
      %v211 = vperm.slane %v171, 1
      %v212 = vmul.f32 %v203, %v211
      %v213 = vmul.f32 %v204, %v211
      %v214 = vmul.f32 %v205, %v211
      %v215 = vmul.f32 %v206, %v211
      %v216 = vmul.f32 %v207, %v211
      %v217 = vmul.f32 %v208, %v211
      %v218 = vmul.f32 %v209, %v211
      %v219 = vmul.f32 %v210, %v211
      %v220 = vadd.f32 %v195, %v212
      %v221 = vadd.f32 %v196, %v213
      %v222 = vadd.f32 %v197, %v214
      %v223 = vadd.f32 %v198, %v215
      %v224 = vadd.f32 %v199, %v216
      %v225 = vadd.f32 %v200, %v217
      %v226 = vadd.f32 %v201, %v218
      %v227 = vadd.f32 %v202, %v219
      %v228 = vld [vmem:[%s165 + $0x2] sm:$0xff]
      %v229 = vld [vmem:[%s165 + $0x12] sm:$0xff]
      %v230 = vld [vmem:[%s165 + $0x22] sm:$0xff]
      %v231 = vld [vmem:[%s165 + $0x32] sm:$0xff]
      %v232 = vld [vmem:[%s165 + $0x42] sm:$0xff]
      %v233 = vld [vmem:[%s165 + $0x52] sm:$0xff]
      %v234 = vld [vmem:[%s165 + $0x62] sm:$0xff]
      %v235 = vld [vmem:[%s165 + $0x72] sm:$0xff]
      %v236 = vperm.slane %v171, 2
      %v237 = vmul.f32 %v228, %v236
      %v238 = vmul.f32 %v229, %v236
      %v239 = vmul.f32 %v230, %v236
      %v240 = vmul.f32 %v231, %v236
      %v241 = vmul.f32 %v232, %v236
      %v242 = vmul.f32 %v233, %v236
      %v243 = vmul.f32 %v234, %v236
      %v244 = vmul.f32 %v235, %v236
      %v245 = vadd.f32 %v220, %v237
      %v246 = vadd.f32 %v221, %v238
      %v247 = vadd.f32 %v222, %v239
      %v248 = vadd.f32 %v223, %v240
      %v249 = vadd.f32 %v224, %v241
      %v250 = vadd.f32 %v225, %v242
      %v251 = vadd.f32 %v226, %v243
      %v252 = vadd.f32 %v227, %v244
      %v253 = vld [vmem:[%s165 + $0x3] sm:$0xff]
      %v254 = vld [vmem:[%s165 + $0x13] sm:$0xff]
      %v255 = vld [vmem:[%s165 + $0x23] sm:$0xff]
      %v256 = vld [vmem:[%s165 + $0x33] sm:$0xff]
      %v257 = vld [vmem:[%s165 + $0x43] sm:$0xff]
      %v258 = vld [vmem:[%s165 + $0x53] sm:$0xff]
      %v259 = vld [vmem:[%s165 + $0x63] sm:$0xff]
      %v260 = vld [vmem:[%s165 + $0x73] sm:$0xff]
      %v261 = vperm.slane %v171, 3
      %v262 = vmul.f32 %v253, %v261
      %v263 = vmul.f32 %v254, %v261
      %v264 = vmul.f32 %v255, %v261
      %v265 = vmul.f32 %v256, %v261
      %v266 = vmul.f32 %v257, %v261
      %v267 = vmul.f32 %v258, %v261
      %v268 = vmul.f32 %v259, %v261
      %v269 = vmul.f32 %v260, %v261
      %v270 = vadd.f32 %v245, %v262
      %v271 = vadd.f32 %v246, %v263
      %v272 = vadd.f32 %v247, %v264
      %v273 = vadd.f32 %v248, %v265
      %v274 = vadd.f32 %v249, %v266
      %v275 = vadd.f32 %v250, %v267
      %v276 = vadd.f32 %v251, %v268
      %v277 = vadd.f32 %v252, %v269
      %v278 = vld [vmem:[%s165 + $0x4] sm:$0xff]
      %v279 = vld [vmem:[%s165 + $0x14] sm:$0xff]
      %v280 = vld [vmem:[%s165 + $0x24] sm:$0xff]
      %v281 = vld [vmem:[%s165 + $0x34] sm:$0xff]
      %v282 = vld [vmem:[%s165 + $0x44] sm:$0xff]
      %v283 = vld [vmem:[%s165 + $0x54] sm:$0xff]
      %v284 = vld [vmem:[%s165 + $0x64] sm:$0xff]
      %v285 = vld [vmem:[%s165 + $0x74] sm:$0xff]
      %v286 = vperm.slane %v171, 4
      %v287 = vmul.f32 %v278, %v286
      %v288 = vmul.f32 %v279, %v286
      %v289 = vmul.f32 %v280, %v286
      %v290 = vmul.f32 %v281, %v286
      %v291 = vmul.f32 %v282, %v286
      %v292 = vmul.f32 %v283, %v286
      %v293 = vmul.f32 %v284, %v286
      %v294 = vmul.f32 %v285, %v286
      %v295 = vadd.f32 %v270, %v287
      %v296 = vadd.f32 %v271, %v288
      %v297 = vadd.f32 %v272, %v289
      %v298 = vadd.f32 %v273, %v290
      %v299 = vadd.f32 %v274, %v291
      %v300 = vadd.f32 %v275, %v292
      %v301 = vadd.f32 %v276, %v293
      %v302 = vadd.f32 %v277, %v294
      %v303 = vld [vmem:[%s165 + $0x5] sm:$0xff]
      %v304 = vld [vmem:[%s165 + $0x15] sm:$0xff]
      %v305 = vld [vmem:[%s165 + $0x25] sm:$0xff]
      %v306 = vld [vmem:[%s165 + $0x35] sm:$0xff]
      %v307 = vld [vmem:[%s165 + $0x45] sm:$0xff]
      %v308 = vld [vmem:[%s165 + $0x55] sm:$0xff]
      %v309 = vld [vmem:[%s165 + $0x65] sm:$0xff]
      %v310 = vld [vmem:[%s165 + $0x75] sm:$0xff]
      %v311 = vperm.slane %v171, 5
      %v312 = vmul.f32 %v303, %v311
      %v313 = vmul.f32 %v304, %v311
      %v314 = vmul.f32 %v305, %v311
      %v315 = vmul.f32 %v306, %v311
      %v316 = vmul.f32 %v307, %v311
      %v317 = vmul.f32 %v308, %v311
      %v318 = vmul.f32 %v309, %v311
      %v319 = vmul.f32 %v310, %v311
      %v320 = vadd.f32 %v295, %v312
      %v321 = vadd.f32 %v296, %v313
      %v322 = vadd.f32 %v297, %v314
      %v323 = vadd.f32 %v298, %v315
      %v324 = vadd.f32 %v299, %v316
      %v325 = vadd.f32 %v300, %v317
      %v326 = vadd.f32 %v301, %v318
      %v327 = vadd.f32 %v302, %v319
      %v328 = vld [vmem:[%s165 + $0x6] sm:$0xff]
      %v329 = vld [vmem:[%s165 + $0x16] sm:$0xff]
      %v330 = vld [vmem:[%s165 + $0x26] sm:$0xff]
      %v331 = vld [vmem:[%s165 + $0x36] sm:$0xff]
      %v332 = vld [vmem:[%s165 + $0x46] sm:$0xff]
      %v333 = vld [vmem:[%s165 + $0x56] sm:$0xff]
      %v334 = vld [vmem:[%s165 + $0x66] sm:$0xff]
      %v335 = vld [vmem:[%s165 + $0x76] sm:$0xff]
      %v336 = vperm.slane %v171, 6
      %v337 = vmul.f32 %v328, %v336
      %v338 = vmul.f32 %v329, %v336
      %v339 = vmul.f32 %v330, %v336
      %v340 = vmul.f32 %v331, %v336
      %v341 = vmul.f32 %v332, %v336
      %v342 = vmul.f32 %v333, %v336
      %v343 = vmul.f32 %v334, %v336
      %v344 = vmul.f32 %v335, %v336
      %v345 = vadd.f32 %v320, %v337
      %v346 = vadd.f32 %v321, %v338
      %v347 = vadd.f32 %v322, %v339
      %v348 = vadd.f32 %v323, %v340
      %v349 = vadd.f32 %v324, %v341
      %v350 = vadd.f32 %v325, %v342
      %v351 = vadd.f32 %v326, %v343
      %v352 = vadd.f32 %v327, %v344
      %s353 = scalar_lea.vmem %s165, 16
      %v354 = vld [vmem:[%s353] sm:$0xff]
      %v355 = vld [vmem:[%s353 + $0x10] sm:$0xff]
      %v356 = vld [vmem:[%s353 + $0x20] sm:$0xff]
      %v357 = vld [vmem:[%s353 + $0x30] sm:$0xff]
      %v358 = vld [vmem:[%s353 + $0x40] sm:$0xff]
      %v359 = vld [vmem:[%s353 + $0x50] sm:$0xff]
      %v360 = vld [vmem:[%s353 + $0x60] sm:$0xff]
      %v361 = vld [vmem:[%s353 + $0x70] sm:$0xff]
      %v362 = vperm.slane %v172, 0
      %v363 = vmul.f32 %v354, %v362
      %v364 = vmul.f32 %v355, %v362
      %v365 = vmul.f32 %v356, %v362
      %v366 = vmul.f32 %v357, %v362
      %v367 = vmul.f32 %v358, %v362
      %v368 = vmul.f32 %v359, %v362
      %v369 = vmul.f32 %v360, %v362
      %v370 = vmul.f32 %v361, %v362
      %v371 = vadd.f32 %v345, %v363
      %v372 = vadd.f32 %v346, %v364
      %v373 = vadd.f32 %v347, %v365
      %v374 = vadd.f32 %v348, %v366
      %v375 = vadd.f32 %v349, %v367
      %v376 = vadd.f32 %v350, %v368
      %v377 = vadd.f32 %v351, %v369
      %v378 = vadd.f32 %v352, %v370
      %v379 = vld [vmem:[%s353 + $0x1] sm:$0xff]
      %v380 = vld [vmem:[%s353 + $0x11] sm:$0xff]
      %v381 = vld [vmem:[%s353 + $0x21] sm:$0xff]
      %v382 = vld [vmem:[%s353 + $0x31] sm:$0xff]
      %v383 = vld [vmem:[%s353 + $0x41] sm:$0xff]
      %v384 = vld [vmem:[%s353 + $0x51] sm:$0xff]
      %v385 = vld [vmem:[%s353 + $0x61] sm:$0xff]
      %v386 = vld [vmem:[%s353 + $0x71] sm:$0xff]
      %v387 = vperm.slane %v172, 1
      %v388 = vmul.f32 %v379, %v387
      %v389 = vmul.f32 %v380, %v387
      %v390 = vmul.f32 %v381, %v387
      %v391 = vmul.f32 %v382, %v387
      %v392 = vmul.f32 %v383, %v387
      %v393 = vmul.f32 %v384, %v387
      %v394 = vmul.f32 %v385, %v387
      %v395 = vmul.f32 %v386, %v387
      %v396 = vadd.f32 %v371, %v388
      %v397 = vadd.f32 %v372, %v389
      %v398 = vadd.f32 %v373, %v390
      %v399 = vadd.f32 %v374, %v391
      %v400 = vadd.f32 %v375, %v392
      %v401 = vadd.f32 %v376, %v393
      %v402 = vadd.f32 %v377, %v394
      %v403 = vadd.f32 %v378, %v395
      %v404 = vld [vmem:[%s353 + $0x2] sm:$0xff]
      %v405 = vld [vmem:[%s353 + $0x12] sm:$0xff]
      %v406 = vld [vmem:[%s353 + $0x22] sm:$0xff]
      %v407 = vld [vmem:[%s353 + $0x32] sm:$0xff]
      %v408 = vld [vmem:[%s353 + $0x42] sm:$0xff]
      %v409 = vld [vmem:[%s353 + $0x52] sm:$0xff]
      %v410 = vld [vmem:[%s353 + $0x62] sm:$0xff]
      %v411 = vld [vmem:[%s353 + $0x72] sm:$0xff]
      %v412 = vperm.slane %v172, 2
      %v413 = vmul.f32 %v404, %v412
      %v414 = vmul.f32 %v405, %v412
      %v415 = vmul.f32 %v406, %v412
      %v416 = vmul.f32 %v407, %v412
      %v417 = vmul.f32 %v408, %v412
      %v418 = vmul.f32 %v409, %v412
      %v419 = vmul.f32 %v410, %v412
      %v420 = vmul.f32 %v411, %v412
      %v421 = vadd.f32 %v396, %v413
      %v422 = vadd.f32 %v397, %v414
      %v423 = vadd.f32 %v398, %v415
      %v424 = vadd.f32 %v399, %v416
      %v425 = vadd.f32 %v400, %v417
      %v426 = vadd.f32 %v401, %v418
      %v427 = vadd.f32 %v402, %v419
      %v428 = vadd.f32 %v403, %v420
      %v429 = vld [vmem:[%s353 + $0x3] sm:$0xff]
      %v430 = vld [vmem:[%s353 + $0x13] sm:$0xff]
      %v431 = vld [vmem:[%s353 + $0x23] sm:$0xff]
      %v432 = vld [vmem:[%s353 + $0x33] sm:$0xff]
      %v433 = vld [vmem:[%s353 + $0x43] sm:$0xff]
      %v434 = vld [vmem:[%s353 + $0x53] sm:$0xff]
      %v435 = vld [vmem:[%s353 + $0x63] sm:$0xff]
      %v436 = vld [vmem:[%s353 + $0x73] sm:$0xff]
      %v437 = vperm.slane %v172, 3
      %v438 = vmul.f32 %v429, %v437
      %v439 = vmul.f32 %v430, %v437
      %v440 = vmul.f32 %v431, %v437
      %v441 = vmul.f32 %v432, %v437
      %v442 = vmul.f32 %v433, %v437
      %v443 = vmul.f32 %v434, %v437
      %v444 = vmul.f32 %v435, %v437
      %v445 = vmul.f32 %v436, %v437
      %v446 = vadd.f32 %v421, %v438
      %v447 = vadd.f32 %v422, %v439
      %v448 = vadd.f32 %v423, %v440
      %v449 = vadd.f32 %v424, %v441
      %v450 = vadd.f32 %v425, %v442
      %v451 = vadd.f32 %v426, %v443
      %v452 = vadd.f32 %v427, %v444
      %v453 = vadd.f32 %v428, %v445
      %v454 = vld [vmem:[%s353 + $0x4] sm:$0xff]
      %v455 = vld [vmem:[%s353 + $0x14] sm:$0xff]
      %v456 = vld [vmem:[%s353 + $0x24] sm:$0xff]
      %v457 = vld [vmem:[%s353 + $0x34] sm:$0xff]
      %v458 = vld [vmem:[%s353 + $0x44] sm:$0xff]
      %v459 = vld [vmem:[%s353 + $0x54] sm:$0xff]
      %v460 = vld [vmem:[%s353 + $0x64] sm:$0xff]
      %v461 = vld [vmem:[%s353 + $0x74] sm:$0xff]
      %v462 = vperm.slane %v172, 4
      %v463 = vmul.f32 %v454, %v462
      %v464 = vmul.f32 %v455, %v462
      %v465 = vmul.f32 %v456, %v462
      %v466 = vmul.f32 %v457, %v462
      %v467 = vmul.f32 %v458, %v462
      %v468 = vmul.f32 %v459, %v462
      %v469 = vmul.f32 %v460, %v462
      %v470 = vmul.f32 %v461, %v462
      %v471 = vadd.f32 %v446, %v463
      %v472 = vadd.f32 %v447, %v464
      %v473 = vadd.f32 %v448, %v465
      %v474 = vadd.f32 %v449, %v466
      %v475 = vadd.f32 %v450, %v467
      %v476 = vadd.f32 %v451, %v468
      %v477 = vadd.f32 %v452, %v469
      %v478 = vadd.f32 %v453, %v470
      %v479 = vld [vmem:[%s353 + $0x5] sm:$0xff]
      %v480 = vld [vmem:[%s353 + $0x15] sm:$0xff]
      %v481 = vld [vmem:[%s353 + $0x25] sm:$0xff]
      %v482 = vld [vmem:[%s353 + $0x35] sm:$0xff]
      %v483 = vld [vmem:[%s353 + $0x45] sm:$0xff]
      %v484 = vld [vmem:[%s353 + $0x55] sm:$0xff]
      %v485 = vld [vmem:[%s353 + $0x65] sm:$0xff]
      %v486 = vld [vmem:[%s353 + $0x75] sm:$0xff]
      %v487 = vperm.slane %v172, 5
      %v488 = vmul.f32 %v479, %v487
      %v489 = vmul.f32 %v480, %v487
      %v490 = vmul.f32 %v481, %v487
      %v491 = vmul.f32 %v482, %v487
      %v492 = vmul.f32 %v483, %v487
      %v493 = vmul.f32 %v484, %v487
      %v494 = vmul.f32 %v485, %v487
      %v495 = vmul.f32 %v486, %v487
      %v496 = vadd.f32 %v471, %v488
      %v497 = vadd.f32 %v472, %v489
      %v498 = vadd.f32 %v473, %v490
      %v499 = vadd.f32 %v474, %v491
      %v500 = vadd.f32 %v475, %v492
      %v501 = vadd.f32 %v476, %v493
      %v502 = vadd.f32 %v477, %v494
      %v503 = vadd.f32 %v478, %v495
      %v504 = vld [vmem:[%s353 + $0x6] sm:$0xff]
      %v505 = vld [vmem:[%s353 + $0x16] sm:$0xff]
      %v506 = vld [vmem:[%s353 + $0x26] sm:$0xff]
      %v507 = vld [vmem:[%s353 + $0x36] sm:$0xff]
      %v508 = vld [vmem:[%s353 + $0x46] sm:$0xff]
      %v509 = vld [vmem:[%s353 + $0x56] sm:$0xff]
      %v510 = vld [vmem:[%s353 + $0x66] sm:$0xff]
      %v511 = vld [vmem:[%s353 + $0x76] sm:$0xff]
      %v512 = vperm.slane %v172, 6
      %v513 = vmul.f32 %v504, %v512
      %v514 = vmul.f32 %v505, %v512
      %v515 = vmul.f32 %v506, %v512
      %v516 = vmul.f32 %v507, %v512
      %v517 = vmul.f32 %v508, %v512
      %v518 = vmul.f32 %v509, %v512
      %v519 = vmul.f32 %v510, %v512
      %v520 = vmul.f32 %v511, %v512
      %v521 = vadd.f32 %v496, %v513
      %v522 = vadd.f32 %v497, %v514
      %v523 = vadd.f32 %v498, %v515
      %v524 = vadd.f32 %v499, %v516
      %v525 = vadd.f32 %v500, %v517
      %v526 = vadd.f32 %v501, %v518
      %v527 = vadd.f32 %v502, %v519
      %v528 = vadd.f32 %v503, %v520
      %s529 = scalar_lea.vmem %s165, 32
      %v530 = vld [vmem:[%s529] sm:$0xff]
      %v531 = vld [vmem:[%s529 + $0x10] sm:$0xff]
      %v532 = vld [vmem:[%s529 + $0x20] sm:$0xff]
      %v533 = vld [vmem:[%s529 + $0x30] sm:$0xff]
      %v534 = vld [vmem:[%s529 + $0x40] sm:$0xff]
      %v535 = vld [vmem:[%s529 + $0x50] sm:$0xff]
      %v536 = vld [vmem:[%s529 + $0x60] sm:$0xff]
      %v537 = vld [vmem:[%s529 + $0x70] sm:$0xff]
      %v538 = vperm.slane %v173, 0
      %v539 = vmul.f32 %v530, %v538
      %v540 = vmul.f32 %v531, %v538
      %v541 = vmul.f32 %v532, %v538
      %v542 = vmul.f32 %v533, %v538
      %v543 = vmul.f32 %v534, %v538
      %v544 = vmul.f32 %v535, %v538
      %v545 = vmul.f32 %v536, %v538
      %v546 = vmul.f32 %v537, %v538
      %v547 = vadd.f32 %v521, %v539
      %v548 = vadd.f32 %v522, %v540
      %v549 = vadd.f32 %v523, %v541
      %v550 = vadd.f32 %v524, %v542
      %v551 = vadd.f32 %v525, %v543
      %v552 = vadd.f32 %v526, %v544
      %v553 = vadd.f32 %v527, %v545
      %v554 = vadd.f32 %v528, %v546
      %v555 = vld [vmem:[%s529 + $0x1] sm:$0xff]
      %v556 = vld [vmem:[%s529 + $0x11] sm:$0xff]
      %v557 = vld [vmem:[%s529 + $0x21] sm:$0xff]
      %v558 = vld [vmem:[%s529 + $0x31] sm:$0xff]
      %v559 = vld [vmem:[%s529 + $0x41] sm:$0xff]
      %v560 = vld [vmem:[%s529 + $0x51] sm:$0xff]
      %v561 = vld [vmem:[%s529 + $0x61] sm:$0xff]
      %v562 = vld [vmem:[%s529 + $0x71] sm:$0xff]
      %v563 = vperm.slane %v173, 1
      %v564 = vmul.f32 %v555, %v563
      %v565 = vmul.f32 %v556, %v563
      %v566 = vmul.f32 %v557, %v563
      %v567 = vmul.f32 %v558, %v563
      %v568 = vmul.f32 %v559, %v563
      %v569 = vmul.f32 %v560, %v563
      %v570 = vmul.f32 %v561, %v563
      %v571 = vmul.f32 %v562, %v563
      %v572 = vadd.f32 %v547, %v564
      %v573 = vadd.f32 %v548, %v565
      %v574 = vadd.f32 %v549, %v566
      %v575 = vadd.f32 %v550, %v567
      %v576 = vadd.f32 %v551, %v568
      %v577 = vadd.f32 %v552, %v569
      %v578 = vadd.f32 %v553, %v570
      %v579 = vadd.f32 %v554, %v571
      %v580 = vld [vmem:[%s529 + $0x2] sm:$0xff]
      %v581 = vld [vmem:[%s529 + $0x12] sm:$0xff]
      %v582 = vld [vmem:[%s529 + $0x22] sm:$0xff]
      %v583 = vld [vmem:[%s529 + $0x32] sm:$0xff]
      %v584 = vld [vmem:[%s529 + $0x42] sm:$0xff]
      %v585 = vld [vmem:[%s529 + $0x52] sm:$0xff]
      %v586 = vld [vmem:[%s529 + $0x62] sm:$0xff]
      %v587 = vld [vmem:[%s529 + $0x72] sm:$0xff]
      %v588 = vperm.slane %v173, 2
      %v589 = vmul.f32 %v580, %v588
      %v590 = vmul.f32 %v581, %v588
      %v591 = vmul.f32 %v582, %v588
      %v592 = vmul.f32 %v583, %v588
      %v593 = vmul.f32 %v584, %v588
      %v594 = vmul.f32 %v585, %v588
      %v595 = vmul.f32 %v586, %v588
      %v596 = vmul.f32 %v587, %v588
      %v597 = vadd.f32 %v572, %v589
      %v598 = vadd.f32 %v573, %v590
      %v599 = vadd.f32 %v574, %v591
      %v600 = vadd.f32 %v575, %v592
      %v601 = vadd.f32 %v576, %v593
      %v602 = vadd.f32 %v577, %v594
      %v603 = vadd.f32 %v578, %v595
      %v604 = vadd.f32 %v579, %v596
      %v605 = vld [vmem:[%s529 + $0x3] sm:$0xff]
      %v606 = vld [vmem:[%s529 + $0x13] sm:$0xff]
      %v607 = vld [vmem:[%s529 + $0x23] sm:$0xff]
      %v608 = vld [vmem:[%s529 + $0x33] sm:$0xff]
      %v609 = vld [vmem:[%s529 + $0x43] sm:$0xff]
      %v610 = vld [vmem:[%s529 + $0x53] sm:$0xff]
      %v611 = vld [vmem:[%s529 + $0x63] sm:$0xff]
      %v612 = vld [vmem:[%s529 + $0x73] sm:$0xff]
      %v613 = vperm.slane %v173, 3
      %v614 = vmul.f32 %v605, %v613
      %v615 = vmul.f32 %v606, %v613
      %v616 = vmul.f32 %v607, %v613
      %v617 = vmul.f32 %v608, %v613
      %v618 = vmul.f32 %v609, %v613
      %v619 = vmul.f32 %v610, %v613
      %v620 = vmul.f32 %v611, %v613
      %v621 = vmul.f32 %v612, %v613
      %v622 = vadd.f32 %v597, %v614
      %v623 = vadd.f32 %v598, %v615
      %v624 = vadd.f32 %v599, %v616
      %v625 = vadd.f32 %v600, %v617
      %v626 = vadd.f32 %v601, %v618
      %v627 = vadd.f32 %v602, %v619
      %v628 = vadd.f32 %v603, %v620
      %v629 = vadd.f32 %v604, %v621
      %v630 = vld [vmem:[%s529 + $0x4] sm:$0xff]
      %v631 = vld [vmem:[%s529 + $0x14] sm:$0xff]
      %v632 = vld [vmem:[%s529 + $0x24] sm:$0xff]
      %v633 = vld [vmem:[%s529 + $0x34] sm:$0xff]
      %v634 = vld [vmem:[%s529 + $0x44] sm:$0xff]
      %v635 = vld [vmem:[%s529 + $0x54] sm:$0xff]
      %v636 = vld [vmem:[%s529 + $0x64] sm:$0xff]
      %v637 = vld [vmem:[%s529 + $0x74] sm:$0xff]
      %v638 = vperm.slane %v173, 4
      %v639 = vmul.f32 %v630, %v638
      %v640 = vmul.f32 %v631, %v638
      %v641 = vmul.f32 %v632, %v638
      %v642 = vmul.f32 %v633, %v638
      %v643 = vmul.f32 %v634, %v638
      %v644 = vmul.f32 %v635, %v638
      %v645 = vmul.f32 %v636, %v638
      %v646 = vmul.f32 %v637, %v638
      %v647 = vadd.f32 %v622, %v639
      %v648 = vadd.f32 %v623, %v640
      %v649 = vadd.f32 %v624, %v641
      %v650 = vadd.f32 %v625, %v642
      %v651 = vadd.f32 %v626, %v643
      %v652 = vadd.f32 %v627, %v644
      %v653 = vadd.f32 %v628, %v645
      %v654 = vadd.f32 %v629, %v646
      %v655 = vld [vmem:[%s529 + $0x5] sm:$0xff]
      %v656 = vld [vmem:[%s529 + $0x15] sm:$0xff]
      %v657 = vld [vmem:[%s529 + $0x25] sm:$0xff]
      %v658 = vld [vmem:[%s529 + $0x35] sm:$0xff]
      %v659 = vld [vmem:[%s529 + $0x45] sm:$0xff]
      %v660 = vld [vmem:[%s529 + $0x55] sm:$0xff]
      %v661 = vld [vmem:[%s529 + $0x65] sm:$0xff]
      %v662 = vld [vmem:[%s529 + $0x75] sm:$0xff]
      %v663 = vperm.slane %v173, 5
      %v664 = vmul.f32 %v655, %v663
      %v665 = vmul.f32 %v656, %v663
      %v666 = vmul.f32 %v657, %v663
      %v667 = vmul.f32 %v658, %v663
      %v668 = vmul.f32 %v659, %v663
      %v669 = vmul.f32 %v660, %v663
      %v670 = vmul.f32 %v661, %v663
      %v671 = vmul.f32 %v662, %v663
      %v672 = vadd.f32 %v647, %v664
      %v673 = vadd.f32 %v648, %v665
      %v674 = vadd.f32 %v649, %v666
      %v675 = vadd.f32 %v650, %v667
      %v676 = vadd.f32 %v651, %v668
      %v677 = vadd.f32 %v652, %v669
      %v678 = vadd.f32 %v653, %v670
      %v679 = vadd.f32 %v654, %v671
      %v680 = vld [vmem:[%s529 + $0x6] sm:$0xff]
      %v681 = vld [vmem:[%s529 + $0x16] sm:$0xff]
      %v682 = vld [vmem:[%s529 + $0x26] sm:$0xff]
      %v683 = vld [vmem:[%s529 + $0x36] sm:$0xff]
      %v684 = vld [vmem:[%s529 + $0x46] sm:$0xff]
      %v685 = vld [vmem:[%s529 + $0x56] sm:$0xff]
      %v686 = vld [vmem:[%s529 + $0x66] sm:$0xff]
      %v687 = vld [vmem:[%s529 + $0x76] sm:$0xff]
      %v688 = vperm.slane %v173, 6
      %v689 = vmul.f32 %v680, %v688
      %v690 = vmul.f32 %v681, %v688
      %v691 = vmul.f32 %v682, %v688
      %v692 = vmul.f32 %v683, %v688
      %v693 = vmul.f32 %v684, %v688
      %v694 = vmul.f32 %v685, %v688
      %v695 = vmul.f32 %v686, %v688
      %v696 = vmul.f32 %v687, %v688
      %v697 = vadd.f32 %v672, %v689
      %v698 = vadd.f32 %v673, %v690
      %v699 = vadd.f32 %v674, %v691
      %v700 = vadd.f32 %v675, %v692
      %v701 = vadd.f32 %v676, %v693
      %v702 = vadd.f32 %v677, %v694
      %v703 = vadd.f32 %v678, %v695
      %v704 = vadd.f32 %v679, %v696
      %s705 = scalar_lea.vmem %s165, 48
      %v706 = vld [vmem:[%s705] sm:$0xff]
      %v707 = vld [vmem:[%s705 + $0x10] sm:$0xff]
      %v708 = vld [vmem:[%s705 + $0x20] sm:$0xff]
      %v709 = vld [vmem:[%s705 + $0x30] sm:$0xff]
      %v710 = vld [vmem:[%s705 + $0x40] sm:$0xff]
      %v711 = vld [vmem:[%s705 + $0x50] sm:$0xff]
      %v712 = vld [vmem:[%s705 + $0x60] sm:$0xff]
      %v713 = vld [vmem:[%s705 + $0x70] sm:$0xff]
      %v714 = vperm.slane %v174, 0
      %v715 = vmul.f32 %v706, %v714
      %v716 = vmul.f32 %v707, %v714
      %v717 = vmul.f32 %v708, %v714
      %v718 = vmul.f32 %v709, %v714
      %v719 = vmul.f32 %v710, %v714
      %v720 = vmul.f32 %v711, %v714
      %v721 = vmul.f32 %v712, %v714
      %v722 = vmul.f32 %v713, %v714
      %v723 = vadd.f32 %v697, %v715
      %v724 = vadd.f32 %v698, %v716
      %v725 = vadd.f32 %v699, %v717
      %v726 = vadd.f32 %v700, %v718
      %v727 = vadd.f32 %v701, %v719
      %v728 = vadd.f32 %v702, %v720
      %v729 = vadd.f32 %v703, %v721
      %v730 = vadd.f32 %v704, %v722
      %v731 = vld [vmem:[%s705 + $0x1] sm:$0xff]
      %v732 = vld [vmem:[%s705 + $0x11] sm:$0xff]
      %v733 = vld [vmem:[%s705 + $0x21] sm:$0xff]
      %v734 = vld [vmem:[%s705 + $0x31] sm:$0xff]
      %v735 = vld [vmem:[%s705 + $0x41] sm:$0xff]
      %v736 = vld [vmem:[%s705 + $0x51] sm:$0xff]
      %v737 = vld [vmem:[%s705 + $0x61] sm:$0xff]
      %v738 = vld [vmem:[%s705 + $0x71] sm:$0xff]
      %v739 = vperm.slane %v174, 1
      %v740 = vmul.f32 %v731, %v739
      %v741 = vmul.f32 %v732, %v739
      %v742 = vmul.f32 %v733, %v739
      %v743 = vmul.f32 %v734, %v739
      %v744 = vmul.f32 %v735, %v739
      %v745 = vmul.f32 %v736, %v739
      %v746 = vmul.f32 %v737, %v739
      %v747 = vmul.f32 %v738, %v739
      %v748 = vadd.f32 %v723, %v740
      %v749 = vadd.f32 %v724, %v741
      %v750 = vadd.f32 %v725, %v742
      %v751 = vadd.f32 %v726, %v743
      %v752 = vadd.f32 %v727, %v744
      %v753 = vadd.f32 %v728, %v745
      %v754 = vadd.f32 %v729, %v746
      %v755 = vadd.f32 %v730, %v747
      %v756 = vld [vmem:[%s705 + $0x2] sm:$0xff]
      %v757 = vld [vmem:[%s705 + $0x12] sm:$0xff]
      %v758 = vld [vmem:[%s705 + $0x22] sm:$0xff]
      %v759 = vld [vmem:[%s705 + $0x32] sm:$0xff]
      %v760 = vld [vmem:[%s705 + $0x42] sm:$0xff]
      %v761 = vld [vmem:[%s705 + $0x52] sm:$0xff]
      %v762 = vld [vmem:[%s705 + $0x62] sm:$0xff]
      %v763 = vld [vmem:[%s705 + $0x72] sm:$0xff]
      %v764 = vperm.slane %v174, 2
      %v765 = vmul.f32 %v756, %v764
      %v766 = vmul.f32 %v757, %v764
      %v767 = vmul.f32 %v758, %v764
      %v768 = vmul.f32 %v759, %v764
      %v769 = vmul.f32 %v760, %v764
      %v770 = vmul.f32 %v761, %v764
      %v771 = vmul.f32 %v762, %v764
      %v772 = vmul.f32 %v763, %v764
      %v773 = vadd.f32 %v748, %v765
      %v774 = vadd.f32 %v749, %v766
      %v775 = vadd.f32 %v750, %v767
      %v776 = vadd.f32 %v751, %v768
      %v777 = vadd.f32 %v752, %v769
      %v778 = vadd.f32 %v753, %v770
      %v779 = vadd.f32 %v754, %v771
      %v780 = vadd.f32 %v755, %v772
      %v781 = vld [vmem:[%s705 + $0x3] sm:$0xff]
      %v782 = vld [vmem:[%s705 + $0x13] sm:$0xff]
      %v783 = vld [vmem:[%s705 + $0x23] sm:$0xff]
      %v784 = vld [vmem:[%s705 + $0x33] sm:$0xff]
      %v785 = vld [vmem:[%s705 + $0x43] sm:$0xff]
      %v786 = vld [vmem:[%s705 + $0x53] sm:$0xff]
      %v787 = vld [vmem:[%s705 + $0x63] sm:$0xff]
      %v788 = vld [vmem:[%s705 + $0x73] sm:$0xff]
      %v789 = vperm.slane %v174, 3
      %v790 = vmul.f32 %v781, %v789
      %v791 = vmul.f32 %v782, %v789
      %v792 = vmul.f32 %v783, %v789
      %v793 = vmul.f32 %v784, %v789
      %v794 = vmul.f32 %v785, %v789
      %v795 = vmul.f32 %v786, %v789
      %v796 = vmul.f32 %v787, %v789
      %v797 = vmul.f32 %v788, %v789
      %v798 = vadd.f32 %v773, %v790
      %v799 = vadd.f32 %v774, %v791
      %v800 = vadd.f32 %v775, %v792
      %v801 = vadd.f32 %v776, %v793
      %v802 = vadd.f32 %v777, %v794
      %v803 = vadd.f32 %v778, %v795
      %v804 = vadd.f32 %v779, %v796
      %v805 = vadd.f32 %v780, %v797
      %v806 = vld [vmem:[%s705 + $0x4] sm:$0xff]
      %v807 = vld [vmem:[%s705 + $0x14] sm:$0xff]
      %v808 = vld [vmem:[%s705 + $0x24] sm:$0xff]
      %v809 = vld [vmem:[%s705 + $0x34] sm:$0xff]
      %v810 = vld [vmem:[%s705 + $0x44] sm:$0xff]
      %v811 = vld [vmem:[%s705 + $0x54] sm:$0xff]
      %v812 = vld [vmem:[%s705 + $0x64] sm:$0xff]
      %v813 = vld [vmem:[%s705 + $0x74] sm:$0xff]
      %v814 = vperm.slane %v174, 4
      %v815 = vmul.f32 %v806, %v814
      %v816 = vmul.f32 %v807, %v814
      %v817 = vmul.f32 %v808, %v814
      %v818 = vmul.f32 %v809, %v814
      %v819 = vmul.f32 %v810, %v814
      %v820 = vmul.f32 %v811, %v814
      %v821 = vmul.f32 %v812, %v814
      %v822 = vmul.f32 %v813, %v814
      %v823 = vadd.f32 %v798, %v815
      %v824 = vadd.f32 %v799, %v816
      %v825 = vadd.f32 %v800, %v817
      %v826 = vadd.f32 %v801, %v818
      %v827 = vadd.f32 %v802, %v819
      %v828 = vadd.f32 %v803, %v820
      %v829 = vadd.f32 %v804, %v821
      %v830 = vadd.f32 %v805, %v822
      %v831 = vld [vmem:[%s705 + $0x5] sm:$0xff]
      %v832 = vld [vmem:[%s705 + $0x15] sm:$0xff]
      %v833 = vld [vmem:[%s705 + $0x25] sm:$0xff]
      %v834 = vld [vmem:[%s705 + $0x35] sm:$0xff]
      %v835 = vld [vmem:[%s705 + $0x45] sm:$0xff]
      %v836 = vld [vmem:[%s705 + $0x55] sm:$0xff]
      %v837 = vld [vmem:[%s705 + $0x65] sm:$0xff]
      %v838 = vld [vmem:[%s705 + $0x75] sm:$0xff]
      %v839 = vperm.slane %v174, 5
      %v840 = vmul.f32 %v831, %v839
      %v841 = vmul.f32 %v832, %v839
      %v842 = vmul.f32 %v833, %v839
      %v843 = vmul.f32 %v834, %v839
      %v844 = vmul.f32 %v835, %v839
      %v845 = vmul.f32 %v836, %v839
      %v846 = vmul.f32 %v837, %v839
      %v847 = vmul.f32 %v838, %v839
      %v848 = vadd.f32 %v823, %v840
      %v849 = vadd.f32 %v824, %v841
      %v850 = vadd.f32 %v825, %v842
      %v851 = vadd.f32 %v826, %v843
      %v852 = vadd.f32 %v827, %v844
      %v853 = vadd.f32 %v828, %v845
      %v854 = vadd.f32 %v829, %v846
      %v855 = vadd.f32 %v830, %v847
      %v856 = vld [vmem:[%s705 + $0x6] sm:$0xff]
      %v857 = vld [vmem:[%s705 + $0x16] sm:$0xff]
      %v858 = vld [vmem:[%s705 + $0x26] sm:$0xff]
      %v859 = vld [vmem:[%s705 + $0x36] sm:$0xff]
      %v860 = vld [vmem:[%s705 + $0x46] sm:$0xff]
      %v861 = vld [vmem:[%s705 + $0x56] sm:$0xff]
      %v862 = vld [vmem:[%s705 + $0x66] sm:$0xff]
      %v863 = vld [vmem:[%s705 + $0x76] sm:$0xff]
      %v864 = vperm.slane %v174, 6
      %v865 = vmul.f32 %v856, %v864
      %v866 = vmul.f32 %v857, %v864
      %v867 = vmul.f32 %v858, %v864
      %v868 = vmul.f32 %v859, %v864
      %v869 = vmul.f32 %v860, %v864
      %v870 = vmul.f32 %v861, %v864
      %v871 = vmul.f32 %v862, %v864
      %v872 = vmul.f32 %v863, %v864
      %v873 = vadd.f32 %v848, %v865
      %v874 = vadd.f32 %v849, %v866
      %v875 = vadd.f32 %v850, %v867
      %v876 = vadd.f32 %v851, %v868
      %v877 = vadd.f32 %v852, %v869
      %v878 = vadd.f32 %v853, %v870
      %v879 = vadd.f32 %v854, %v871
      %v880 = vadd.f32 %v855, %v872
      %s881 = scalar_lea.vmem %s165, 64
      %v882 = vld [vmem:[%s881] sm:$0xff]
      %v883 = vld [vmem:[%s881 + $0x10] sm:$0xff]
      %v884 = vld [vmem:[%s881 + $0x20] sm:$0xff]
      %v885 = vld [vmem:[%s881 + $0x30] sm:$0xff]
      %v886 = vld [vmem:[%s881 + $0x40] sm:$0xff]
      %v887 = vld [vmem:[%s881 + $0x50] sm:$0xff]
      %v888 = vld [vmem:[%s881 + $0x60] sm:$0xff]
      %v889 = vld [vmem:[%s881 + $0x70] sm:$0xff]
      %v890 = vperm.slane %v175, 0
      %v891 = vmul.f32 %v882, %v890
      %v892 = vmul.f32 %v883, %v890
      %v893 = vmul.f32 %v884, %v890
      %v894 = vmul.f32 %v885, %v890
      %v895 = vmul.f32 %v886, %v890
      %v896 = vmul.f32 %v887, %v890
      %v897 = vmul.f32 %v888, %v890
      %v898 = vmul.f32 %v889, %v890
      %v899 = vadd.f32 %v873, %v891
      %v900 = vadd.f32 %v874, %v892
      %v901 = vadd.f32 %v875, %v893
      %v902 = vadd.f32 %v876, %v894
      %v903 = vadd.f32 %v877, %v895
      %v904 = vadd.f32 %v878, %v896
      %v905 = vadd.f32 %v879, %v897
      %v906 = vadd.f32 %v880, %v898
      %v907 = vld [vmem:[%s881 + $0x1] sm:$0xff]
      %v908 = vld [vmem:[%s881 + $0x11] sm:$0xff]
      %v909 = vld [vmem:[%s881 + $0x21] sm:$0xff]
      %v910 = vld [vmem:[%s881 + $0x31] sm:$0xff]
      %v911 = vld [vmem:[%s881 + $0x41] sm:$0xff]
      %v912 = vld [vmem:[%s881 + $0x51] sm:$0xff]
      %v913 = vld [vmem:[%s881 + $0x61] sm:$0xff]
      %v914 = vld [vmem:[%s881 + $0x71] sm:$0xff]
      %v915 = vperm.slane %v175, 1
      %v916 = vmul.f32 %v907, %v915
      %v917 = vmul.f32 %v908, %v915
      %v918 = vmul.f32 %v909, %v915
      %v919 = vmul.f32 %v910, %v915
      %v920 = vmul.f32 %v911, %v915
      %v921 = vmul.f32 %v912, %v915
      %v922 = vmul.f32 %v913, %v915
      %v923 = vmul.f32 %v914, %v915
      %v924 = vadd.f32 %v899, %v916
      %v925 = vadd.f32 %v900, %v917
      %v926 = vadd.f32 %v901, %v918
      %v927 = vadd.f32 %v902, %v919
      %v928 = vadd.f32 %v903, %v920
      %v929 = vadd.f32 %v904, %v921
      %v930 = vadd.f32 %v905, %v922
      %v931 = vadd.f32 %v906, %v923
      %v932 = vld [vmem:[%s881 + $0x2] sm:$0xff]
      %v933 = vld [vmem:[%s881 + $0x12] sm:$0xff]
      %v934 = vld [vmem:[%s881 + $0x22] sm:$0xff]
      %v935 = vld [vmem:[%s881 + $0x32] sm:$0xff]
      %v936 = vld [vmem:[%s881 + $0x42] sm:$0xff]
      %v937 = vld [vmem:[%s881 + $0x52] sm:$0xff]
      %v938 = vld [vmem:[%s881 + $0x62] sm:$0xff]
      %v939 = vld [vmem:[%s881 + $0x72] sm:$0xff]
      %v940 = vperm.slane %v175, 2
      %v941 = vmul.f32 %v932, %v940
      %v942 = vmul.f32 %v933, %v940
      %v943 = vmul.f32 %v934, %v940
      %v944 = vmul.f32 %v935, %v940
      %v945 = vmul.f32 %v936, %v940
      %v946 = vmul.f32 %v937, %v940
      %v947 = vmul.f32 %v938, %v940
      %v948 = vmul.f32 %v939, %v940
      %v949 = vadd.f32 %v924, %v941
      %v950 = vadd.f32 %v925, %v942
      %v951 = vadd.f32 %v926, %v943
      %v952 = vadd.f32 %v927, %v944
      %v953 = vadd.f32 %v928, %v945
      %v954 = vadd.f32 %v929, %v946
      %v955 = vadd.f32 %v930, %v947
      %v956 = vadd.f32 %v931, %v948
      %v957 = vld [vmem:[%s881 + $0x3] sm:$0xff]
      %v958 = vld [vmem:[%s881 + $0x13] sm:$0xff]
      %v959 = vld [vmem:[%s881 + $0x23] sm:$0xff]
      %v960 = vld [vmem:[%s881 + $0x33] sm:$0xff]
      %v961 = vld [vmem:[%s881 + $0x43] sm:$0xff]
      %v962 = vld [vmem:[%s881 + $0x53] sm:$0xff]
      %v963 = vld [vmem:[%s881 + $0x63] sm:$0xff]
      %v964 = vld [vmem:[%s881 + $0x73] sm:$0xff]
      %v965 = vperm.slane %v175, 3
      %v966 = vmul.f32 %v957, %v965
      %v967 = vmul.f32 %v958, %v965
      %v968 = vmul.f32 %v959, %v965
      %v969 = vmul.f32 %v960, %v965
      %v970 = vmul.f32 %v961, %v965
      %v971 = vmul.f32 %v962, %v965
      %v972 = vmul.f32 %v963, %v965
      %v973 = vmul.f32 %v964, %v965
      %v974 = vadd.f32 %v949, %v966
      %v975 = vadd.f32 %v950, %v967
      %v976 = vadd.f32 %v951, %v968
      %v977 = vadd.f32 %v952, %v969
      %v978 = vadd.f32 %v953, %v970
      %v979 = vadd.f32 %v954, %v971
      %v980 = vadd.f32 %v955, %v972
      %v981 = vadd.f32 %v956, %v973
      %v982 = vld [vmem:[%s881 + $0x4] sm:$0xff]
      %v983 = vld [vmem:[%s881 + $0x14] sm:$0xff]
      %v984 = vld [vmem:[%s881 + $0x24] sm:$0xff]
      %v985 = vld [vmem:[%s881 + $0x34] sm:$0xff]
      %v986 = vld [vmem:[%s881 + $0x44] sm:$0xff]
      %v987 = vld [vmem:[%s881 + $0x54] sm:$0xff]
      %v988 = vld [vmem:[%s881 + $0x64] sm:$0xff]
      %v989 = vld [vmem:[%s881 + $0x74] sm:$0xff]
      %v990 = vperm.slane %v175, 4
      %v991 = vmul.f32 %v982, %v990
      %v992 = vmul.f32 %v983, %v990
      %v993 = vmul.f32 %v984, %v990
      %v994 = vmul.f32 %v985, %v990
      %v995 = vmul.f32 %v986, %v990
      %v996 = vmul.f32 %v987, %v990
      %v997 = vmul.f32 %v988, %v990
      %v998 = vmul.f32 %v989, %v990
      %v999 = vadd.f32 %v974, %v991
      %v1000 = vadd.f32 %v975, %v992
      %v1001 = vadd.f32 %v976, %v993
      %v1002 = vadd.f32 %v977, %v994
      %v1003 = vadd.f32 %v978, %v995
      %v1004 = vadd.f32 %v979, %v996
      %v1005 = vadd.f32 %v980, %v997
      %v1006 = vadd.f32 %v981, %v998
      %v1007 = vld [vmem:[%s881 + $0x5] sm:$0xff]
      %v1008 = vld [vmem:[%s881 + $0x15] sm:$0xff]
      %v1009 = vld [vmem:[%s881 + $0x25] sm:$0xff]
      %v1010 = vld [vmem:[%s881 + $0x35] sm:$0xff]
      %v1011 = vld [vmem:[%s881 + $0x45] sm:$0xff]
      %v1012 = vld [vmem:[%s881 + $0x55] sm:$0xff]
      %v1013 = vld [vmem:[%s881 + $0x65] sm:$0xff]
      %v1014 = vld [vmem:[%s881 + $0x75] sm:$0xff]
      %v1015 = vperm.slane %v175, 5
      %v1016 = vmul.f32 %v1007, %v1015
      %v1017 = vmul.f32 %v1008, %v1015
      %v1018 = vmul.f32 %v1009, %v1015
      %v1019 = vmul.f32 %v1010, %v1015
      %v1020 = vmul.f32 %v1011, %v1015
      %v1021 = vmul.f32 %v1012, %v1015
      %v1022 = vmul.f32 %v1013, %v1015
      %v1023 = vmul.f32 %v1014, %v1015
      %v1024 = vadd.f32 %v999, %v1016
      %v1025 = vadd.f32 %v1000, %v1017
      %v1026 = vadd.f32 %v1001, %v1018
      %v1027 = vadd.f32 %v1002, %v1019
      %v1028 = vadd.f32 %v1003, %v1020
      %v1029 = vadd.f32 %v1004, %v1021
      %v1030 = vadd.f32 %v1005, %v1022
      %v1031 = vadd.f32 %v1006, %v1023
      %v1032 = vld [vmem:[%s881 + $0x6] sm:$0xff]
      %v1033 = vld [vmem:[%s881 + $0x16] sm:$0xff]
      %v1034 = vld [vmem:[%s881 + $0x26] sm:$0xff]
      %v1035 = vld [vmem:[%s881 + $0x36] sm:$0xff]
      %v1036 = vld [vmem:[%s881 + $0x46] sm:$0xff]
      %v1037 = vld [vmem:[%s881 + $0x56] sm:$0xff]
      %v1038 = vld [vmem:[%s881 + $0x66] sm:$0xff]
      %v1039 = vld [vmem:[%s881 + $0x76] sm:$0xff]
      %v1040 = vperm.slane %v175, 6
      %v1041 = vmul.f32 %v1032, %v1040
      %v1042 = vmul.f32 %v1033, %v1040
      %v1043 = vmul.f32 %v1034, %v1040
      %v1044 = vmul.f32 %v1035, %v1040
      %v1045 = vmul.f32 %v1036, %v1040
      %v1046 = vmul.f32 %v1037, %v1040
      %v1047 = vmul.f32 %v1038, %v1040
      %v1048 = vmul.f32 %v1039, %v1040
      %v1049 = vadd.f32 %v1024, %v1041
      %v1050 = vadd.f32 %v1025, %v1042
      %v1051 = vadd.f32 %v1026, %v1043
      %v1052 = vadd.f32 %v1027, %v1044
      %v1053 = vadd.f32 %v1028, %v1045
      %v1054 = vadd.f32 %v1029, %v1046
      %v1055 = vadd.f32 %v1030, %v1047
      %v1056 = vadd.f32 %v1031, %v1048
      %s1057 = scalar_lea.vmem %s165, 80
      %v1058 = vld [vmem:[%s1057] sm:$0xff]
      %v1059 = vld [vmem:[%s1057 + $0x10] sm:$0xff]
      %v1060 = vld [vmem:[%s1057 + $0x20] sm:$0xff]
      %v1061 = vld [vmem:[%s1057 + $0x30] sm:$0xff]
      %v1062 = vld [vmem:[%s1057 + $0x40] sm:$0xff]
      %v1063 = vld [vmem:[%s1057 + $0x50] sm:$0xff]
      %v1064 = vld [vmem:[%s1057 + $0x60] sm:$0xff]
      %v1065 = vld [vmem:[%s1057 + $0x70] sm:$0xff]
      %v1066 = vperm.slane %v176, 0
      %v1067 = vmul.f32 %v1058, %v1066
      %v1068 = vmul.f32 %v1059, %v1066
      %v1069 = vmul.f32 %v1060, %v1066
      %v1070 = vmul.f32 %v1061, %v1066
      %v1071 = vmul.f32 %v1062, %v1066
      %v1072 = vmul.f32 %v1063, %v1066
      %v1073 = vmul.f32 %v1064, %v1066
      %v1074 = vmul.f32 %v1065, %v1066
      %v1075 = vadd.f32 %v1049, %v1067
      %v1076 = vadd.f32 %v1050, %v1068
      %v1077 = vadd.f32 %v1051, %v1069
      %v1078 = vadd.f32 %v1052, %v1070
      %v1079 = vadd.f32 %v1053, %v1071
      %v1080 = vadd.f32 %v1054, %v1072
      %v1081 = vadd.f32 %v1055, %v1073
      %v1082 = vadd.f32 %v1056, %v1074
      %v1083 = vld [vmem:[%s1057 + $0x1] sm:$0xff]
      %v1084 = vld [vmem:[%s1057 + $0x11] sm:$0xff]
      %v1085 = vld [vmem:[%s1057 + $0x21] sm:$0xff]
      %v1086 = vld [vmem:[%s1057 + $0x31] sm:$0xff]
      %v1087 = vld [vmem:[%s1057 + $0x41] sm:$0xff]
      %v1088 = vld [vmem:[%s1057 + $0x51] sm:$0xff]
      %v1089 = vld [vmem:[%s1057 + $0x61] sm:$0xff]
      %v1090 = vld [vmem:[%s1057 + $0x71] sm:$0xff]
      %v1091 = vperm.slane %v176, 1
      %v1092 = vmul.f32 %v1083, %v1091
      %v1093 = vmul.f32 %v1084, %v1091
      %v1094 = vmul.f32 %v1085, %v1091
      %v1095 = vmul.f32 %v1086, %v1091
      %v1096 = vmul.f32 %v1087, %v1091
      %v1097 = vmul.f32 %v1088, %v1091
      %v1098 = vmul.f32 %v1089, %v1091
      %v1099 = vmul.f32 %v1090, %v1091
      %v1100 = vadd.f32 %v1075, %v1092
      %v1101 = vadd.f32 %v1076, %v1093
      %v1102 = vadd.f32 %v1077, %v1094
      %v1103 = vadd.f32 %v1078, %v1095
      %v1104 = vadd.f32 %v1079, %v1096
      %v1105 = vadd.f32 %v1080, %v1097
      %v1106 = vadd.f32 %v1081, %v1098
      %v1107 = vadd.f32 %v1082, %v1099
      %v1108 = vld [vmem:[%s1057 + $0x2] sm:$0xff]
      %v1109 = vld [vmem:[%s1057 + $0x12] sm:$0xff]
      %v1110 = vld [vmem:[%s1057 + $0x22] sm:$0xff]
      %v1111 = vld [vmem:[%s1057 + $0x32] sm:$0xff]
      %v1112 = vld [vmem:[%s1057 + $0x42] sm:$0xff]
      %v1113 = vld [vmem:[%s1057 + $0x52] sm:$0xff]
      %v1114 = vld [vmem:[%s1057 + $0x62] sm:$0xff]
      %v1115 = vld [vmem:[%s1057 + $0x72] sm:$0xff]
      %v1116 = vperm.slane %v176, 2
      %v1117 = vmul.f32 %v1108, %v1116
      %v1118 = vmul.f32 %v1109, %v1116
      %v1119 = vmul.f32 %v1110, %v1116
      %v1120 = vmul.f32 %v1111, %v1116
      %v1121 = vmul.f32 %v1112, %v1116
      %v1122 = vmul.f32 %v1113, %v1116
      %v1123 = vmul.f32 %v1114, %v1116
      %v1124 = vmul.f32 %v1115, %v1116
      %v1125 = vadd.f32 %v1100, %v1117
      %v1126 = vadd.f32 %v1101, %v1118
      %v1127 = vadd.f32 %v1102, %v1119
      %v1128 = vadd.f32 %v1103, %v1120
      %v1129 = vadd.f32 %v1104, %v1121
      %v1130 = vadd.f32 %v1105, %v1122
      %v1131 = vadd.f32 %v1106, %v1123
      %v1132 = vadd.f32 %v1107, %v1124
      %v1133 = vld [vmem:[%s1057 + $0x3] sm:$0xff]
      %v1134 = vld [vmem:[%s1057 + $0x13] sm:$0xff]
      %v1135 = vld [vmem:[%s1057 + $0x23] sm:$0xff]
      %v1136 = vld [vmem:[%s1057 + $0x33] sm:$0xff]
      %v1137 = vld [vmem:[%s1057 + $0x43] sm:$0xff]
      %v1138 = vld [vmem:[%s1057 + $0x53] sm:$0xff]
      %v1139 = vld [vmem:[%s1057 + $0x63] sm:$0xff]
      %v1140 = vld [vmem:[%s1057 + $0x73] sm:$0xff]
      %v1141 = vperm.slane %v176, 3
      %v1142 = vmul.f32 %v1133, %v1141
      %v1143 = vmul.f32 %v1134, %v1141
      %v1144 = vmul.f32 %v1135, %v1141
      %v1145 = vmul.f32 %v1136, %v1141
      %v1146 = vmul.f32 %v1137, %v1141
      %v1147 = vmul.f32 %v1138, %v1141
      %v1148 = vmul.f32 %v1139, %v1141
      %v1149 = vmul.f32 %v1140, %v1141
      %v1150 = vadd.f32 %v1125, %v1142
      %v1151 = vadd.f32 %v1126, %v1143
      %v1152 = vadd.f32 %v1127, %v1144
      %v1153 = vadd.f32 %v1128, %v1145
      %v1154 = vadd.f32 %v1129, %v1146
      %v1155 = vadd.f32 %v1130, %v1147
      %v1156 = vadd.f32 %v1131, %v1148
      %v1157 = vadd.f32 %v1132, %v1149
      %v1158 = vld [vmem:[%s1057 + $0x4] sm:$0xff]
      %v1159 = vld [vmem:[%s1057 + $0x14] sm:$0xff]
      %v1160 = vld [vmem:[%s1057 + $0x24] sm:$0xff]
      %v1161 = vld [vmem:[%s1057 + $0x34] sm:$0xff]
      %v1162 = vld [vmem:[%s1057 + $0x44] sm:$0xff]
      %v1163 = vld [vmem:[%s1057 + $0x54] sm:$0xff]
      %v1164 = vld [vmem:[%s1057 + $0x64] sm:$0xff]
      %v1165 = vld [vmem:[%s1057 + $0x74] sm:$0xff]
      %v1166 = vperm.slane %v176, 4
      %v1167 = vmul.f32 %v1158, %v1166
      %v1168 = vmul.f32 %v1159, %v1166
      %v1169 = vmul.f32 %v1160, %v1166
      %v1170 = vmul.f32 %v1161, %v1166
      %v1171 = vmul.f32 %v1162, %v1166
      %v1172 = vmul.f32 %v1163, %v1166
      %v1173 = vmul.f32 %v1164, %v1166
      %v1174 = vmul.f32 %v1165, %v1166
      %v1175 = vadd.f32 %v1150, %v1167
      %v1176 = vadd.f32 %v1151, %v1168
      %v1177 = vadd.f32 %v1152, %v1169
      %v1178 = vadd.f32 %v1153, %v1170
      %v1179 = vadd.f32 %v1154, %v1171
      %v1180 = vadd.f32 %v1155, %v1172
      %v1181 = vadd.f32 %v1156, %v1173
      %v1182 = vadd.f32 %v1157, %v1174
      %v1183 = vld [vmem:[%s1057 + $0x5] sm:$0xff]
      %v1184 = vld [vmem:[%s1057 + $0x15] sm:$0xff]
      %v1185 = vld [vmem:[%s1057 + $0x25] sm:$0xff]
      %v1186 = vld [vmem:[%s1057 + $0x35] sm:$0xff]
      %v1187 = vld [vmem:[%s1057 + $0x45] sm:$0xff]
      %v1188 = vld [vmem:[%s1057 + $0x55] sm:$0xff]
      %v1189 = vld [vmem:[%s1057 + $0x65] sm:$0xff]
      %v1190 = vld [vmem:[%s1057 + $0x75] sm:$0xff]
      %v1191 = vperm.slane %v176, 5
      %v1192 = vmul.f32 %v1183, %v1191
      %v1193 = vmul.f32 %v1184, %v1191
      %v1194 = vmul.f32 %v1185, %v1191
      %v1195 = vmul.f32 %v1186, %v1191
      %v1196 = vmul.f32 %v1187, %v1191
      %v1197 = vmul.f32 %v1188, %v1191
      %v1198 = vmul.f32 %v1189, %v1191
      %v1199 = vmul.f32 %v1190, %v1191
      %v1200 = vadd.f32 %v1175, %v1192
      %v1201 = vadd.f32 %v1176, %v1193
      %v1202 = vadd.f32 %v1177, %v1194
      %v1203 = vadd.f32 %v1178, %v1195
      %v1204 = vadd.f32 %v1179, %v1196
      %v1205 = vadd.f32 %v1180, %v1197
      %v1206 = vadd.f32 %v1181, %v1198
      %v1207 = vadd.f32 %v1182, %v1199
      %v1208 = vld [vmem:[%s1057 + $0x6] sm:$0xff]
      %v1209 = vld [vmem:[%s1057 + $0x16] sm:$0xff]
      %v1210 = vld [vmem:[%s1057 + $0x26] sm:$0xff]
      %v1211 = vld [vmem:[%s1057 + $0x36] sm:$0xff]
      %v1212 = vld [vmem:[%s1057 + $0x46] sm:$0xff]
      %v1213 = vld [vmem:[%s1057 + $0x56] sm:$0xff]
      %v1214 = vld [vmem:[%s1057 + $0x66] sm:$0xff]
      %v1215 = vld [vmem:[%s1057 + $0x76] sm:$0xff]
      %v1216 = vperm.slane %v176, 6
      %v1217 = vmul.f32 %v1208, %v1216
      %v1218 = vmul.f32 %v1209, %v1216
      %v1219 = vmul.f32 %v1210, %v1216
      %v1220 = vmul.f32 %v1211, %v1216
      %v1221 = vmul.f32 %v1212, %v1216
      %v1222 = vmul.f32 %v1213, %v1216
      %v1223 = vmul.f32 %v1214, %v1216
      %v1224 = vmul.f32 %v1215, %v1216
      %v1225 = vadd.f32 %v1200, %v1217
      %v1226 = vadd.f32 %v1201, %v1218
      %v1227 = vadd.f32 %v1202, %v1219
      %v1228 = vadd.f32 %v1203, %v1220
      %v1229 = vadd.f32 %v1204, %v1221
      %v1230 = vadd.f32 %v1205, %v1222
      %v1231 = vadd.f32 %v1206, %v1223
      %v1232 = vadd.f32 %v1207, %v1224
      %s1233 = scalar_lea.vmem %s165, 96
      %v1234 = vld [vmem:[%s1233] sm:$0xff]
      %v1235 = vld [vmem:[%s1233 + $0x10] sm:$0xff]
      %v1236 = vld [vmem:[%s1233 + $0x20] sm:$0xff]
      %v1237 = vld [vmem:[%s1233 + $0x30] sm:$0xff]
      %v1238 = vld [vmem:[%s1233 + $0x40] sm:$0xff]
      %v1239 = vld [vmem:[%s1233 + $0x50] sm:$0xff]
      %v1240 = vld [vmem:[%s1233 + $0x60] sm:$0xff]
      %v1241 = vld [vmem:[%s1233 + $0x70] sm:$0xff]
      %v1242 = vperm.slane %v177, 0
      %v1243 = vmul.f32 %v1234, %v1242
      %v1244 = vmul.f32 %v1235, %v1242
      %v1245 = vmul.f32 %v1236, %v1242
      %v1246 = vmul.f32 %v1237, %v1242
      %v1247 = vmul.f32 %v1238, %v1242
      %v1248 = vmul.f32 %v1239, %v1242
      %v1249 = vmul.f32 %v1240, %v1242
      %v1250 = vmul.f32 %v1241, %v1242
      %v1251 = vadd.f32 %v1225, %v1243
      %v1252 = vadd.f32 %v1226, %v1244
      %v1253 = vadd.f32 %v1227, %v1245
      %v1254 = vadd.f32 %v1228, %v1246
      %v1255 = vadd.f32 %v1229, %v1247
      %v1256 = vadd.f32 %v1230, %v1248
      %v1257 = vadd.f32 %v1231, %v1249
      %v1258 = vadd.f32 %v1232, %v1250
      %v1259 = vld [vmem:[%s1233 + $0x1] sm:$0xff]
      %v1260 = vld [vmem:[%s1233 + $0x11] sm:$0xff]
      %v1261 = vld [vmem:[%s1233 + $0x21] sm:$0xff]
      %v1262 = vld [vmem:[%s1233 + $0x31] sm:$0xff]
      %v1263 = vld [vmem:[%s1233 + $0x41] sm:$0xff]
      %v1264 = vld [vmem:[%s1233 + $0x51] sm:$0xff]
      %v1265 = vld [vmem:[%s1233 + $0x61] sm:$0xff]
      %v1266 = vld [vmem:[%s1233 + $0x71] sm:$0xff]
      %v1267 = vperm.slane %v177, 1
      %v1268 = vmul.f32 %v1259, %v1267
      %v1269 = vmul.f32 %v1260, %v1267
      %v1270 = vmul.f32 %v1261, %v1267
      %v1271 = vmul.f32 %v1262, %v1267
      %v1272 = vmul.f32 %v1263, %v1267
      %v1273 = vmul.f32 %v1264, %v1267
      %v1274 = vmul.f32 %v1265, %v1267
      %v1275 = vmul.f32 %v1266, %v1267
      %v1276 = vadd.f32 %v1251, %v1268
      %v1277 = vadd.f32 %v1252, %v1269
      %v1278 = vadd.f32 %v1253, %v1270
      %v1279 = vadd.f32 %v1254, %v1271
      %v1280 = vadd.f32 %v1255, %v1272
      %v1281 = vadd.f32 %v1256, %v1273
      %v1282 = vadd.f32 %v1257, %v1274
      %v1283 = vadd.f32 %v1258, %v1275
      %v1284 = vld [vmem:[%s1233 + $0x2] sm:$0xff]
      %v1285 = vld [vmem:[%s1233 + $0x12] sm:$0xff]
      %v1286 = vld [vmem:[%s1233 + $0x22] sm:$0xff]
      %v1287 = vld [vmem:[%s1233 + $0x32] sm:$0xff]
      %v1288 = vld [vmem:[%s1233 + $0x42] sm:$0xff]
      %v1289 = vld [vmem:[%s1233 + $0x52] sm:$0xff]
      %v1290 = vld [vmem:[%s1233 + $0x62] sm:$0xff]
      %v1291 = vld [vmem:[%s1233 + $0x72] sm:$0xff]
      %v1292 = vperm.slane %v177, 2
      %v1293 = vmul.f32 %v1284, %v1292
      %v1294 = vmul.f32 %v1285, %v1292
      %v1295 = vmul.f32 %v1286, %v1292
      %v1296 = vmul.f32 %v1287, %v1292
      %v1297 = vmul.f32 %v1288, %v1292
      %v1298 = vmul.f32 %v1289, %v1292
      %v1299 = vmul.f32 %v1290, %v1292
      %v1300 = vmul.f32 %v1291, %v1292
      %v1301 = vadd.f32 %v1276, %v1293
      %v1302 = vadd.f32 %v1277, %v1294
      %v1303 = vadd.f32 %v1278, %v1295
      %v1304 = vadd.f32 %v1279, %v1296
      %v1305 = vadd.f32 %v1280, %v1297
      %v1306 = vadd.f32 %v1281, %v1298
      %v1307 = vadd.f32 %v1282, %v1299
      %v1308 = vadd.f32 %v1283, %v1300
      %v1309 = vld [vmem:[%s1233 + $0x3] sm:$0xff]
      %v1310 = vld [vmem:[%s1233 + $0x13] sm:$0xff]
      %v1311 = vld [vmem:[%s1233 + $0x23] sm:$0xff]
      %v1312 = vld [vmem:[%s1233 + $0x33] sm:$0xff]
      %v1313 = vld [vmem:[%s1233 + $0x43] sm:$0xff]
      %v1314 = vld [vmem:[%s1233 + $0x53] sm:$0xff]
      %v1315 = vld [vmem:[%s1233 + $0x63] sm:$0xff]
      %v1316 = vld [vmem:[%s1233 + $0x73] sm:$0xff]
      %v1317 = vperm.slane %v177, 3
      %v1318 = vmul.f32 %v1309, %v1317
      %v1319 = vmul.f32 %v1310, %v1317
      %v1320 = vmul.f32 %v1311, %v1317
      %v1321 = vmul.f32 %v1312, %v1317
      %v1322 = vmul.f32 %v1313, %v1317
      %v1323 = vmul.f32 %v1314, %v1317
      %v1324 = vmul.f32 %v1315, %v1317
      %v1325 = vmul.f32 %v1316, %v1317
      %v1326 = vadd.f32 %v1301, %v1318
      %v1327 = vadd.f32 %v1302, %v1319
      %v1328 = vadd.f32 %v1303, %v1320
      %v1329 = vadd.f32 %v1304, %v1321
      %v1330 = vadd.f32 %v1305, %v1322
      %v1331 = vadd.f32 %v1306, %v1323
      %v1332 = vadd.f32 %v1307, %v1324
      %v1333 = vadd.f32 %v1308, %v1325
      %v1334 = vld [vmem:[%s1233 + $0x4] sm:$0xff]
      %v1335 = vld [vmem:[%s1233 + $0x14] sm:$0xff]
      %v1336 = vld [vmem:[%s1233 + $0x24] sm:$0xff]
      %v1337 = vld [vmem:[%s1233 + $0x34] sm:$0xff]
      %v1338 = vld [vmem:[%s1233 + $0x44] sm:$0xff]
      %v1339 = vld [vmem:[%s1233 + $0x54] sm:$0xff]
      %v1340 = vld [vmem:[%s1233 + $0x64] sm:$0xff]
      %v1341 = vld [vmem:[%s1233 + $0x74] sm:$0xff]
      %v1342 = vperm.slane %v177, 4
      %v1343 = vmul.f32 %v1334, %v1342
      %v1344 = vmul.f32 %v1335, %v1342
      %v1345 = vmul.f32 %v1336, %v1342
      %v1346 = vmul.f32 %v1337, %v1342
      %v1347 = vmul.f32 %v1338, %v1342
      %v1348 = vmul.f32 %v1339, %v1342
      %v1349 = vmul.f32 %v1340, %v1342
      %v1350 = vmul.f32 %v1341, %v1342
      %v1351 = vadd.f32 %v1326, %v1343
      %v1352 = vadd.f32 %v1327, %v1344
      %v1353 = vadd.f32 %v1328, %v1345
      %v1354 = vadd.f32 %v1329, %v1346
      %v1355 = vadd.f32 %v1330, %v1347
      %v1356 = vadd.f32 %v1331, %v1348
      %v1357 = vadd.f32 %v1332, %v1349
      %v1358 = vadd.f32 %v1333, %v1350
      %v1359 = vld [vmem:[%s1233 + $0x5] sm:$0xff]
      %v1360 = vld [vmem:[%s1233 + $0x15] sm:$0xff]
      %v1361 = vld [vmem:[%s1233 + $0x25] sm:$0xff]
      %v1362 = vld [vmem:[%s1233 + $0x35] sm:$0xff]
      %v1363 = vld [vmem:[%s1233 + $0x45] sm:$0xff]
      %v1364 = vld [vmem:[%s1233 + $0x55] sm:$0xff]
      %v1365 = vld [vmem:[%s1233 + $0x65] sm:$0xff]
      %v1366 = vld [vmem:[%s1233 + $0x75] sm:$0xff]
      %v1367 = vperm.slane %v177, 5
      %v1368 = vmul.f32 %v1359, %v1367
      %v1369 = vmul.f32 %v1360, %v1367
      %v1370 = vmul.f32 %v1361, %v1367
      %v1371 = vmul.f32 %v1362, %v1367
      %v1372 = vmul.f32 %v1363, %v1367
      %v1373 = vmul.f32 %v1364, %v1367
      %v1374 = vmul.f32 %v1365, %v1367
      %v1375 = vmul.f32 %v1366, %v1367
      %v1376 = vadd.f32 %v1351, %v1368
      %v1377 = vadd.f32 %v1352, %v1369
      %v1378 = vadd.f32 %v1353, %v1370
      %v1379 = vadd.f32 %v1354, %v1371
      %v1380 = vadd.f32 %v1355, %v1372
      %v1381 = vadd.f32 %v1356, %v1373
      %v1382 = vadd.f32 %v1357, %v1374
      %v1383 = vadd.f32 %v1358, %v1375
      %v1384 = vld [vmem:[%s1233 + $0x6] sm:$0xff]
      %v1385 = vld [vmem:[%s1233 + $0x16] sm:$0xff]
      %v1386 = vld [vmem:[%s1233 + $0x26] sm:$0xff]
      %v1387 = vld [vmem:[%s1233 + $0x36] sm:$0xff]
      %v1388 = vld [vmem:[%s1233 + $0x46] sm:$0xff]
      %v1389 = vld [vmem:[%s1233 + $0x56] sm:$0xff]
      %v1390 = vld [vmem:[%s1233 + $0x66] sm:$0xff]
      %v1391 = vld [vmem:[%s1233 + $0x76] sm:$0xff]
      %v1392 = vperm.slane %v177, 6
      %v1393 = vmul.f32 %v1384, %v1392
      %v1394 = vmul.f32 %v1385, %v1392
      %v1395 = vmul.f32 %v1386, %v1392
      %v1396 = vmul.f32 %v1387, %v1392
      %v1397 = vmul.f32 %v1388, %v1392
      %v1398 = vmul.f32 %v1389, %v1392
      %v1399 = vmul.f32 %v1390, %v1392
      %v1400 = vmul.f32 %v1391, %v1392
      %v1401 = vadd.f32 %v1376, %v1393
      %v1402 = vadd.f32 %v1377, %v1394
      %v1403 = vadd.f32 %v1378, %v1395
      %v1404 = vadd.f32 %v1379, %v1396
      %v1405 = vadd.f32 %v1380, %v1397
      %v1406 = vadd.f32 %v1381, %v1398
      %v1407 = vadd.f32 %v1382, %v1399
      %v1408 = vadd.f32 %v1383, %v1400
      %v1409 = vld [vmem:[%s2] sm:$0x1]
      %v1411 = vperm.slane %v1409, 0
      %v1413 = vadd.f32 %v1401, %v1411
      %v1414 = vadd.f32 %v1402, %v1411
      %v1415 = vadd.f32 %v1403, %v1411
      %v1416 = vadd.f32 %v1404, %v1411
      %v1417 = vadd.f32 %v1405, %v1411
      %v1418 = vadd.f32 %v1406, %v1411
      %v1419 = vadd.f32 %v1407, %v1411
      %v1420 = vadd.f32 %v1408, %v1411
      %vm1421 = vcmask 261120
      %1422 = vst.msk [vmem:[%s170] sm:$0xff] %vm1421, %v1413
      %1423 = vst.msk [vmem:[%s170 + $0x8] sm:$0xff] %vm1421, %v1414
      %1424 = vst.msk [vmem:[%s170 + $0x10] sm:$0xff] %vm1421, %v1415
      %1425 = vst.msk [vmem:[%s170 + $0x18] sm:$0xff] %vm1421, %v1416
      %1426 = vst.msk [vmem:[%s170 + $0x20] sm:$0xff] %vm1421, %v1417
      %1427 = vst.msk [vmem:[%s170 + $0x28] sm:$0xff] %vm1421, %v1418
      %1428 = vst.msk [vmem:[%s170 + $0x30] sm:$0xff] %vm1421, %v1419
      %1429 = vst.msk [vmem:[%s170 + $0x38] sm:$0xff] %vm1421, %v1420
      %p1430 = scmp.lt.s32.totalorder %s14, 1
      %s1431 = scalar_select %p1430, %s14, 1
      %s1432 = smul.addr %s1431, 8
      %s1433 = smul.addr %s1432, 8
      %s1434 = scalar_lea.vmem %s3, %s1433
      // Predicated region
      $region33: #{forward.15} parent=31 // pred_check
        %p1435 = pneg %p100
      $region34: #{forward.15} parent=31 // pred_check_branch
        %1437 = sbr.rel (%p1435) target = $region36
      $region35: #{forward.15} parent=31 // pred_region
        _
      $region36: #{forward.15} parent=31 // pred_fallthru
        _
    $region32: #{forward.15} parent=5 // pred_fallthru
      _
    %p1438 = scmp.le.s32.totalorder 2, %s9
    // Predicated region
    $region37: #{forward.15} parent=5 // pred_check
      %p1439 = pneg %p1438
    $region38: #{forward.15} parent=5 // pred_check_branch
      %1441 = sbr.rel (%p1439) target = $region40
    $region39: #{forward.15} parent=5 // pred_region
      %s1442 = ssub.s32 %s9, 2
      // Predicated region
      $region41: #{forward.15} parent=39 // pred_check
        %p1443 = pneg %p106
      $region42: #{forward.15} parent=39 // pred_check_branch
        %1445 = sbr.rel (%p1443) target = $region44
      $region43: #{forward.15} parent=39 // pred_region
        %p1446 = scmp.lt.s32.totalorder %s15, 1
        %s1447 = scalar_select %p1446, %s15, 1
        %s1448 = smul.addr %s1447, 8
        %s1449 = smul.addr %s1448, 8
        %s1450 = scalar_lea.vmem %s3, %s1449
      $region44: #{forward.15} parent=39 // pred_fallthru
        _
    $region40: #{forward.15} parent=5 // pred_fallthru
      _
  $region6: #{forward.15} parent=0 // loop_footer
    %s13 = sadd.s32 1, %s9
  $region7: #{forward.15} parent=0 // loop_footer_branch
    %8 = sbr.rel target = $region3
  $region8: #{forward.15} parent=0 // loop_exit
    _

// kernel: forward.18
$region0: #{forward.18}
  #allocation0 [shape = 'u32[]', space=smem, size = 0x4, offset = 0x4, fixed_abs, tag = 'smem constant byte address 0x4 - core index']
  #allocation1 [shape = 'u32[72,128]{1,0:T(1,128)}', space=vmem, size = 0x9000, scoped, tag = 'internal scratch']
  %s0 = inlined_call_operand.vmem [shape: f32[32,128], index: 0, kind: input, shape index: {}]
  %s1 = inlined_call_operand.vmem [shape: f32[128,64], index: 1, kind: input, shape index: {}]
  %s2 = inlined_call_operand.vmem [shape: f32[1,64], index: 2, kind: input, shape index: {}]
  %s3 = inlined_call_operand.vmem [shape: f32[32,64], index: 3, kind: output, shape index: {}]
  %s4 = sld [smem:[#allocation0]]
  $region45: #{forward.18} parent=0
    _
  %s6 = ssub.s32 1, %s4
  %s7 = scalar_select 0, %s6, %s4
  loop: start=0, step=1, limit=4
  $region2: #{forward.18} parent=0 // loop_pre_header
    _
  $region3: #{forward.18} parent=0 // loop_header
    %s9 = sphi 0, %s13
    %p10 = scmp.ge.s32.totalorder %s9, 4
    %s19 = sphi 0, %s21
    %s22 = sphi 0, %s19
    %s23 = sphi 0, %s22
    %s39 = sphi 0, %s23
    %s43 = sphi 0, %s43
    %s45 = sphi 0, %s43
    %s46 = sphi 0, %s45
    %s60 = sphi 0, %s46
    %s64 = sphi 0, %s64
    %s66 = sphi 0, %s64
    %s67 = sphi 0, %s66
    %s81 = sphi 0, %s67
    %s87 = sphi 0, %s89
    %s90 = sphi 0, %s87
    %s91 = sphi 0, %s90
    %s107 = sphi 0, %s91
  $region4: #{forward.18} parent=0 // loop_header_branch
    %12 = sbr.rel (%p10) target = $region8
  $region5: #{forward.18} parent=0 // loop_body
    %s14 = ssub.s32 %s9, 1
    %s15 = ssub.s32 %s9, 2
    %s16 = sadd.s32 %s9, 1
    %s17 = ssub.s32 %s9, %s16
    %p18 = scmp.eq.s32.totalorder %s17, 0
    %s20 = sadd.s32 %s19, 1
    %s21 = scalar_select %p18, %s19, %s20
    %p24 = pneg %p18
    %p25 = scmp.eq.s32.totalorder %s9, 1
    %p26 = por %p24, %p25
    %p27 = scmp.ne.s32.totalorder %s19, %s22
    %p28 = scmp.eq.s32.totalorder %s9, 0
    %p29 = por %p27, %p28
    %p30 = scmp.ne.s32.totalorder %s19, %s22
    %p31 = scmp.eq.s32.totalorder %s14, 1
    %p32 = por %p30, %p31
    %p33 = scmp.ne.s32.totalorder %s22, %s23
    %p34 = scmp.eq.s32.totalorder %s14, 0
    %p35 = por %p33, %p34
    %p36 = scmp.ne.s32.totalorder %s22, %s23
    %p37 = scmp.eq.s32.totalorder %s15, 1
    %p38 = por %p36, %p37
    %p40 = scmp.ne.s32.totalorder %s23, %s39
    %p41 = scmp.eq.s32.totalorder %s15, 0
    %p42 = por %p40, %p41
    %s44 = sadd.s32 %s43, 1
    %p47 = scmp.eq.s32.totalorder %s9, 1
    %p48 = scmp.ne.s32.totalorder %s43, %s45
    %p49 = scmp.eq.s32.totalorder %s9, 0
    %p50 = por %p48, %p49
    %p51 = scmp.ne.s32.totalorder %s43, %s45
    %p52 = scmp.eq.s32.totalorder %s14, 1
    %p53 = por %p51, %p52
    %p54 = scmp.ne.s32.totalorder %s45, %s46
    %p55 = scmp.eq.s32.totalorder %s14, 0
    %p56 = por %p54, %p55
    %p57 = scmp.ne.s32.totalorder %s45, %s46
    %p58 = scmp.eq.s32.totalorder %s15, 1
    %p59 = por %p57, %p58
    %p61 = scmp.ne.s32.totalorder %s46, %s60
    %p62 = scmp.eq.s32.totalorder %s15, 0
    %p63 = por %p61, %p62
    %s65 = sadd.s32 %s64, 1
    %p68 = scmp.eq.s32.totalorder %s9, 1
    %p69 = scmp.ne.s32.totalorder %s64, %s66
    %p70 = scmp.eq.s32.totalorder %s9, 0
    %p71 = por %p69, %p70
    %p72 = scmp.ne.s32.totalorder %s64, %s66
    %p73 = scmp.eq.s32.totalorder %s14, 1
    %p74 = por %p72, %p73
    %p75 = scmp.ne.s32.totalorder %s66, %s67
    %p76 = scmp.eq.s32.totalorder %s14, 0
    %p77 = por %p75, %p76
    %p78 = scmp.ne.s32.totalorder %s66, %s67
    %p79 = scmp.eq.s32.totalorder %s15, 1
    %p80 = por %p78, %p79
    %p82 = scmp.ne.s32.totalorder %s67, %s81
    %p83 = scmp.eq.s32.totalorder %s15, 0
    %p84 = por %p82, %p83
    %s85 = ssub.s32 %s9, %s16
    %p86 = scmp.eq.s32.totalorder %s85, 0
    %s88 = sadd.s32 %s87, 1
    %s89 = scalar_select %p86, %s87, %s88
    %p92 = pneg %p86
    %p93 = scmp.eq.s32.totalorder %s9, 1
    %p94 = por %p92, %p93
    %p95 = scmp.ne.s32.totalorder %s87, %s90
    %p96 = scmp.eq.s32.totalorder %s9, 0
    %p97 = por %p95, %p96
    %p98 = scmp.ne.s32.totalorder %s87, %s90
    %p99 = scmp.eq.s32.totalorder %s14, 1
    %p100 = por %p98, %p99
    %p101 = scmp.ne.s32.totalorder %s90, %s91
    %p102 = scmp.eq.s32.totalorder %s14, 0
    %p103 = por %p101, %p102
    %p104 = scmp.ne.s32.totalorder %s90, %s91
    %p105 = scmp.eq.s32.totalorder %s15, 1
    %p106 = por %p104, %p105
    %p108 = scmp.ne.s32.totalorder %s91, %s107
    %p109 = scmp.eq.s32.totalorder %s15, 0
    %p110 = por %p108, %p109
    %p111 = scmp.le.s32.totalorder 1, %s9
    %p112 = scmp.lt.s32.totalorder %s9, 3
    %p113 = pnand %p111, %p112
    %p114 = pneg %p113
    // Predicated region
    $region9: #{forward.18} parent=5 // pred_check
      _
    $region10: #{forward.18} parent=5 // pred_check_branch
      %116 = sbr.rel (%p113) target = $region12
    $region11: #{forward.18} parent=5 // pred_region
      %s117 = ssub.s32 %s9, 1
      // Predicated region
      $region13: #{forward.18} parent=11 // pred_check
        %p118 = pneg %p56
      $region14: #{forward.18} parent=11 // pred_check_branch
        %120 = sbr.rel (%p118) target = $region16
      $region15: #{forward.18} parent=11 // pred_region
        _
      $region16: #{forward.18} parent=11 // pred_fallthru
        _
      // Predicated region
      $region17: #{forward.18} parent=11 // pred_check
        %p121 = pneg %p77
      $region18: #{forward.18} parent=11 // pred_check_branch
        %123 = sbr.rel (%p121) target = $region20
      $region19: #{forward.18} parent=11 // pred_region
        _
      $region20: #{forward.18} parent=11 // pred_fallthru
        _
    $region12: #{forward.18} parent=5 // pred_fallthru
      _
    %p124 = scmp.lt.s32.totalorder %s9, 2
    // Predicated region
    $region21: #{forward.18} parent=5 // pred_check
      %p125 = pneg %p124
    $region22: #{forward.18} parent=5 // pred_check_branch
      %127 = sbr.rel (%p125) target = $region24
    $region23: #{forward.18} parent=5 // pred_region
      // Predicated region
      $region25: #{forward.18} parent=23 // pred_check
        %p128 = pneg %p29
      $region26: #{forward.18} parent=23 // pred_check_branch
        %130 = sbr.rel (%p128) target = $region28
      $region27: #{forward.18} parent=23 // pred_region
        %s131 = smul.u32 2, %s9
        %p132 = scmp.lt.s32.totalorder %s131, 3
        %s133 = scalar_select %p132, %s131, 3
        %s134 = smul.addr %s133, 8
        %s135 = scalar_lea.vmem %s0, %s134
        %s136 = smul.u32 2, %s9
      $region28: #{forward.18} parent=23 // pred_fallthru
        _
    $region24: #{forward.18} parent=5 // pred_fallthru
      _
    %p137 = scmp.le.s32.totalorder 1, %s9
    %p138 = scmp.lt.s32.totalorder %s9, 3
    %p139 = pnand %p137, %p138
    %p140 = pneg %p139
    // Predicated region
    $region29: #{forward.18} parent=5 // pred_check
      _
    $region30: #{forward.18} parent=5 // pred_check_branch
      %142 = sbr.rel (%p139) target = $region32
    $region31: #{forward.18} parent=5 // pred_region
      %s143 = ssub.s32 %s9, 1
      %s144 = smul.u32 2, %s14
      %p145 = scmp.lt.s32.totalorder %s144, 3
      %s146 = scalar_select %p145, %s144, 3
      %s147 = smul.addr %s146, 8
      %s148 = scalar_lea.vmem %s0, %s147
      %p149 = pneg %p35
      %p150 = pneg %p32
      %p151 = pneg %p56
      %p152 = pneg %p53
      %p153 = pneg %p77
      %p154 = pneg %p74
      %p155 = pneg %p103
      %p156 = pneg %p100
      %s157 = smul.u32 2, %s14
      %p158 = scmp.lt.s32.totalorder %s157, 3
      %s159 = scalar_select %p158, %s157, 3
      %s160 = smul.addr %s159, 8
      %s161 = scalar_lea.vmem %s3, %s160
      %s162 = smul.u32 2, %s14
      %p163 = scmp.lt.s32.totalorder %s162, 3
      %s164 = scalar_select %p163, %s162, 3
      %s165 = smul.addr %s164, 8
      %s166 = scalar_lea.vmem %s0, %s165
      %s167 = smul.u32 2, %s14
      %s168 = smul.u32 2, %s14
      %p169 = scmp.lt.s32.totalorder %s168, 3
      %s170 = scalar_select %p169, %s168, 3
      %s171 = smul.addr %s170, 8
      %s172 = scalar_lea.vmem %s3, %s171
      %s173 = smul.u32 2, %s14
      %v174 = vld [vmem:[%s166] sm:$0xff]
      %v175 = vld [vmem:[%s166 + $0x8] sm:$0xff]
      %v176 = vld [vmem:[%s1] sm:$0xff]
      %v177 = vld [vmem:[%s1 + $0x8] sm:$0xff]
      %v178 = vld [vmem:[%s1 + $0x10] sm:$0xff]
      %v179 = vld [vmem:[%s1 + $0x18] sm:$0xff]
      %v180 = vld [vmem:[%s1 + $0x20] sm:$0xff]
      %v181 = vld [vmem:[%s1 + $0x28] sm:$0xff]
      %v182 = vld [vmem:[%s1 + $0x30] sm:$0xff]
      %v183 = vld [vmem:[%s1 + $0x38] sm:$0xff]
      %v184 = vld [vmem:[%s1 + $0x40] sm:$0xff]
      %v185 = vld [vmem:[%s1 + $0x48] sm:$0xff]
      %v186 = vld [vmem:[%s1 + $0x50] sm:$0xff]
      %v187 = vld [vmem:[%s1 + $0x58] sm:$0xff]
      %v188 = vld [vmem:[%s1 + $0x60] sm:$0xff]
      %v189 = vld [vmem:[%s1 + $0x68] sm:$0xff]
      %v190 = vld [vmem:[%s1 + $0x70] sm:$0xff]
      %v191 = vld [vmem:[%s1 + $0x78] sm:$0xff]
      %v192 = vpack.c.bf16 %v175, %v174
      %v193 = vpack.c.bf16 %v177, %v176
      %v194 = vpack.c.bf16 %v179, %v178
      %v195 = vpack.c.bf16 %v181, %v180
      %v196 = vpack.c.bf16 %v183, %v182
      %v197 = vpack.c.bf16 %v185, %v184
      %v198 = vpack.c.bf16 %v187, %v186
      %v199 = vpack.c.bf16 %v189, %v188
      %v200 = vpack.c.bf16 %v191, %v190
      %v201 = vld [vmem:[%s2] sm:$0x1]
      %v203 = vperm.slane %v201, 0
      %205 = vmatpush.bf16.msra.mxu0 %v200
      %206 = vmatpush.bf16.msra.mxu0 %v199
      %207 = vmatpush.bf16.msra.mxu0 %v198
      %208 = vmatpush.bf16.msra.mxu0 %v197
      %209 = vmatpush.bf16.msra.mxu0 %v196
      %210 = vmatpush.bf16.msra.mxu0 %v195
      %211 = vmatpush.bf16.msra.mxu0 %v194
      %212 = vmatpush.bf16.msra.mxu0 %v193
      %213 = vmatmul.bf16.gmra.mxu0 %v192
      %v214 = vpop.f32.mrf.mxu0
      %v215 = vadd.f32 %v203, %v214
      %v216 = vpop.f32.mrf.mxu0
      %v217 = vadd.f32 %v203, %v216
      %218 = vdwg.mxu0
      %vm219 = vcmask 523264
      %220 = vst.msk [vmem:[%s172] sm:$0xff] %vm219, %v215
      %221 = vst.msk [vmem:[%s172 + $0x8] sm:$0xff] %vm219, %v217
      %s222 = smul.u32 2, %s14
      %p223 = scmp.lt.s32.totalorder %s222, 3
      %s224 = scalar_select %p223, %s222, 3
      %s225 = smul.addr %s224, 8
      %s226 = scalar_lea.vmem %s3, %s225
      // Predicated region
      $region33: #{forward.18} parent=31 // pred_check
        %p227 = pneg %p100
      $region34: #{forward.18} parent=31 // pred_check_branch
        %229 = sbr.rel (%p227) target = $region36
      $region35: #{forward.18} parent=31 // pred_region
        %s230 = smul.u32 2, %s14
      $region36: #{forward.18} parent=31 // pred_fallthru
        _
    $region32: #{forward.18} parent=5 // pred_fallthru
      _
    %p231 = scmp.le.s32.totalorder 2, %s9
    // Predicated region
    $region37: #{forward.18} parent=5 // pred_check
      %p232 = pneg %p231
    $region38: #{forward.18} parent=5 // pred_check_branch
      %234 = sbr.rel (%p232) target = $region40
    $region39: #{forward.18} parent=5 // pred_region
      %s235 = ssub.s32 %s9, 2
      // Predicated region
      $region41: #{forward.18} parent=39 // pred_check
        %p236 = pneg %p106
      $region42: #{forward.18} parent=39 // pred_check_branch
        %238 = sbr.rel (%p236) target = $region44
      $region43: #{forward.18} parent=39 // pred_region
        %s239 = smul.u32 2, %s15
        %p240 = scmp.lt.s32.totalorder %s239, 3
        %s241 = scalar_select %p240, %s239, 3
        %s242 = smul.addr %s241, 8
        %s243 = scalar_lea.vmem %s3, %s242
      $region44: #{forward.18} parent=39 // pred_fallthru
        _
    $region40: #{forward.18} parent=5 // pred_fallthru
      _
  $region6: #{forward.18} parent=0 // loop_footer
    %s13 = sadd.s32 1, %s9
  $region7: #{forward.18} parent=0 // loop_footer_branch
    %8 = sbr.rel target = $region3
  $region8: #{forward.18} parent=0 // loop_exit
    _

// kernel: forward.20
$region0: #{forward.20}
  #allocation0 [shape = 'u32[]', space=smem, size = 0x4, offset = 0x4, fixed_abs, tag = 'smem constant byte address 0x4 - core index']
  #allocation1 [shape = 'u32[72,128]{1,0:T(1,128)}', space=vmem, size = 0x9000, scoped, tag = 'internal scratch']
  %s0 = inlined_call_operand.vmem [shape: f32[32,64], index: 0, kind: input, shape index: {}, may-alias: {0,1}]
  %s1 = inlined_call_operand.vmem [shape: f32[32,64], index: 1, kind: input, shape index: {}, may-alias: {0,1}]
  %s2 = inlined_call_operand.vmem [shape: f32[1,64], index: 2, kind: input, shape index: {}]
  %s3 = inlined_call_operand.vmem [shape: f32[1,64], index: 3, kind: input, shape index: {}]
  %s4 = inlined_call_operand.vmem [shape: f32[64,256], index: 4, kind: input, shape index: {}]
  %s5 = inlined_call_operand.vmem [shape: f32[1,256], index: 5, kind: input, shape index: {}]
  %s6 = inlined_call_operand.vmem [shape: f32[256,64], index: 6, kind: input, shape index: {}]
  %s7 = inlined_call_operand.vmem [shape: f32[1,64], index: 7, kind: input, shape index: {}]
  %s8 = inlined_call_operand.vmem [shape: f32[32,64], index: 8, kind: output, shape index: {}]
  %s9 = sld [smem:[#allocation0]]
  $region65: #{forward.20} parent=0
    _
  %s11 = ssub.s32 1, %s9
  %s12 = scalar_select 0, %s11, %s9
  loop: start=0, step=1, limit=4
  $region2: #{forward.20} parent=0 // loop_pre_header
    _
  $region3: #{forward.20} parent=0 // loop_header
    %s14 = sphi 0, %s18
    %p15 = scmp.ge.s32.totalorder %s14, 4
    %s24 = sphi 0, %s26
    %s27 = sphi 0, %s24
    %s28 = sphi 0, %s27
    %s44 = sphi 0, %s28
    %s50 = sphi 0, %s52
    %s53 = sphi 0, %s50
    %s54 = sphi 0, %s53
    %s70 = sphi 0, %s54
    %s74 = sphi 0, %s74
    %s76 = sphi 0, %s74
    %s77 = sphi 0, %s76
    %s91 = sphi 0, %s77
    %s95 = sphi 0, %s95
    %s97 = sphi 0, %s95
    %s98 = sphi 0, %s97
    %s112 = sphi 0, %s98
    %s116 = sphi 0, %s116
    %s118 = sphi 0, %s116
    %s119 = sphi 0, %s118
    %s133 = sphi 0, %s119
    %s137 = sphi 0, %s137
    %s139 = sphi 0, %s137
    %s140 = sphi 0, %s139
    %s154 = sphi 0, %s140
    %s158 = sphi 0, %s158
    %s160 = sphi 0, %s158
    %s161 = sphi 0, %s160
    %s175 = sphi 0, %s161
    %s179 = sphi 0, %s179
    %s181 = sphi 0, %s179
    %s182 = sphi 0, %s181
    %s196 = sphi 0, %s182
    %s202 = sphi 0, %s204
    %s205 = sphi 0, %s202
    %s206 = sphi 0, %s205
    %s222 = sphi 0, %s206
  $region4: #{forward.20} parent=0 // loop_header_branch
    %17 = sbr.rel (%p15) target = $region8
  $region5: #{forward.20} parent=0 // loop_body
    %s19 = ssub.s32 %s14, 1
    %s20 = ssub.s32 %s14, 2
    %s21 = sadd.s32 %s14, 1
    %s22 = ssub.s32 %s14, %s21
    %p23 = scmp.eq.s32.totalorder %s22, 0
    %s25 = sadd.s32 %s24, 1
    %s26 = scalar_select %p23, %s24, %s25
    %p29 = pneg %p23
    %p30 = scmp.eq.s32.totalorder %s14, 1
    %p31 = por %p29, %p30
    %p32 = scmp.ne.s32.totalorder %s24, %s27
    %p33 = scmp.eq.s32.totalorder %s14, 0
    %p34 = por %p32, %p33
    %p35 = scmp.ne.s32.totalorder %s24, %s27
    %p36 = scmp.eq.s32.totalorder %s19, 1
    %p37 = por %p35, %p36
    %p38 = scmp.ne.s32.totalorder %s27, %s28
    %p39 = scmp.eq.s32.totalorder %s19, 0
    %p40 = por %p38, %p39
    %p41 = scmp.ne.s32.totalorder %s27, %s28
    %p42 = scmp.eq.s32.totalorder %s20, 1
    %p43 = por %p41, %p42
    %p45 = scmp.ne.s32.totalorder %s28, %s44
    %p46 = scmp.eq.s32.totalorder %s20, 0
    %p47 = por %p45, %p46
    %s48 = ssub.s32 %s14, %s21
    %p49 = scmp.eq.s32.totalorder %s48, 0
    %s51 = sadd.s32 %s50, 1
    %s52 = scalar_select %p49, %s50, %s51
    %p55 = pneg %p49
    %p56 = scmp.eq.s32.totalorder %s14, 1
    %p57 = por %p55, %p56
    %p58 = scmp.ne.s32.totalorder %s50, %s53
    %p59 = scmp.eq.s32.totalorder %s14, 0
    %p60 = por %p58, %p59
    %p61 = scmp.ne.s32.totalorder %s50, %s53
    %p62 = scmp.eq.s32.totalorder %s19, 1
    %p63 = por %p61, %p62
    %p64 = scmp.ne.s32.totalorder %s53, %s54
    %p65 = scmp.eq.s32.totalorder %s19, 0
    %p66 = por %p64, %p65
    %p67 = scmp.ne.s32.totalorder %s53, %s54
    %p68 = scmp.eq.s32.totalorder %s20, 1
    %p69 = por %p67, %p68
    %p71 = scmp.ne.s32.totalorder %s54, %s70
    %p72 = scmp.eq.s32.totalorder %s20, 0
    %p73 = por %p71, %p72
    %s75 = sadd.s32 %s74, 1
    %p78 = scmp.eq.s32.totalorder %s14, 1
    %p79 = scmp.ne.s32.totalorder %s74, %s76
    %p80 = scmp.eq.s32.totalorder %s14, 0
    %p81 = por %p79, %p80
    %p82 = scmp.ne.s32.totalorder %s74, %s76
    %p83 = scmp.eq.s32.totalorder %s19, 1
    %p84 = por %p82, %p83
    %p85 = scmp.ne.s32.totalorder %s76, %s77
    %p86 = scmp.eq.s32.totalorder %s19, 0
    %p87 = por %p85, %p86
    %p88 = scmp.ne.s32.totalorder %s76, %s77
    %p89 = scmp.eq.s32.totalorder %s20, 1
    %p90 = por %p88, %p89
    %p92 = scmp.ne.s32.totalorder %s77, %s91
    %p93 = scmp.eq.s32.totalorder %s20, 0
    %p94 = por %p92, %p93
    %s96 = sadd.s32 %s95, 1
    %p99 = scmp.eq.s32.totalorder %s14, 1
    %p100 = scmp.ne.s32.totalorder %s95, %s97
    %p101 = scmp.eq.s32.totalorder %s14, 0
    %p102 = por %p100, %p101
    %p103 = scmp.ne.s32.totalorder %s95, %s97
    %p104 = scmp.eq.s32.totalorder %s19, 1
    %p105 = por %p103, %p104
    %p106 = scmp.ne.s32.totalorder %s97, %s98
    %p107 = scmp.eq.s32.totalorder %s19, 0
    %p108 = por %p106, %p107
    %p109 = scmp.ne.s32.totalorder %s97, %s98
    %p110 = scmp.eq.s32.totalorder %s20, 1
    %p111 = por %p109, %p110
    %p113 = scmp.ne.s32.totalorder %s98, %s112
    %p114 = scmp.eq.s32.totalorder %s20, 0
    %p115 = por %p113, %p114
    %s117 = sadd.s32 %s116, 1
    %p120 = scmp.eq.s32.totalorder %s14, 1
    %p121 = scmp.ne.s32.totalorder %s116, %s118
    %p122 = scmp.eq.s32.totalorder %s14, 0
    %p123 = por %p121, %p122
    %p124 = scmp.ne.s32.totalorder %s116, %s118
    %p125 = scmp.eq.s32.totalorder %s19, 1
    %p126 = por %p124, %p125
    %p127 = scmp.ne.s32.totalorder %s118, %s119
    %p128 = scmp.eq.s32.totalorder %s19, 0
    %p129 = por %p127, %p128
    %p130 = scmp.ne.s32.totalorder %s118, %s119
    %p131 = scmp.eq.s32.totalorder %s20, 1
    %p132 = por %p130, %p131
    %p134 = scmp.ne.s32.totalorder %s119, %s133
    %p135 = scmp.eq.s32.totalorder %s20, 0
    %p136 = por %p134, %p135
    %s138 = sadd.s32 %s137, 1
    %p141 = scmp.eq.s32.totalorder %s14, 1
    %p142 = scmp.ne.s32.totalorder %s137, %s139
    %p143 = scmp.eq.s32.totalorder %s14, 0
    %p144 = por %p142, %p143
    %p145 = scmp.ne.s32.totalorder %s137, %s139
    %p146 = scmp.eq.s32.totalorder %s19, 1
    %p147 = por %p145, %p146
    %p148 = scmp.ne.s32.totalorder %s139, %s140
    %p149 = scmp.eq.s32.totalorder %s19, 0
    %p150 = por %p148, %p149
    %p151 = scmp.ne.s32.totalorder %s139, %s140
    %p152 = scmp.eq.s32.totalorder %s20, 1
    %p153 = por %p151, %p152
    %p155 = scmp.ne.s32.totalorder %s140, %s154
    %p156 = scmp.eq.s32.totalorder %s20, 0
    %p157 = por %p155, %p156
    %s159 = sadd.s32 %s158, 1
    %p162 = scmp.eq.s32.totalorder %s14, 1
    %p163 = scmp.ne.s32.totalorder %s158, %s160
    %p164 = scmp.eq.s32.totalorder %s14, 0
    %p165 = por %p163, %p164
    %p166 = scmp.ne.s32.totalorder %s158, %s160
    %p167 = scmp.eq.s32.totalorder %s19, 1
    %p168 = por %p166, %p167
    %p169 = scmp.ne.s32.totalorder %s160, %s161
    %p170 = scmp.eq.s32.totalorder %s19, 0
    %p171 = por %p169, %p170
    %p172 = scmp.ne.s32.totalorder %s160, %s161
    %p173 = scmp.eq.s32.totalorder %s20, 1
    %p174 = por %p172, %p173
    %p176 = scmp.ne.s32.totalorder %s161, %s175
    %p177 = scmp.eq.s32.totalorder %s20, 0
    %p178 = por %p176, %p177
    %s180 = sadd.s32 %s179, 1
    %p183 = scmp.eq.s32.totalorder %s14, 1
    %p184 = scmp.ne.s32.totalorder %s179, %s181
    %p185 = scmp.eq.s32.totalorder %s14, 0
    %p186 = por %p184, %p185
    %p187 = scmp.ne.s32.totalorder %s179, %s181
    %p188 = scmp.eq.s32.totalorder %s19, 1
    %p189 = por %p187, %p188
    %p190 = scmp.ne.s32.totalorder %s181, %s182
    %p191 = scmp.eq.s32.totalorder %s19, 0
    %p192 = por %p190, %p191
    %p193 = scmp.ne.s32.totalorder %s181, %s182
    %p194 = scmp.eq.s32.totalorder %s20, 1
    %p195 = por %p193, %p194
    %p197 = scmp.ne.s32.totalorder %s182, %s196
    %p198 = scmp.eq.s32.totalorder %s20, 0
    %p199 = por %p197, %p198
    %s200 = ssub.s32 %s14, %s21
    %p201 = scmp.eq.s32.totalorder %s200, 0
    %s203 = sadd.s32 %s202, 1
    %s204 = scalar_select %p201, %s202, %s203
    %p207 = pneg %p201
    %p208 = scmp.eq.s32.totalorder %s14, 1
    %p209 = por %p207, %p208
    %p210 = scmp.ne.s32.totalorder %s202, %s205
    %p211 = scmp.eq.s32.totalorder %s14, 0
    %p212 = por %p210, %p211
    %p213 = scmp.ne.s32.totalorder %s202, %s205
    %p214 = scmp.eq.s32.totalorder %s19, 1
    %p215 = por %p213, %p214
    %p216 = scmp.ne.s32.totalorder %s205, %s206
    %p217 = scmp.eq.s32.totalorder %s19, 0
    %p218 = por %p216, %p217
    %p219 = scmp.ne.s32.totalorder %s205, %s206
    %p220 = scmp.eq.s32.totalorder %s20, 1
    %p221 = por %p219, %p220
    %p223 = scmp.ne.s32.totalorder %s206, %s222
    %p224 = scmp.eq.s32.totalorder %s20, 0
    %p225 = por %p223, %p224
    %p226 = scmp.le.s32.totalorder 1, %s14
    %p227 = scmp.lt.s32.totalorder %s14, 3
    %p228 = pnand %p226, %p227
    %p229 = pneg %p228
    // Predicated region
    $region9: #{forward.20} parent=5 // pred_check
      _
    $region10: #{forward.20} parent=5 // pred_check_branch
      %231 = sbr.rel (%p228) target = $region12
    $region11: #{forward.20} parent=5 // pred_region
      %s232 = ssub.s32 %s14, 1
      // Predicated region
      $region13: #{forward.20} parent=11 // pred_check
        %p233 = pneg %p87
      $region14: #{forward.20} parent=11 // pred_check_branch
        %235 = sbr.rel (%p233) target = $region16
      $region15: #{forward.20} parent=11 // pred_region
        _
      $region16: #{forward.20} parent=11 // pred_fallthru
        _
      // Predicated region
      $region17: #{forward.20} parent=11 // pred_check
        %p236 = pneg %p108
      $region18: #{forward.20} parent=11 // pred_check_branch
        %238 = sbr.rel (%p236) target = $region20
      $region19: #{forward.20} parent=11 // pred_region
        _
      $region20: #{forward.20} parent=11 // pred_fallthru
        _
      // Predicated region
      $region21: #{forward.20} parent=11 // pred_check
        %p239 = pneg %p129
      $region22: #{forward.20} parent=11 // pred_check_branch
        %241 = sbr.rel (%p239) target = $region24
      $region23: #{forward.20} parent=11 // pred_region
        _
      $region24: #{forward.20} parent=11 // pred_fallthru
        _
      // Predicated region
      $region25: #{forward.20} parent=11 // pred_check
        %p242 = pneg %p150
      $region26: #{forward.20} parent=11 // pred_check_branch
        %244 = sbr.rel (%p242) target = $region28
      $region27: #{forward.20} parent=11 // pred_region
        _
      $region28: #{forward.20} parent=11 // pred_fallthru
        _
      // Predicated region
      $region29: #{forward.20} parent=11 // pred_check
        %p245 = pneg %p171
      $region30: #{forward.20} parent=11 // pred_check_branch
        %247 = sbr.rel (%p245) target = $region32
      $region31: #{forward.20} parent=11 // pred_region
        _
      $region32: #{forward.20} parent=11 // pred_fallthru
        _
      // Predicated region
      $region33: #{forward.20} parent=11 // pred_check
        %p248 = pneg %p192
      $region34: #{forward.20} parent=11 // pred_check_branch
        %250 = sbr.rel (%p248) target = $region36
      $region35: #{forward.20} parent=11 // pred_region
        _
      $region36: #{forward.20} parent=11 // pred_fallthru
        _
    $region12: #{forward.20} parent=5 // pred_fallthru
      _
    %p251 = scmp.lt.s32.totalorder %s14, 2
    // Predicated region
    $region37: #{forward.20} parent=5 // pred_check
      %p252 = pneg %p251
    $region38: #{forward.20} parent=5 // pred_check_branch
      %254 = sbr.rel (%p252) target = $region40
    $region39: #{forward.20} parent=5 // pred_region
      // Predicated region
      $region41: #{forward.20} parent=39 // pred_check
        %p255 = pneg %p34
      $region42: #{forward.20} parent=39 // pred_check_branch
        %257 = sbr.rel (%p255) target = $region44
      $region43: #{forward.20} parent=39 // pred_region
        %s258 = smul.u32 2, %s14
        %p259 = scmp.lt.s32.totalorder %s258, 3
        %s260 = scalar_select %p259, %s258, 3
        %s261 = smul.addr %s260, 8
        %s262 = scalar_lea.vmem %s0, %s261
        %s263 = smul.u32 2, %s14
      $region44: #{forward.20} parent=39 // pred_fallthru
        _
      // Predicated region
      $region45: #{forward.20} parent=39 // pred_check
        %p264 = pneg %p60
      $region46: #{forward.20} parent=39 // pred_check_branch
        %266 = sbr.rel (%p264) target = $region48
      $region47: #{forward.20} parent=39 // pred_region
        %s267 = smul.u32 2, %s14
        %p268 = scmp.lt.s32.totalorder %s267, 3
        %s269 = scalar_select %p268, %s267, 3
        %s270 = smul.addr %s269, 8
        %s271 = scalar_lea.vmem %s1, %s270
        %s272 = smul.u32 2, %s14
      $region48: #{forward.20} parent=39 // pred_fallthru
        _
    $region40: #{forward.20} parent=5 // pred_fallthru
      _
    %p273 = scmp.le.s32.totalorder 1, %s14
    %p274 = scmp.lt.s32.totalorder %s14, 3
    %p275 = pnand %p273, %p274
    %p276 = pneg %p275
    // Predicated region
    $region49: #{forward.20} parent=5 // pred_check
      _
    $region50: #{forward.20} parent=5 // pred_check_branch
      %278 = sbr.rel (%p275) target = $region52
    $region51: #{forward.20} parent=5 // pred_region
      %s279 = ssub.s32 %s14, 1
      %s280 = smul.u32 2, %s19
      %p281 = scmp.lt.s32.totalorder %s280, 3
      %s282 = scalar_select %p281, %s280, 3
      %s283 = smul.addr %s282, 8
      %s284 = scalar_lea.vmem %s0, %s283
      %p285 = pneg %p40
      %p286 = pneg %p37
      %s287 = smul.u32 2, %s19
      %p288 = scmp.lt.s32.totalorder %s287, 3
      %s289 = scalar_select %p288, %s287, 3
      %s290 = smul.addr %s289, 8
      %s291 = scalar_lea.vmem %s1, %s290
      %p292 = pneg %p66
      %p293 = pneg %p63
      %p294 = pneg %p87
      %p295 = pneg %p84
      %p296 = pneg %p108
      %p297 = pneg %p105
      %p298 = pneg %p129
      %p299 = pneg %p126
      %p300 = pneg %p150
      %p301 = pneg %p147
      %p302 = pneg %p171
      %p303 = pneg %p168
      %p304 = pneg %p192
      %p305 = pneg %p189
      %p306 = pneg %p218
      %p307 = pneg %p215
      %s308 = smul.u32 2, %s19
      %p309 = scmp.lt.s32.totalorder %s308, 3
      %s310 = scalar_select %p309, %s308, 3
      %s311 = smul.addr %s310, 8
      %s312 = scalar_lea.vmem %s8, %s311
      %s313 = smul.u32 2, %s19
      %p314 = scmp.lt.s32.totalorder %s313, 3
      %s315 = scalar_select %p314, %s313, 3
      %s316 = smul.addr %s315, 8
      %s317 = scalar_lea.vmem %s0, %s316
      %s318 = smul.u32 2, %s19
      %s319 = smul.u32 2, %s19
      %p320 = scmp.lt.s32.totalorder %s319, 3
      %s321 = scalar_select %p320, %s319, 3
      %s322 = smul.addr %s321, 8
      %s323 = scalar_lea.vmem %s1, %s322
      %s324 = smul.u32 2, %s19
      %s325 = smul.u32 2, %s19
      %p326 = scmp.lt.s32.totalorder %s325, 3
      %s327 = scalar_select %p326, %s325, 3
      %s328 = smul.addr %s327, 8
      %s329 = scalar_lea.vmem %s8, %s328
      %s330 = smul.u32 2, %s19
      %v332 = vld [vmem:[%s317] sm:$0xff]
      %v333 = vld [vmem:[%s317 + $0x8] sm:$0xff]
      %v334 = vld [vmem:[%s2] sm:$0x1]
      %v335 = vld [vmem:[%s3] sm:$0x1]
      %vm336 = vcmask 523264
      %v337 = vsel %vm336, %v332, 0.0
      %338 = vadd.xlane.f32.xlu0 %v337
      %v339 = vpop.xlane.xlu0 %338
      %v340 = vsel %vm336, %v333, 0.0
      %341 = vadd.xlane.f32.xlu0 %v340
      %v342 = vpop.xlane.xlu0 %341
      %v343 = vrcp.pop 64.0
      %v344 = vmul.f32 64.0, %v343
      %v345 = vsub.f32 1.0, %v344
      %v346 = vmul.f32 %v343, %v345
      %v347 = vadd.f32 %v343, %v346
      %vm348 = vweird.f32 %v343
      %v349 = vsel %vm348, %v343, %v347
      %v350 = vmul.f32 %v339, %v349
      %v351 = vmul.f32 %v342, %v349
      %v352 = vsub.f32 %v332, %v350
      %v353 = vsub.f32 %v333, %v351
      %v354 = vmul.f32 %v352, %v352
      %v355 = vmul.f32 %v353, %v353
      %v356 = vsel %vm336, %v354, 0.0
      %357 = vadd.xlane.f32.xlu0 %v356
      %v358 = vpop.xlane.xlu0 %357
      %v359 = vsel %vm336, %v355, 0.0
      %360 = vadd.xlane.f32.xlu0 %v359
      %v361 = vpop.xlane.xlu0 %360
      %v362 = vmul.f32 %v358, %v349
      %v363 = vmul.f32 %v361, %v349
      %v364 = vadd.f32 %v362, 1e-06
      %v365 = vadd.f32 %v363, 1e-06
      %v366 = vrsqrt.pop %v364
      %v367 = vmul.f32 %v366, %v364
      %v368 = vmul.f32 %v367, %v366
      %v369 = vmul.f32 0.5, %v368
      %v370 = vsub.f32 1.5, %v369
      %v371 = vmul.f32 %v366, %v370
      %vm372 = vweird.f32 %v364
      %vm373 = vweird.f32 %v366
      %vm374 = vmor %vm372, %vm373
      %v375 = vsel %vm374, %v366, %v371
      %v376 = vrsqrt.pop %v365
      %v377 = vmul.f32 %v376, %v365
      %v378 = vmul.f32 %v377, %v376
      %v379 = vmul.f32 0.5, %v378
      %v380 = vsub.f32 1.5, %v379
      %v381 = vmul.f32 %v376, %v380
      %vm382 = vweird.f32 %v365
      %vm383 = vweird.f32 %v376
      %vm384 = vmor %vm382, %vm383
      %v385 = vsel %vm384, %v376, %v381
      %v386 = vmul.f32 %v352, %v375
      %v387 = vmul.f32 %v353, %v385
      %v389 = vperm.slane %v334, 0
      %v391 = vmul.f32 %v386, %v389
      %v392 = vmul.f32 %v387, %v389
      %v394 = vperm.slane %v335, 0
      %v396 = vadd.f32 %v391, %v394
      %v397 = vadd.f32 %v392, %v394
      %v398 = vld [vmem:[%s4] sm:$0xff]
      %v399 = vld [vmem:[%s4 + $0x8] sm:$0xff]
      %v400 = vld [vmem:[%s4 + $0x10] sm:$0xff]
      %v401 = vld [vmem:[%s4 + $0x18] sm:$0xff]
      %v402 = vld [vmem:[%s4 + $0x20] sm:$0xff]
      %v403 = vld [vmem:[%s4 + $0x28] sm:$0xff]
      %v404 = vld [vmem:[%s4 + $0x30] sm:$0xff]
      %v405 = vld [vmem:[%s4 + $0x38] sm:$0xff]
      %v406 = vld [vmem:[%s4 + $0x40] sm:$0xff]
      %v407 = vld [vmem:[%s4 + $0x48] sm:$0xff]
      %v408 = vld [vmem:[%s4 + $0x50] sm:$0xff]
      %v409 = vld [vmem:[%s4 + $0x58] sm:$0xff]
      %v410 = vld [vmem:[%s4 + $0x60] sm:$0xff]
      %v411 = vld [vmem:[%s4 + $0x68] sm:$0xff]
      %v412 = vld [vmem:[%s4 + $0x70] sm:$0xff]
      %v413 = vld [vmem:[%s4 + $0x78] sm:$0xff]
      %v414 = vpack.c.bf16 %v397, %v396
      %v415 = vpack.c.bf16 %v400, %v398
      %v416 = vpack.c.bf16 %v401, %v399
      %v417 = vpack.c.bf16 %v404, %v402
      %v418 = vpack.c.bf16 %v405, %v403
      %v419 = vpack.c.bf16 %v408, %v406
      %v420 = vpack.c.bf16 %v409, %v407
      %v421 = vpack.c.bf16 %v412, %v410
      %v422 = vpack.c.bf16 %v413, %v411
      %v423 = vld [vmem:[%s5] sm:$0x3]
      %v425 = vperm.slane %v423, 0
      %v426 = vperm.slane %v423, 1
      %v430 = vsel %vm336, %v414, 0
      %432 = vmatpush.bf16.msra.mxu0 0
      %433 = vmatpush.bf16.msra.mxu0 0
      %434 = vmatpush.bf16.msra.mxu0 0
      %435 = vmatpush.bf16.msra.mxu0 0
      %436 = vmatpush.bf16.msra.mxu0 %v421
      %437 = vmatpush.bf16.msra.mxu0 %v419
      %438 = vmatpush.bf16.msra.mxu0 %v417
      %439 = vmatpush.bf16.msra.mxu0 %v415
      %440 = vmatmul.bf16.gmra.mxu0 %v430
      %v441 = vpop.f32.mrf.mxu0
      %v442 = vadd.f32 %v425, %v441
      %v443 = vpop.f32.mrf.mxu0
      %v444 = vadd.f32 %v425, %v443
      %445 = vdwg.mxu0
      %446 = vmatpush.bf16.msra.mxu0 0
      %447 = vmatpush.bf16.msra.mxu0 0
      %448 = vmatpush.bf16.msra.mxu0 0
      %449 = vmatpush.bf16.msra.mxu0 0
      %450 = vmatpush.bf16.msra.mxu0 %v422
      %451 = vmatpush.bf16.msra.mxu0 %v420
      %452 = vmatpush.bf16.msra.mxu0 %v418
      %453 = vmatpush.bf16.msra.mxu0 %v416
      %454 = vmatmul.bf16.gmra.mxu0 %v430
      %v455 = vpop.f32.mrf.mxu0
      %v456 = vadd.f32 %v426, %v455
      %v457 = vpop.f32.mrf.mxu0
      %v458 = vadd.f32 %v426, %v457
      %459 = vdwg.mxu0
      %v460 = vmul.f32 %v442, 0.5
      %v461 = vmul.f32 %v456, 0.5
      %v462 = vmul.f32 %v444, 0.5
      %v463 = vmul.f32 %v458, 0.5
      %v464 = vmul.f32 %v442, 0.044715
      %v465 = vmul.f32 %v456, 0.044715
      %v466 = vmul.f32 %v444, 0.044715
      %v467 = vmul.f32 %v458, 0.044715
      %v468 = vmul.f32 %v464, %v442
      %v469 = vmul.f32 %v465, %v456
      %v470 = vmul.f32 %v466, %v444
      %v471 = vmul.f32 %v467, %v458
      %v472 = vmul.f32 %v468, %v442
      %v473 = vmul.f32 %v469, %v456
      %v474 = vmul.f32 %v470, %v444
      %v475 = vmul.f32 %v471, %v458
      %v476 = vadd.f32 %v442, %v472
      %v477 = vadd.f32 %v456, %v473
      %v478 = vadd.f32 %v444, %v474
      %v479 = vadd.f32 %v458, %v475
      %v480 = vmul.f32 %v476, 0.7978846
      %v481 = vmul.f32 %v477, 0.7978846
      %v482 = vmul.f32 %v478, 0.7978846
      %v483 = vmul.f32 %v479, 0.7978846
      %v484 = vtanh.pop %v480
      %v485 = vtanh.pop %v481
      %v486 = vtanh.pop %v482
      %v487 = vtanh.pop %v483
      %v488 = vadd.f32 %v484, 1.0
      %v489 = vadd.f32 %v485, 1.0
      %v490 = vadd.f32 %v486, 1.0
      %v491 = vadd.f32 %v487, 1.0
      %v492 = vmul.f32 %v460, %v488
      %v493 = vmul.f32 %v461, %v489
      %v494 = vmul.f32 %v462, %v490
      %v495 = vmul.f32 %v463, %v491
      %v496 = vld [vmem:[%s6] sm:$0xff]
      %v497 = vld [vmem:[%s6 + $0x8] sm:$0xff]
      %v498 = vld [vmem:[%s6 + $0x10] sm:$0xff]
      %v499 = vld [vmem:[%s6 + $0x18] sm:$0xff]
      %v500 = vld [vmem:[%s6 + $0x20] sm:$0xff]
      %v501 = vld [vmem:[%s6 + $0x28] sm:$0xff]
      %v502 = vld [vmem:[%s6 + $0x30] sm:$0xff]
      %v503 = vld [vmem:[%s6 + $0x38] sm:$0xff]
      %v504 = vld [vmem:[%s6 + $0x40] sm:$0xff]
      %v505 = vld [vmem:[%s6 + $0x48] sm:$0xff]
      %v506 = vld [vmem:[%s6 + $0x50] sm:$0xff]
      %v507 = vld [vmem:[%s6 + $0x58] sm:$0xff]
      %v508 = vld [vmem:[%s6 + $0x60] sm:$0xff]
      %v509 = vld [vmem:[%s6 + $0x68] sm:$0xff]
      %v510 = vld [vmem:[%s6 + $0x70] sm:$0xff]
      %v511 = vld [vmem:[%s6 + $0x78] sm:$0xff]
      %v512 = vld [vmem:[%s6 + $0x80] sm:$0xff]
      %v513 = vld [vmem:[%s6 + $0x88] sm:$0xff]
      %v514 = vld [vmem:[%s6 + $0x90] sm:$0xff]
      %v515 = vld [vmem:[%s6 + $0x98] sm:$0xff]
      %v516 = vld [vmem:[%s6 + $0xa0] sm:$0xff]
      %v517 = vld [vmem:[%s6 + $0xa8] sm:$0xff]
      %v518 = vld [vmem:[%s6 + $0xb0] sm:$0xff]
      %v519 = vld [vmem:[%s6 + $0xb8] sm:$0xff]
      %v520 = vld [vmem:[%s6 + $0xc0] sm:$0xff]
      %v521 = vld [vmem:[%s6 + $0xc8] sm:$0xff]
      %v522 = vld [vmem:[%s6 + $0xd0] sm:$0xff]
      %v523 = vld [vmem:[%s6 + $0xd8] sm:$0xff]
      %v524 = vld [vmem:[%s6 + $0xe0] sm:$0xff]
      %v525 = vld [vmem:[%s6 + $0xe8] sm:$0xff]
      %v526 = vld [vmem:[%s6 + $0xf0] sm:$0xff]
      %v527 = vld [vmem:[%s6 + $0xf8] sm:$0xff]
      %v528 = vpack.c.bf16 %v494, %v492
      %v529 = vpack.c.bf16 %v495, %v493
      %v530 = vpack.c.bf16 %v497, %v496
      %v531 = vpack.c.bf16 %v499, %v498
      %v532 = vpack.c.bf16 %v501, %v500
      %v533 = vpack.c.bf16 %v503, %v502
      %v534 = vpack.c.bf16 %v505, %v504
      %v535 = vpack.c.bf16 %v507, %v506
      %v536 = vpack.c.bf16 %v509, %v508
      %v537 = vpack.c.bf16 %v511, %v510
      %v538 = vpack.c.bf16 %v513, %v512
      %v539 = vpack.c.bf16 %v515, %v514
      %v540 = vpack.c.bf16 %v517, %v516
      %v541 = vpack.c.bf16 %v519, %v518
      %v542 = vpack.c.bf16 %v521, %v520
      %v543 = vpack.c.bf16 %v523, %v522
      %v544 = vpack.c.bf16 %v525, %v524
      %v545 = vpack.c.bf16 %v527, %v526
      %v546 = vld [vmem:[%s7] sm:$0x1]
      %v548 = vperm.slane %v546, 0
      %550 = vmatpush.bf16.msra.mxu0 %v537
      %551 = vmatpush.bf16.msra.mxu0 %v536
      %552 = vmatpush.bf16.msra.mxu0 %v535
      %553 = vmatpush.bf16.msra.mxu0 %v534
      %554 = vmatpush.bf16.msra.mxu0 %v533
      %555 = vmatpush.bf16.msra.mxu0 %v532
      %556 = vmatpush.bf16.msra.mxu0 %v531
      %557 = vmatpush.bf16.msra.mxu0 %v530
      %558 = vmatmul.bf16.gmra.mxu0 %v528
      %v559 = vpop.f32.mrf.mxu0
      %v560 = vadd.f32 %v548, %v559
      %v561 = vpop.f32.mrf.mxu0
      %v562 = vadd.f32 %v548, %v561
      %563 = vdwg.mxu0
      %564 = vmatpush.bf16.msra.mxu0 %v545
      %565 = vmatpush.bf16.msra.mxu0 %v544
      %566 = vmatpush.bf16.msra.mxu0 %v543
      %567 = vmatpush.bf16.msra.mxu0 %v542
      %568 = vmatpush.bf16.msra.mxu0 %v541
      %569 = vmatpush.bf16.msra.mxu0 %v540
      %570 = vmatpush.bf16.msra.mxu0 %v539
      %571 = vmatpush.bf16.msra.mxu0 %v538
      %572 = vmatmul.bf16.gmra.mxu0 %v529
      %v573 = vpop.f32.mrf.mxu0
      %v574 = vadd.f32 %v560, %v573
      %v575 = vpop.f32.mrf.mxu0
      %v576 = vadd.f32 %v562, %v575
      %577 = vdwg.mxu0
      %v578 = vld [vmem:[%s323] sm:$0xff]
      %v579 = vld [vmem:[%s323 + $0x8] sm:$0xff]
      %v580 = vadd.f32 %v578, %v574
      %v581 = vadd.f32 %v579, %v576
      %582 = vst.msk [vmem:[%s329] sm:$0xff] %vm336, %v580
      %583 = vst.msk [vmem:[%s329 + $0x8] sm:$0xff] %vm336, %v581
      %s584 = smul.u32 2, %s19
      %p585 = scmp.lt.s32.totalorder %s584, 3
      %s586 = scalar_select %p585, %s584, 3
      %s587 = smul.addr %s586, 8
      %s588 = scalar_lea.vmem %s8, %s587
      // Predicated region
      $region53: #{forward.20} parent=51 // pred_check
        %p589 = pneg %p215
      $region54: #{forward.20} parent=51 // pred_check_branch
        %591 = sbr.rel (%p589) target = $region56
      $region55: #{forward.20} parent=51 // pred_region
        %s592 = smul.u32 2, %s19
      $region56: #{forward.20} parent=51 // pred_fallthru
        _
    $region52: #{forward.20} parent=5 // pred_fallthru
      _
    %p593 = scmp.le.s32.totalorder 2, %s14
    // Predicated region
    $region57: #{forward.20} parent=5 // pred_check
      %p594 = pneg %p593
    $region58: #{forward.20} parent=5 // pred_check_branch
      %596 = sbr.rel (%p594) target = $region60
    $region59: #{forward.20} parent=5 // pred_region
      %s597 = ssub.s32 %s14, 2
      // Predicated region
      $region61: #{forward.20} parent=59 // pred_check
        %p598 = pneg %p221
      $region62: #{forward.20} parent=59 // pred_check_branch
        %600 = sbr.rel (%p598) target = $region64
      $region63: #{forward.20} parent=59 // pred_region
        %s601 = smul.u32 2, %s20
        %p602 = scmp.lt.s32.totalorder %s601, 3
        %s603 = scalar_select %p602, %s601, 3
        %s604 = smul.addr %s603, 8
        %s605 = scalar_lea.vmem %s8, %s604
      $region64: #{forward.20} parent=59 // pred_fallthru
        _
    $region60: #{forward.20} parent=5 // pred_fallthru
      _
  $region6: #{forward.20} parent=0 // loop_footer
    %s18 = sadd.s32 1, %s14
  $region7: #{forward.20} parent=0 // loop_footer_branch
    %13 = sbr.rel target = $region3
  $region8: #{forward.20} parent=0 // loop_exit
    _

// kernel: forward.21
$region0: #{forward.21}
  #allocation0 [shape = 'u32[]', space=smem, size = 0x4, offset = 0x4, fixed_abs, tag = 'smem constant byte address 0x4 - core index']
  #allocation1 [shape = 'u32[72,128]{1,0:T(1,128)}', space=vmem, size = 0x9000, scoped, tag = 'internal scratch']
  %s0 = inlined_call_operand.vmem [shape: f32[32,64], index: 0, kind: input, shape index: {}]
  %s1 = inlined_call_operand.vmem [shape: f32[64,64], index: 1, kind: input, shape index: {}]
  %s2 = inlined_call_operand.vmem [shape: f32[1,64], index: 2, kind: input, shape index: {}]
  %s3 = inlined_call_operand.vmem [shape: f32[32,64], index: 3, kind: output, shape index: {}]
  %s4 = sld [smem:[#allocation0]]
  $region45: #{forward.21} parent=0
    _
  %s6 = ssub.s32 1, %s4
  %s7 = scalar_select 0, %s6, %s4
  loop: start=0, step=1, limit=4
  $region2: #{forward.21} parent=0 // loop_pre_header
    _
  $region3: #{forward.21} parent=0 // loop_header
    %s9 = sphi 0, %s13
    %p10 = scmp.ge.s32.totalorder %s9, 4
    %s19 = sphi 0, %s21
    %s22 = sphi 0, %s19
    %s23 = sphi 0, %s22
    %s39 = sphi 0, %s23
    %s43 = sphi 0, %s43
    %s45 = sphi 0, %s43
    %s46 = sphi 0, %s45
    %s60 = sphi 0, %s46
    %s64 = sphi 0, %s64
    %s66 = sphi 0, %s64
    %s67 = sphi 0, %s66
    %s81 = sphi 0, %s67
    %s87 = sphi 0, %s89
    %s90 = sphi 0, %s87
    %s91 = sphi 0, %s90
    %s107 = sphi 0, %s91
  $region4: #{forward.21} parent=0 // loop_header_branch
    %12 = sbr.rel (%p10) target = $region8
  $region5: #{forward.21} parent=0 // loop_body
    %s14 = ssub.s32 %s9, 1
    %s15 = ssub.s32 %s9, 2
    %s16 = sadd.s32 %s9, 1
    %s17 = ssub.s32 %s9, %s16
    %p18 = scmp.eq.s32.totalorder %s17, 0
    %s20 = sadd.s32 %s19, 1
    %s21 = scalar_select %p18, %s19, %s20
    %p24 = pneg %p18
    %p25 = scmp.eq.s32.totalorder %s9, 1
    %p26 = por %p24, %p25
    %p27 = scmp.ne.s32.totalorder %s19, %s22
    %p28 = scmp.eq.s32.totalorder %s9, 0
    %p29 = por %p27, %p28
    %p30 = scmp.ne.s32.totalorder %s19, %s22
    %p31 = scmp.eq.s32.totalorder %s14, 1
    %p32 = por %p30, %p31
    %p33 = scmp.ne.s32.totalorder %s22, %s23
    %p34 = scmp.eq.s32.totalorder %s14, 0
    %p35 = por %p33, %p34
    %p36 = scmp.ne.s32.totalorder %s22, %s23
    %p37 = scmp.eq.s32.totalorder %s15, 1
    %p38 = por %p36, %p37
    %p40 = scmp.ne.s32.totalorder %s23, %s39
    %p41 = scmp.eq.s32.totalorder %s15, 0
    %p42 = por %p40, %p41
    %s44 = sadd.s32 %s43, 1
    %p47 = scmp.eq.s32.totalorder %s9, 1
    %p48 = scmp.ne.s32.totalorder %s43, %s45
    %p49 = scmp.eq.s32.totalorder %s9, 0
    %p50 = por %p48, %p49
    %p51 = scmp.ne.s32.totalorder %s43, %s45
    %p52 = scmp.eq.s32.totalorder %s14, 1
    %p53 = por %p51, %p52
    %p54 = scmp.ne.s32.totalorder %s45, %s46
    %p55 = scmp.eq.s32.totalorder %s14, 0
    %p56 = por %p54, %p55
    %p57 = scmp.ne.s32.totalorder %s45, %s46
    %p58 = scmp.eq.s32.totalorder %s15, 1
    %p59 = por %p57, %p58
    %p61 = scmp.ne.s32.totalorder %s46, %s60
    %p62 = scmp.eq.s32.totalorder %s15, 0
    %p63 = por %p61, %p62
    %s65 = sadd.s32 %s64, 1
    %p68 = scmp.eq.s32.totalorder %s9, 1
    %p69 = scmp.ne.s32.totalorder %s64, %s66
    %p70 = scmp.eq.s32.totalorder %s9, 0
    %p71 = por %p69, %p70
    %p72 = scmp.ne.s32.totalorder %s64, %s66
    %p73 = scmp.eq.s32.totalorder %s14, 1
    %p74 = por %p72, %p73
    %p75 = scmp.ne.s32.totalorder %s66, %s67
    %p76 = scmp.eq.s32.totalorder %s14, 0
    %p77 = por %p75, %p76
    %p78 = scmp.ne.s32.totalorder %s66, %s67
    %p79 = scmp.eq.s32.totalorder %s15, 1
    %p80 = por %p78, %p79
    %p82 = scmp.ne.s32.totalorder %s67, %s81
    %p83 = scmp.eq.s32.totalorder %s15, 0
    %p84 = por %p82, %p83
    %s85 = ssub.s32 %s9, %s16
    %p86 = scmp.eq.s32.totalorder %s85, 0
    %s88 = sadd.s32 %s87, 1
    %s89 = scalar_select %p86, %s87, %s88
    %p92 = pneg %p86
    %p93 = scmp.eq.s32.totalorder %s9, 1
    %p94 = por %p92, %p93
    %p95 = scmp.ne.s32.totalorder %s87, %s90
    %p96 = scmp.eq.s32.totalorder %s9, 0
    %p97 = por %p95, %p96
    %p98 = scmp.ne.s32.totalorder %s87, %s90
    %p99 = scmp.eq.s32.totalorder %s14, 1
    %p100 = por %p98, %p99
    %p101 = scmp.ne.s32.totalorder %s90, %s91
    %p102 = scmp.eq.s32.totalorder %s14, 0
    %p103 = por %p101, %p102
    %p104 = scmp.ne.s32.totalorder %s90, %s91
    %p105 = scmp.eq.s32.totalorder %s15, 1
    %p106 = por %p104, %p105
    %p108 = scmp.ne.s32.totalorder %s91, %s107
    %p109 = scmp.eq.s32.totalorder %s15, 0
    %p110 = por %p108, %p109
    %p111 = scmp.le.s32.totalorder 1, %s9
    %p112 = scmp.lt.s32.totalorder %s9, 3
    %p113 = pnand %p111, %p112
    %p114 = pneg %p113
    // Predicated region
    $region9: #{forward.21} parent=5 // pred_check
      _
    $region10: #{forward.21} parent=5 // pred_check_branch
      %116 = sbr.rel (%p113) target = $region12
    $region11: #{forward.21} parent=5 // pred_region
      %s117 = ssub.s32 %s9, 1
      // Predicated region
      $region13: #{forward.21} parent=11 // pred_check
        %p118 = pneg %p56
      $region14: #{forward.21} parent=11 // pred_check_branch
        %120 = sbr.rel (%p118) target = $region16
      $region15: #{forward.21} parent=11 // pred_region
        _
      $region16: #{forward.21} parent=11 // pred_fallthru
        _
      // Predicated region
      $region17: #{forward.21} parent=11 // pred_check
        %p121 = pneg %p77
      $region18: #{forward.21} parent=11 // pred_check_branch
        %123 = sbr.rel (%p121) target = $region20
      $region19: #{forward.21} parent=11 // pred_region
        _
      $region20: #{forward.21} parent=11 // pred_fallthru
        _
    $region12: #{forward.21} parent=5 // pred_fallthru
      _
    %p124 = scmp.lt.s32.totalorder %s9, 2
    // Predicated region
    $region21: #{forward.21} parent=5 // pred_check
      %p125 = pneg %p124
    $region22: #{forward.21} parent=5 // pred_check_branch
      %127 = sbr.rel (%p125) target = $region24
    $region23: #{forward.21} parent=5 // pred_region
      // Predicated region
      $region25: #{forward.21} parent=23 // pred_check
        %p128 = pneg %p29
      $region26: #{forward.21} parent=23 // pred_check_branch
        %130 = sbr.rel (%p128) target = $region28
      $region27: #{forward.21} parent=23 // pred_region
        %s131 = smul.u32 2, %s9
        %p132 = scmp.lt.s32.totalorder %s131, 3
        %s133 = scalar_select %p132, %s131, 3
        %s134 = smul.addr %s133, 8
        %s135 = scalar_lea.vmem %s0, %s134
        %s136 = smul.u32 2, %s9
      $region28: #{forward.21} parent=23 // pred_fallthru
        _
    $region24: #{forward.21} parent=5 // pred_fallthru
      _
    %p137 = scmp.le.s32.totalorder 1, %s9
    %p138 = scmp.lt.s32.totalorder %s9, 3
    %p139 = pnand %p137, %p138
    %p140 = pneg %p139
    // Predicated region
    $region29: #{forward.21} parent=5 // pred_check
      _
    $region30: #{forward.21} parent=5 // pred_check_branch
      %142 = sbr.rel (%p139) target = $region32
    $region31: #{forward.21} parent=5 // pred_region
      %s143 = ssub.s32 %s9, 1
      %s144 = smul.u32 2, %s14
      %p145 = scmp.lt.s32.totalorder %s144, 3
      %s146 = scalar_select %p145, %s144, 3
      %s147 = smul.addr %s146, 8
      %s148 = scalar_lea.vmem %s0, %s147
      %p149 = pneg %p35
      %p150 = pneg %p32
      %p151 = pneg %p56
      %p152 = pneg %p53
      %p153 = pneg %p77
      %p154 = pneg %p74
      %p155 = pneg %p103
      %p156 = pneg %p100
      %s157 = smul.u32 2, %s14
      %p158 = scmp.lt.s32.totalorder %s157, 3
      %s159 = scalar_select %p158, %s157, 3
      %s160 = smul.addr %s159, 8
      %s161 = scalar_lea.vmem %s3, %s160
      %s162 = smul.u32 2, %s14
      %p163 = scmp.lt.s32.totalorder %s162, 3
      %s164 = scalar_select %p163, %s162, 3
      %s165 = smul.addr %s164, 8
      %s166 = scalar_lea.vmem %s0, %s165
      %s167 = smul.u32 2, %s14
      %s168 = smul.u32 2, %s14
      %p169 = scmp.lt.s32.totalorder %s168, 3
      %s170 = scalar_select %p169, %s168, 3
      %s171 = smul.addr %s170, 8
      %s172 = scalar_lea.vmem %s3, %s171
      %s173 = smul.u32 2, %s14
      %v175 = vld [vmem:[%s166] sm:$0xff]
      %v176 = vld [vmem:[%s166 + $0x8] sm:$0xff]
      %v177 = vld [vmem:[%s1] sm:$0xff]
      %v178 = vld [vmem:[%s1 + $0x8] sm:$0xff]
      %v179 = vld [vmem:[%s1 + $0x10] sm:$0xff]
      %v180 = vld [vmem:[%s1 + $0x18] sm:$0xff]
      %v181 = vld [vmem:[%s1 + $0x20] sm:$0xff]
      %v182 = vld [vmem:[%s1 + $0x28] sm:$0xff]
      %v183 = vld [vmem:[%s1 + $0x30] sm:$0xff]
      %v184 = vld [vmem:[%s1 + $0x38] sm:$0xff]
      %v185 = vpack.c.bf16 %v176, %v175
      %v186 = vpack.c.bf16 %v178, %v177
      %v187 = vpack.c.bf16 %v180, %v179
      %v188 = vpack.c.bf16 %v182, %v181
      %v189 = vpack.c.bf16 %v184, %v183
      %v190 = vld [vmem:[%s2] sm:$0x1]
      %v192 = vperm.slane %v190, 0
      %vm194 = vcmask 523264
      %v196 = vsel %vm194, %v185, 0
      %198 = vmatpush.bf16.msra.mxu0 0
      %199 = vmatpush.bf16.msra.mxu0 0
      %200 = vmatpush.bf16.msra.mxu0 0
      %201 = vmatpush.bf16.msra.mxu0 0
      %202 = vmatpush.bf16.msra.mxu0 %v189
      %203 = vmatpush.bf16.msra.mxu0 %v188
      %204 = vmatpush.bf16.msra.mxu0 %v187
      %205 = vmatpush.bf16.msra.mxu0 %v186
      %206 = vmatmul.bf16.gmra.mxu0 %v196
      %v207 = vpop.f32.mrf.mxu0
      %v208 = vadd.f32 %v192, %v207
      %v209 = vpop.f32.mrf.mxu0
      %v210 = vadd.f32 %v192, %v209
      %211 = vdwg.mxu0
      %212 = vst.msk [vmem:[%s172] sm:$0xff] %vm194, %v208
      %213 = vst.msk [vmem:[%s172 + $0x8] sm:$0xff] %vm194, %v210
      %s214 = smul.u32 2, %s14
      %p215 = scmp.lt.s32.totalorder %s214, 3
      %s216 = scalar_select %p215, %s214, 3
      %s217 = smul.addr %s216, 8
      %s218 = scalar_lea.vmem %s3, %s217
      // Predicated region
      $region33: #{forward.21} parent=31 // pred_check
        %p219 = pneg %p100
      $region34: #{forward.21} parent=31 // pred_check_branch
        %221 = sbr.rel (%p219) target = $region36
      $region35: #{forward.21} parent=31 // pred_region
        %s222 = smul.u32 2, %s14
      $region36: #{forward.21} parent=31 // pred_fallthru
        _
    $region32: #{forward.21} parent=5 // pred_fallthru
      _
    %p223 = scmp.le.s32.totalorder 2, %s9
    // Predicated region
    $region37: #{forward.21} parent=5 // pred_check
      %p224 = pneg %p223
    $region38: #{forward.21} parent=5 // pred_check_branch
      %226 = sbr.rel (%p224) target = $region40
    $region39: #{forward.21} parent=5 // pred_region
      %s227 = ssub.s32 %s9, 2
      // Predicated region
      $region41: #{forward.21} parent=39 // pred_check
        %p228 = pneg %p106
      $region42: #{forward.21} parent=39 // pred_check_branch
        %230 = sbr.rel (%p228) target = $region44
      $region43: #{forward.21} parent=39 // pred_region
        %s231 = smul.u32 2, %s15
        %p232 = scmp.lt.s32.totalorder %s231, 3
        %s233 = scalar_select %p232, %s231, 3
        %s234 = smul.addr %s233, 8
        %s235 = scalar_lea.vmem %s3, %s234
      $region44: #{forward.21} parent=39 // pred_fallthru
        _
    $region40: #{forward.21} parent=5 // pred_fallthru
      _
  $region6: #{forward.21} parent=0 // loop_footer
    %s13 = sadd.s32 1, %s9
  $region7: #{forward.21} parent=0 // loop_footer_branch
    %8 = sbr.rel target = $region3
  $region8: #{forward.21} parent=0 // loop_exit
    _

// kernel: forward.19
$region0: #{forward.19}
  #allocation0 [shape = 'u32[]', space=smem, size = 0x4, offset = 0x4, fixed_abs, tag = 'smem constant byte address 0x4 - core index']
  #allocation1 [shape = 'u32[72,128]{1,0:T(1,128)}', space=vmem, size = 0x9000, scoped, tag = 'internal scratch']
  %s0 = inlined_call_operand.vmem [shape: f32[2,10,10,64], index: 0, kind: input, shape index: {}]
  %s1 = inlined_call_operand.vmem [shape: f32[7,7,64], index: 1, kind: input, shape index: {}]
  %s2 = inlined_call_operand.vmem [shape: f32[1,64], index: 2, kind: input, shape index: {}]
  %s3 = inlined_call_operand.vmem [shape: f32[2,4,4,64], index: 3, kind: output, shape index: {}]
  %s4 = sld [smem:[#allocation0]]
  $region45: #{forward.19} parent=0
    _
  %s6 = ssub.s32 1, %s4
  %s7 = scalar_select 0, %s6, %s4
  loop: start=0, step=1, limit=4
  $region2: #{forward.19} parent=0 // loop_pre_header
    _
  $region3: #{forward.19} parent=0 // loop_header
    %s9 = sphi 0, %s13
    %p10 = scmp.ge.s32.totalorder %s9, 4
    %s19 = sphi 0, %s21
    %s22 = sphi 0, %s19
    %s23 = sphi 0, %s22
    %s39 = sphi 0, %s23
    %s43 = sphi 0, %s43
    %s45 = sphi 0, %s43
    %s46 = sphi 0, %s45
    %s60 = sphi 0, %s46
    %s64 = sphi 0, %s64
    %s66 = sphi 0, %s64
    %s67 = sphi 0, %s66
    %s81 = sphi 0, %s67
    %s87 = sphi 0, %s89
    %s90 = sphi 0, %s87
    %s91 = sphi 0, %s90
    %s107 = sphi 0, %s91
  $region4: #{forward.19} parent=0 // loop_header_branch
    %12 = sbr.rel (%p10) target = $region8
  $region5: #{forward.19} parent=0 // loop_body
    %s14 = ssub.s32 %s9, 1
    %s15 = ssub.s32 %s9, 2
    %s16 = sadd.s32 %s9, 1
    %s17 = ssub.s32 %s9, %s16
    %p18 = scmp.eq.s32.totalorder %s17, 0
    %s20 = sadd.s32 %s19, 1
    %s21 = scalar_select %p18, %s19, %s20
    %p24 = pneg %p18
    %p25 = scmp.eq.s32.totalorder %s9, 1
    %p26 = por %p24, %p25
    %p27 = scmp.ne.s32.totalorder %s19, %s22
    %p28 = scmp.eq.s32.totalorder %s9, 0
    %p29 = por %p27, %p28
    %p30 = scmp.ne.s32.totalorder %s19, %s22
    %p31 = scmp.eq.s32.totalorder %s14, 1
    %p32 = por %p30, %p31
    %p33 = scmp.ne.s32.totalorder %s22, %s23
    %p34 = scmp.eq.s32.totalorder %s14, 0
    %p35 = por %p33, %p34
    %p36 = scmp.ne.s32.totalorder %s22, %s23
    %p37 = scmp.eq.s32.totalorder %s15, 1
    %p38 = por %p36, %p37
    %p40 = scmp.ne.s32.totalorder %s23, %s39
    %p41 = scmp.eq.s32.totalorder %s15, 0
    %p42 = por %p40, %p41
    %s44 = sadd.s32 %s43, 1
    %p47 = scmp.eq.s32.totalorder %s9, 1
    %p48 = scmp.ne.s32.totalorder %s43, %s45
    %p49 = scmp.eq.s32.totalorder %s9, 0
    %p50 = por %p48, %p49
    %p51 = scmp.ne.s32.totalorder %s43, %s45
    %p52 = scmp.eq.s32.totalorder %s14, 1
    %p53 = por %p51, %p52
    %p54 = scmp.ne.s32.totalorder %s45, %s46
    %p55 = scmp.eq.s32.totalorder %s14, 0
    %p56 = por %p54, %p55
    %p57 = scmp.ne.s32.totalorder %s45, %s46
    %p58 = scmp.eq.s32.totalorder %s15, 1
    %p59 = por %p57, %p58
    %p61 = scmp.ne.s32.totalorder %s46, %s60
    %p62 = scmp.eq.s32.totalorder %s15, 0
    %p63 = por %p61, %p62
    %s65 = sadd.s32 %s64, 1
    %p68 = scmp.eq.s32.totalorder %s9, 1
    %p69 = scmp.ne.s32.totalorder %s64, %s66
    %p70 = scmp.eq.s32.totalorder %s9, 0
    %p71 = por %p69, %p70
    %p72 = scmp.ne.s32.totalorder %s64, %s66
    %p73 = scmp.eq.s32.totalorder %s14, 1
    %p74 = por %p72, %p73
    %p75 = scmp.ne.s32.totalorder %s66, %s67
    %p76 = scmp.eq.s32.totalorder %s14, 0
    %p77 = por %p75, %p76
    %p78 = scmp.ne.s32.totalorder %s66, %s67
    %p79 = scmp.eq.s32.totalorder %s15, 1
    %p80 = por %p78, %p79
    %p82 = scmp.ne.s32.totalorder %s67, %s81
    %p83 = scmp.eq.s32.totalorder %s15, 0
    %p84 = por %p82, %p83
    %s85 = ssub.s32 %s9, %s16
    %p86 = scmp.eq.s32.totalorder %s85, 0
    %s88 = sadd.s32 %s87, 1
    %s89 = scalar_select %p86, %s87, %s88
    %p92 = pneg %p86
    %p93 = scmp.eq.s32.totalorder %s9, 1
    %p94 = por %p92, %p93
    %p95 = scmp.ne.s32.totalorder %s87, %s90
    %p96 = scmp.eq.s32.totalorder %s9, 0
    %p97 = por %p95, %p96
    %p98 = scmp.ne.s32.totalorder %s87, %s90
    %p99 = scmp.eq.s32.totalorder %s14, 1
    %p100 = por %p98, %p99
    %p101 = scmp.ne.s32.totalorder %s90, %s91
    %p102 = scmp.eq.s32.totalorder %s14, 0
    %p103 = por %p101, %p102
    %p104 = scmp.ne.s32.totalorder %s90, %s91
    %p105 = scmp.eq.s32.totalorder %s15, 1
    %p106 = por %p104, %p105
    %p108 = scmp.ne.s32.totalorder %s91, %s107
    %p109 = scmp.eq.s32.totalorder %s15, 0
    %p110 = por %p108, %p109
    %p111 = scmp.le.s32.totalorder 1, %s9
    %p112 = scmp.lt.s32.totalorder %s9, 3
    %p113 = pnand %p111, %p112
    %p114 = pneg %p113
    // Predicated region
    $region9: #{forward.19} parent=5 // pred_check
      _
    $region10: #{forward.19} parent=5 // pred_check_branch
      %116 = sbr.rel (%p113) target = $region12
    $region11: #{forward.19} parent=5 // pred_region
      %s117 = ssub.s32 %s9, 1
      // Predicated region
      $region13: #{forward.19} parent=11 // pred_check
        %p118 = pneg %p56
      $region14: #{forward.19} parent=11 // pred_check_branch
        %120 = sbr.rel (%p118) target = $region16
      $region15: #{forward.19} parent=11 // pred_region
        _
      $region16: #{forward.19} parent=11 // pred_fallthru
        _
      // Predicated region
      $region17: #{forward.19} parent=11 // pred_check
        %p121 = pneg %p77
      $region18: #{forward.19} parent=11 // pred_check_branch
        %123 = sbr.rel (%p121) target = $region20
      $region19: #{forward.19} parent=11 // pred_region
        _
      $region20: #{forward.19} parent=11 // pred_fallthru
        _
    $region12: #{forward.19} parent=5 // pred_fallthru
      _
    %p124 = scmp.lt.s32.totalorder %s9, 2
    // Predicated region
    $region21: #{forward.19} parent=5 // pred_check
      %p125 = pneg %p124
    $region22: #{forward.19} parent=5 // pred_check_branch
      %127 = sbr.rel (%p125) target = $region24
    $region23: #{forward.19} parent=5 // pred_region
      // Predicated region
      $region25: #{forward.19} parent=23 // pred_check
        %p128 = pneg %p29
      $region26: #{forward.19} parent=23 // pred_check_branch
        %130 = sbr.rel (%p128) target = $region28
      $region27: #{forward.19} parent=23 // pred_region
        %p131 = scmp.lt.s32.totalorder %s9, 1
        %s132 = scalar_select %p131, %s9, 1
        %s133 = smul.addr %s132, 20
        %s134 = smul.addr %s133, 8
        %s135 = scalar_lea.vmem %s0, %s134
      $region28: #{forward.19} parent=23 // pred_fallthru
        _
    $region24: #{forward.19} parent=5 // pred_fallthru
      _
    %p136 = scmp.le.s32.totalorder 1, %s9
    %p137 = scmp.lt.s32.totalorder %s9, 3
    %p138 = pnand %p136, %p137
    %p139 = pneg %p138
    // Predicated region
    $region29: #{forward.19} parent=5 // pred_check
      _
    $region30: #{forward.19} parent=5 // pred_check_branch
      %141 = sbr.rel (%p138) target = $region32
    $region31: #{forward.19} parent=5 // pred_region
      %s142 = ssub.s32 %s9, 1
      %p143 = scmp.lt.s32.totalorder %s14, 1
      %s144 = scalar_select %p143, %s14, 1
      %s145 = smul.addr %s144, 20
      %s146 = smul.addr %s145, 8
      %s147 = scalar_lea.vmem %s0, %s146
      %p148 = pneg %p35
      %p149 = pneg %p32
      %p150 = pneg %p56
      %p151 = pneg %p53
      %p152 = pneg %p77
      %p153 = pneg %p74
      %p154 = pneg %p103
      %p155 = pneg %p100
      %p156 = scmp.lt.s32.totalorder %s14, 1
      %s157 = scalar_select %p156, %s14, 1
      %s158 = smul.addr %s157, 4
      %s159 = smul.addr %s158, 4
      %s160 = scalar_lea.vmem %s3, %s159
      %p161 = scmp.lt.s32.totalorder %s14, 1
      %s162 = scalar_select %p161, %s14, 1
      %s163 = smul.addr %s162, 20
      %s164 = smul.addr %s163, 8
      %s165 = scalar_lea.vmem %s0, %s164
      %p166 = scmp.lt.s32.totalorder %s14, 1
      %s167 = scalar_select %p166, %s14, 1
      %s168 = smul.addr %s167, 4
      %s169 = smul.addr %s168, 4
      %s170 = scalar_lea.vmem %s3, %s169
      %v171 = vld [vmem:[%s1] sm:$0x7f]
      %v172 = vld [vmem:[%s1 + $0x8] sm:$0x7f]
      %v173 = vld [vmem:[%s1 + $0x10] sm:$0x7f]
      %v174 = vld [vmem:[%s1 + $0x18] sm:$0x7f]
      %v175 = vld [vmem:[%s1 + $0x20] sm:$0x7f]
      %v176 = vld [vmem:[%s1 + $0x28] sm:$0x7f]
      %v177 = vld [vmem:[%s1 + $0x30] sm:$0x7f]
      %v178 = vld [vmem:[%s165] sm:$0xf]
      %v179 = vld [vmem:[%s165 + $0x10] sm:$0xf]
      %v180 = vld [vmem:[%s165 + $0x20] sm:$0xf]
      %v181 = vld [vmem:[%s165 + $0x30] sm:$0xf]
      %v182 = vperm.slane %v171, 0
      %v183 = vmul.f32 %v178, %v182
      %v184 = vmul.f32 %v179, %v182
      %v185 = vmul.f32 %v180, %v182
      %v186 = vmul.f32 %v181, %v182
      %v187 = vadd.f32 %v183, 0.0
      %v188 = vadd.f32 %v184, 0.0
      %v189 = vadd.f32 %v185, 0.0
      %v190 = vadd.f32 %v186, 0.0
      %v191 = vld [vmem:[%s165 + $0x1] sm:$0xf]
      %v192 = vld [vmem:[%s165 + $0x11] sm:$0xf]
      %v193 = vld [vmem:[%s165 + $0x21] sm:$0xf]
      %v194 = vld [vmem:[%s165 + $0x31] sm:$0xf]
      %v195 = vperm.slane %v171, 1
      %v196 = vmul.f32 %v191, %v195
      %v197 = vmul.f32 %v192, %v195
      %v198 = vmul.f32 %v193, %v195
      %v199 = vmul.f32 %v194, %v195
      %v200 = vadd.f32 %v187, %v196
      %v201 = vadd.f32 %v188, %v197
      %v202 = vadd.f32 %v189, %v198
      %v203 = vadd.f32 %v190, %v199
      %v204 = vld [vmem:[%s165 + $0x2] sm:$0xf]
      %v205 = vld [vmem:[%s165 + $0x12] sm:$0xf]
      %v206 = vld [vmem:[%s165 + $0x22] sm:$0xf]
      %v207 = vld [vmem:[%s165 + $0x32] sm:$0xf]
      %v208 = vperm.slane %v171, 2
      %v209 = vmul.f32 %v204, %v208
      %v210 = vmul.f32 %v205, %v208
      %v211 = vmul.f32 %v206, %v208
      %v212 = vmul.f32 %v207, %v208
      %v213 = vadd.f32 %v200, %v209
      %v214 = vadd.f32 %v201, %v210
      %v215 = vadd.f32 %v202, %v211
      %v216 = vadd.f32 %v203, %v212
      %v217 = vld [vmem:[%s165 + $0x3] sm:$0xf]
      %v218 = vld [vmem:[%s165 + $0x13] sm:$0xf]
      %v219 = vld [vmem:[%s165 + $0x23] sm:$0xf]
      %v220 = vld [vmem:[%s165 + $0x33] sm:$0xf]
      %v221 = vperm.slane %v171, 3
      %v222 = vmul.f32 %v217, %v221
      %v223 = vmul.f32 %v218, %v221
      %v224 = vmul.f32 %v219, %v221
      %v225 = vmul.f32 %v220, %v221
      %v226 = vadd.f32 %v213, %v222
      %v227 = vadd.f32 %v214, %v223
      %v228 = vadd.f32 %v215, %v224
      %v229 = vadd.f32 %v216, %v225
      %v230 = vld [vmem:[%s165 + $0x4] sm:$0xf]
      %v231 = vld [vmem:[%s165 + $0x14] sm:$0xf]
      %v232 = vld [vmem:[%s165 + $0x24] sm:$0xf]
      %v233 = vld [vmem:[%s165 + $0x34] sm:$0xf]
      %v234 = vperm.slane %v171, 4
      %v235 = vmul.f32 %v230, %v234
      %v236 = vmul.f32 %v231, %v234
      %v237 = vmul.f32 %v232, %v234
      %v238 = vmul.f32 %v233, %v234
      %v239 = vadd.f32 %v226, %v235
      %v240 = vadd.f32 %v227, %v236
      %v241 = vadd.f32 %v228, %v237
      %v242 = vadd.f32 %v229, %v238
      %v243 = vld [vmem:[%s165 + $0x5] sm:$0xf]
      %v244 = vld [vmem:[%s165 + $0x15] sm:$0xf]
      %v245 = vld [vmem:[%s165 + $0x25] sm:$0xf]
      %v246 = vld [vmem:[%s165 + $0x35] sm:$0xf]
      %v247 = vperm.slane %v171, 5
      %v248 = vmul.f32 %v243, %v247
      %v249 = vmul.f32 %v244, %v247
      %v250 = vmul.f32 %v245, %v247
      %v251 = vmul.f32 %v246, %v247
      %v252 = vadd.f32 %v239, %v248
      %v253 = vadd.f32 %v240, %v249
      %v254 = vadd.f32 %v241, %v250
      %v255 = vadd.f32 %v242, %v251
      %v256 = vld [vmem:[%s165 + $0x6] sm:$0xf]
      %v257 = vld [vmem:[%s165 + $0x16] sm:$0xf]
      %v258 = vld [vmem:[%s165 + $0x26] sm:$0xf]
      %v259 = vld [vmem:[%s165 + $0x36] sm:$0xf]
      %v260 = vperm.slane %v171, 6
      %v261 = vmul.f32 %v256, %v260
      %v262 = vmul.f32 %v257, %v260
      %v263 = vmul.f32 %v258, %v260
      %v264 = vmul.f32 %v259, %v260
      %v265 = vadd.f32 %v252, %v261
      %v266 = vadd.f32 %v253, %v262
      %v267 = vadd.f32 %v254, %v263
      %v268 = vadd.f32 %v255, %v264
      %s269 = scalar_lea.vmem %s165, 16
      %v270 = vld [vmem:[%s269] sm:$0xf]
      %v271 = vld [vmem:[%s269 + $0x10] sm:$0xf]
      %v272 = vld [vmem:[%s269 + $0x20] sm:$0xf]
      %v273 = vld [vmem:[%s269 + $0x30] sm:$0xf]
      %v274 = vperm.slane %v172, 0
      %v275 = vmul.f32 %v270, %v274
      %v276 = vmul.f32 %v271, %v274
      %v277 = vmul.f32 %v272, %v274
      %v278 = vmul.f32 %v273, %v274
      %v279 = vadd.f32 %v265, %v275
      %v280 = vadd.f32 %v266, %v276
      %v281 = vadd.f32 %v267, %v277
      %v282 = vadd.f32 %v268, %v278
      %v283 = vld [vmem:[%s269 + $0x1] sm:$0xf]
      %v284 = vld [vmem:[%s269 + $0x11] sm:$0xf]
      %v285 = vld [vmem:[%s269 + $0x21] sm:$0xf]
      %v286 = vld [vmem:[%s269 + $0x31] sm:$0xf]
      %v287 = vperm.slane %v172, 1
      %v288 = vmul.f32 %v283, %v287
      %v289 = vmul.f32 %v284, %v287
      %v290 = vmul.f32 %v285, %v287
      %v291 = vmul.f32 %v286, %v287
      %v292 = vadd.f32 %v279, %v288
      %v293 = vadd.f32 %v280, %v289
      %v294 = vadd.f32 %v281, %v290
      %v295 = vadd.f32 %v282, %v291
      %v296 = vld [vmem:[%s269 + $0x2] sm:$0xf]
      %v297 = vld [vmem:[%s269 + $0x12] sm:$0xf]
      %v298 = vld [vmem:[%s269 + $0x22] sm:$0xf]
      %v299 = vld [vmem:[%s269 + $0x32] sm:$0xf]
      %v300 = vperm.slane %v172, 2
      %v301 = vmul.f32 %v296, %v300
      %v302 = vmul.f32 %v297, %v300
      %v303 = vmul.f32 %v298, %v300
      %v304 = vmul.f32 %v299, %v300
      %v305 = vadd.f32 %v292, %v301
      %v306 = vadd.f32 %v293, %v302
      %v307 = vadd.f32 %v294, %v303
      %v308 = vadd.f32 %v295, %v304
      %v309 = vld [vmem:[%s269 + $0x3] sm:$0xf]
      %v310 = vld [vmem:[%s269 + $0x13] sm:$0xf]
      %v311 = vld [vmem:[%s269 + $0x23] sm:$0xf]
      %v312 = vld [vmem:[%s269 + $0x33] sm:$0xf]
      %v313 = vperm.slane %v172, 3
      %v314 = vmul.f32 %v309, %v313
      %v315 = vmul.f32 %v310, %v313
      %v316 = vmul.f32 %v311, %v313
      %v317 = vmul.f32 %v312, %v313
      %v318 = vadd.f32 %v305, %v314
      %v319 = vadd.f32 %v306, %v315
      %v320 = vadd.f32 %v307, %v316
      %v321 = vadd.f32 %v308, %v317
      %v322 = vld [vmem:[%s269 + $0x4] sm:$0xf]
      %v323 = vld [vmem:[%s269 + $0x14] sm:$0xf]
      %v324 = vld [vmem:[%s269 + $0x24] sm:$0xf]
      %v325 = vld [vmem:[%s269 + $0x34] sm:$0xf]
      %v326 = vperm.slane %v172, 4
      %v327 = vmul.f32 %v322, %v326
      %v328 = vmul.f32 %v323, %v326
      %v329 = vmul.f32 %v324, %v326
      %v330 = vmul.f32 %v325, %v326
      %v331 = vadd.f32 %v318, %v327
      %v332 = vadd.f32 %v319, %v328
      %v333 = vadd.f32 %v320, %v329
      %v334 = vadd.f32 %v321, %v330
      %v335 = vld [vmem:[%s269 + $0x5] sm:$0xf]
      %v336 = vld [vmem:[%s269 + $0x15] sm:$0xf]
      %v337 = vld [vmem:[%s269 + $0x25] sm:$0xf]
      %v338 = vld [vmem:[%s269 + $0x35] sm:$0xf]
      %v339 = vperm.slane %v172, 5
      %v340 = vmul.f32 %v335, %v339
      %v341 = vmul.f32 %v336, %v339
      %v342 = vmul.f32 %v337, %v339
      %v343 = vmul.f32 %v338, %v339
      %v344 = vadd.f32 %v331, %v340
      %v345 = vadd.f32 %v332, %v341
      %v346 = vadd.f32 %v333, %v342
      %v347 = vadd.f32 %v334, %v343
      %v348 = vld [vmem:[%s269 + $0x6] sm:$0xf]
      %v349 = vld [vmem:[%s269 + $0x16] sm:$0xf]
      %v350 = vld [vmem:[%s269 + $0x26] sm:$0xf]
      %v351 = vld [vmem:[%s269 + $0x36] sm:$0xf]
      %v352 = vperm.slane %v172, 6
      %v353 = vmul.f32 %v348, %v352
      %v354 = vmul.f32 %v349, %v352
      %v355 = vmul.f32 %v350, %v352
      %v356 = vmul.f32 %v351, %v352
      %v357 = vadd.f32 %v344, %v353
      %v358 = vadd.f32 %v345, %v354
      %v359 = vadd.f32 %v346, %v355
      %v360 = vadd.f32 %v347, %v356
      %s361 = scalar_lea.vmem %s165, 32
      %v362 = vld [vmem:[%s361] sm:$0xf]
      %v363 = vld [vmem:[%s361 + $0x10] sm:$0xf]
      %v364 = vld [vmem:[%s361 + $0x20] sm:$0xf]
      %v365 = vld [vmem:[%s361 + $0x30] sm:$0xf]
      %v366 = vperm.slane %v173, 0
      %v367 = vmul.f32 %v362, %v366
      %v368 = vmul.f32 %v363, %v366
      %v369 = vmul.f32 %v364, %v366
      %v370 = vmul.f32 %v365, %v366
      %v371 = vadd.f32 %v357, %v367
      %v372 = vadd.f32 %v358, %v368
      %v373 = vadd.f32 %v359, %v369
      %v374 = vadd.f32 %v360, %v370
      %v375 = vld [vmem:[%s361 + $0x1] sm:$0xf]
      %v376 = vld [vmem:[%s361 + $0x11] sm:$0xf]
      %v377 = vld [vmem:[%s361 + $0x21] sm:$0xf]
      %v378 = vld [vmem:[%s361 + $0x31] sm:$0xf]
      %v379 = vperm.slane %v173, 1
      %v380 = vmul.f32 %v375, %v379
      %v381 = vmul.f32 %v376, %v379
      %v382 = vmul.f32 %v377, %v379
      %v383 = vmul.f32 %v378, %v379
      %v384 = vadd.f32 %v371, %v380
      %v385 = vadd.f32 %v372, %v381
      %v386 = vadd.f32 %v373, %v382
      %v387 = vadd.f32 %v374, %v383
      %v388 = vld [vmem:[%s361 + $0x2] sm:$0xf]
      %v389 = vld [vmem:[%s361 + $0x12] sm:$0xf]
      %v390 = vld [vmem:[%s361 + $0x22] sm:$0xf]
      %v391 = vld [vmem:[%s361 + $0x32] sm:$0xf]
      %v392 = vperm.slane %v173, 2
      %v393 = vmul.f32 %v388, %v392
      %v394 = vmul.f32 %v389, %v392
      %v395 = vmul.f32 %v390, %v392
      %v396 = vmul.f32 %v391, %v392
      %v397 = vadd.f32 %v384, %v393
      %v398 = vadd.f32 %v385, %v394
      %v399 = vadd.f32 %v386, %v395
      %v400 = vadd.f32 %v387, %v396
      %v401 = vld [vmem:[%s361 + $0x3] sm:$0xf]
      %v402 = vld [vmem:[%s361 + $0x13] sm:$0xf]
      %v403 = vld [vmem:[%s361 + $0x23] sm:$0xf]
      %v404 = vld [vmem:[%s361 + $0x33] sm:$0xf]
      %v405 = vperm.slane %v173, 3
      %v406 = vmul.f32 %v401, %v405
      %v407 = vmul.f32 %v402, %v405
      %v408 = vmul.f32 %v403, %v405
      %v409 = vmul.f32 %v404, %v405
      %v410 = vadd.f32 %v397, %v406
      %v411 = vadd.f32 %v398, %v407
      %v412 = vadd.f32 %v399, %v408
      %v413 = vadd.f32 %v400, %v409
      %v414 = vld [vmem:[%s361 + $0x4] sm:$0xf]
      %v415 = vld [vmem:[%s361 + $0x14] sm:$0xf]
      %v416 = vld [vmem:[%s361 + $0x24] sm:$0xf]
      %v417 = vld [vmem:[%s361 + $0x34] sm:$0xf]
      %v418 = vperm.slane %v173, 4
      %v419 = vmul.f32 %v414, %v418
      %v420 = vmul.f32 %v415, %v418
      %v421 = vmul.f32 %v416, %v418
      %v422 = vmul.f32 %v417, %v418
      %v423 = vadd.f32 %v410, %v419
      %v424 = vadd.f32 %v411, %v420
      %v425 = vadd.f32 %v412, %v421
      %v426 = vadd.f32 %v413, %v422
      %v427 = vld [vmem:[%s361 + $0x5] sm:$0xf]
      %v428 = vld [vmem:[%s361 + $0x15] sm:$0xf]
      %v429 = vld [vmem:[%s361 + $0x25] sm:$0xf]
      %v430 = vld [vmem:[%s361 + $0x35] sm:$0xf]
      %v431 = vperm.slane %v173, 5
      %v432 = vmul.f32 %v427, %v431
      %v433 = vmul.f32 %v428, %v431
      %v434 = vmul.f32 %v429, %v431
      %v435 = vmul.f32 %v430, %v431
      %v436 = vadd.f32 %v423, %v432
      %v437 = vadd.f32 %v424, %v433
      %v438 = vadd.f32 %v425, %v434
      %v439 = vadd.f32 %v426, %v435
      %v440 = vld [vmem:[%s361 + $0x6] sm:$0xf]
      %v441 = vld [vmem:[%s361 + $0x16] sm:$0xf]
      %v442 = vld [vmem:[%s361 + $0x26] sm:$0xf]
      %v443 = vld [vmem:[%s361 + $0x36] sm:$0xf]
      %v444 = vperm.slane %v173, 6
      %v445 = vmul.f32 %v440, %v444
      %v446 = vmul.f32 %v441, %v444
      %v447 = vmul.f32 %v442, %v444
      %v448 = vmul.f32 %v443, %v444
      %v449 = vadd.f32 %v436, %v445
      %v450 = vadd.f32 %v437, %v446
      %v451 = vadd.f32 %v438, %v447
      %v452 = vadd.f32 %v439, %v448
      %s453 = scalar_lea.vmem %s165, 48
      %v454 = vld [vmem:[%s453] sm:$0xf]
      %v455 = vld [vmem:[%s453 + $0x10] sm:$0xf]
      %v456 = vld [vmem:[%s453 + $0x20] sm:$0xf]
      %v457 = vld [vmem:[%s453 + $0x30] sm:$0xf]
      %v458 = vperm.slane %v174, 0
      %v459 = vmul.f32 %v454, %v458
      %v460 = vmul.f32 %v455, %v458
      %v461 = vmul.f32 %v456, %v458
      %v462 = vmul.f32 %v457, %v458
      %v463 = vadd.f32 %v449, %v459
      %v464 = vadd.f32 %v450, %v460
      %v465 = vadd.f32 %v451, %v461
      %v466 = vadd.f32 %v452, %v462
      %v467 = vld [vmem:[%s453 + $0x1] sm:$0xf]
      %v468 = vld [vmem:[%s453 + $0x11] sm:$0xf]
      %v469 = vld [vmem:[%s453 + $0x21] sm:$0xf]
      %v470 = vld [vmem:[%s453 + $0x31] sm:$0xf]
      %v471 = vperm.slane %v174, 1
      %v472 = vmul.f32 %v467, %v471
      %v473 = vmul.f32 %v468, %v471
      %v474 = vmul.f32 %v469, %v471
      %v475 = vmul.f32 %v470, %v471
      %v476 = vadd.f32 %v463, %v472
      %v477 = vadd.f32 %v464, %v473
      %v478 = vadd.f32 %v465, %v474
      %v479 = vadd.f32 %v466, %v475
      %v480 = vld [vmem:[%s453 + $0x2] sm:$0xf]
      %v481 = vld [vmem:[%s453 + $0x12] sm:$0xf]
      %v482 = vld [vmem:[%s453 + $0x22] sm:$0xf]
      %v483 = vld [vmem:[%s453 + $0x32] sm:$0xf]
      %v484 = vperm.slane %v174, 2
      %v485 = vmul.f32 %v480, %v484
      %v486 = vmul.f32 %v481, %v484
      %v487 = vmul.f32 %v482, %v484
      %v488 = vmul.f32 %v483, %v484
      %v489 = vadd.f32 %v476, %v485
      %v490 = vadd.f32 %v477, %v486
      %v491 = vadd.f32 %v478, %v487
      %v492 = vadd.f32 %v479, %v488
      %v493 = vld [vmem:[%s453 + $0x3] sm:$0xf]
      %v494 = vld [vmem:[%s453 + $0x13] sm:$0xf]
      %v495 = vld [vmem:[%s453 + $0x23] sm:$0xf]
      %v496 = vld [vmem:[%s453 + $0x33] sm:$0xf]
      %v497 = vperm.slane %v174, 3
      %v498 = vmul.f32 %v493, %v497
      %v499 = vmul.f32 %v494, %v497
      %v500 = vmul.f32 %v495, %v497
      %v501 = vmul.f32 %v496, %v497
      %v502 = vadd.f32 %v489, %v498
      %v503 = vadd.f32 %v490, %v499
      %v504 = vadd.f32 %v491, %v500
      %v505 = vadd.f32 %v492, %v501
      %v506 = vld [vmem:[%s453 + $0x4] sm:$0xf]
      %v507 = vld [vmem:[%s453 + $0x14] sm:$0xf]
      %v508 = vld [vmem:[%s453 + $0x24] sm:$0xf]
      %v509 = vld [vmem:[%s453 + $0x34] sm:$0xf]
      %v510 = vperm.slane %v174, 4
      %v511 = vmul.f32 %v506, %v510
      %v512 = vmul.f32 %v507, %v510
      %v513 = vmul.f32 %v508, %v510
      %v514 = vmul.f32 %v509, %v510
      %v515 = vadd.f32 %v502, %v511
      %v516 = vadd.f32 %v503, %v512
      %v517 = vadd.f32 %v504, %v513
      %v518 = vadd.f32 %v505, %v514
      %v519 = vld [vmem:[%s453 + $0x5] sm:$0xf]
      %v520 = vld [vmem:[%s453 + $0x15] sm:$0xf]
      %v521 = vld [vmem:[%s453 + $0x25] sm:$0xf]
      %v522 = vld [vmem:[%s453 + $0x35] sm:$0xf]
      %v523 = vperm.slane %v174, 5
      %v524 = vmul.f32 %v519, %v523
      %v525 = vmul.f32 %v520, %v523
      %v526 = vmul.f32 %v521, %v523
      %v527 = vmul.f32 %v522, %v523
      %v528 = vadd.f32 %v515, %v524
      %v529 = vadd.f32 %v516, %v525
      %v530 = vadd.f32 %v517, %v526
      %v531 = vadd.f32 %v518, %v527
      %v532 = vld [vmem:[%s453 + $0x6] sm:$0xf]
      %v533 = vld [vmem:[%s453 + $0x16] sm:$0xf]
      %v534 = vld [vmem:[%s453 + $0x26] sm:$0xf]
      %v535 = vld [vmem:[%s453 + $0x36] sm:$0xf]
      %v536 = vperm.slane %v174, 6
      %v537 = vmul.f32 %v532, %v536
      %v538 = vmul.f32 %v533, %v536
      %v539 = vmul.f32 %v534, %v536
      %v540 = vmul.f32 %v535, %v536
      %v541 = vadd.f32 %v528, %v537
      %v542 = vadd.f32 %v529, %v538
      %v543 = vadd.f32 %v530, %v539
      %v544 = vadd.f32 %v531, %v540
      %s545 = scalar_lea.vmem %s165, 64
      %v546 = vld [vmem:[%s545] sm:$0xf]
      %v547 = vld [vmem:[%s545 + $0x10] sm:$0xf]
      %v548 = vld [vmem:[%s545 + $0x20] sm:$0xf]
      %v549 = vld [vmem:[%s545 + $0x30] sm:$0xf]
      %v550 = vperm.slane %v175, 0
      %v551 = vmul.f32 %v546, %v550
      %v552 = vmul.f32 %v547, %v550
      %v553 = vmul.f32 %v548, %v550
      %v554 = vmul.f32 %v549, %v550
      %v555 = vadd.f32 %v541, %v551
      %v556 = vadd.f32 %v542, %v552
      %v557 = vadd.f32 %v543, %v553
      %v558 = vadd.f32 %v544, %v554
      %v559 = vld [vmem:[%s545 + $0x1] sm:$0xf]
      %v560 = vld [vmem:[%s545 + $0x11] sm:$0xf]
      %v561 = vld [vmem:[%s545 + $0x21] sm:$0xf]
      %v562 = vld [vmem:[%s545 + $0x31] sm:$0xf]
      %v563 = vperm.slane %v175, 1
      %v564 = vmul.f32 %v559, %v563
      %v565 = vmul.f32 %v560, %v563
      %v566 = vmul.f32 %v561, %v563
      %v567 = vmul.f32 %v562, %v563
      %v568 = vadd.f32 %v555, %v564
      %v569 = vadd.f32 %v556, %v565
      %v570 = vadd.f32 %v557, %v566
      %v571 = vadd.f32 %v558, %v567
      %v572 = vld [vmem:[%s545 + $0x2] sm:$0xf]
      %v573 = vld [vmem:[%s545 + $0x12] sm:$0xf]
      %v574 = vld [vmem:[%s545 + $0x22] sm:$0xf]
      %v575 = vld [vmem:[%s545 + $0x32] sm:$0xf]
      %v576 = vperm.slane %v175, 2
      %v577 = vmul.f32 %v572, %v576
      %v578 = vmul.f32 %v573, %v576
      %v579 = vmul.f32 %v574, %v576
      %v580 = vmul.f32 %v575, %v576
      %v581 = vadd.f32 %v568, %v577
      %v582 = vadd.f32 %v569, %v578
      %v583 = vadd.f32 %v570, %v579
      %v584 = vadd.f32 %v571, %v580
      %v585 = vld [vmem:[%s545 + $0x3] sm:$0xf]
      %v586 = vld [vmem:[%s545 + $0x13] sm:$0xf]
      %v587 = vld [vmem:[%s545 + $0x23] sm:$0xf]
      %v588 = vld [vmem:[%s545 + $0x33] sm:$0xf]
      %v589 = vperm.slane %v175, 3
      %v590 = vmul.f32 %v585, %v589
      %v591 = vmul.f32 %v586, %v589
      %v592 = vmul.f32 %v587, %v589
      %v593 = vmul.f32 %v588, %v589
      %v594 = vadd.f32 %v581, %v590
      %v595 = vadd.f32 %v582, %v591
      %v596 = vadd.f32 %v583, %v592
      %v597 = vadd.f32 %v584, %v593
      %v598 = vld [vmem:[%s545 + $0x4] sm:$0xf]
      %v599 = vld [vmem:[%s545 + $0x14] sm:$0xf]
      %v600 = vld [vmem:[%s545 + $0x24] sm:$0xf]
      %v601 = vld [vmem:[%s545 + $0x34] sm:$0xf]
      %v602 = vperm.slane %v175, 4
      %v603 = vmul.f32 %v598, %v602
      %v604 = vmul.f32 %v599, %v602
      %v605 = vmul.f32 %v600, %v602
      %v606 = vmul.f32 %v601, %v602
      %v607 = vadd.f32 %v594, %v603
      %v608 = vadd.f32 %v595, %v604
      %v609 = vadd.f32 %v596, %v605
      %v610 = vadd.f32 %v597, %v606
      %v611 = vld [vmem:[%s545 + $0x5] sm:$0xf]
      %v612 = vld [vmem:[%s545 + $0x15] sm:$0xf]
      %v613 = vld [vmem:[%s545 + $0x25] sm:$0xf]
      %v614 = vld [vmem:[%s545 + $0x35] sm:$0xf]
      %v615 = vperm.slane %v175, 5
      %v616 = vmul.f32 %v611, %v615
      %v617 = vmul.f32 %v612, %v615
      %v618 = vmul.f32 %v613, %v615
      %v619 = vmul.f32 %v614, %v615
      %v620 = vadd.f32 %v607, %v616
      %v621 = vadd.f32 %v608, %v617
      %v622 = vadd.f32 %v609, %v618
      %v623 = vadd.f32 %v610, %v619
      %v624 = vld [vmem:[%s545 + $0x6] sm:$0xf]
      %v625 = vld [vmem:[%s545 + $0x16] sm:$0xf]
      %v626 = vld [vmem:[%s545 + $0x26] sm:$0xf]
      %v627 = vld [vmem:[%s545 + $0x36] sm:$0xf]
      %v628 = vperm.slane %v175, 6
      %v629 = vmul.f32 %v624, %v628
      %v630 = vmul.f32 %v625, %v628
      %v631 = vmul.f32 %v626, %v628
      %v632 = vmul.f32 %v627, %v628
      %v633 = vadd.f32 %v620, %v629
      %v634 = vadd.f32 %v621, %v630
      %v635 = vadd.f32 %v622, %v631
      %v636 = vadd.f32 %v623, %v632
      %s637 = scalar_lea.vmem %s165, 80
      %v638 = vld [vmem:[%s637] sm:$0xf]
      %v639 = vld [vmem:[%s637 + $0x10] sm:$0xf]
      %v640 = vld [vmem:[%s637 + $0x20] sm:$0xf]
      %v641 = vld [vmem:[%s637 + $0x30] sm:$0xf]
      %v642 = vperm.slane %v176, 0
      %v643 = vmul.f32 %v638, %v642
      %v644 = vmul.f32 %v639, %v642
      %v645 = vmul.f32 %v640, %v642
      %v646 = vmul.f32 %v641, %v642
      %v647 = vadd.f32 %v633, %v643
      %v648 = vadd.f32 %v634, %v644
      %v649 = vadd.f32 %v635, %v645
      %v650 = vadd.f32 %v636, %v646
      %v651 = vld [vmem:[%s637 + $0x1] sm:$0xf]
      %v652 = vld [vmem:[%s637 + $0x11] sm:$0xf]
      %v653 = vld [vmem:[%s637 + $0x21] sm:$0xf]
      %v654 = vld [vmem:[%s637 + $0x31] sm:$0xf]
      %v655 = vperm.slane %v176, 1
      %v656 = vmul.f32 %v651, %v655
      %v657 = vmul.f32 %v652, %v655
      %v658 = vmul.f32 %v653, %v655
      %v659 = vmul.f32 %v654, %v655
      %v660 = vadd.f32 %v647, %v656
      %v661 = vadd.f32 %v648, %v657
      %v662 = vadd.f32 %v649, %v658
      %v663 = vadd.f32 %v650, %v659
      %v664 = vld [vmem:[%s637 + $0x2] sm:$0xf]
      %v665 = vld [vmem:[%s637 + $0x12] sm:$0xf]
      %v666 = vld [vmem:[%s637 + $0x22] sm:$0xf]
      %v667 = vld [vmem:[%s637 + $0x32] sm:$0xf]
      %v668 = vperm.slane %v176, 2
      %v669 = vmul.f32 %v664, %v668
      %v670 = vmul.f32 %v665, %v668
      %v671 = vmul.f32 %v666, %v668
      %v672 = vmul.f32 %v667, %v668
      %v673 = vadd.f32 %v660, %v669
      %v674 = vadd.f32 %v661, %v670
      %v675 = vadd.f32 %v662, %v671
      %v676 = vadd.f32 %v663, %v672
      %v677 = vld [vmem:[%s637 + $0x3] sm:$0xf]
      %v678 = vld [vmem:[%s637 + $0x13] sm:$0xf]
      %v679 = vld [vmem:[%s637 + $0x23] sm:$0xf]
      %v680 = vld [vmem:[%s637 + $0x33] sm:$0xf]
      %v681 = vperm.slane %v176, 3
      %v682 = vmul.f32 %v677, %v681
      %v683 = vmul.f32 %v678, %v681
      %v684 = vmul.f32 %v679, %v681
      %v685 = vmul.f32 %v680, %v681
      %v686 = vadd.f32 %v673, %v682
      %v687 = vadd.f32 %v674, %v683
      %v688 = vadd.f32 %v675, %v684
      %v689 = vadd.f32 %v676, %v685
      %v690 = vld [vmem:[%s637 + $0x4] sm:$0xf]
      %v691 = vld [vmem:[%s637 + $0x14] sm:$0xf]
      %v692 = vld [vmem:[%s637 + $0x24] sm:$0xf]
      %v693 = vld [vmem:[%s637 + $0x34] sm:$0xf]
      %v694 = vperm.slane %v176, 4
      %v695 = vmul.f32 %v690, %v694
      %v696 = vmul.f32 %v691, %v694
      %v697 = vmul.f32 %v692, %v694
      %v698 = vmul.f32 %v693, %v694
      %v699 = vadd.f32 %v686, %v695
      %v700 = vadd.f32 %v687, %v696
      %v701 = vadd.f32 %v688, %v697
      %v702 = vadd.f32 %v689, %v698
      %v703 = vld [vmem:[%s637 + $0x5] sm:$0xf]
      %v704 = vld [vmem:[%s637 + $0x15] sm:$0xf]
      %v705 = vld [vmem:[%s637 + $0x25] sm:$0xf]
      %v706 = vld [vmem:[%s637 + $0x35] sm:$0xf]
      %v707 = vperm.slane %v176, 5
      %v708 = vmul.f32 %v703, %v707
      %v709 = vmul.f32 %v704, %v707
      %v710 = vmul.f32 %v705, %v707
      %v711 = vmul.f32 %v706, %v707
      %v712 = vadd.f32 %v699, %v708
      %v713 = vadd.f32 %v700, %v709
      %v714 = vadd.f32 %v701, %v710
      %v715 = vadd.f32 %v702, %v711
      %v716 = vld [vmem:[%s637 + $0x6] sm:$0xf]
      %v717 = vld [vmem:[%s637 + $0x16] sm:$0xf]
      %v718 = vld [vmem:[%s637 + $0x26] sm:$0xf]
      %v719 = vld [vmem:[%s637 + $0x36] sm:$0xf]
      %v720 = vperm.slane %v176, 6
      %v721 = vmul.f32 %v716, %v720
      %v722 = vmul.f32 %v717, %v720
      %v723 = vmul.f32 %v718, %v720
      %v724 = vmul.f32 %v719, %v720
      %v725 = vadd.f32 %v712, %v721
      %v726 = vadd.f32 %v713, %v722
      %v727 = vadd.f32 %v714, %v723
      %v728 = vadd.f32 %v715, %v724
      %s729 = scalar_lea.vmem %s165, 96
      %v730 = vld [vmem:[%s729] sm:$0xf]
      %v731 = vld [vmem:[%s729 + $0x10] sm:$0xf]
      %v732 = vld [vmem:[%s729 + $0x20] sm:$0xf]
      %v733 = vld [vmem:[%s729 + $0x30] sm:$0xf]
      %v734 = vperm.slane %v177, 0
      %v735 = vmul.f32 %v730, %v734
      %v736 = vmul.f32 %v731, %v734
      %v737 = vmul.f32 %v732, %v734
      %v738 = vmul.f32 %v733, %v734
      %v739 = vadd.f32 %v725, %v735
      %v740 = vadd.f32 %v726, %v736
      %v741 = vadd.f32 %v727, %v737
      %v742 = vadd.f32 %v728, %v738
      %v743 = vld [vmem:[%s729 + $0x1] sm:$0xf]
      %v744 = vld [vmem:[%s729 + $0x11] sm:$0xf]
      %v745 = vld [vmem:[%s729 + $0x21] sm:$0xf]
      %v746 = vld [vmem:[%s729 + $0x31] sm:$0xf]
      %v747 = vperm.slane %v177, 1
      %v748 = vmul.f32 %v743, %v747
      %v749 = vmul.f32 %v744, %v747
      %v750 = vmul.f32 %v745, %v747
      %v751 = vmul.f32 %v746, %v747
      %v752 = vadd.f32 %v739, %v748
      %v753 = vadd.f32 %v740, %v749
      %v754 = vadd.f32 %v741, %v750
      %v755 = vadd.f32 %v742, %v751
      %v756 = vld [vmem:[%s729 + $0x2] sm:$0xf]
      %v757 = vld [vmem:[%s729 + $0x12] sm:$0xf]
      %v758 = vld [vmem:[%s729 + $0x22] sm:$0xf]
      %v759 = vld [vmem:[%s729 + $0x32] sm:$0xf]
      %v760 = vperm.slane %v177, 2
      %v761 = vmul.f32 %v756, %v760
      %v762 = vmul.f32 %v757, %v760
      %v763 = vmul.f32 %v758, %v760
      %v764 = vmul.f32 %v759, %v760
      %v765 = vadd.f32 %v752, %v761
      %v766 = vadd.f32 %v753, %v762
      %v767 = vadd.f32 %v754, %v763
      %v768 = vadd.f32 %v755, %v764
      %v769 = vld [vmem:[%s729 + $0x3] sm:$0xf]
      %v770 = vld [vmem:[%s729 + $0x13] sm:$0xf]
      %v771 = vld [vmem:[%s729 + $0x23] sm:$0xf]
      %v772 = vld [vmem:[%s729 + $0x33] sm:$0xf]
      %v773 = vperm.slane %v177, 3
      %v774 = vmul.f32 %v769, %v773
      %v775 = vmul.f32 %v770, %v773
      %v776 = vmul.f32 %v771, %v773
      %v777 = vmul.f32 %v772, %v773
      %v778 = vadd.f32 %v765, %v774
      %v779 = vadd.f32 %v766, %v775
      %v780 = vadd.f32 %v767, %v776
      %v781 = vadd.f32 %v768, %v777
      %v782 = vld [vmem:[%s729 + $0x4] sm:$0xf]
      %v783 = vld [vmem:[%s729 + $0x14] sm:$0xf]
      %v784 = vld [vmem:[%s729 + $0x24] sm:$0xf]
      %v785 = vld [vmem:[%s729 + $0x34] sm:$0xf]
      %v786 = vperm.slane %v177, 4
      %v787 = vmul.f32 %v782, %v786
      %v788 = vmul.f32 %v783, %v786
      %v789 = vmul.f32 %v784, %v786
      %v790 = vmul.f32 %v785, %v786
      %v791 = vadd.f32 %v778, %v787
      %v792 = vadd.f32 %v779, %v788
      %v793 = vadd.f32 %v780, %v789
      %v794 = vadd.f32 %v781, %v790
      %v795 = vld [vmem:[%s729 + $0x5] sm:$0xf]
      %v796 = vld [vmem:[%s729 + $0x15] sm:$0xf]
      %v797 = vld [vmem:[%s729 + $0x25] sm:$0xf]
      %v798 = vld [vmem:[%s729 + $0x35] sm:$0xf]
      %v799 = vperm.slane %v177, 5
      %v800 = vmul.f32 %v795, %v799
      %v801 = vmul.f32 %v796, %v799
      %v802 = vmul.f32 %v797, %v799
      %v803 = vmul.f32 %v798, %v799
      %v804 = vadd.f32 %v791, %v800
      %v805 = vadd.f32 %v792, %v801
      %v806 = vadd.f32 %v793, %v802
      %v807 = vadd.f32 %v794, %v803
      %v808 = vld [vmem:[%s729 + $0x6] sm:$0xf]
      %v809 = vld [vmem:[%s729 + $0x16] sm:$0xf]
      %v810 = vld [vmem:[%s729 + $0x26] sm:$0xf]
      %v811 = vld [vmem:[%s729 + $0x36] sm:$0xf]
      %v812 = vperm.slane %v177, 6
      %v813 = vmul.f32 %v808, %v812
      %v814 = vmul.f32 %v809, %v812
      %v815 = vmul.f32 %v810, %v812
      %v816 = vmul.f32 %v811, %v812
      %v817 = vadd.f32 %v804, %v813
      %v818 = vadd.f32 %v805, %v814
      %v819 = vadd.f32 %v806, %v815
      %v820 = vadd.f32 %v807, %v816
      %v821 = vld [vmem:[%s2] sm:$0x1]
      %v823 = vperm.slane %v821, 0
      %v825 = vadd.f32 %v817, %v823
      %v826 = vadd.f32 %v818, %v823
      %v827 = vadd.f32 %v819, %v823
      %v828 = vadd.f32 %v820, %v823
      %vm829 = vcmask 519168
      %830 = vst.msk [vmem:[%s170] sm:$0xf] %vm829, %v825
      %831 = vst.msk [vmem:[%s170 + $0x4] sm:$0xf] %vm829, %v826
      %832 = vst.msk [vmem:[%s170 + $0x8] sm:$0xf] %vm829, %v827
      %833 = vst.msk [vmem:[%s170 + $0xc] sm:$0xf] %vm829, %v828
      %p834 = scmp.lt.s32.totalorder %s14, 1
      %s835 = scalar_select %p834, %s14, 1
      %s836 = smul.addr %s835, 4
      %s837 = smul.addr %s836, 4
      %s838 = scalar_lea.vmem %s3, %s837
      // Predicated region
      $region33: #{forward.19} parent=31 // pred_check
        %p839 = pneg %p100
      $region34: #{forward.19} parent=31 // pred_check_branch
        %841 = sbr.rel (%p839) target = $region36
      $region35: #{forward.19} parent=31 // pred_region
        _
      $region36: #{forward.19} parent=31 // pred_fallthru
        _
    $region32: #{forward.19} parent=5 // pred_fallthru
      _
    %p842 = scmp.le.s32.totalorder 2, %s9
    // Predicated region
    $region37: #{forward.19} parent=5 // pred_check
      %p843 = pneg %p842
    $region38: #{forward.19} parent=5 // pred_check_branch
      %845 = sbr.rel (%p843) target = $region40
    $region39: #{forward.19} parent=5 // pred_region
      %s846 = ssub.s32 %s9, 2
      // Predicated region
      $region41: #{forward.19} parent=39 // pred_check
        %p847 = pneg %p106
      $region42: #{forward.19} parent=39 // pred_check_branch
        %849 = sbr.rel (%p847) target = $region44
      $region43: #{forward.19} parent=39 // pred_region
        %p850 = scmp.lt.s32.totalorder %s15, 1
        %s851 = scalar_select %p850, %s15, 1
        %s852 = smul.addr %s851, 4
        %s853 = smul.addr %s852, 4
        %s854 = scalar_lea.vmem %s3, %s853
      $region44: #{forward.19} parent=39 // pred_fallthru
        _
    $region40: #{forward.19} parent=5 // pred_fallthru
      _
  $region6: #{forward.19} parent=0 // loop_footer
    %s13 = sadd.s32 1, %s9
  $region7: #{forward.19} parent=0 // loop_footer_branch
    %8 = sbr.rel target = $region3
  $region8: #{forward.19} parent=0 // loop_exit
    _

// kernel: forward.26
$region0: #{forward.26}
  #allocation0 [shape = 'u32[]', space=smem, size = 0x4, offset = 0x4, fixed_abs, tag = 'smem constant byte address 0x4 - core index']
  #allocation1 [shape = 'u32[72,128]{1,0:T(1,128)}', space=vmem, size = 0x9000, scoped, tag = 'internal scratch']
  %s0 = inlined_call_operand.vmem [shape: f32[32,64], index: 0, kind: input, shape index: {}]
  %s1 = inlined_call_operand.vmem [shape: f32[64,256], index: 1, kind: input, shape index: {}]
  %s2 = inlined_call_operand.vmem [shape: f32[1,256], index: 2, kind: input, shape index: {}]
  %s3 = inlined_call_operand.vmem [shape: f32[1,64], index: 3, kind: input, shape index: {}]
  %s4 = inlined_call_operand.vmem [shape: f32[1,64], index: 4, kind: input, shape index: {}]
  %s5 = inlined_call_operand.vmem [shape: f32[32,256], index: 5, kind: output, shape index: {}]
  %s6 = sld [smem:[#allocation0]]
  $region53: #{forward.26} parent=0
    _
  %s8 = ssub.s32 1, %s6
  %s9 = scalar_select 0, %s8, %s6
  loop: start=0, step=1, limit=4
  $region2: #{forward.26} parent=0 // loop_pre_header
    _
  $region3: #{forward.26} parent=0 // loop_header
    %s11 = sphi 0, %s15
    %p12 = scmp.ge.s32.totalorder %s11, 4
    %s21 = sphi 0, %s23
    %s24 = sphi 0, %s21
    %s25 = sphi 0, %s24
    %s41 = sphi 0, %s25
    %s45 = sphi 0, %s45
    %s47 = sphi 0, %s45
    %s48 = sphi 0, %s47
    %s62 = sphi 0, %s48
    %s66 = sphi 0, %s66
    %s68 = sphi 0, %s66
    %s69 = sphi 0, %s68
    %s83 = sphi 0, %s69
    %s87 = sphi 0, %s87
    %s89 = sphi 0, %s87
    %s90 = sphi 0, %s89
    %s104 = sphi 0, %s90
    %s108 = sphi 0, %s108
    %s110 = sphi 0, %s108
    %s111 = sphi 0, %s110
    %s125 = sphi 0, %s111
    %s131 = sphi 0, %s133
    %s134 = sphi 0, %s131
    %s135 = sphi 0, %s134
    %s151 = sphi 0, %s135
  $region4: #{forward.26} parent=0 // loop_header_branch
    %14 = sbr.rel (%p12) target = $region8
  $region5: #{forward.26} parent=0 // loop_body
    %s16 = ssub.s32 %s11, 1
    %s17 = ssub.s32 %s11, 2
    %s18 = sadd.s32 %s11, 1
    %s19 = ssub.s32 %s11, %s18
    %p20 = scmp.eq.s32.totalorder %s19, 0
    %s22 = sadd.s32 %s21, 1
    %s23 = scalar_select %p20, %s21, %s22
    %p26 = pneg %p20
    %p27 = scmp.eq.s32.totalorder %s11, 1
    %p28 = por %p26, %p27
    %p29 = scmp.ne.s32.totalorder %s21, %s24
    %p30 = scmp.eq.s32.totalorder %s11, 0
    %p31 = por %p29, %p30
    %p32 = scmp.ne.s32.totalorder %s21, %s24
    %p33 = scmp.eq.s32.totalorder %s16, 1
    %p34 = por %p32, %p33
    %p35 = scmp.ne.s32.totalorder %s24, %s25
    %p36 = scmp.eq.s32.totalorder %s16, 0
    %p37 = por %p35, %p36
    %p38 = scmp.ne.s32.totalorder %s24, %s25
    %p39 = scmp.eq.s32.totalorder %s17, 1
    %p40 = por %p38, %p39
    %p42 = scmp.ne.s32.totalorder %s25, %s41
    %p43 = scmp.eq.s32.totalorder %s17, 0
    %p44 = por %p42, %p43
    %s46 = sadd.s32 %s45, 1
    %p49 = scmp.eq.s32.totalorder %s11, 1
    %p50 = scmp.ne.s32.totalorder %s45, %s47
    %p51 = scmp.eq.s32.totalorder %s11, 0
    %p52 = por %p50, %p51
    %p53 = scmp.ne.s32.totalorder %s45, %s47
    %p54 = scmp.eq.s32.totalorder %s16, 1
    %p55 = por %p53, %p54
    %p56 = scmp.ne.s32.totalorder %s47, %s48
    %p57 = scmp.eq.s32.totalorder %s16, 0
    %p58 = por %p56, %p57
    %p59 = scmp.ne.s32.totalorder %s47, %s48
    %p60 = scmp.eq.s32.totalorder %s17, 1
    %p61 = por %p59, %p60
    %p63 = scmp.ne.s32.totalorder %s48, %s62
    %p64 = scmp.eq.s32.totalorder %s17, 0
    %p65 = por %p63, %p64
    %s67 = sadd.s32 %s66, 1
    %p70 = scmp.eq.s32.totalorder %s11, 1
    %p71 = scmp.ne.s32.totalorder %s66, %s68
    %p72 = scmp.eq.s32.totalorder %s11, 0
    %p73 = por %p71, %p72
    %p74 = scmp.ne.s32.totalorder %s66, %s68
    %p75 = scmp.eq.s32.totalorder %s16, 1
    %p76 = por %p74, %p75
    %p77 = scmp.ne.s32.totalorder %s68, %s69
    %p78 = scmp.eq.s32.totalorder %s16, 0
    %p79 = por %p77, %p78
    %p80 = scmp.ne.s32.totalorder %s68, %s69
    %p81 = scmp.eq.s32.totalorder %s17, 1
    %p82 = por %p80, %p81
    %p84 = scmp.ne.s32.totalorder %s69, %s83
    %p85 = scmp.eq.s32.totalorder %s17, 0
    %p86 = por %p84, %p85
    %s88 = sadd.s32 %s87, 1
    %p91 = scmp.eq.s32.totalorder %s11, 1
    %p92 = scmp.ne.s32.totalorder %s87, %s89
    %p93 = scmp.eq.s32.totalorder %s11, 0
    %p94 = por %p92, %p93
    %p95 = scmp.ne.s32.totalorder %s87, %s89
    %p96 = scmp.eq.s32.totalorder %s16, 1
    %p97 = por %p95, %p96
    %p98 = scmp.ne.s32.totalorder %s89, %s90
    %p99 = scmp.eq.s32.totalorder %s16, 0
    %p100 = por %p98, %p99
    %p101 = scmp.ne.s32.totalorder %s89, %s90
    %p102 = scmp.eq.s32.totalorder %s17, 1
    %p103 = por %p101, %p102
    %p105 = scmp.ne.s32.totalorder %s90, %s104
    %p106 = scmp.eq.s32.totalorder %s17, 0
    %p107 = por %p105, %p106
    %s109 = sadd.s32 %s108, 1
    %p112 = scmp.eq.s32.totalorder %s11, 1
    %p113 = scmp.ne.s32.totalorder %s108, %s110
    %p114 = scmp.eq.s32.totalorder %s11, 0
    %p115 = por %p113, %p114
    %p116 = scmp.ne.s32.totalorder %s108, %s110
    %p117 = scmp.eq.s32.totalorder %s16, 1
    %p118 = por %p116, %p117
    %p119 = scmp.ne.s32.totalorder %s110, %s111
    %p120 = scmp.eq.s32.totalorder %s16, 0
    %p121 = por %p119, %p120
    %p122 = scmp.ne.s32.totalorder %s110, %s111
    %p123 = scmp.eq.s32.totalorder %s17, 1
    %p124 = por %p122, %p123
    %p126 = scmp.ne.s32.totalorder %s111, %s125
    %p127 = scmp.eq.s32.totalorder %s17, 0
    %p128 = por %p126, %p127
    %s129 = ssub.s32 %s11, %s18
    %p130 = scmp.eq.s32.totalorder %s129, 0
    %s132 = sadd.s32 %s131, 1
    %s133 = scalar_select %p130, %s131, %s132
    %p136 = pneg %p130
    %p137 = scmp.eq.s32.totalorder %s11, 1
    %p138 = por %p136, %p137
    %p139 = scmp.ne.s32.totalorder %s131, %s134
    %p140 = scmp.eq.s32.totalorder %s11, 0
    %p141 = por %p139, %p140
    %p142 = scmp.ne.s32.totalorder %s131, %s134
    %p143 = scmp.eq.s32.totalorder %s16, 1
    %p144 = por %p142, %p143
    %p145 = scmp.ne.s32.totalorder %s134, %s135
    %p146 = scmp.eq.s32.totalorder %s16, 0
    %p147 = por %p145, %p146
    %p148 = scmp.ne.s32.totalorder %s134, %s135
    %p149 = scmp.eq.s32.totalorder %s17, 1
    %p150 = por %p148, %p149
    %p152 = scmp.ne.s32.totalorder %s135, %s151
    %p153 = scmp.eq.s32.totalorder %s17, 0
    %p154 = por %p152, %p153
    %p155 = scmp.le.s32.totalorder 1, %s11
    %p156 = scmp.lt.s32.totalorder %s11, 3
    %p157 = pnand %p155, %p156
    %p158 = pneg %p157
    // Predicated region
    $region9: #{forward.26} parent=5 // pred_check
      _
    $region10: #{forward.26} parent=5 // pred_check_branch
      %160 = sbr.rel (%p157) target = $region12
    $region11: #{forward.26} parent=5 // pred_region
      %s161 = ssub.s32 %s11, 1
      // Predicated region
      $region13: #{forward.26} parent=11 // pred_check
        %p162 = pneg %p58
      $region14: #{forward.26} parent=11 // pred_check_branch
        %164 = sbr.rel (%p162) target = $region16
      $region15: #{forward.26} parent=11 // pred_region
        _
      $region16: #{forward.26} parent=11 // pred_fallthru
        _
      // Predicated region
      $region17: #{forward.26} parent=11 // pred_check
        %p165 = pneg %p79
      $region18: #{forward.26} parent=11 // pred_check_branch
        %167 = sbr.rel (%p165) target = $region20
      $region19: #{forward.26} parent=11 // pred_region
        _
      $region20: #{forward.26} parent=11 // pred_fallthru
        _
      // Predicated region
      $region21: #{forward.26} parent=11 // pred_check
        %p168 = pneg %p100
      $region22: #{forward.26} parent=11 // pred_check_branch
        %170 = sbr.rel (%p168) target = $region24
      $region23: #{forward.26} parent=11 // pred_region
        _
      $region24: #{forward.26} parent=11 // pred_fallthru
        _
      // Predicated region
      $region25: #{forward.26} parent=11 // pred_check
        %p171 = pneg %p121
      $region26: #{forward.26} parent=11 // pred_check_branch
        %173 = sbr.rel (%p171) target = $region28
      $region27: #{forward.26} parent=11 // pred_region
        _
      $region28: #{forward.26} parent=11 // pred_fallthru
        _
    $region12: #{forward.26} parent=5 // pred_fallthru
      _
    %p174 = scmp.lt.s32.totalorder %s11, 2
    // Predicated region
    $region29: #{forward.26} parent=5 // pred_check
      %p175 = pneg %p174
    $region30: #{forward.26} parent=5 // pred_check_branch
      %177 = sbr.rel (%p175) target = $region32
    $region31: #{forward.26} parent=5 // pred_region
      // Predicated region
      $region33: #{forward.26} parent=31 // pred_check
        %p178 = pneg %p31
      $region34: #{forward.26} parent=31 // pred_check_branch
        %180 = sbr.rel (%p178) target = $region36
      $region35: #{forward.26} parent=31 // pred_region
        %s181 = smul.u32 2, %s11
        %p182 = scmp.lt.s32.totalorder %s181, 3
        %s183 = scalar_select %p182, %s181, 3
        %s184 = smul.addr %s183, 8
        %s185 = scalar_lea.vmem %s0, %s184
        %s186 = smul.u32 2, %s11
      $region36: #{forward.26} parent=31 // pred_fallthru
        _
    $region32: #{forward.26} parent=5 // pred_fallthru
      _
    %p187 = scmp.le.s32.totalorder 1, %s11
    %p188 = scmp.lt.s32.totalorder %s11, 3
    %p189 = pnand %p187, %p188
    %p190 = pneg %p189
    // Predicated region
    $region37: #{forward.26} parent=5 // pred_check
      _
    $region38: #{forward.26} parent=5 // pred_check_branch
      %192 = sbr.rel (%p189) target = $region40
    $region39: #{forward.26} parent=5 // pred_region
      %s193 = ssub.s32 %s11, 1
      %s194 = smul.u32 2, %s16
      %p195 = scmp.lt.s32.totalorder %s194, 3
      %s196 = scalar_select %p195, %s194, 3
      %s197 = smul.addr %s196, 8
      %s198 = scalar_lea.vmem %s0, %s197
      %p199 = pneg %p37
      %p200 = pneg %p34
      %p201 = pneg %p58
      %p202 = pneg %p55
      %p203 = pneg %p79
      %p204 = pneg %p76
      %p205 = pneg %p100
      %p206 = pneg %p97
      %p207 = pneg %p121
      %p208 = pneg %p118
      %p209 = pneg %p147
      %p210 = pneg %p144
      %s211 = smul.u32 2, %s16
      %p212 = scmp.lt.s32.totalorder %s211, 3
      %s213 = scalar_select %p212, %s211, 3
      %s214 = smul.addr %s213, 2
      %s215 = smul.addr %s214, 8
      %s216 = scalar_lea.vmem %s5, %s215
      %s217 = smul.u32 2, %s16
      %p218 = scmp.lt.s32.totalorder %s217, 3
      %s219 = scalar_select %p218, %s217, 3
      %s220 = smul.addr %s219, 8
      %s221 = scalar_lea.vmem %s0, %s220
      %s222 = smul.u32 2, %s16
      %s223 = smul.u32 2, %s16
      %p224 = scmp.lt.s32.totalorder %s223, 3
      %s225 = scalar_select %p224, %s223, 3
      %s226 = smul.addr %s225, 2
      %s227 = smul.addr %s226, 8
      %s228 = scalar_lea.vmem %s5, %s227
      %s229 = smul.u32 2, %s16
      %v231 = vld [vmem:[%s221] sm:$0xff]
      %v232 = vld [vmem:[%s221 + $0x8] sm:$0xff]
      %v233 = vld [vmem:[%s3] sm:$0x1]
      %v234 = vld [vmem:[%s4] sm:$0x1]
      %vm235 = vcmask 523264
      %v236 = vsel %vm235, %v231, 0.0
      %237 = vadd.xlane.f32.xlu0 %v236
      %v238 = vpop.xlane.xlu0 %237
      %v239 = vsel %vm235, %v232, 0.0
      %240 = vadd.xlane.f32.xlu0 %v239
      %v241 = vpop.xlane.xlu0 %240
      %v242 = vrcp.pop 64.0
      %v243 = vmul.f32 64.0, %v242
      %v244 = vsub.f32 1.0, %v243
      %v245 = vmul.f32 %v242, %v244
      %v246 = vadd.f32 %v242, %v245
      %vm247 = vweird.f32 %v242
      %v248 = vsel %vm247, %v242, %v246
      %v249 = vmul.f32 %v238, %v248
      %v250 = vmul.f32 %v241, %v248
      %v251 = vsub.f32 %v231, %v249
      %v252 = vsub.f32 %v232, %v250
      %v253 = vmul.f32 %v251, %v251
      %v254 = vmul.f32 %v252, %v252
      %v255 = vsel %vm235, %v253, 0.0
      %256 = vadd.xlane.f32.xlu0 %v255
      %v257 = vpop.xlane.xlu0 %256
      %v258 = vsel %vm235, %v254, 0.0
      %259 = vadd.xlane.f32.xlu0 %v258
      %v260 = vpop.xlane.xlu0 %259
      %v261 = vmul.f32 %v257, %v248
      %v262 = vmul.f32 %v260, %v248
      %v263 = vadd.f32 %v261, 1e-06
      %v264 = vadd.f32 %v262, 1e-06
      %v265 = vrsqrt.pop %v263
      %v266 = vmul.f32 %v265, %v263
      %v267 = vmul.f32 %v266, %v265
      %v268 = vmul.f32 0.5, %v267
      %v269 = vsub.f32 1.5, %v268
      %v270 = vmul.f32 %v265, %v269
      %vm271 = vweird.f32 %v263
      %vm272 = vweird.f32 %v265
      %vm273 = vmor %vm271, %vm272
      %v274 = vsel %vm273, %v265, %v270
      %v275 = vrsqrt.pop %v264
      %v276 = vmul.f32 %v275, %v264
      %v277 = vmul.f32 %v276, %v275
      %v278 = vmul.f32 0.5, %v277
      %v279 = vsub.f32 1.5, %v278
      %v280 = vmul.f32 %v275, %v279
      %vm281 = vweird.f32 %v264
      %vm282 = vweird.f32 %v275
      %vm283 = vmor %vm281, %vm282
      %v284 = vsel %vm283, %v275, %v280
      %v285 = vmul.f32 %v251, %v274
      %v286 = vmul.f32 %v252, %v284
      %v288 = vperm.slane %v233, 0
      %v290 = vmul.f32 %v285, %v288
      %v291 = vmul.f32 %v286, %v288
      %v293 = vperm.slane %v234, 0
      %v295 = vadd.f32 %v290, %v293
      %v296 = vadd.f32 %v291, %v293
      %v297 = vld [vmem:[%s1] sm:$0xff]
      %v298 = vld [vmem:[%s1 + $0x8] sm:$0xff]
      %v299 = vld [vmem:[%s1 + $0x10] sm:$0xff]
      %v300 = vld [vmem:[%s1 + $0x18] sm:$0xff]
      %v301 = vld [vmem:[%s1 + $0x20] sm:$0xff]
      %v302 = vld [vmem:[%s1 + $0x28] sm:$0xff]
      %v303 = vld [vmem:[%s1 + $0x30] sm:$0xff]
      %v304 = vld [vmem:[%s1 + $0x38] sm:$0xff]
      %v305 = vld [vmem:[%s1 + $0x40] sm:$0xff]
      %v306 = vld [vmem:[%s1 + $0x48] sm:$0xff]
      %v307 = vld [vmem:[%s1 + $0x50] sm:$0xff]
      %v308 = vld [vmem:[%s1 + $0x58] sm:$0xff]
      %v309 = vld [vmem:[%s1 + $0x60] sm:$0xff]
      %v310 = vld [vmem:[%s1 + $0x68] sm:$0xff]
      %v311 = vld [vmem:[%s1 + $0x70] sm:$0xff]
      %v312 = vld [vmem:[%s1 + $0x78] sm:$0xff]
      %v313 = vpack.c.bf16 %v296, %v295
      %v314 = vpack.c.bf16 %v299, %v297
      %v315 = vpack.c.bf16 %v300, %v298
      %v316 = vpack.c.bf16 %v303, %v301
      %v317 = vpack.c.bf16 %v304, %v302
      %v318 = vpack.c.bf16 %v307, %v305
      %v319 = vpack.c.bf16 %v308, %v306
      %v320 = vpack.c.bf16 %v311, %v309
      %v321 = vpack.c.bf16 %v312, %v310
      %v322 = vld [vmem:[%s2] sm:$0x3]
      %v324 = vperm.slane %v322, 0
      %v325 = vperm.slane %v322, 1
      %v329 = vsel %vm235, %v313, 0
      %331 = vmatpush.bf16.msra.mxu0 0
      %332 = vmatpush.bf16.msra.mxu0 0
      %333 = vmatpush.bf16.msra.mxu0 0
      %334 = vmatpush.bf16.msra.mxu0 0
      %335 = vmatpush.bf16.msra.mxu0 %v320
      %336 = vmatpush.bf16.msra.mxu0 %v318
      %337 = vmatpush.bf16.msra.mxu0 %v316
      %338 = vmatpush.bf16.msra.mxu0 %v314
      %339 = vmatmul.bf16.gmra.mxu0 %v329
      %v340 = vpop.f32.mrf.mxu0
      %v341 = vadd.f32 %v324, %v340
      %v342 = vpop.f32.mrf.mxu0
      %v343 = vadd.f32 %v324, %v342
      %344 = vdwg.mxu0
      %345 = vmatpush.bf16.msra.mxu0 0
      %346 = vmatpush.bf16.msra.mxu0 0
      %347 = vmatpush.bf16.msra.mxu0 0
      %348 = vmatpush.bf16.msra.mxu0 0
      %349 = vmatpush.bf16.msra.mxu0 %v321
      %350 = vmatpush.bf16.msra.mxu0 %v319
      %351 = vmatpush.bf16.msra.mxu0 %v317
      %352 = vmatpush.bf16.msra.mxu0 %v315
      %353 = vmatmul.bf16.gmra.mxu0 %v329
      %v354 = vpop.f32.mrf.mxu0
      %v355 = vadd.f32 %v325, %v354
      %v356 = vpop.f32.mrf.mxu0
      %v357 = vadd.f32 %v325, %v356
      %358 = vdwg.mxu0
      %359 = vst [vmem:[%s228] sm:$0xff] %v341
      %360 = vst [vmem:[%s228 + $0x8] sm:$0xff] %v355
      %361 = vst [vmem:[%s228 + $0x10] sm:$0xff] %v343
      %362 = vst [vmem:[%s228 + $0x18] sm:$0xff] %v357
      %s363 = smul.u32 2, %s16
      %p364 = scmp.lt.s32.totalorder %s363, 3
      %s365 = scalar_select %p364, %s363, 3
      %s366 = smul.addr %s365, 2
      %s367 = smul.addr %s366, 8
      %s368 = scalar_lea.vmem %s5, %s367
      // Predicated region
      $region41: #{forward.26} parent=39 // pred_check
        %p369 = pneg %p144
      $region42: #{forward.26} parent=39 // pred_check_branch
        %371 = sbr.rel (%p369) target = $region44
      $region43: #{forward.26} parent=39 // pred_region
        %s372 = smul.u32 2, %s16
      $region44: #{forward.26} parent=39 // pred_fallthru
        _
    $region40: #{forward.26} parent=5 // pred_fallthru
      _
    %p373 = scmp.le.s32.totalorder 2, %s11
    // Predicated region
    $region45: #{forward.26} parent=5 // pred_check
      %p374 = pneg %p373
    $region46: #{forward.26} parent=5 // pred_check_branch
      %376 = sbr.rel (%p374) target = $region48
    $region47: #{forward.26} parent=5 // pred_region
      %s377 = ssub.s32 %s11, 2
      // Predicated region
      $region49: #{forward.26} parent=47 // pred_check
        %p378 = pneg %p150
      $region50: #{forward.26} parent=47 // pred_check_branch
        %380 = sbr.rel (%p378) target = $region52
      $region51: #{forward.26} parent=47 // pred_region
        %s381 = smul.u32 2, %s17
        %p382 = scmp.lt.s32.totalorder %s381, 3
        %s383 = scalar_select %p382, %s381, 3
        %s384 = smul.addr %s383, 2
        %s385 = smul.addr %s384, 8
        %s386 = scalar_lea.vmem %s5, %s385
      $region52: #{forward.26} parent=47 // pred_fallthru
        _
    $region48: #{forward.26} parent=5 // pred_fallthru
      _
  $region6: #{forward.26} parent=0 // loop_footer
    %s15 = sadd.s32 1, %s11
  $region7: #{forward.26} parent=0 // loop_footer_branch
    %10 = sbr.rel target = $region3
  $region8: #{forward.26} parent=0 // loop_exit
    _

// kernel: forward.22
$region0: #{forward.22}
  #allocation0 [shape = 'u32[]', space=smem, size = 0x4, offset = 0x4, fixed_abs, tag = 'smem constant byte address 0x4 - core index']
  #allocation1 [shape = 'u32[72,128]{1,0:T(1,128)}', space=vmem, size = 0x9000, scoped, tag = 'internal scratch']
  %s0 = inlined_call_operand.vmem [shape: f32[2,16,64], index: 0, kind: input, shape index: {}]
  %s1 = inlined_call_operand.vmem [shape: f32[1,64], index: 1, kind: input, shape index: {}]
  %s2 = inlined_call_operand.vmem [shape: f32[1,64], index: 2, kind: input, shape index: {}]
  %s3 = inlined_call_operand.vmem [shape: f32[64,64], index: 3, kind: input, shape index: {}]
  %s4 = inlined_call_operand.vmem [shape: f32[1,64], index: 4, kind: input, shape index: {}]
  %s5 = inlined_call_operand.vmem [shape: f32[64,64], index: 5, kind: input, shape index: {}]
  %s6 = inlined_call_operand.vmem [shape: f32[1,64], index: 6, kind: input, shape index: {}]
  %s7 = inlined_call_operand.vmem [shape: f32[64,64], index: 7, kind: input, shape index: {}]
  %s8 = inlined_call_operand.vmem [shape: f32[1,64], index: 8, kind: input, shape index: {}]
  %s9 = inlined_call_operand.vmem [shape: f32[64,64], index: 9, kind: input, shape index: {}]
  %s10 = inlined_call_operand.vmem [shape: f32[1,64], index: 10, kind: input, shape index: {}]
  %s11 = inlined_call_operand.vmem [shape: f32[2,16,64], index: 11, kind: output, shape index: {}]
  %s12 = sld [smem:[#allocation0]]
  $region77: #{forward.22} parent=0
    _
  %s14 = ssub.s32 1, %s12
  %s15 = scalar_select 0, %s14, %s12
  loop: start=0, step=1, limit=4
  $region2: #{forward.22} parent=0 // loop_pre_header
    _
  $region3: #{forward.22} parent=0 // loop_header
    %s17 = sphi 0, %s21
    %p18 = scmp.ge.s32.totalorder %s17, 4
    %s27 = sphi 0, %s29
    %s30 = sphi 0, %s27
    %s31 = sphi 0, %s30
    %s47 = sphi 0, %s31
    %s51 = sphi 0, %s51
    %s53 = sphi 0, %s51
    %s54 = sphi 0, %s53
    %s68 = sphi 0, %s54
    %s72 = sphi 0, %s72
    %s74 = sphi 0, %s72
    %s75 = sphi 0, %s74
    %s89 = sphi 0, %s75
    %s93 = sphi 0, %s93
    %s95 = sphi 0, %s93
    %s96 = sphi 0, %s95
    %s110 = sphi 0, %s96
    %s114 = sphi 0, %s114
    %s116 = sphi 0, %s114
    %s117 = sphi 0, %s116
    %s131 = sphi 0, %s117
    %s135 = sphi 0, %s135
    %s137 = sphi 0, %s135
    %s138 = sphi 0, %s137
    %s152 = sphi 0, %s138
    %s156 = sphi 0, %s156
    %s158 = sphi 0, %s156
    %s159 = sphi 0, %s158
    %s173 = sphi 0, %s159
    %s177 = sphi 0, %s177
    %s179 = sphi 0, %s177
    %s180 = sphi 0, %s179
    %s194 = sphi 0, %s180
    %s198 = sphi 0, %s198
    %s200 = sphi 0, %s198
    %s201 = sphi 0, %s200
    %s215 = sphi 0, %s201
    %s219 = sphi 0, %s219
    %s221 = sphi 0, %s219
    %s222 = sphi 0, %s221
    %s236 = sphi 0, %s222
    %s240 = sphi 0, %s240
    %s242 = sphi 0, %s240
    %s243 = sphi 0, %s242
    %s257 = sphi 0, %s243
    %s263 = sphi 0, %s265
    %s266 = sphi 0, %s263
    %s267 = sphi 0, %s266
    %s283 = sphi 0, %s267
  $region4: #{forward.22} parent=0 // loop_header_branch
    %20 = sbr.rel (%p18) target = $region8
  $region5: #{forward.22} parent=0 // loop_body
    %s22 = ssub.s32 %s17, 1
    %s23 = ssub.s32 %s17, 2
    %s24 = sadd.s32 %s17, 1
    %s25 = ssub.s32 %s17, %s24
    %p26 = scmp.eq.s32.totalorder %s25, 0
    %s28 = sadd.s32 %s27, 1
    %s29 = scalar_select %p26, %s27, %s28
    %p32 = pneg %p26
    %p33 = scmp.eq.s32.totalorder %s17, 1
    %p34 = por %p32, %p33
    %p35 = scmp.ne.s32.totalorder %s27, %s30
    %p36 = scmp.eq.s32.totalorder %s17, 0
    %p37 = por %p35, %p36
    %p38 = scmp.ne.s32.totalorder %s27, %s30
    %p39 = scmp.eq.s32.totalorder %s22, 1
    %p40 = por %p38, %p39
    %p41 = scmp.ne.s32.totalorder %s30, %s31
    %p42 = scmp.eq.s32.totalorder %s22, 0
    %p43 = por %p41, %p42
    %p44 = scmp.ne.s32.totalorder %s30, %s31
    %p45 = scmp.eq.s32.totalorder %s23, 1
    %p46 = por %p44, %p45
    %p48 = scmp.ne.s32.totalorder %s31, %s47
    %p49 = scmp.eq.s32.totalorder %s23, 0
    %p50 = por %p48, %p49
    %s52 = sadd.s32 %s51, 1
    %p55 = scmp.eq.s32.totalorder %s17, 1
    %p56 = scmp.ne.s32.totalorder %s51, %s53
    %p57 = scmp.eq.s32.totalorder %s17, 0
    %p58 = por %p56, %p57
    %p59 = scmp.ne.s32.totalorder %s51, %s53
    %p60 = scmp.eq.s32.totalorder %s22, 1
    %p61 = por %p59, %p60
    %p62 = scmp.ne.s32.totalorder %s53, %s54
    %p63 = scmp.eq.s32.totalorder %s22, 0
    %p64 = por %p62, %p63
    %p65 = scmp.ne.s32.totalorder %s53, %s54
    %p66 = scmp.eq.s32.totalorder %s23, 1
    %p67 = por %p65, %p66
    %p69 = scmp.ne.s32.totalorder %s54, %s68
    %p70 = scmp.eq.s32.totalorder %s23, 0
    %p71 = por %p69, %p70
    %s73 = sadd.s32 %s72, 1
    %p76 = scmp.eq.s32.totalorder %s17, 1
    %p77 = scmp.ne.s32.totalorder %s72, %s74
    %p78 = scmp.eq.s32.totalorder %s17, 0
    %p79 = por %p77, %p78
    %p80 = scmp.ne.s32.totalorder %s72, %s74
    %p81 = scmp.eq.s32.totalorder %s22, 1
    %p82 = por %p80, %p81
    %p83 = scmp.ne.s32.totalorder %s74, %s75
    %p84 = scmp.eq.s32.totalorder %s22, 0
    %p85 = por %p83, %p84
    %p86 = scmp.ne.s32.totalorder %s74, %s75
    %p87 = scmp.eq.s32.totalorder %s23, 1
    %p88 = por %p86, %p87
    %p90 = scmp.ne.s32.totalorder %s75, %s89
    %p91 = scmp.eq.s32.totalorder %s23, 0
    %p92 = por %p90, %p91
    %s94 = sadd.s32 %s93, 1
    %p97 = scmp.eq.s32.totalorder %s17, 1
    %p98 = scmp.ne.s32.totalorder %s93, %s95
    %p99 = scmp.eq.s32.totalorder %s17, 0
    %p100 = por %p98, %p99
    %p101 = scmp.ne.s32.totalorder %s93, %s95
    %p102 = scmp.eq.s32.totalorder %s22, 1
    %p103 = por %p101, %p102
    %p104 = scmp.ne.s32.totalorder %s95, %s96
    %p105 = scmp.eq.s32.totalorder %s22, 0
    %p106 = por %p104, %p105
    %p107 = scmp.ne.s32.totalorder %s95, %s96
    %p108 = scmp.eq.s32.totalorder %s23, 1
    %p109 = por %p107, %p108
    %p111 = scmp.ne.s32.totalorder %s96, %s110
    %p112 = scmp.eq.s32.totalorder %s23, 0
    %p113 = por %p111, %p112
    %s115 = sadd.s32 %s114, 1
    %p118 = scmp.eq.s32.totalorder %s17, 1
    %p119 = scmp.ne.s32.totalorder %s114, %s116
    %p120 = scmp.eq.s32.totalorder %s17, 0
    %p121 = por %p119, %p120
    %p122 = scmp.ne.s32.totalorder %s114, %s116
    %p123 = scmp.eq.s32.totalorder %s22, 1
    %p124 = por %p122, %p123
    %p125 = scmp.ne.s32.totalorder %s116, %s117
    %p126 = scmp.eq.s32.totalorder %s22, 0
    %p127 = por %p125, %p126
    %p128 = scmp.ne.s32.totalorder %s116, %s117
    %p129 = scmp.eq.s32.totalorder %s23, 1
    %p130 = por %p128, %p129
    %p132 = scmp.ne.s32.totalorder %s117, %s131
    %p133 = scmp.eq.s32.totalorder %s23, 0
    %p134 = por %p132, %p133
    %s136 = sadd.s32 %s135, 1
    %p139 = scmp.eq.s32.totalorder %s17, 1
    %p140 = scmp.ne.s32.totalorder %s135, %s137
    %p141 = scmp.eq.s32.totalorder %s17, 0
    %p142 = por %p140, %p141
    %p143 = scmp.ne.s32.totalorder %s135, %s137
    %p144 = scmp.eq.s32.totalorder %s22, 1
    %p145 = por %p143, %p144
    %p146 = scmp.ne.s32.totalorder %s137, %s138
    %p147 = scmp.eq.s32.totalorder %s22, 0
    %p148 = por %p146, %p147
    %p149 = scmp.ne.s32.totalorder %s137, %s138
    %p150 = scmp.eq.s32.totalorder %s23, 1
    %p151 = por %p149, %p150
    %p153 = scmp.ne.s32.totalorder %s138, %s152
    %p154 = scmp.eq.s32.totalorder %s23, 0
    %p155 = por %p153, %p154
    %s157 = sadd.s32 %s156, 1
    %p160 = scmp.eq.s32.totalorder %s17, 1
    %p161 = scmp.ne.s32.totalorder %s156, %s158
    %p162 = scmp.eq.s32.totalorder %s17, 0
    %p163 = por %p161, %p162
    %p164 = scmp.ne.s32.totalorder %s156, %s158
    %p165 = scmp.eq.s32.totalorder %s22, 1
    %p166 = por %p164, %p165
    %p167 = scmp.ne.s32.totalorder %s158, %s159
    %p168 = scmp.eq.s32.totalorder %s22, 0
    %p169 = por %p167, %p168
    %p170 = scmp.ne.s32.totalorder %s158, %s159
    %p171 = scmp.eq.s32.totalorder %s23, 1
    %p172 = por %p170, %p171
    %p174 = scmp.ne.s32.totalorder %s159, %s173
    %p175 = scmp.eq.s32.totalorder %s23, 0
    %p176 = por %p174, %p175
    %s178 = sadd.s32 %s177, 1
    %p181 = scmp.eq.s32.totalorder %s17, 1
    %p182 = scmp.ne.s32.totalorder %s177, %s179
    %p183 = scmp.eq.s32.totalorder %s17, 0
    %p184 = por %p182, %p183
    %p185 = scmp.ne.s32.totalorder %s177, %s179
    %p186 = scmp.eq.s32.totalorder %s22, 1
    %p187 = por %p185, %p186
    %p188 = scmp.ne.s32.totalorder %s179, %s180
    %p189 = scmp.eq.s32.totalorder %s22, 0
    %p190 = por %p188, %p189
    %p191 = scmp.ne.s32.totalorder %s179, %s180
    %p192 = scmp.eq.s32.totalorder %s23, 1
    %p193 = por %p191, %p192
    %p195 = scmp.ne.s32.totalorder %s180, %s194
    %p196 = scmp.eq.s32.totalorder %s23, 0
    %p197 = por %p195, %p196
    %s199 = sadd.s32 %s198, 1
    %p202 = scmp.eq.s32.totalorder %s17, 1
    %p203 = scmp.ne.s32.totalorder %s198, %s200
    %p204 = scmp.eq.s32.totalorder %s17, 0
    %p205 = por %p203, %p204
    %p206 = scmp.ne.s32.totalorder %s198, %s200
    %p207 = scmp.eq.s32.totalorder %s22, 1
    %p208 = por %p206, %p207
    %p209 = scmp.ne.s32.totalorder %s200, %s201
    %p210 = scmp.eq.s32.totalorder %s22, 0
    %p211 = por %p209, %p210
    %p212 = scmp.ne.s32.totalorder %s200, %s201
    %p213 = scmp.eq.s32.totalorder %s23, 1
    %p214 = por %p212, %p213
    %p216 = scmp.ne.s32.totalorder %s201, %s215
    %p217 = scmp.eq.s32.totalorder %s23, 0
    %p218 = por %p216, %p217
    %s220 = sadd.s32 %s219, 1
    %p223 = scmp.eq.s32.totalorder %s17, 1
    %p224 = scmp.ne.s32.totalorder %s219, %s221
    %p225 = scmp.eq.s32.totalorder %s17, 0
    %p226 = por %p224, %p225
    %p227 = scmp.ne.s32.totalorder %s219, %s221
    %p228 = scmp.eq.s32.totalorder %s22, 1
    %p229 = por %p227, %p228
    %p230 = scmp.ne.s32.totalorder %s221, %s222
    %p231 = scmp.eq.s32.totalorder %s22, 0
    %p232 = por %p230, %p231
    %p233 = scmp.ne.s32.totalorder %s221, %s222
    %p234 = scmp.eq.s32.totalorder %s23, 1
    %p235 = por %p233, %p234
    %p237 = scmp.ne.s32.totalorder %s222, %s236
    %p238 = scmp.eq.s32.totalorder %s23, 0
    %p239 = por %p237, %p238
    %s241 = sadd.s32 %s240, 1
    %p244 = scmp.eq.s32.totalorder %s17, 1
    %p245 = scmp.ne.s32.totalorder %s240, %s242
    %p246 = scmp.eq.s32.totalorder %s17, 0
    %p247 = por %p245, %p246
    %p248 = scmp.ne.s32.totalorder %s240, %s242
    %p249 = scmp.eq.s32.totalorder %s22, 1
    %p250 = por %p248, %p249
    %p251 = scmp.ne.s32.totalorder %s242, %s243
    %p252 = scmp.eq.s32.totalorder %s22, 0
    %p253 = por %p251, %p252
    %p254 = scmp.ne.s32.totalorder %s242, %s243
    %p255 = scmp.eq.s32.totalorder %s23, 1
    %p256 = por %p254, %p255
    %p258 = scmp.ne.s32.totalorder %s243, %s257
    %p259 = scmp.eq.s32.totalorder %s23, 0
    %p260 = por %p258, %p259
    %s261 = ssub.s32 %s17, %s24
    %p262 = scmp.eq.s32.totalorder %s261, 0
    %s264 = sadd.s32 %s263, 1
    %s265 = scalar_select %p262, %s263, %s264
    %p268 = pneg %p262
    %p269 = scmp.eq.s32.totalorder %s17, 1
    %p270 = por %p268, %p269
    %p271 = scmp.ne.s32.totalorder %s263, %s266
    %p272 = scmp.eq.s32.totalorder %s17, 0
    %p273 = por %p271, %p272
    %p274 = scmp.ne.s32.totalorder %s263, %s266
    %p275 = scmp.eq.s32.totalorder %s22, 1
    %p276 = por %p274, %p275
    %p277 = scmp.ne.s32.totalorder %s266, %s267
    %p278 = scmp.eq.s32.totalorder %s22, 0
    %p279 = por %p277, %p278
    %p280 = scmp.ne.s32.totalorder %s266, %s267
    %p281 = scmp.eq.s32.totalorder %s23, 1
    %p282 = por %p280, %p281
    %p284 = scmp.ne.s32.totalorder %s267, %s283
    %p285 = scmp.eq.s32.totalorder %s23, 0
    %p286 = por %p284, %p285
    %p287 = scmp.le.s32.totalorder 1, %s17
    %p288 = scmp.lt.s32.totalorder %s17, 3
    %p289 = pnand %p287, %p288
    %p290 = pneg %p289
    // Predicated region
    $region9: #{forward.22} parent=5 // pred_check
      _
    $region10: #{forward.22} parent=5 // pred_check_branch
      %292 = sbr.rel (%p289) target = $region12
    $region11: #{forward.22} parent=5 // pred_region
      %s293 = ssub.s32 %s17, 1
      // Predicated region
      $region13: #{forward.22} parent=11 // pred_check
        %p294 = pneg %p64
      $region14: #{forward.22} parent=11 // pred_check_branch
        %296 = sbr.rel (%p294) target = $region16
      $region15: #{forward.22} parent=11 // pred_region
        _
      $region16: #{forward.22} parent=11 // pred_fallthru
        _
      // Predicated region
      $region17: #{forward.22} parent=11 // pred_check
        %p297 = pneg %p85
      $region18: #{forward.22} parent=11 // pred_check_branch
        %299 = sbr.rel (%p297) target = $region20
      $region19: #{forward.22} parent=11 // pred_region
        _
      $region20: #{forward.22} parent=11 // pred_fallthru
        _
      // Predicated region
      $region21: #{forward.22} parent=11 // pred_check
        %p300 = pneg %p106
      $region22: #{forward.22} parent=11 // pred_check_branch
        %302 = sbr.rel (%p300) target = $region24
      $region23: #{forward.22} parent=11 // pred_region
        _
      $region24: #{forward.22} parent=11 // pred_fallthru
        _
      // Predicated region
      $region25: #{forward.22} parent=11 // pred_check
        %p303 = pneg %p127
      $region26: #{forward.22} parent=11 // pred_check_branch
        %305 = sbr.rel (%p303) target = $region28
      $region27: #{forward.22} parent=11 // pred_region
        _
      $region28: #{forward.22} parent=11 // pred_fallthru
        _
      // Predicated region
      $region29: #{forward.22} parent=11 // pred_check
        %p306 = pneg %p148
      $region30: #{forward.22} parent=11 // pred_check_branch
        %308 = sbr.rel (%p306) target = $region32
      $region31: #{forward.22} parent=11 // pred_region
        _
      $region32: #{forward.22} parent=11 // pred_fallthru
        _
      // Predicated region
      $region33: #{forward.22} parent=11 // pred_check
        %p309 = pneg %p169
      $region34: #{forward.22} parent=11 // pred_check_branch
        %311 = sbr.rel (%p309) target = $region36
      $region35: #{forward.22} parent=11 // pred_region
        _
      $region36: #{forward.22} parent=11 // pred_fallthru
        _
      // Predicated region
      $region37: #{forward.22} parent=11 // pred_check
        %p312 = pneg %p190
      $region38: #{forward.22} parent=11 // pred_check_branch
        %314 = sbr.rel (%p312) target = $region40
      $region39: #{forward.22} parent=11 // pred_region
        _
      $region40: #{forward.22} parent=11 // pred_fallthru
        _
      // Predicated region
      $region41: #{forward.22} parent=11 // pred_check
        %p315 = pneg %p211
      $region42: #{forward.22} parent=11 // pred_check_branch
        %317 = sbr.rel (%p315) target = $region44
      $region43: #{forward.22} parent=11 // pred_region
        _
      $region44: #{forward.22} parent=11 // pred_fallthru
        _
      // Predicated region
      $region45: #{forward.22} parent=11 // pred_check
        %p318 = pneg %p232
      $region46: #{forward.22} parent=11 // pred_check_branch
        %320 = sbr.rel (%p318) target = $region48
      $region47: #{forward.22} parent=11 // pred_region
        _
      $region48: #{forward.22} parent=11 // pred_fallthru
        _
      // Predicated region
      $region49: #{forward.22} parent=11 // pred_check
        %p321 = pneg %p253
      $region50: #{forward.22} parent=11 // pred_check_branch
        %323 = sbr.rel (%p321) target = $region52
      $region51: #{forward.22} parent=11 // pred_region
        _
      $region52: #{forward.22} parent=11 // pred_fallthru
        _
    $region12: #{forward.22} parent=5 // pred_fallthru
      _
    %p324 = scmp.lt.s32.totalorder %s17, 2
    // Predicated region
    $region53: #{forward.22} parent=5 // pred_check
      %p325 = pneg %p324
    $region54: #{forward.22} parent=5 // pred_check_branch
      %327 = sbr.rel (%p325) target = $region56
    $region55: #{forward.22} parent=5 // pred_region
      // Predicated region
      $region57: #{forward.22} parent=55 // pred_check
        %p328 = pneg %p37
      $region58: #{forward.22} parent=55 // pred_check_branch
        %330 = sbr.rel (%p328) target = $region60
      $region59: #{forward.22} parent=55 // pred_region
        %p331 = scmp.lt.s32.totalorder %s17, 1
        %s332 = scalar_select %p331, %s17, 1
        %s333 = smul.addr %s332, 2
        %s334 = smul.addr %s333, 8
        %s335 = scalar_lea.vmem %s0, %s334
      $region60: #{forward.22} parent=55 // pred_fallthru
        _
    $region56: #{forward.22} parent=5 // pred_fallthru
      _
    %p336 = scmp.le.s32.totalorder 1, %s17
    %p337 = scmp.lt.s32.totalorder %s17, 3
    %p338 = pnand %p336, %p337
    %p339 = pneg %p338
    // Predicated region
    $region61: #{forward.22} parent=5 // pred_check
      _
    $region62: #{forward.22} parent=5 // pred_check_branch
      %341 = sbr.rel (%p338) target = $region64
    $region63: #{forward.22} parent=5 // pred_region
      %s342 = ssub.s32 %s17, 1
      %p343 = scmp.lt.s32.totalorder %s22, 1
      %s344 = scalar_select %p343, %s22, 1
      %s345 = smul.addr %s344, 2
      %s346 = smul.addr %s345, 8
      %s347 = scalar_lea.vmem %s0, %s346
      %p348 = pneg %p43
      %p349 = pneg %p40
      %p350 = pneg %p64
      %p351 = pneg %p61
      %p352 = pneg %p85
      %p353 = pneg %p82
      %p354 = pneg %p106
      %p355 = pneg %p103
      %p356 = pneg %p127
      %p357 = pneg %p124
      %p358 = pneg %p148
      %p359 = pneg %p145
      %p360 = pneg %p169
      %p361 = pneg %p166
      %p362 = pneg %p190
      %p363 = pneg %p187
      %p364 = pneg %p211
      %p365 = pneg %p208
      %p366 = pneg %p232
      %p367 = pneg %p229
      %p368 = pneg %p253
      %p369 = pneg %p250
      %p370 = pneg %p279
      %p371 = pneg %p276
      %p372 = scmp.lt.s32.totalorder %s22, 1
      %s373 = scalar_select %p372, %s22, 1
      %s374 = smul.addr %s373, 2
      %s375 = smul.addr %s374, 8
      %s376 = scalar_lea.vmem %s11, %s375
      %p377 = scmp.lt.s32.totalorder %s22, 1
      %s378 = scalar_select %p377, %s22, 1
      %s379 = smul.addr %s378, 2
      %s380 = smul.addr %s379, 8
      %s381 = scalar_lea.vmem %s0, %s380
      %p382 = scmp.lt.s32.totalorder %s22, 1
      %s383 = scalar_select %p382, %s22, 1
      %s384 = smul.addr %s383, 2
      %s385 = smul.addr %s384, 8
      %s386 = scalar_lea.vmem %s11, %s385
      %v388 = vld [vmem:[%s381] sm:$0xff]
      %v389 = vld [vmem:[%s381 + $0x8] sm:$0xff]
      %v390 = vld [vmem:[%s1] sm:$0x1]
      %v391 = vld [vmem:[%s2] sm:$0x1]
      %vm392 = vcmask 523264
      %v393 = vsel %vm392, %v388, 0.0
      %394 = vadd.xlane.f32.xlu0 %v393
      %v395 = vpop.xlane.xlu0 %394
      %v396 = vsel %vm392, %v389, 0.0
      %397 = vadd.xlane.f32.xlu0 %v396
      %v398 = vpop.xlane.xlu0 %397
      %v399 = vrcp.pop 64.0
      %v400 = vmul.f32 64.0, %v399
      %v401 = vsub.f32 1.0, %v400
      %v402 = vmul.f32 %v399, %v401
      %v403 = vadd.f32 %v399, %v402
      %vm404 = vweird.f32 %v399
      %v405 = vsel %vm404, %v399, %v403
      %v406 = vmul.f32 %v395, %v405
      %v407 = vmul.f32 %v398, %v405
      %v408 = vsub.f32 %v388, %v406
      %v409 = vsub.f32 %v389, %v407
      %v410 = vmul.f32 %v408, %v408
      %v411 = vmul.f32 %v409, %v409
      %v412 = vsel %vm392, %v410, 0.0
      %413 = vadd.xlane.f32.xlu0 %v412
      %v414 = vpop.xlane.xlu0 %413
      %v415 = vsel %vm392, %v411, 0.0
      %416 = vadd.xlane.f32.xlu0 %v415
      %v417 = vpop.xlane.xlu0 %416
      %v418 = vmul.f32 %v414, %v405
      %v419 = vmul.f32 %v417, %v405
      %v420 = vadd.f32 %v418, 1e-06
      %v421 = vadd.f32 %v419, 1e-06
      %v422 = vrsqrt.pop %v420
      %v423 = vmul.f32 %v422, %v420
      %v424 = vmul.f32 %v423, %v422
      %v425 = vmul.f32 0.5, %v424
      %v426 = vsub.f32 1.5, %v425
      %v427 = vmul.f32 %v422, %v426
      %vm428 = vweird.f32 %v420
      %vm429 = vweird.f32 %v422
      %vm430 = vmor %vm428, %vm429
      %v431 = vsel %vm430, %v422, %v427
      %v432 = vrsqrt.pop %v421
      %v433 = vmul.f32 %v432, %v421
      %v434 = vmul.f32 %v433, %v432
      %v435 = vmul.f32 0.5, %v434
      %v436 = vsub.f32 1.5, %v435
      %v437 = vmul.f32 %v432, %v436
      %vm438 = vweird.f32 %v421
      %vm439 = vweird.f32 %v432
      %vm440 = vmor %vm438, %vm439
      %v441 = vsel %vm440, %v432, %v437
      %v442 = vmul.f32 %v408, %v431
      %v443 = vmul.f32 %v409, %v441
      %v445 = vperm.slane %v390, 0
      %v447 = vmul.f32 %v442, %v445
      %v448 = vmul.f32 %v443, %v445
      %v450 = vperm.slane %v391, 0
      %v452 = vadd.f32 %v447, %v450
      %v453 = vadd.f32 %v448, %v450
      %v454 = vld [vmem:[%s3] sm:$0xff]
      %v455 = vld [vmem:[%s3 + $0x8] sm:$0xff]
      %v456 = vld [vmem:[%s3 + $0x10] sm:$0xff]
      %v457 = vld [vmem:[%s3 + $0x18] sm:$0xff]
      %v458 = vld [vmem:[%s3 + $0x20] sm:$0xff]
      %v459 = vld [vmem:[%s3 + $0x28] sm:$0xff]
      %v460 = vld [vmem:[%s3 + $0x30] sm:$0xff]
      %v461 = vld [vmem:[%s3 + $0x38] sm:$0xff]
      %v462 = vpack.c.bf16 %v453, %v452
      %v463 = vpack.c.bf16 %v455, %v454
      %v464 = vpack.c.bf16 %v457, %v456
      %v465 = vpack.c.bf16 %v459, %v458
      %v466 = vpack.c.bf16 %v461, %v460
      %v467 = vld [vmem:[%s4] sm:$0x1]
      %v469 = vperm.slane %v467, 0
      %v472 = vsel %vm392, %v462, 0
      %474 = vmatpush.bf16.msra.mxu0 0
      %475 = vmatpush.bf16.msra.mxu0 0
      %476 = vmatpush.bf16.msra.mxu0 0
      %477 = vmatpush.bf16.msra.mxu0 0
      %478 = vmatpush.bf16.msra.mxu0 %v466
      %479 = vmatpush.bf16.msra.mxu0 %v465
      %480 = vmatpush.bf16.msra.mxu0 %v464
      %481 = vmatpush.bf16.msra.mxu0 %v463
      %482 = vmatmul.bf16.gmra.mxu0 %v472
      %v483 = vpop.f32.mrf.mxu0
      %v484 = vadd.f32 %v469, %v483
      %v485 = vpop.f32.mrf.mxu0
      %v486 = vadd.f32 %v469, %v485
      %487 = vdwg.mxu0
      %v488 = vld [vmem:[%s5] sm:$0xff]
      %v489 = vld [vmem:[%s5 + $0x8] sm:$0xff]
      %v490 = vld [vmem:[%s5 + $0x10] sm:$0xff]
      %v491 = vld [vmem:[%s5 + $0x18] sm:$0xff]
      %v492 = vld [vmem:[%s5 + $0x20] sm:$0xff]
      %v493 = vld [vmem:[%s5 + $0x28] sm:$0xff]
      %v494 = vld [vmem:[%s5 + $0x30] sm:$0xff]
      %v495 = vld [vmem:[%s5 + $0x38] sm:$0xff]
      %v496 = vpack.c.bf16 %v489, %v488
      %v497 = vpack.c.bf16 %v491, %v490
      %v498 = vpack.c.bf16 %v493, %v492
      %v499 = vpack.c.bf16 %v495, %v494
      %v500 = vld [vmem:[%s6] sm:$0x1]
      %v502 = vperm.slane %v500, 0
      %504 = vmatpush.bf16.msra.mxu0 0
      %505 = vmatpush.bf16.msra.mxu0 0
      %506 = vmatpush.bf16.msra.mxu0 0
      %507 = vmatpush.bf16.msra.mxu0 0
      %508 = vmatpush.bf16.msra.mxu0 %v499
      %509 = vmatpush.bf16.msra.mxu0 %v498
      %510 = vmatpush.bf16.msra.mxu0 %v497
      %511 = vmatpush.bf16.msra.mxu0 %v496
      %512 = vmatmul.bf16.gmra.mxu0 %v472
      %v513 = vpop.f32.mrf.mxu0
      %v514 = vadd.f32 %v502, %v513
      %v515 = vpop.f32.mrf.mxu0
      %v516 = vadd.f32 %v502, %v515
      %517 = vdwg.mxu0
      %v518 = vld [vmem:[%s7] sm:$0xff]
      %v519 = vld [vmem:[%s7 + $0x8] sm:$0xff]
      %v520 = vld [vmem:[%s7 + $0x10] sm:$0xff]
      %v521 = vld [vmem:[%s7 + $0x18] sm:$0xff]
      %v522 = vld [vmem:[%s7 + $0x20] sm:$0xff]
      %v523 = vld [vmem:[%s7 + $0x28] sm:$0xff]
      %v524 = vld [vmem:[%s7 + $0x30] sm:$0xff]
      %v525 = vld [vmem:[%s7 + $0x38] sm:$0xff]
      %v526 = vpack.c.bf16 %v519, %v518
      %v527 = vpack.c.bf16 %v521, %v520
      %v528 = vpack.c.bf16 %v523, %v522
      %v529 = vpack.c.bf16 %v525, %v524
      %v530 = vld [vmem:[%s8] sm:$0x1]
      %v532 = vperm.slane %v530, 0
      %534 = vmatpush.bf16.msra.mxu0 0
      %535 = vmatpush.bf16.msra.mxu0 0
      %536 = vmatpush.bf16.msra.mxu0 0
      %537 = vmatpush.bf16.msra.mxu0 0
      %538 = vmatpush.bf16.msra.mxu0 %v529
      %539 = vmatpush.bf16.msra.mxu0 %v528
      %540 = vmatpush.bf16.msra.mxu0 %v527
      %541 = vmatpush.bf16.msra.mxu0 %v526
      %542 = vmatmul.bf16.gmra.mxu0 %v472
      %v543 = vpop.f32.mrf.mxu0
      %v544 = vadd.f32 %v532, %v543
      %v545 = vpop.f32.mrf.mxu0
      %v546 = vadd.f32 %v532, %v545
      %547 = vdwg.mxu0
      %v548 = vpack.c.bf16 %v486, %v484
      %v549 = vpack.c.bf16 %v516, %v514
      %vm550 = vcmask 261120
      %v552 = vsel %vm550, %v548, 0
      %v555 = vsel %vm550, %v549, 0
      %557 = vmatpush.bf16.xpose.msra.mxu0 0
      %558 = vmatpush.bf16.xpose.msra.mxu0 0
      %559 = vmatpush.bf16.xpose.msra.mxu0 0
      %560 = vmatpush.bf16.xpose.msra.mxu0 0
      %561 = vmatpush.bf16.xpose.msra.mxu0 0
      %562 = vmatpush.bf16.xpose.msra.mxu0 0
      %563 = vmatpush.bf16.xpose.msra.mxu0 0
      %564 = vmatpush.bf16.xpose.msra.mxu0 %v555
      %565 = vmatmul.bf16.gmra.mxu0 %v552
      %v566 = vpop.f32.mrf.mxu0
      %v567 = vadd.f32 0.0, %v566
      %v568 = vpop.f32.mrf.mxu0
      %v569 = vadd.f32 0.0, %v568
      %570 = vdwg.mxu0
      %v571 = vmul.f32 %v567, 0.17677669
      %v572 = vmul.f32 %v569, 0.17677669
      %vm573 = vcmask 130048
      %v574 = vsel %vm573, %v571, -inf
      %575 = vmax.xlane.f32.xlu0 %v574
      %v576 = vpop.xlane.xlu0 %575
      %v577 = vsel %vm573, %v572, -inf
      %578 = vmax.xlane.f32.xlu0 %v577
      %v579 = vpop.xlane.xlu0 %578
      %v580 = vsub.f32 %v571, %v576
      %v581 = vsub.f32 %v572, %v579
      %v582 = vmul.f32 %v580, 1.442695
      %v583 = vpow.pop %v582
      %v584 = vmul.f32 %v581, 1.442695
      %v585 = vpow.pop %v584
      %v586 = vsel %vm573, %v583, 0.0
      %587 = vadd.xlane.f32.xlu0 %v586
      %v588 = vpop.xlane.xlu0 %587
      %v589 = vsel %vm573, %v585, 0.0
      %590 = vadd.xlane.f32.xlu0 %v589
      %v591 = vpop.xlane.xlu0 %590
      %v592 = vrcp.pop %v588
      %v593 = vrcp.pop %v591
      %v594 = vmul.f32 %v583, %v592
      %v595 = vmul.f32 %v585, %v593
      %v596 = vpack.c.bf16 %v595, %v594
      %v597 = vpack.c.bf16 %v546, %v544
      %v599 = vsel %vm573, %v596, 0
      %601 = vmatpush.bf16.msra.mxu0 0
      %602 = vmatpush.bf16.msra.mxu0 0
      %603 = vmatpush.bf16.msra.mxu0 0
      %604 = vmatpush.bf16.msra.mxu0 0
      %605 = vmatpush.bf16.msra.mxu0 0
      %606 = vmatpush.bf16.msra.mxu0 0
      %607 = vmatpush.bf16.msra.mxu0 0
      %608 = vmatpush.bf16.msra.mxu0 %v597
      %609 = vmatmul.bf16.gmra.mxu0 %v599
      %v610 = vpop.f32.mrf.mxu0
      %v611 = vadd.f32 0.0, %v610
      %v612 = vpop.f32.mrf.mxu0
      %v613 = vadd.f32 0.0, %v612
      %614 = vdwg.mxu0
      %616 = vrot.lane.b32.xlu0 %v548, 96
      %v617 = vpop.permute.xlu0 %616
      %619 = vrot.lane.b32.xlu0 %v549, 96
      %v620 = vpop.permute.xlu0 %619
      %v622 = vsel %vm550, %v617, 0
      %v625 = vsel %vm550, %v620, 0
      %627 = vmatpush.bf16.xpose.msra.mxu0 0
      %628 = vmatpush.bf16.xpose.msra.mxu0 0
      %629 = vmatpush.bf16.xpose.msra.mxu0 0
      %630 = vmatpush.bf16.xpose.msra.mxu0 0
      %631 = vmatpush.bf16.xpose.msra.mxu0 0
      %632 = vmatpush.bf16.xpose.msra.mxu0 0
      %633 = vmatpush.bf16.xpose.msra.mxu0 0
      %634 = vmatpush.bf16.xpose.msra.mxu0 %v625
      %635 = vmatmul.bf16.gmra.mxu0 %v622
      %v636 = vpop.f32.mrf.mxu0
      %v637 = vadd.f32 0.0, %v636
      %v638 = vpop.f32.mrf.mxu0
      %v639 = vadd.f32 0.0, %v638
      %640 = vdwg.mxu0
      %v641 = vmul.f32 %v637, 0.17677669
      %v642 = vmul.f32 %v639, 0.17677669
      %v643 = vsel %vm573, %v641, -inf
      %644 = vmax.xlane.f32.xlu0 %v643
      %v645 = vpop.xlane.xlu0 %644
      %v646 = vsel %vm573, %v642, -inf
      %647 = vmax.xlane.f32.xlu0 %v646
      %v648 = vpop.xlane.xlu0 %647
      %v649 = vsub.f32 %v641, %v645
      %v650 = vsub.f32 %v642, %v648
      %v651 = vmul.f32 %v649, 1.442695
      %v652 = vpow.pop %v651
      %v653 = vmul.f32 %v650, 1.442695
      %v654 = vpow.pop %v653
      %v655 = vsel %vm573, %v652, 0.0
      %656 = vadd.xlane.f32.xlu0 %v655
      %v657 = vpop.xlane.xlu0 %656
      %v658 = vsel %vm573, %v654, 0.0
      %659 = vadd.xlane.f32.xlu0 %v658
      %v660 = vpop.xlane.xlu0 %659
      %v661 = vrcp.pop %v657
      %v662 = vrcp.pop %v660
      %v663 = vmul.f32 %v652, %v661
      %v664 = vmul.f32 %v654, %v662
      %v665 = vpack.c.bf16 %v664, %v663
      %667 = vrot.lane.b32.xlu0 %v597, 96
      %v668 = vpop.permute.xlu0 %667
      %v671 = vsel %vm573, %v665, 0
      %673 = vmatpush.bf16.msra.mxu0 0
      %674 = vmatpush.bf16.msra.mxu0 0
      %675 = vmatpush.bf16.msra.mxu0 0
      %676 = vmatpush.bf16.msra.mxu0 0
      %677 = vmatpush.bf16.msra.mxu0 0
      %678 = vmatpush.bf16.msra.mxu0 0
      %679 = vmatpush.bf16.msra.mxu0 0
      %680 = vmatpush.bf16.msra.mxu0 %v668
      %681 = vmatmul.bf16.gmra.mxu0 %v671
      %v682 = vpop.f32.mrf.mxu0
      %v683 = vadd.f32 0.0, %v682
      %v684 = vpop.f32.mrf.mxu0
      %v685 = vadd.f32 0.0, %v684
      %686 = vdwg.mxu0
      %689 = vrot.lane.b32.xlu0 %v683, 32
      %v690 = vpop.permute.xlu0 %689
      %691 = vrot.lane.b32.xlu0 %v685, 32
      %v692 = vpop.permute.xlu0 %691
      %v695 = vsel %vm550, %v611, %v690
      %v696 = vsel %vm550, %v613, %v692
      %v697 = vld [vmem:[%s9] sm:$0xff]
      %v698 = vld [vmem:[%s9 + $0x8] sm:$0xff]
      %v699 = vld [vmem:[%s9 + $0x10] sm:$0xff]
      %v700 = vld [vmem:[%s9 + $0x18] sm:$0xff]
      %v701 = vld [vmem:[%s9 + $0x20] sm:$0xff]
      %v702 = vld [vmem:[%s9 + $0x28] sm:$0xff]
      %v703 = vld [vmem:[%s9 + $0x30] sm:$0xff]
      %v704 = vld [vmem:[%s9 + $0x38] sm:$0xff]
      %v705 = vpack.c.bf16 %v696, %v695
      %v706 = vpack.c.bf16 %v698, %v697
      %v707 = vpack.c.bf16 %v700, %v699
      %v708 = vpack.c.bf16 %v702, %v701
      %v709 = vpack.c.bf16 %v704, %v703
      %v710 = vld [vmem:[%s10] sm:$0x1]
      %v712 = vperm.slane %v710, 0
      %v715 = vsel %vm392, %v705, 0
      %717 = vmatpush.bf16.msra.mxu0 0
      %718 = vmatpush.bf16.msra.mxu0 0
      %719 = vmatpush.bf16.msra.mxu0 0
      %720 = vmatpush.bf16.msra.mxu0 0
      %721 = vmatpush.bf16.msra.mxu0 %v709
      %722 = vmatpush.bf16.msra.mxu0 %v708
      %723 = vmatpush.bf16.msra.mxu0 %v707
      %724 = vmatpush.bf16.msra.mxu0 %v706
      %725 = vmatmul.bf16.gmra.mxu0 %v715
      %v726 = vpop.f32.mrf.mxu0
      %v727 = vadd.f32 %v712, %v726
      %v728 = vpop.f32.mrf.mxu0
      %v729 = vadd.f32 %v712, %v728
      %730 = vdwg.mxu0
      %v731 = vadd.f32 %v388, %v727
      %v732 = vadd.f32 %v389, %v729
      %733 = vst.msk [vmem:[%s386] sm:$0xff] %vm392, %v731
      %734 = vst.msk [vmem:[%s386 + $0x8] sm:$0xff] %vm392, %v732
      %p735 = scmp.lt.s32.totalorder %s22, 1
      %s736 = scalar_select %p735, %s22, 1
      %s737 = smul.addr %s736, 2
      %s738 = smul.addr %s737, 8
      %s739 = scalar_lea.vmem %s11, %s738
      // Predicated region
      $region65: #{forward.22} parent=63 // pred_check
        %p740 = pneg %p276
      $region66: #{forward.22} parent=63 // pred_check_branch
        %742 = sbr.rel (%p740) target = $region68
      $region67: #{forward.22} parent=63 // pred_region
        _
      $region68: #{forward.22} parent=63 // pred_fallthru
        _
    $region64: #{forward.22} parent=5 // pred_fallthru
      _
    %p743 = scmp.le.s32.totalorder 2, %s17
    // Predicated region
    $region69: #{forward.22} parent=5 // pred_check
      %p744 = pneg %p743
    $region70: #{forward.22} parent=5 // pred_check_branch
      %746 = sbr.rel (%p744) target = $region72
    $region71: #{forward.22} parent=5 // pred_region
      %s747 = ssub.s32 %s17, 2
      // Predicated region
      $region73: #{forward.22} parent=71 // pred_check
        %p748 = pneg %p282
      $region74: #{forward.22} parent=71 // pred_check_branch
        %750 = sbr.rel (%p748) target = $region76
      $region75: #{forward.22} parent=71 // pred_region
        %p751 = scmp.lt.s32.totalorder %s23, 1
        %s752 = scalar_select %p751, %s23, 1
        %s753 = smul.addr %s752, 2
        %s754 = smul.addr %s753, 8
        %s755 = scalar_lea.vmem %s11, %s754
      $region76: #{forward.22} parent=71 // pred_fallthru
        _
    $region72: #{forward.22} parent=5 // pred_fallthru
      _
  $region6: #{forward.22} parent=0 // loop_footer
    %s21 = sadd.s32 1, %s17
  $region7: #{forward.22} parent=0 // loop_footer_branch
    %16 = sbr.rel target = $region3
  $region8: #{forward.22} parent=0 // loop_exit
    _

// kernel: forward.27
$region0: #{forward.27}
  #allocation0 [shape = 'u32[]', space=smem, size = 0x4, offset = 0x4, fixed_abs, tag = 'smem constant byte address 0x4 - core index']
  #allocation1 [shape = 'u32[72,128]{1,0:T(1,128)}', space=vmem, size = 0x9000, scoped, tag = 'internal scratch']
  %s0 = inlined_call_operand.vmem [shape: f32[32,256], index: 0, kind: input, shape index: {}]
  %s1 = inlined_call_operand.vmem [shape: s32[32,1], index: 1, kind: output, shape index: {}]
  %s2 = sld [smem:[#allocation0]]
  $region37: #{forward.27} parent=0
    _
  %s4 = ssub.s32 1, %s2
  %s5 = scalar_select 0, %s4, %s2
  loop: start=0, step=1, limit=4
  $region2: #{forward.27} parent=0 // loop_pre_header
    _
  $region3: #{forward.27} parent=0 // loop_header
    %s7 = sphi 0, %s11
    %p8 = scmp.ge.s32.totalorder %s7, 4
    %s17 = sphi 0, %s19
    %s20 = sphi 0, %s17
    %s21 = sphi 0, %s20
    %s37 = sphi 0, %s21
    %s43 = sphi 0, %s45
    %s46 = sphi 0, %s43
    %s47 = sphi 0, %s46
    %s63 = sphi 0, %s47
  $region4: #{forward.27} parent=0 // loop_header_branch
    %10 = sbr.rel (%p8) target = $region8
  $region5: #{forward.27} parent=0 // loop_body
    %s12 = ssub.s32 %s7, 1
    %s13 = ssub.s32 %s7, 2
    %s14 = sadd.s32 %s7, 1
    %s15 = ssub.s32 %s7, %s14
    %p16 = scmp.eq.s32.totalorder %s15, 0
    %s18 = sadd.s32 %s17, 1
    %s19 = scalar_select %p16, %s17, %s18
    %p22 = pneg %p16
    %p23 = scmp.eq.s32.totalorder %s7, 1
    %p24 = por %p22, %p23
    %p25 = scmp.ne.s32.totalorder %s17, %s20
    %p26 = scmp.eq.s32.totalorder %s7, 0
    %p27 = por %p25, %p26
    %p28 = scmp.ne.s32.totalorder %s17, %s20
    %p29 = scmp.eq.s32.totalorder %s12, 1
    %p30 = por %p28, %p29
    %p31 = scmp.ne.s32.totalorder %s20, %s21
    %p32 = scmp.eq.s32.totalorder %s12, 0
    %p33 = por %p31, %p32
    %p34 = scmp.ne.s32.totalorder %s20, %s21
    %p35 = scmp.eq.s32.totalorder %s13, 1
    %p36 = por %p34, %p35
    %p38 = scmp.ne.s32.totalorder %s21, %s37
    %p39 = scmp.eq.s32.totalorder %s13, 0
    %p40 = por %p38, %p39
    %s41 = ssub.s32 %s7, %s14
    %p42 = scmp.eq.s32.totalorder %s41, 0
    %s44 = sadd.s32 %s43, 1
    %s45 = scalar_select %p42, %s43, %s44
    %p48 = pneg %p42
    %p49 = scmp.eq.s32.totalorder %s7, 1
    %p50 = por %p48, %p49
    %p51 = scmp.ne.s32.totalorder %s43, %s46
    %p52 = scmp.eq.s32.totalorder %s7, 0
    %p53 = por %p51, %p52
    %p54 = scmp.ne.s32.totalorder %s43, %s46
    %p55 = scmp.eq.s32.totalorder %s12, 1
    %p56 = por %p54, %p55
    %p57 = scmp.ne.s32.totalorder %s46, %s47
    %p58 = scmp.eq.s32.totalorder %s12, 0
    %p59 = por %p57, %p58
    %p60 = scmp.ne.s32.totalorder %s46, %s47
    %p61 = scmp.eq.s32.totalorder %s13, 1
    %p62 = por %p60, %p61
    %p64 = scmp.ne.s32.totalorder %s47, %s63
    %p65 = scmp.eq.s32.totalorder %s13, 0
    %p66 = por %p64, %p65
    %p67 = scmp.le.s32.totalorder 1, %s7
    %p68 = scmp.lt.s32.totalorder %s7, 3
    %p69 = pnand %p67, %p68
    %p70 = pneg %p69
    // Predicated region
    $region9: #{forward.27} parent=5 // pred_check
      _
    $region10: #{forward.27} parent=5 // pred_check_branch
      %72 = sbr.rel (%p69) target = $region12
    $region11: #{forward.27} parent=5 // pred_region
      %s73 = ssub.s32 %s7, 1
    $region12: #{forward.27} parent=5 // pred_fallthru
      _
    %p74 = scmp.lt.s32.totalorder %s7, 2
    // Predicated region
    $region13: #{forward.27} parent=5 // pred_check
      %p75 = pneg %p74
    $region14: #{forward.27} parent=5 // pred_check_branch
      %77 = sbr.rel (%p75) target = $region16
    $region15: #{forward.27} parent=5 // pred_region
      // Predicated region
      $region17: #{forward.27} parent=15 // pred_check
        %p78 = pneg %p27
      $region18: #{forward.27} parent=15 // pred_check_branch
        %80 = sbr.rel (%p78) target = $region20
      $region19: #{forward.27} parent=15 // pred_region
        %s81 = smul.u32 2, %s7
        %p82 = scmp.lt.s32.totalorder %s81, 3
        %s83 = scalar_select %p82, %s81, 3
        %s84 = smul.addr %s83, 2
        %s85 = smul.addr %s84, 8
        %s86 = scalar_lea.vmem %s0, %s85
        %s87 = smul.u32 2, %s7
      $region20: #{forward.27} parent=15 // pred_fallthru
        _
    $region16: #{forward.27} parent=5 // pred_fallthru
      _
    %p88 = scmp.le.s32.totalorder 1, %s7
    %p89 = scmp.lt.s32.totalorder %s7, 3
    %p90 = pnand %p88, %p89
    %p91 = pneg %p90
    // Predicated region
    $region21: #{forward.27} parent=5 // pred_check
      _
    $region22: #{forward.27} parent=5 // pred_check_branch
      %93 = sbr.rel (%p90) target = $region24
    $region23: #{forward.27} parent=5 // pred_region
      %s94 = ssub.s32 %s7, 1
      %s95 = smul.u32 2, %s12
      %p96 = scmp.lt.s32.totalorder %s95, 3
      %s97 = scalar_select %p96, %s95, 3
      %s98 = smul.addr %s97, 2
      %s99 = smul.addr %s98, 8
      %s100 = scalar_lea.vmem %s0, %s99
      %p101 = pneg %p33
      %p102 = pneg %p30
      %p103 = pneg %p59
      %p104 = pneg %p56
      %s105 = smul.u32 2, %s12
      %p106 = scmp.lt.s32.totalorder %s105, 3
      %s107 = scalar_select %p106, %s105, 3
      %s108 = smul.addr %s107, 8
      %s109 = scalar_lea.vmem %s1, %s108
      %s110 = smul.u32 2, %s12
      %p111 = scmp.lt.s32.totalorder %s110, 3
      %s112 = scalar_select %p111, %s110, 3
      %s113 = smul.addr %s112, 2
      %s114 = smul.addr %s113, 8
      %s115 = scalar_lea.vmem %s0, %s114
      %s116 = smul.u32 2, %s12
      %s117 = smul.u32 2, %s12
      %p118 = scmp.lt.s32.totalorder %s117, 3
      %s119 = scalar_select %p118, %s117, 3
      %s120 = smul.addr %s119, 8
      %s121 = scalar_lea.vmem %s1, %s120
      %s122 = smul.u32 2, %s12
      %v123 = vld [vmem:[%s115] sm:$0xff]
      %v124 = vld [vmem:[%s115 + $0x8] sm:$0xff]
      %v125 = vld [vmem:[%s115 + $0x10] sm:$0xff]
      %v126 = vld [vmem:[%s115 + $0x18] sm:$0xff]
      %v127 = vmax.f32 %v123, %v124
      %128 = vmax.xlane.f32.xlu0 %v127
      %v129 = vpop.xlane.xlu0 %128
      %v130 = vmax.f32 %v125, %v126
      %131 = vmax.xlane.f32.xlu0 %v130
      %v132 = vpop.xlane.xlu0 %131
      %v133 = vlaneseq
      %v134 = vand.u32 %v133, 127
      %v135 = vadd.s32 %v134, 128
      %vm136 = vcmp.ge.f32.partialorder %v123, %v129
      %vm137 = vcmp.ge.f32.partialorder %v124, %v129
      %vm138 = vcmp.ge.f32.partialorder %v125, %v132
      %vm139 = vcmp.ge.f32.partialorder %v126, %v132
      %v140 = vsel %vm136, %v134, 256
      %v141 = vsel %vm137, %v135, 256
      %v142 = vsel %vm138, %v134, 256
      %v143 = vsel %vm139, %v135, 256
      %vm144 = vcmp.lt.s32.totalorder %v140, %v141
      %v145 = vsel %vm144, %v140, %v141
      %v146 = vand.u32 %v145, 65535
      %v147 = vshra.s32 %v145, 16
      %v148 = vcvt.s32.f32 %v146
      %v149 = vcvt.s32.f32 %v147
      %150 = vmin.xlane.f32.xlu0 %v149
      %v151 = vpop.xlane.xlu0 %150
      %vm152 = vcmp.eq.f32.partialorder %v149, %v151
      %v153 = vsel %vm152, %v148, inf
      %154 = vmin.xlane.f32.xlu0 %v153
      %v155 = vpop.xlane.xlu0 %154
      %v156 = vcvt.f32.s32 %v155
      %v157 = vcvt.f32.s32 %v151
      %v158 = vshll.u32 %v157, 16
      %v159 = vadd.s32 %v158, %v156
      %vm160 = vcmp.lt.s32.totalorder %v142, %v143
      %v161 = vsel %vm160, %v142, %v143
      %v162 = vand.u32 %v161, 65535
      %v163 = vshra.s32 %v161, 16
      %v164 = vcvt.s32.f32 %v162
      %v165 = vcvt.s32.f32 %v163
      %166 = vmin.xlane.f32.xlu0 %v165
      %v167 = vpop.xlane.xlu0 %166
      %vm168 = vcmp.eq.f32.partialorder %v165, %v167
      %v169 = vsel %vm168, %v164, inf
      %170 = vmin.xlane.f32.xlu0 %v169
      %v171 = vpop.xlane.xlu0 %170
      %v172 = vcvt.f32.s32 %v171
      %v173 = vcvt.f32.s32 %v167
      %v174 = vshll.u32 %v173, 16
      %v175 = vadd.s32 %v174, %v172
      %vm176 = vcmask 7168
      %177 = vst.msk [vmem:[%s121] sm:$0xff] %vm176, %v159
      %178 = vst.msk [vmem:[%s121 + $0x8] sm:$0xff] %vm176, %v175
      %s179 = smul.u32 2, %s12
      %p180 = scmp.lt.s32.totalorder %s179, 3
      %s181 = scalar_select %p180, %s179, 3
      %s182 = smul.addr %s181, 8
      %s183 = scalar_lea.vmem %s1, %s182
      // Predicated region
      $region25: #{forward.27} parent=23 // pred_check
        %p184 = pneg %p56
      $region26: #{forward.27} parent=23 // pred_check_branch
        %186 = sbr.rel (%p184) target = $region28
      $region27: #{forward.27} parent=23 // pred_region
        %s187 = smul.u32 2, %s12
      $region28: #{forward.27} parent=23 // pred_fallthru
        _
    $region24: #{forward.27} parent=5 // pred_fallthru
      _
    %p188 = scmp.le.s32.totalorder 2, %s7
    // Predicated region
    $region29: #{forward.27} parent=5 // pred_check
      %p189 = pneg %p188
    $region30: #{forward.27} parent=5 // pred_check_branch
      %191 = sbr.rel (%p189) target = $region32
    $region31: #{forward.27} parent=5 // pred_region
      %s192 = ssub.s32 %s7, 2
      // Predicated region
      $region33: #{forward.27} parent=31 // pred_check
        %p193 = pneg %p62
      $region34: #{forward.27} parent=31 // pred_check_branch
        %195 = sbr.rel (%p193) target = $region36
      $region35: #{forward.27} parent=31 // pred_region
        %s196 = smul.u32 2, %s13
        %p197 = scmp.lt.s32.totalorder %s196, 3
        %s198 = scalar_select %p197, %s196, 3
        %s199 = smul.addr %s198, 8
        %s200 = scalar_lea.vmem %s1, %s199
      $region36: #{forward.27} parent=31 // pred_fallthru
        _
    $region32: #{forward.27} parent=5 // pred_fallthru
      _
  $region6: #{forward.27} parent=0 // loop_footer
    %s11 = sadd.s32 1, %s7
  $region7: #{forward.27} parent=0 // loop_footer_branch
    %6 = sbr.rel target = $region3
  $region8: #{forward.27} parent=0 // loop_exit
    _

</llo_original>
